<compile_context>
chip_gen: v7x
topology: tpu7x:2x2x1
jax: 0.10.0
libtpu: 0.0.40
codegen_flags: <defaults>
</compile_context>

<pallas_src>
import functools

import jax
import jax.numpy as jnp
from jax.experimental import pallas as pl
from jax.experimental.pallas import tpu as pltpu

EPS = 1e-5
MXU_DTYPE = jnp.bfloat16      # MXU operand dtype (accumulation stays f32).


# ----------------------------------------------------------------------------
# Generation-aware tuning + tiling helpers
# ----------------------------------------------------------------------------
def _tpu_tuning():
    """vmem_limit_bytes ~= 0.75 x physical VMEM (64 MiB v7x / 128 MiB v5e-v6e)
    and a default row-tile target that grows with VMEM."""
    vmem_cap = 128 * 1024 * 1024
    try:
        vmem_cap = int(pltpu.get_tpu_info().vmem_capacity_bytes)
    except Exception:  # older jax / no TPU info available -> conservative default
        pass
    vmem_limit = min(int(vmem_cap * 3 // 4), 100 * 1024 * 1024)
    block_rows = 2048 if vmem_cap >= 96 * 1024 * 1024 else 1024
    return vmem_limit, block_rows


def _compiler_params(dimension_semantics, vmem_limit):
    return pltpu.CompilerParams(dimension_semantics=dimension_semantics,
                                vmem_limit_bytes=int(vmem_limit))


def _pick_block(extent, target, align=16):
    """Largest divisor of `extent` that is <= target and `align`-aligned; falls
    back to smaller alignments (never to a silent full-extent block)."""
    for a in (align, 8, 1):
        t = (min(target, extent) // a) * a
        while t >= a:
            if extent % t == 0:
                return t
            t -= a
    return extent


def _pick_row_tile(n, h, w, target_rows):
    """Row-tile height for the pair kernel: the largest divisor of `h` whose
    th*W row count stays within `target_rows`, preferring 16-aligned row counts
    (bf16 sublane packing) and keeping >= 2 total grid steps so the parallel
    axes can split across v7x's two TensorCores."""
    best, best_aligned = 1, None
    for t in range(1, h + 1):
        if h % t:
            continue
        if t * w > max(target_rows, w):
            continue
        if n * (h // t) < 2 and t > 1:
            continue
        best = t
        if (t * w) % 16 == 0:
            best_aligned = t
    return best_aligned if best_aligned is not None else best


# ----------------------------------------------------------------------------
# Pallas kernels
# ----------------------------------------------------------------------------
def _ffc_pair_kernel(xlp_ref, xgp_ref, h1_ref, fu_ref,
                     w_g2l_ref, w_l2l_ref, w_st2_ref,
                     sl_ref, sg_ref, stl_ref, stg_ref,
                     *, th, wdim, d):
    """Both FFC branch 3x3 convs for one (batch, row-tile) grid step, computed
    directly from reflect-padded NHWC rows as 9 shifted MXU matmuls.

    local : out_l_pre = convg2l(x_l + x_g)                (conv linearity)
    global: out_g_pre = convl2l(x_l) + (h1 + fourier) @ W_st_conv2  (1x1 folded)
    Also emits per-tile per-channel [sum, sum_sq] for the two-pass BatchNorm.
    """
    r = pl.program_id(1)
    row0 = pl.multiple_of(r * th, th)
    cin = xlp_ref.shape[-1]
    rows = th * wdim

    # SpectralTransform.conv2 (1x1) folded into the global-branch accumulator;
    # the (conv1_out + fourier_out) add and its bf16 cast are fused here too.
    hfu = (h1_ref[...] + fu_ref[...]).astype(MXU_DTYPE)
    acc_g = jnp.dot(hfu, w_st2_ref[...], preferred_element_type=jnp.float32)
    acc_l = jnp.zeros_like(acc_g)

    # Padded row window with halo: dynamic slice on the untiled row axis only.
    rl = xlp_ref[pl.ds(row0, th + 2 * d)].astype(jnp.float32)   # [th+2d, Wp, Cin]
    rg = xgp_ref[pl.ds(row0, th + 2 * d)].astype(jnp.float32)
    rs = rl + rg     # convg2l(x_l) + convg2l(x_g) == convg2l(x_l + x_g), f32 add

    for kw in range(3):
        cols = slice(kw * d, kw * d + wdim)
        b_s = rs[:, cols, :].astype(MXU_DTYPE)                  # [th+2d, W, Cin]
        b_l = rl[:, cols, :].astype(MXU_DTYPE)
        for kh in range(3):
            a_s = b_s[kh * d:kh * d + th].reshape(rows, cin)
            a_l = b_l[kh * d:kh * d + th].reshape(rows, cin)
            acc_l += jnp.dot(a_s, w_g2l_ref[kh, kw],
                             preferred_element_type=jnp.float32)
            acc_g += jnp.dot(a_l, w_l2l_ref[kh, kw],
                             preferred_element_type=jnp.float32)

    # Two-pass BatchNorm pass 1: stats from the f32 accumulators (row writes,
    # no in-kernel concatenate).
    stl_ref[0:1, :] = jnp.sum(acc_l, axis=0, keepdims=True)
    stl_ref[1:2, :] = jnp.sum(acc_l * acc_l, axis=0, keepdims=True)
    stg_ref[0:1, :] = jnp.sum(acc_g, axis=0, keepdims=True)
    stg_ref[1:2, :] = jnp.sum(acc_g * acc_g, axis=0, keepdims=True)

    # Pre-BN slabs stored bf16 (written once, read once by the HBM-bound BN pass).
    sl_ref[...] = acc_l.astype(sl_ref.dtype)
    sg_ref[...] = acc_g.astype(sg_ref.dtype)


def _mm_stats_kernel(a_ref, w_ref, s_ref, st_ref):
    """Row-tiled 1x1 conv (a @ w) + per-tile [sum, sum_sq] channel stats."""
    s = jnp.dot(a_ref[...], w_ref[...], preferred_element_type=jnp.float32)
    st_ref[0:1, :] = jnp.sum(s, axis=0, keepdims=True)
    st_ref[1:2, :] = jnp.sum(s * s, axis=0, keepdims=True)
    s_ref[...] = s.astype(s_ref.dtype)


def _bn_relu_kernel(s_ref, scale_ref, shift_ref, o_ref):
    y = jnp.maximum(s_ref[...].astype(jnp.float32) * scale_ref[...] + shift_ref[...], 0.0)
    o_ref[...] = y.astype(o_ref.dtype)


def _bn_relu_res_kernel(s_ref, scale_ref, shift_ref, res_ref, o_ref):
    y = jnp.maximum(s_ref[...].astype(jnp.float32) * scale_ref[...] + shift_ref[...], 0.0)
    o_ref[...] = (res_ref[...] + y).astype(o_ref.dtype)


# ----------------------------------------------------------------------------
# pallas_call wrappers
# ----------------------------------------------------------------------------
def ffc_pair_conv(xl_pad, xg_pad, h1, fu, w_g2l, w_l2l, w_st2, *,
                  dilation, block_rows, vmem_limit):
    n, hp, wp, cin = xl_pad.shape
    d = dilation
    hdim, wdim = hp - 2 * d, wp - 2 * d
    ch = h1.shape[-1]
    cout = w_g2l.shape[-1]
    m = n * hdim * wdim

    th = _pick_row_tile(n, hdim, wdim, block_rows)
    nr = hdim // th
    rows = th * wdim

    slab = jax.ShapeDtypeStruct((m, cout), MXU_DTYPE)
    stats = jax.ShapeDtypeStruct((n * nr, 2, cout), jnp.float32)
    kernel = functools.partial(_ffc_pair_kernel, th=th, wdim=wdim, d=d)
    row_idx = lambda b, r: (b * nr + r, 0)

    return pl.pallas_call(
        kernel,
        out_shape=(slab, slab, stats, stats),
        grid=(n, nr),
        in_specs=[
            # padded images stay block-resident across the row-tile axis
            pl.BlockSpec((None, hp, wp, cin), lambda b, r: (b, 0, 0, 0)),
            pl.BlockSpec((None, hp, wp, cin), lambda b, r: (b, 0, 0, 0)),
            pl.BlockSpec((rows, ch), row_idx),
            pl.BlockSpec((rows, ch), row_idx),
            # weights: constant block index -> DMA'd once for the whole kernel
            pl.BlockSpec((3, 3, cin, cout), lambda b, r: (0, 0, 0, 0)),
            pl.BlockSpec((3, 3, cin, cout), lambda b, r: (0, 0, 0, 0)),
            pl.BlockSpec((ch, cout), lambda b, r: (0, 0)),
        ],
        out_specs=(
            pl.BlockSpec((rows, cout), row_idx),
            pl.BlockSpec((rows, cout), row_idx),
            pl.BlockSpec((None, 2, cout), lambda b, r: (b * nr + r, 0, 0)),
            pl.BlockSpec((None, 2, cout), lambda b, r: (b * nr + r, 0, 0)),
        ),
        compiler_params=_compiler_params(("parallel", "parallel"), vmem_limit),
    )(xl_pad, xg_pad, h1, fu,
      w_g2l.astype(MXU_DTYPE), w_l2l.astype(MXU_DTYPE), w_st2.astype(MXU_DTYPE))


def matmul_stats(a, wmat, *, block_rows, vmem_limit):
    m, k = a.shape
    c = wmat.shape[1]
    tm = _pick_block(m, block_rows, 16)
    gm = m // tm
    return pl.pallas_call(
        _mm_stats_kernel,
        out_shape=(jax.ShapeDtypeStruct((m, c), MXU_DTYPE),
                   jax.ShapeDtypeStruct((gm, 2, c), jnp.float32)),
        grid=(gm,),
        in_specs=[pl.BlockSpec((tm, k), lambda i: (i, 0)),
                  pl.BlockSpec((k, c), lambda i: (0, 0))],
        out_specs=(pl.BlockSpec((tm, c), lambda i: (i, 0)),
                   pl.BlockSpec((None, 2, c), lambda i: (i, 0, 0))),
        compiler_params=_compiler_params(("parallel",), vmem_limit),
    )(a.astype(MXU_DTYPE), wmat.astype(MXU_DTYPE))


def bn_relu(s, scale, shift, *, block_rows, vmem_limit, residual=None,
            out_dtype=jnp.float32):
    """Two-pass BatchNorm pass 2: y = relu(s * scale + shift) [+ residual]."""
    m, c = s.shape
    tm = _pick_block(m, block_rows, 16)
    gm = m // tm
    args = [s, scale, shift]
    in_specs = [pl.BlockSpec((tm, c), lambda i: (i, 0)),
                pl.BlockSpec((1, c), lambda i: (0, 0)),
                pl.BlockSpec((1, c), lambda i: (0, 0))]
    kernel = _bn_relu_kernel
    if residual is not None:
        args.append(residual)
        in_specs.append(pl.BlockSpec((tm, c), lambda i: (i, 0)))
        kernel = _bn_relu_res_kernel
    return pl.pallas_call(
        kernel,
        out_shape=jax.ShapeDtypeStruct((m, c), out_dtype),
        grid=(gm,),
        in_specs=in_specs,
        out_specs=pl.BlockSpec((tm, c), lambda i: (i, 0)),
        compiler_params=_compiler_params(("parallel",), vmem_limit),
    )(*args)


def _stats_to_scale_shift(stats, m):
    """Combine per-tile [sum, sum_sq] into BatchNorm scale/shift (train-mode
    batch statistics, biased variance, weight=1 / bias=0).  Tiny XLA reduction.
    TODO(synk): for very large M a centered second pass would track PyTorch's BN
    variance more tightly than E[x^2]-E[x]^2 from tile sums."""
    tot = jnp.sum(stats.astype(jnp.float32), axis=0)           # [2, C]
    mean = tot[0] / m
    var = jnp.maximum(tot[1] / m - mean * mean, 0.0)
    inv_std = jax.lax.rsqrt(var + EPS)
    return inv_std[None, :], (-mean * inv_std)[None, :]        # [1, C] each


# ----------------------------------------------------------------------------
# SpectralTransform (canonical LaMa version, enable_lfu=False, stride=1)
# ----------------------------------------------------------------------------
def spectral_branch(x_g, p, cfg):
    """SpectralTransform up to (and excluding) its final 1x1 conv2, which is
    folded into the FFC pair kernel.  Returns (conv1_out, fourier_out), NHWC f32."""
    n, hdim, wdim, cg = x_g.shape
    m = n * hdim * wdim
    ch = p["st_conv1"].shape[1]

    # conv1: 1x1 (bias=False) + BN + ReLU.
    s1, st1 = matmul_stats(x_g.reshape(m, cg), p["st_conv1"], **cfg)
    sc1, sh1 = _stats_to_scale_shift(st1, m)
    h1 = bn_relu(s1, sc1, sh1, out_dtype=jnp.float32, **cfg).reshape(n, hdim, wdim, ch)

    # FourierUnit: rFFT2 -> 1x1 conv + BN + ReLU over [re | im] channels -> irFFT2.
    # TODO(synk): torch.fft.rfftn/irfftn has no Pallas equivalent; the FFTs run
    # in XLA, the spectral-domain conv + BN + ReLU runs in Pallas.
    ff = jnp.fft.rfft2(h1, axes=(1, 2), norm="ortho")          # [N, H, Wh, Ch] c64
    wh = ff.shape[2]
    mf = n * hdim * wh
    ff_ri = jnp.concatenate([jnp.real(ff), jnp.imag(ff)], axis=-1)   # block [re|im]
    s2, st2 = matmul_stats(ff_ri.reshape(mf, 2 * ch), p["fu_conv"], **cfg)
    sc2, sh2 = _stats_to_scale_shift(st2, mf)
    f2 = bn_relu(s2, sc2, sh2, out_dtype=jnp.float32, **cfg).reshape(n, hdim, wh, 2 * ch)
    fu = jnp.fft.irfft2(jax.lax.complex(f2[..., :ch], f2[..., ch:]),
                        s=(hdim, wdim), axes=(1, 2), norm="ortho")
    return h1, fu


# ----------------------------------------------------------------------------
# FFC_BN_ACT  (ratio_gin = ratio_gout = 0.5, kernel 3, padding=dilation, ReLU)
# ----------------------------------------------------------------------------
def ffc_bn_act(x_l, x_g, p, dilation, cfg, residual_l=None, residual_g=None,
               out_dtype=jnp.float32):
    """One FFC_BN_ACT layer on NHWC activations.  Returns (local, global) NHWC
    tensors.  Optional residuals ([M, C]) are fused into the BN/ReLU epilogues."""
    n, hdim, wdim, _ = x_l.shape
    m = n * hdim * wdim
    d = dilation

    h1, fu = spectral_branch(x_g, p, cfg)

    # Reflect halo only (no im2col materialization).
    pad = ((0, 0), (d, d), (d, d), (0, 0))
    xlp = jnp.pad(x_l.astype(MXU_DTYPE), pad, mode="reflect")
    xgp = jnp.pad(x_g.astype(MXU_DTYPE), pad, mode="reflect")

    s_l, s_g, st_l, st_g = ffc_pair_conv(
        xlp, xgp, h1.reshape(m, -1), fu.reshape(m, -1),
        p["w_g2l"], p["w_l2l"], p["st_conv2"], dilation=d, **cfg)

    c = s_l.shape[-1]
    sc_l, sh_l = _stats_to_scale_shift(st_l, m)
    sc_g, sh_g = _stats_to_scale_shift(st_g, m)
    y_l = bn_relu(s_l, sc_l, sh_l, residual=residual_l, out_dtype=out_dtype, **cfg)
    y_g = bn_relu(s_g, sc_g, sh_g, residual=residual_g, out_dtype=out_dtype, **cfg)
    return y_l.reshape(n, hdim, wdim, c), y_g.reshape(n, hdim, wdim, c)


# ----------------------------------------------------------------------------
# FFCResnetBlock forward (inline=True)
# ----------------------------------------------------------------------------
def ffc_resnet_block(x, params, dilation=1, block_rows=None):
    """x: [N, dim, H, W] (NCHW, f32).  `params` may be raw PyTorch-layout weights
    (init_block_params) or the pre-transposed weights from prepare_params."""
    if "st_conv1_w" in params["conv1"]:
        params = prepare_params(params)

    n, dim, hdim, wdim = x.shape
    cg = int(dim * 0.5)                       # global_in_num
    cl = dim - cg
    assert cl == cg, "convg2l(x_l + x_g) fusion requires cl == cg (ratio 0.5)."
    m = n * hdim * wdim

    vmem_limit, default_rows = _tpu_tuning()
    cfg = dict(block_rows=block_rows or default_rows, vmem_limit=vmem_limit)

    # Single layout change to NHWC at the block boundary; everything inside is
    # NHWC / [M, C] so inter-kernel reshapes are free.
    x_nhwc = jnp.transpose(x, (0, 2, 3, 1)).astype(jnp.float32)
    x_l, x_g = x_nhwc[..., :cl], x_nhwc[..., cl:]

    y_l, y_g = ffc_bn_act(x_l, x_g, params["conv1"], dilation, cfg,
                          out_dtype=MXU_DTYPE)        # feeds only matmuls -> bf16
    z_l, z_g = ffc_bn_act(y_l, y_g, params["conv2"], dilation, cfg,
                          residual_l=x_l.reshape(m, cl),
                          residual_g=x_g.reshape(m, cg),
                          out_dtype=jnp.float32)      # residual fused in epilogue

    out = jnp.concatenate([z_l, z_g], axis=-1)        # inline=True channel concat
    return jnp.transpose(out, (0, 3, 1, 2))           # back to NCHW once


# ----------------------------------------------------------------------------
# Parameters: PyTorch-layout init + one-time matmul-layout preparation
# ----------------------------------------------------------------------------
def prepare_params(params):
    """One-time weight prep (outside the per-step path): conv weights to tap-major
    / matmul layouts, FourierUnit conv permuted to [re | im] block channel layout,
    all MXU operands cast to bf16."""
    def conv3x3(wt):   # [Cout, Cin, 3, 3] -> [3, 3, Cin, Cout]
        return jnp.transpose(wt, (2, 3, 1, 0)).astype(MXU_DTYPE)

    def conv1x1(wt):   # [Cout, Cin, 1, 1] -> [Cin, Cout]
        return jnp.transpose(wt.reshape(wt.shape[0], wt.shape[1])).astype(MXU_DTYPE)

    def fu_block_layout(wt):
        # PyTorch FourierUnit channels are interleaved (c*2 + {re, im}); permute
        # rows/cols once so the kernel works on contiguous [re | im] channels.
        two_ch = wt.shape[0]
        ch = two_ch // 2
        perm = jnp.concatenate([jnp.arange(ch) * 2, jnp.arange(ch) * 2 + 1])
        wmat = jnp.transpose(wt.reshape(two_ch, two_ch))       # [Cin, Cout]
        return wmat[perm][:, perm].astype(MXU_DTYPE)

    out = {}
    for name in ("conv1", "conv2"):
        q = params[name]
        out[name] = dict(w_g2l=conv3x3(q["w_g2l"]),
                         w_l2l=conv3x3(q["w_l2l"]),
                         st_conv1=conv1x1(q["st_conv1_w"]),
                         fu_conv=fu_block_layout(q["fu_conv_w"]),
                         st_conv2=conv1x1(q["st_conv2_w"]))
    return out


def _conv_w(key, cout, cin, k):
    return jax.random.normal(key, (cout, cin, k, k), jnp.float32) * 0.1


def init_block_params(key, dim):
    cg = int(dim * 0.5)
    cl = dim - cg
    ks = jax.random.split(key, 5)
    return dict(
        w_g2l=_conv_w(ks[0], cl, cg, 3),                            # FFC.convg2l
        w_l2l=_conv_w(ks[1], cl, cl, 3),                            # FFC.convl2l
        st_conv1_w=_conv_w(ks[2], cg // 2, cg, 1),                  # SpectralTransform.conv1
        fu_conv_w=_conv_w(ks[3], (cg // 2) * 2, (cg // 2) * 2, 1),  # FourierUnit.conv_layer
        st_conv2_w=_conv_w(ks[4], cg, cg // 2, 1),                  # SpectralTransform.conv2
    )


if __name__ == "__main__":
    key = jax.random.PRNGKey(0)
    kx, k1, k2 = jax.random.split(key, 3)
    N, DIM, H, W = 2, 4, 16, 16
    x = jax.random.normal(kx, (N, DIM, H, W), jnp.float32)
    params = dict(conv1=init_block_params(k1, DIM), conv2=init_block_params(k2, DIM))
    prep = prepare_params(params)   # hoisted once: weight transpose/permute + bf16 cast

    # block_rows=128 at this toy size (M = 512) exercises multi-tile grids (row
    # tiles, BN tiles) and the cross-tile BatchNorm stats reduction; production
    # sizing comes from _tpu_tuning() when block_rows is left as None.
    fwd = jax.jit(functools.partial(ffc_resnet_block, dilation=1, block_rows=128))
    out = fwd(x, prep)
    jax.block_until_ready(out)
    assert out.shape == (N, DIM, H, W) and out.dtype == jnp.float32
    assert bool(jnp.all(jnp.isfinite(out)))
    print("KERNEL_OK")
</pallas_src>

<mosaic_0001>
module attributes {stable_mosaic.version = 11 : i64} {
  func.func @_mm_stats_kernel(%arg0: i32, %arg1: memref<128x2xbf16, #tpu.memory_space<vmem>>, %arg2: memref<2x1xbf16, #tpu.memory_space<vmem>>, %arg3: memref<128x1xbf16, #tpu.memory_space<vmem>>, %arg4: memref<1x2x1xf32, #tpu.memory_space<vmem>>) attributes {dimension_semantics = [#tpu.dimension_semantics<parallel>], iteration_bounds = array<i64: 4>, scalar_prefetch = 0 : i64, scratch_operands = 0 : i64, tpu.core_type = #tpu.core_type<tc>, window_params = [{transform_indices = @transform_0, window_bounds = array<i64: 128, 2>}, {pipeline_mode = #tpu.pipeline_mode<synchronous>, transform_indices = @transform_1, window_bounds = array<i64: 2, 1>}, {transform_indices = @transform_2, window_bounds = array<i64: 128, 1>}, {transform_indices = @transform_3, window_bounds = array<i64: 1, 2, 1>}]} {
    %c0 = arith.constant 0 : index
    %c0_0 = arith.constant 0 : index
    %0 = vector.load %arg1[%c0, %c0_0] : memref<128x2xbf16, #tpu.memory_space<vmem>>, vector<128x2xbf16>
    %c0_1 = arith.constant 0 : index
    %c0_2 = arith.constant 0 : index
    %1 = vector.load %arg2[%c0_1, %c0_2] : memref<2x1xbf16, #tpu.memory_space<vmem>>, vector<2x1xbf16>
    %cst = arith.constant dense<0.000000e+00> : vector<128x1xf32>
    %2 = tpu.matmul %0, %1, %cst {dimension_numbers = #tpu.dot_dimension_numbers<[1], [0], [0], [1], [0, 0, 1, 1], [], []>} : vector<128x2xbf16>, vector<2x1xbf16>, vector<128x1xf32> -> vector<128x1xf32>
    %cst_3 = arith.constant dense<0.000000e+00> : vector<1xf32>
    %3 = vector.multi_reduction <add>, %2, %cst_3 [0] : vector<128x1xf32> to vector<1xf32>
    %4 = vector.shape_cast %3 : vector<1xf32> to vector<1x1xf32>
    %c0_4 = arith.constant 0 : index
    %c0_5 = arith.constant 0 : index
    %c0_6 = arith.constant 0 : index
    %5 = vector.load %arg4[%c0_4, %c0_5, %c0_6] : memref<1x2x1xf32, #tpu.memory_space<vmem>>, vector<1x1x1xf32>
    %6 = vector.shape_cast %5 : vector<1x1x1xf32> to vector<1x1xf32>
    %7 = vector.shape_cast %4 : vector<1x1xf32> to vector<1x1x1xf32>
    tpu.vector_store %arg4[%c0_4, %c0_5, %c0_6], %7 {strides = array<i32>} : memref<1x2x1xf32, #tpu.memory_space<vmem>>, vector<1x1x1xf32>,
    %8 = arith.mulf %2, %2 : vector<128x1xf32>
    %cst_7 = arith.constant dense<0.000000e+00> : vector<1xf32>
    %9 = vector.multi_reduction <add>, %8, %cst_7 [0] : vector<128x1xf32> to vector<1xf32>
    %10 = vector.shape_cast %9 : vector<1xf32> to vector<1x1xf32>
    %c0_8 = arith.constant 0 : index
    %c1 = arith.constant 1 : index
    %c0_9 = arith.constant 0 : index
    %11 = vector.load %arg4[%c0_8, %c1, %c0_9] : memref<1x2x1xf32, #tpu.memory_space<vmem>>, vector<1x1x1xf32>
    %12 = vector.shape_cast %11 : vector<1x1x1xf32> to vector<1x1xf32>
    %13 = vector.shape_cast %10 : vector<1x1xf32> to vector<1x1x1xf32>
    tpu.vector_store %arg4[%c0_8, %c1, %c0_9], %13 {strides = array<i32>} : memref<1x2x1xf32, #tpu.memory_space<vmem>>, vector<1x1x1xf32>,
    %14 = arith.truncf %2 : vector<128x1xf32> to vector<128x1xbf16>
    %c0_10 = arith.constant 0 : index
    %c0_11 = arith.constant 0 : index
    %15 = vector.load %arg3[%c0_10, %c0_11] : memref<128x1xbf16, #tpu.memory_space<vmem>>, vector<128x1xbf16>
    tpu.vector_store %arg3[%c0_10, %c0_11], %14 {strides = array<i32>} : memref<128x1xbf16, #tpu.memory_space<vmem>>, vector<128x1xbf16>,
    return
  }
  func.func @transform_0(%arg0: i32) -> (i32, i32) {
    %c0_i32 = arith.constant 0 : i32
    %c0_i32_0 = arith.constant 0 : i32
    return %arg0, %c0_i32 : i32, i32
  }
  func.func @transform_1(%arg0: i32) -> (i32, i32) {
    %c0_i32 = arith.constant 0 : i32
    %c0_i32_0 = arith.constant 0 : i32
    %c0_i32_1 = arith.constant 0 : i32
    return %c0_i32, %c0_i32_0 : i32, i32
  }
  func.func @transform_2(%arg0: i32) -> (i32, i32) {
    %c0_i32 = arith.constant 0 : i32
    %c0_i32_0 = arith.constant 0 : i32
    return %arg0, %c0_i32 : i32, i32
  }
  func.func @transform_3(%arg0: i32) -> (i32, i32, i32) {
    %c0_i32 = arith.constant 0 : i32
    %c0_i32_0 = arith.constant 0 : i32
    %c0_i32_1 = arith.constant 0 : i32
    return %arg0, %c0_i32, %c0_i32_0 : i32, i32, i32
  }
}

module attributes {stable_mosaic.version = 11 : i64} {
  func.func @_bn_relu_kernel(%arg0: i32, %arg1: memref<128x1xbf16, #tpu.memory_space<vmem>>, %arg2: memref<1x1xf32, #tpu.memory_space<vmem>>, %arg3: memref<1x1xf32, #tpu.memory_space<vmem>>, %arg4: memref<128x1xf32, #tpu.memory_space<vmem>>) attributes {dimension_semantics = [#tpu.dimension_semantics<parallel>], iteration_bounds = array<i64: 4>, scalar_prefetch = 0 : i64, scratch_operands = 0 : i64, tpu.core_type = #tpu.core_type<tc>, window_params = [{transform_indices = @transform_0, window_bounds = array<i64: 128, 1>}, {pipeline_mode = #tpu.pipeline_mode<synchronous>, transform_indices = @transform_1, window_bounds = array<i64: 1, 1>}, {pipeline_mode = #tpu.pipeline_mode<synchronous>, transform_indices = @transform_2, window_bounds = array<i64: 1, 1>}, {transform_indices = @transform_3, window_bounds = array<i64: 128, 1>}]} {
    %c0 = arith.constant 0 : index
    %c0_0 = arith.constant 0 : index
    %0 = vector.load %arg1[%c0, %c0_0] : memref<128x1xbf16, #tpu.memory_space<vmem>>, vector<128x1xbf16>
    %1 = arith.extf %0 : vector<128x1xbf16> to vector<128x1xf32>
    %c0_1 = arith.constant 0 : index
    %c0_2 = arith.constant 0 : index
    %2 = vector.load %arg2[%c0_1, %c0_2] : memref<1x1xf32, #tpu.memory_space<vmem>>, vector<1x1xf32>
    %3 = vector.broadcast %2 : vector<1x1xf32> to vector<128x1xf32>
    %4 = arith.mulf %1, %3 : vector<128x1xf32>
    %c0_3 = arith.constant 0 : index
    %c0_4 = arith.constant 0 : index
    %5 = vector.load %arg3[%c0_3, %c0_4] : memref<1x1xf32, #tpu.memory_space<vmem>>, vector<1x1xf32>
    %6 = vector.broadcast %5 : vector<1x1xf32> to vector<128x1xf32>
    %7 = arith.addf %4, %6 : vector<128x1xf32>
    %cst = arith.constant 0.000000e+00 : f32
    %8 = vector.broadcast %cst : f32 to vector<128x1xf32>
    %9 = arith.maximumf %7, %8 : vector<128x1xf32>
    %c0_5 = arith.constant 0 : index
    %c0_6 = arith.constant 0 : index
    %10 = vector.load %arg4[%c0_5, %c0_6] : memref<128x1xf32, #tpu.memory_space<vmem>>, vector<128x1xf32>
    tpu.vector_store %arg4[%c0_5, %c0_6], %9 {strides = array<i32>} : memref<128x1xf32, #tpu.memory_space<vmem>>, vector<128x1xf32>,
    return
  }
  func.func @transform_0(%arg0: i32) -> (i32, i32) {
    %c0_i32 = arith.constant 0 : i32
    %c0_i32_0 = arith.constant 0 : i32
    return %arg0, %c0_i32 : i32, i32
  }
  func.func @transform_1(%arg0: i32) -> (i32, i32) {
    %c0_i32 = arith.constant 0 : i32
    %c0_i32_0 = arith.constant 0 : i32
    %c0_i32_1 = arith.constant 0 : i32
    return %c0_i32, %c0_i32_0 : i32, i32
  }
  func.func @transform_2(%arg0: i32) -> (i32, i32) {
    %c0_i32 = arith.constant 0 : i32
    %c0_i32_0 = arith.constant 0 : i32
    %c0_i32_1 = arith.constant 0 : i32
    return %c0_i32, %c0_i32_0 : i32, i32
  }
  func.func @transform_3(%arg0: i32) -> (i32, i32) {
    %c0_i32 = arith.constant 0 : i32
    %c0_i32_0 = arith.constant 0 : i32
    return %arg0, %c0_i32 : i32, i32
  }
}

module attributes {stable_mosaic.version = 11 : i64} {
  func.func @_bn_relu_kernel(%arg0: i32, %arg1: memref<96x2xbf16, #tpu.memory_space<vmem>>, %arg2: memref<1x2xf32, #tpu.memory_space<vmem>>, %arg3: memref<1x2xf32, #tpu.memory_space<vmem>>, %arg4: memref<96x2xf32, #tpu.memory_space<vmem>>) attributes {dimension_semantics = [#tpu.dimension_semantics<parallel>], iteration_bounds = array<i64: 3>, scalar_prefetch = 0 : i64, scratch_operands = 0 : i64, tpu.core_type = #tpu.core_type<tc>, window_params = [{transform_indices = @transform_0, window_bounds = array<i64: 96, 2>}, {pipeline_mode = #tpu.pipeline_mode<synchronous>, transform_indices = @transform_1, window_bounds = array<i64: 1, 2>}, {pipeline_mode = #tpu.pipeline_mode<synchronous>, transform_indices = @transform_2, window_bounds = array<i64: 1, 2>}, {transform_indices = @transform_3, window_bounds = array<i64: 96, 2>}]} {
    %c0 = arith.constant 0 : index
    %c0_0 = arith.constant 0 : index
    %0 = vector.load %arg1[%c0, %c0_0] : memref<96x2xbf16, #tpu.memory_space<vmem>>, vector<96x2xbf16>
    %1 = arith.extf %0 : vector<96x2xbf16> to vector<96x2xf32>
    %c0_1 = arith.constant 0 : index
    %c0_2 = arith.constant 0 : index
    %2 = vector.load %arg2[%c0_1, %c0_2] : memref<1x2xf32, #tpu.memory_space<vmem>>, vector<1x2xf32>
    %3 = vector.broadcast %2 : vector<1x2xf32> to vector<96x2xf32>
    %4 = arith.mulf %1, %3 : vector<96x2xf32>
    %c0_3 = arith.constant 0 : index
    %c0_4 = arith.constant 0 : index
    %5 = vector.load %arg3[%c0_3, %c0_4] : memref<1x2xf32, #tpu.memory_space<vmem>>, vector<1x2xf32>
    %6 = vector.broadcast %5 : vector<1x2xf32> to vector<96x2xf32>
    %7 = arith.addf %4, %6 : vector<96x2xf32>
    %cst = arith.constant 0.000000e+00 : f32
    %8 = vector.broadcast %cst : f32 to vector<96x2xf32>
    %9 = arith.maximumf %7, %8 : vector<96x2xf32>
    %c0_5 = arith.constant 0 : index
    %c0_6 = arith.constant 0 : index
    %10 = vector.load %arg4[%c0_5, %c0_6] : memref<96x2xf32, #tpu.memory_space<vmem>>, vector<96x2xf32>
    tpu.vector_store %arg4[%c0_5, %c0_6], %9 {strides = array<i32>} : memref<96x2xf32, #tpu.memory_space<vmem>>, vector<96x2xf32>,
    return
  }
  func.func @transform_0(%arg0: i32) -> (i32, i32) {
    %c0_i32 = arith.constant 0 : i32
    %c0_i32_0 = arith.constant 0 : i32
    return %arg0, %c0_i32 : i32, i32
  }
  func.func @transform_1(%arg0: i32) -> (i32, i32) {
    %c0_i32 = arith.constant 0 : i32
    %c0_i32_0 = arith.constant 0 : i32
    %c0_i32_1 = arith.constant 0 : i32
    return %c0_i32, %c0_i32_0 : i32, i32
  }
  func.func @transform_2(%arg0: i32) -> (i32, i32) {
    %c0_i32 = arith.constant 0 : i32
    %c0_i32_0 = arith.constant 0 : i32
    %c0_i32_1 = arith.constant 0 : i32
    return %c0_i32, %c0_i32_0 : i32, i32
  }
  func.func @transform_3(%arg0: i32) -> (i32, i32) {
    %c0_i32 = arith.constant 0 : i32
    %c0_i32_0 = arith.constant 0 : i32
    return %arg0, %c0_i32 : i32, i32
  }
}

module attributes {stable_mosaic.version = 11 : i64} {
  func.func @_mm_stats_kernel(%arg0: i32, %arg1: memref<96x2xbf16, #tpu.memory_space<vmem>>, %arg2: memref<2x2xbf16, #tpu.memory_space<vmem>>, %arg3: memref<96x2xbf16, #tpu.memory_space<vmem>>, %arg4: memref<1x2x2xf32, #tpu.memory_space<vmem>>) attributes {dimension_semantics = [#tpu.dimension_semantics<parallel>], iteration_bounds = array<i64: 3>, scalar_prefetch = 0 : i64, scratch_operands = 0 : i64, tpu.core_type = #tpu.core_type<tc>, window_params = [{transform_indices = @transform_0, window_bounds = array<i64: 96, 2>}, {pipeline_mode = #tpu.pipeline_mode<synchronous>, transform_indices = @transform_1, window_bounds = array<i64: 2, 2>}, {transform_indices = @transform_2, window_bounds = array<i64: 96, 2>}, {transform_indices = @transform_3, window_bounds = array<i64: 1, 2, 2>}]} {
    %c0 = arith.constant 0 : index
    %c0_0 = arith.constant 0 : index
    %0 = vector.load %arg1[%c0, %c0_0] : memref<96x2xbf16, #tpu.memory_space<vmem>>, vector<96x2xbf16>
    %c0_1 = arith.constant 0 : index
    %c0_2 = arith.constant 0 : index
    %1 = vector.load %arg2[%c0_1, %c0_2] : memref<2x2xbf16, #tpu.memory_space<vmem>>, vector<2x2xbf16>
    %cst = arith.constant dense<0.000000e+00> : vector<96x2xf32>
    %2 = tpu.matmul %0, %1, %cst {dimension_numbers = #tpu.dot_dimension_numbers<[1], [0], [0], [1], [0, 0, 1, 1], [], []>} : vector<96x2xbf16>, vector<2x2xbf16>, vector<96x2xf32> -> vector<96x2xf32>
    %cst_3 = arith.constant dense<0.000000e+00> : vector<2xf32>
    %3 = vector.multi_reduction <add>, %2, %cst_3 [0] : vector<96x2xf32> to vector<2xf32>
    %4 = vector.shape_cast %3 : vector<2xf32> to vector<1x2xf32>
    %c0_4 = arith.constant 0 : index
    %c0_5 = arith.constant 0 : index
    %c0_6 = arith.constant 0 : index
    %5 = vector.load %arg4[%c0_4, %c0_5, %c0_6] : memref<1x2x2xf32, #tpu.memory_space<vmem>>, vector<1x1x2xf32>
    %6 = vector.shape_cast %5 : vector<1x1x2xf32> to vector<1x2xf32>
    %7 = vector.shape_cast %4 : vector<1x2xf32> to vector<1x1x2xf32>
    tpu.vector_store %arg4[%c0_4, %c0_5, %c0_6], %7 {strides = array<i32>} : memref<1x2x2xf32, #tpu.memory_space<vmem>>, vector<1x1x2xf32>,
    %8 = arith.mulf %2, %2 : vector<96x2xf32>
    %cst_7 = arith.constant dense<0.000000e+00> : vector<2xf32>
    %9 = vector.multi_reduction <add>, %8, %cst_7 [0] : vector<96x2xf32> to vector<2xf32>
    %10 = vector.shape_cast %9 : vector<2xf32> to vector<1x2xf32>
    %c0_8 = arith.constant 0 : index
    %c1 = arith.constant 1 : index
    %c0_9 = arith.constant 0 : index
    %11 = vector.load %arg4[%c0_8, %c1, %c0_9] : memref<1x2x2xf32, #tpu.memory_space<vmem>>, vector<1x1x2xf32>
    %12 = vector.shape_cast %11 : vector<1x1x2xf32> to vector<1x2xf32>
    %13 = vector.shape_cast %10 : vector<1x2xf32> to vector<1x1x2xf32>
    tpu.vector_store %arg4[%c0_8, %c1, %c0_9], %13 {strides = array<i32>} : memref<1x2x2xf32, #tpu.memory_space<vmem>>, vector<1x1x2xf32>,
    %14 = arith.truncf %2 : vector<96x2xf32> to vector<96x2xbf16>
    %c0_10 = arith.constant 0 : index
    %c0_11 = arith.constant 0 : index
    %15 = vector.load %arg3[%c0_10, %c0_11] : memref<96x2xbf16, #tpu.memory_space<vmem>>, vector<96x2xbf16>
    tpu.vector_store %arg3[%c0_10, %c0_11], %14 {strides = array<i32>} : memref<96x2xbf16, #tpu.memory_space<vmem>>, vector<96x2xbf16>,
    return
  }
  func.func @transform_0(%arg0: i32) -> (i32, i32) {
    %c0_i32 = arith.constant 0 : i32
    %c0_i32_0 = arith.constant 0 : i32
    return %arg0, %c0_i32 : i32, i32
  }
  func.func @transform_1(%arg0: i32) -> (i32, i32) {
    %c0_i32 = arith.constant 0 : i32
    %c0_i32_0 = arith.constant 0 : i32
    %c0_i32_1 = arith.constant 0 : i32
    return %c0_i32, %c0_i32_0 : i32, i32
  }
  func.func @transform_2(%arg0: i32) -> (i32, i32) {
    %c0_i32 = arith.constant 0 : i32
    %c0_i32_0 = arith.constant 0 : i32
    return %arg0, %c0_i32 : i32, i32
  }
  func.func @transform_3(%arg0: i32) -> (i32, i32, i32) {
    %c0_i32 = arith.constant 0 : i32
    %c0_i32_0 = arith.constant 0 : i32
    %c0_i32_1 = arith.constant 0 : i32
    return %arg0, %c0_i32, %c0_i32_0 : i32, i32, i32
  }
}

module attributes {stable_mosaic.version = 11 : i64} {
  func.func @_ffc_pair_kernel(%arg0: i32, %arg1: i32, %arg2: memref<1x18x18x2xbf16, #tpu.memory_space<vmem>>, %arg3: memref<1x18x18x2xbf16, #tpu.memory_space<vmem>>, %arg4: memref<128x1xf32, #tpu.memory_space<vmem>>, %arg5: memref<128x1xf32, #tpu.memory_space<vmem>>, %arg6: memref<3x3x2x2xbf16, #tpu.memory_space<vmem>>, %arg7: memref<3x3x2x2xbf16, #tpu.memory_space<vmem>>, %arg8: memref<1x2xbf16, #tpu.memory_space<vmem>>, %arg9: memref<128x2xbf16, #tpu.memory_space<vmem>>, %arg10: memref<128x2xbf16, #tpu.memory_space<vmem>>, %arg11: memref<1x2x2xf32, #tpu.memory_space<vmem>>, %arg12: memref<1x2x2xf32, #tpu.memory_space<vmem>>) attributes {dimension_semantics = [#tpu.dimension_semantics<parallel>, #tpu.dimension_semantics<parallel>], iteration_bounds = array<i64: 2, 2>, scalar_prefetch = 0 : i64, scratch_operands = 0 : i64, tpu.core_type = #tpu.core_type<tc>, window_params = [{transform_indices = @transform_0, window_bounds = array<i64: 1, 18, 18, 2>}, {transform_indices = @transform_1, window_bounds = array<i64: 1, 18, 18, 2>}, {transform_indices = @transform_2, window_bounds = array<i64: 128, 1>}, {transform_indices = @transform_3, window_bounds = array<i64: 128, 1>}, {pipeline_mode = #tpu.pipeline_mode<synchronous>, transform_indices = @transform_4, window_bounds = array<i64: 3, 3, 2, 2>}, {pipeline_mode = #tpu.pipeline_mode<synchronous>, transform_indices = @transform_5, window_bounds = array<i64: 3, 3, 2, 2>}, {pipeline_mode = #tpu.pipeline_mode<synchronous>, transform_indices = @transform_6, window_bounds = array<i64: 1, 2>}, {transform_indices = @transform_7, window_bounds = array<i64: 128, 2>}, {transform_indices = @transform_8, window_bounds = array<i64: 128, 2>}, {transform_indices = @transform_9, window_bounds = array<i64: 1, 2, 2>}, {transform_indices = @transform_10, window_bounds = array<i64: 1, 2, 2>}]} {
    %c8_i32 = arith.constant 8 : i32
    %0 = arith.muli %arg1, %c8_i32 : i32
    %1 = tpu.assume_multiple %0, 8 : i32
    %c0 = arith.constant 0 : index
    %c0_0 = arith.constant 0 : index
    %2 = vector.load %arg4[%c0, %c0_0] : memref<128x1xf32, #tpu.memory_space<vmem>>, vector<128x1xf32>
    %c0_1 = arith.constant 0 : index
    %c0_2 = arith.constant 0 : index
    %3 = vector.load %arg5[%c0_1, %c0_2] : memref<128x1xf32, #tpu.memory_space<vmem>>, vector<128x1xf32>
    %4 = arith.addf %2, %3 : vector<128x1xf32>
    %5 = arith.truncf %4 : vector<128x1xf32> to vector<128x1xbf16>
    %c0_3 = arith.constant 0 : index
    %c0_4 = arith.constant 0 : index
    %6 = vector.load %arg8[%c0_3, %c0_4] : memref<1x2xbf16, #tpu.memory_space<vmem>>, vector<1x2xbf16>
    %cst = arith.constant dense<0.000000e+00> : vector<128x2xf32>
    %7 = tpu.matmul %5, %6, %cst {dimension_numbers = #tpu.dot_dimension_numbers<[1], [0], [0], [1], [0, 0, 1, 1], [], []>} : vector<128x1xbf16>, vector<1x2xbf16>, vector<128x2xf32> -> vector<128x2xf32>
    %cst_5 = arith.constant 0.000000e+00 : f32
    %8 = vector.broadcast %cst_5 : f32 to vector<128x2xf32>
    %c0_6 = arith.constant 0 : index
    %9 = arith.index_cast %1 : i32 to index
    %c0_7 = arith.constant 0 : index
    %c0_8 = arith.constant 0 : index
    %10 = vector.load %arg2[%c0_6, %9, %c0_7, %c0_8] : memref<1x18x18x2xbf16, #tpu.memory_space<vmem>>, vector<1x10x18x2xbf16>
    %11 = vector.shape_cast %10 : vector<1x10x18x2xbf16> to vector<10x18x2xbf16>
    %12 = arith.extf %11 : vector<10x18x2xbf16> to vector<10x18x2xf32>
    %c0_9 = arith.constant 0 : index
    %13 = arith.index_cast %1 : i32 to index
    %c0_10 = arith.constant 0 : index
    %c0_11 = arith.constant 0 : index
    %14 = vector.load %arg3[%c0_9, %13, %c0_10, %c0_11] : memref<1x18x18x2xbf16, #tpu.memory_space<vmem>>, vector<1x10x18x2xbf16>
    %15 = vector.shape_cast %14 : vector<1x10x18x2xbf16> to vector<10x18x2xbf16>
    %16 = arith.extf %15 : vector<10x18x2xbf16> to vector<10x18x2xf32>
    %17 = arith.addf %12, %16 : vector<10x18x2xf32>
    %18 = vector.extract_strided_slice %17 {offsets = [0, 0, 0], sizes = [10, 16, 2], strides = [1, 1, 1]} : vector<10x18x2xf32> to vector<10x16x2xf32>
    %19 = arith.truncf %18 : vector<10x16x2xf32> to vector<10x16x2xbf16>
    %20 = vector.extract_strided_slice %12 {offsets = [0, 0, 0], sizes = [10, 16, 2], strides = [1, 1, 1]} : vector<10x18x2xf32> to vector<10x16x2xf32>
    %21 = arith.truncf %20 : vector<10x16x2xf32> to vector<10x16x2xbf16>
    %22 = vector.extract_strided_slice %19 {offsets = [0, 0, 0], sizes = [8, 16, 2], strides = [1, 1, 1]} : vector<10x16x2xbf16> to vector<8x16x2xbf16>
    %23 = vector.shape_cast %22 : vector<8x16x2xbf16> to vector<128x2xbf16>
    %24 = vector.extract_strided_slice %21 {offsets = [0, 0, 0], sizes = [8, 16, 2], strides = [1, 1, 1]} : vector<10x16x2xbf16> to vector<8x16x2xbf16>
    %25 = vector.shape_cast %24 : vector<8x16x2xbf16> to vector<128x2xbf16>
    %c0_12 = arith.constant 0 : index
    %c0_13 = arith.constant 0 : index
    %c0_14 = arith.constant 0 : index
    %c0_15 = arith.constant 0 : index
    %26 = vector.load %arg6[%c0_12, %c0_13, %c0_14, %c0_15] : memref<3x3x2x2xbf16, #tpu.memory_space<vmem>>, vector<1x1x2x2xbf16>
    %27 = vector.shape_cast %26 : vector<1x1x2x2xbf16> to vector<2x2xbf16>
    %cst_16 = arith.constant dense<0.000000e+00> : vector<128x2xf32>
    %28 = tpu.matmul %23, %27, %cst_16 {dimension_numbers = #tpu.dot_dimension_numbers<[1], [0], [0], [1], [0, 0, 1, 1], [], []>} : vector<128x2xbf16>, vector<2x2xbf16>, vector<128x2xf32> -> vector<128x2xf32>
    %29 = arith.addf %8, %28 : vector<128x2xf32>
    %c0_17 = arith.constant 0 : index
    %c0_18 = arith.constant 0 : index
    %c0_19 = arith.constant 0 : index
    %c0_20 = arith.constant 0 : index
    %30 = vector.load %arg7[%c0_17, %c0_18, %c0_19, %c0_20] : memref<3x3x2x2xbf16, #tpu.memory_space<vmem>>, vector<1x1x2x2xbf16>
    %31 = vector.shape_cast %30 : vector<1x1x2x2xbf16> to vector<2x2xbf16>
    %cst_21 = arith.constant dense<0.000000e+00> : vector<128x2xf32>
    %32 = tpu.matmul %25, %31, %cst_21 {dimension_numbers = #tpu.dot_dimension_numbers<[1], [0], [0], [1], [0, 0, 1, 1], [], []>} : vector<128x2xbf16>, vector<2x2xbf16>, vector<128x2xf32> -> vector<128x2xf32>
    %33 = arith.addf %7, %32 : vector<128x2xf32>
    %34 = vector.extract_strided_slice %19 {offsets = [1, 0, 0], sizes = [8, 16, 2], strides = [1, 1, 1]} : vector<10x16x2xbf16> to vector<8x16x2xbf16>
    %35 = vector.shape_cast %34 : vector<8x16x2xbf16> to vector<128x2xbf16>
    %36 = vector.extract_strided_slice %21 {offsets = [1, 0, 0], sizes = [8, 16, 2], strides = [1, 1, 1]} : vector<10x16x2xbf16> to vector<8x16x2xbf16>
    %37 = vector.shape_cast %36 : vector<8x16x2xbf16> to vector<128x2xbf16>
    %c1 = arith.constant 1 : index
    %c0_22 = arith.constant 0 : index
    %c0_23 = arith.constant 0 : index
    %c0_24 = arith.constant 0 : index
    %38 = vector.load %arg6[%c1, %c0_22, %c0_23, %c0_24] : memref<3x3x2x2xbf16, #tpu.memory_space<vmem>>, vector<1x1x2x2xbf16>
    %39 = vector.shape_cast %38 : vector<1x1x2x2xbf16> to vector<2x2xbf16>
    %cst_25 = arith.constant dense<0.000000e+00> : vector<128x2xf32>
    %40 = tpu.matmul %35, %39, %cst_25 {dimension_numbers = #tpu.dot_dimension_numbers<[1], [0], [0], [1], [0, 0, 1, 1], [], []>} : vector<128x2xbf16>, vector<2x2xbf16>, vector<128x2xf32> -> vector<128x2xf32>
    %41 = arith.addf %29, %40 : vector<128x2xf32>
    %c1_26 = arith.constant 1 : index
    %c0_27 = arith.constant 0 : index
    %c0_28 = arith.constant 0 : index
    %c0_29 = arith.constant 0 : index
    %42 = vector.load %arg7[%c1_26, %c0_27, %c0_28, %c0_29] : memref<3x3x2x2xbf16, #tpu.memory_space<vmem>>, vector<1x1x2x2xbf16>
    %43 = vector.shape_cast %42 : vector<1x1x2x2xbf16> to vector<2x2xbf16>
    %cst_30 = arith.constant dense<0.000000e+00> : vector<128x2xf32>
    %44 = tpu.matmul %37, %43, %cst_30 {dimension_numbers = #tpu.dot_dimension_numbers<[1], [0], [0], [1], [0, 0, 1, 1], [], []>} : vector<128x2xbf16>, vector<2x2xbf16>, vector<128x2xf32> -> vector<128x2xf32>
    %45 = arith.addf %33, %44 : vector<128x2xf32>
    %46 = vector.extract_strided_slice %19 {offsets = [2, 0, 0], sizes = [8, 16, 2], strides = [1, 1, 1]} : vector<10x16x2xbf16> to vector<8x16x2xbf16>
    %47 = vector.shape_cast %46 : vector<8x16x2xbf16> to vector<128x2xbf16>
    %48 = vector.extract_strided_slice %21 {offsets = [2, 0, 0], sizes = [8, 16, 2], strides = [1, 1, 1]} : vector<10x16x2xbf16> to vector<8x16x2xbf16>
    %49 = vector.shape_cast %48 : vector<8x16x2xbf16> to vector<128x2xbf16>
    %c2 = arith.constant 2 : index
    %c0_31 = arith.constant 0 : index
    %c0_32 = arith.constant 0 : index
    %c0_33 = arith.constant 0 : index
    %50 = vector.load %arg6[%c2, %c0_31, %c0_32, %c0_33] : memref<3x3x2x2xbf16, #tpu.memory_space<vmem>>, vector<1x1x2x2xbf16>
    %51 = vector.shape_cast %50 : vector<1x1x2x2xbf16> to vector<2x2xbf16>
    %cst_34 = arith.constant dense<0.000000e+00> : vector<128x2xf32>
    %52 = tpu.matmul %47, %51, %cst_34 {dimension_numbers = #tpu.dot_dimension_numbers<[1], [0], [0], [1], [0, 0, 1, 1], [], []>} : vector<128x2xbf16>, vector<2x2xbf16>, vector<128x2xf32> -> vector<128x2xf32>
    %53 = arith.addf %41, %52 : vector<128x2xf32>
    %c2_35 = arith.constant 2 : index
    %c0_36 = arith.constant 0 : index
    %c0_37 = arith.constant 0 : index
    %c0_38 = arith.constant 0 : index
    %54 = vector.load %arg7[%c2_35, %c0_36, %c0_37, %c0_38] : memref<3x3x2x2xbf16, #tpu.memory_space<vmem>>, vector<1x1x2x2xbf16>
    %55 = vector.shape_cast %54 : vector<1x1x2x2xbf16> to vector<2x2xbf16>
    %cst_39 = arith.constant dense<0.000000e+00> : vector<128x2xf32>
    %56 = tpu.matmul %49, %55, %cst_39 {dimension_numbers = #tpu.dot_dimension_numbers<[1], [0], [0], [1], [0, 0, 1, 1], [], []>} : vector<128x2xbf16>, vector<2x2xbf16>, vector<128x2xf32> -> vector<128x2xf32>
    %57 = arith.addf %45, %56 : vector<128x2xf32>
    %58 = vector.extract_strided_slice %17 {offsets = [0, 1, 0], sizes = [10, 16, 2], strides = [1, 1, 1]} : vector<10x18x2xf32> to vector<10x16x2xf32>
    %59 = arith.truncf %58 : vector<10x16x2xf32> to vector<10x16x2xbf16>
    %60 = vector.extract_strided_slice %12 {offsets = [0, 1, 0], sizes = [10, 16, 2], strides = [1, 1, 1]} : vector<10x18x2xf32> to vector<10x16x2xf32>
    %61 = arith.truncf %60 : vector<10x16x2xf32> to vector<10x16x2xbf16>
    %62 = vector.extract_strided_slice %59 {offsets = [0, 0, 0], sizes = [8, 16, 2], strides = [1, 1, 1]} : vector<10x16x2xbf16> to vector<8x16x2xbf16>
    %63 = vector.shape_cast %62 : vector<8x16x2xbf16> to vector<128x2xbf16>
    %64 = vector.extract_strided_slice %61 {offsets = [0, 0, 0], sizes = [8, 16, 2], strides = [1, 1, 1]} : vector<10x16x2xbf16> to vector<8x16x2xbf16>
    %65 = vector.shape_cast %64 : vector<8x16x2xbf16> to vector<128x2xbf16>
    %c0_40 = arith.constant 0 : index
    %c1_41 = arith.constant 1 : index
    %c0_42 = arith.constant 0 : index
    %c0_43 = arith.constant 0 : index
    %66 = vector.load %arg6[%c0_40, %c1_41, %c0_42, %c0_43] : memref<3x3x2x2xbf16, #tpu.memory_space<vmem>>, vector<1x1x2x2xbf16>
    %67 = vector.shape_cast %66 : vector<1x1x2x2xbf16> to vector<2x2xbf16>
    %cst_44 = arith.constant dense<0.000000e+00> : vector<128x2xf32>
    %68 = tpu.matmul %63, %67, %cst_44 {dimension_numbers = #tpu.dot_dimension_numbers<[1], [0], [0], [1], [0, 0, 1, 1], [], []>} : vector<128x2xbf16>, vector<2x2xbf16>, vector<128x2xf32> -> vector<128x2xf32>
    %69 = arith.addf %53, %68 : vector<128x2xf32>
    %c0_45 = arith.constant 0 : index
    %c1_46 = arith.constant 1 : index
    %c0_47 = arith.constant 0 : index
    %c0_48 = arith.constant 0 : index
    %70 = vector.load %arg7[%c0_45, %c1_46, %c0_47, %c0_48] : memref<3x3x2x2xbf16, #tpu.memory_space<vmem>>, vector<1x1x2x2xbf16>
    %71 = vector.shape_cast %70 : vector<1x1x2x2xbf16> to vector<2x2xbf16>
    %cst_49 = arith.constant dense<0.000000e+00> : vector<128x2xf32>
    %72 = tpu.matmul %65, %71, %cst_49 {dimension_numbers = #tpu.dot_dimension_numbers<[1], [0], [0], [1], [0, 0, 1, 1], [], []>} : vector<128x2xbf16>, vector<2x2xbf16>, vector<128x2xf32> -> vector<128x2xf32>
    %73 = arith.addf %57, %72 : vector<128x2xf32>
    %74 = vector.extract_strided_slice %59 {offsets = [1, 0, 0], sizes = [8, 16, 2], strides = [1, 1, 1]} : vector<10x16x2xbf16> to vector<8x16x2xbf16>
    %75 = vector.shape_cast %74 : vector<8x16x2xbf16> to vector<128x2xbf16>
    %76 = vector.extract_strided_slice %61 {offsets = [1, 0, 0], sizes = [8, 16, 2], strides = [1, 1, 1]} : vector<10x16x2xbf16> to vector<8x16x2xbf16>
    %77 = vector.shape_cast %76 : vector<8x16x2xbf16> to vector<128x2xbf16>
    %c1_50 = arith.constant 1 : index
    %c1_51 = arith.constant 1 : index
    %c0_52 = arith.constant 0 : index
    %c0_53 = arith.constant 0 : index
    %78 = vector.load %arg6[%c1_50, %c1_51, %c0_52, %c0_53] : memref<3x3x2x2xbf16, #tpu.memory_space<vmem>>, vector<1x1x2x2xbf16>
    %79 = vector.shape_cast %78 : vector<1x1x2x2xbf16> to vector<2x2xbf16>
    %cst_54 = arith.constant dense<0.000000e+00> : vector<128x2xf32>
    %80 = tpu.matmul %75, %79, %cst_54 {dimension_numbers = #tpu.dot_dimension_numbers<[1], [0], [0], [1], [0, 0, 1, 1], [], []>} : vector<128x2xbf16>, vector<2x2xbf16>, vector<128x2xf32> -> vector<128x2xf32>
    %81 = arith.addf %69, %80 : vector<128x2xf32>
    %c1_55 = arith.constant 1 : index
    %c1_56 = arith.constant 1 : index
    %c0_57 = arith.constant 0 : index
    %c0_58 = arith.constant 0 : index
    %82 = vector.load %arg7[%c1_55, %c1_56, %c0_57, %c0_58] : memref<3x3x2x2xbf16, #tpu.memory_space<vmem>>, vector<1x1x2x2xbf16>
    %83 = vector.shape_cast %82 : vector<1x1x2x2xbf16> to vector<2x2xbf16>
    %cst_59 = arith.constant dense<0.000000e+00> : vector<128x2xf32>
    %84 = tpu.matmul %77, %83, %cst_59 {dimension_numbers = #tpu.dot_dimension_numbers<[1], [0], [0], [1], [0, 0, 1, 1], [], []>} : vector<128x2xbf16>, vector<2x2xbf16>, vector<128x2xf32> -> vector<128x2xf32>
    %85 = arith.addf %73, %84 : vector<128x2xf32>
    %86 = vector.extract_strided_slice %59 {offsets = [2, 0, 0], sizes = [8, 16, 2], strides = [1, 1, 1]} : vector<10x16x2xbf16> to vector<8x16x2xbf16>
    %87 = vector.shape_cast %86 : vector<8x16x2xbf16> to vector<128x2xbf16>
    %88 = vector.extract_strided_slice %61 {offsets = [2, 0, 0], sizes = [8, 16, 2], strides = [1, 1, 1]} : vector<10x16x2xbf16> to vector<8x16x2xbf16>
    %89 = vector.shape_cast %88 : vector<8x16x2xbf16> to vector<128x2xbf16>
    %c2_60 = arith.constant 2 : index
    %c1_61 = arith.constant 1 : index
    %c0_62 = arith.constant 0 : index
    %c0_63 = arith.constant 0 : index
    %90 = vector.load %arg6[%c2_60, %c1_61, %c0_62, %c0_63] : memref<3x3x2x2xbf16, #tpu.memory_space<vmem>>, vector<1x1x2x2xbf16>
    %91 = vector.shape_cast %90 : vector<1x1x2x2xbf16> to vector<2x2xbf16>
    %cst_64 = arith.constant dense<0.000000e+00> : vector<128x2xf32>
    %92 = tpu.matmul %87, %91, %cst_64 {dimension_numbers = #tpu.dot_dimension_numbers<[1], [0], [0], [1], [0, 0, 1, 1], [], []>} : vector<128x2xbf16>, vector<2x2xbf16>, vector<128x2xf32> -> vector<128x2xf32>
    %93 = arith.addf %81, %92 : vector<128x2xf32>
    %c2_65 = arith.constant 2 : index
    %c1_66 = arith.constant 1 : index
    %c0_67 = arith.constant 0 : index
    %c0_68 = arith.constant 0 : index
    %94 = vector.load %arg7[%c2_65, %c1_66, %c0_67, %c0_68] : memref<3x3x2x2xbf16, #tpu.memory_space<vmem>>, vector<1x1x2x2xbf16>
    %95 = vector.shape_cast %94 : vector<1x1x2x2xbf16> to vector<2x2xbf16>
    %cst_69 = arith.constant dense<0.000000e+00> : vector<128x2xf32>
    %96 = tpu.matmul %89, %95, %cst_69 {dimension_numbers = #tpu.dot_dimension_numbers<[1], [0], [0], [1], [0, 0, 1, 1], [], []>} : vector<128x2xbf16>, vector<2x2xbf16>, vector<128x2xf32> -> vector<128x2xf32>
    %97 = arith.addf %85, %96 : vector<128x2xf32>
    %98 = vector.extract_strided_slice %17 {offsets = [0, 2, 0], sizes = [10, 16, 2], strides = [1, 1, 1]} : vector<10x18x2xf32> to vector<10x16x2xf32>
    %99 = arith.truncf %98 : vector<10x16x2xf32> to vector<10x16x2xbf16>
    %100 = vector.extract_strided_slice %12 {offsets = [0, 2, 0], sizes = [10, 16, 2], strides = [1, 1, 1]} : vector<10x18x2xf32> to vector<10x16x2xf32>
    %101 = arith.truncf %100 : vector<10x16x2xf32> to vector<10x16x2xbf16>
    %102 = vector.extract_strided_slice %99 {offsets = [0, 0, 0], sizes = [8, 16, 2], strides = [1, 1, 1]} : vector<10x16x2xbf16> to vector<8x16x2xbf16>
    %103 = vector.shape_cast %102 : vector<8x16x2xbf16> to vector<128x2xbf16>
    %104 = vector.extract_strided_slice %101 {offsets = [0, 0, 0], sizes = [8, 16, 2], strides = [1, 1, 1]} : vector<10x16x2xbf16> to vector<8x16x2xbf16>
    %105 = vector.shape_cast %104 : vector<8x16x2xbf16> to vector<128x2xbf16>
    %c0_70 = arith.constant 0 : index
    %c2_71 = arith.constant 2 : index
    %c0_72 = arith.constant 0 : index
    %c0_73 = arith.constant 0 : index
    %106 = vector.load %arg6[%c0_70, %c2_71, %c0_72, %c0_73] : memref<3x3x2x2xbf16, #tpu.memory_space<vmem>>, vector<1x1x2x2xbf16>
    %107 = vector.shape_cast %106 : vector<1x1x2x2xbf16> to vector<2x2xbf16>
    %cst_74 = arith.constant dense<0.000000e+00> : vector<128x2xf32>
    %108 = tpu.matmul %103, %107, %cst_74 {dimension_numbers = #tpu.dot_dimension_numbers<[1], [0], [0], [1], [0, 0, 1, 1], [], []>} : vector<128x2xbf16>, vector<2x2xbf16>, vector<128x2xf32> -> vector<128x2xf32>
    %109 = arith.addf %93, %108 : vector<128x2xf32>
    %c0_75 = arith.constant 0 : index
    %c2_76 = arith.constant 2 : index
    %c0_77 = arith.constant 0 : index
    %c0_78 = arith.constant 0 : index
    %110 = vector.load %arg7[%c0_75, %c2_76, %c0_77, %c0_78] : memref<3x3x2x2xbf16, #tpu.memory_space<vmem>>, vector<1x1x2x2xbf16>
    %111 = vector.shape_cast %110 : vector<1x1x2x2xbf16> to vector<2x2xbf16>
    %cst_79 = arith.constant dense<0.000000e+00> : vector<128x2xf32>
    %112 = tpu.matmul %105, %111, %cst_79 {dimension_numbers = #tpu.dot_dimension_numbers<[1], [0], [0], [1], [0, 0, 1, 1], [], []>} : vector<128x2xbf16>, vector<2x2xbf16>, vector<128x2xf32> -> vector<128x2xf32>
    %113 = arith.addf %97, %112 : vector<128x2xf32>
    %114 = vector.extract_strided_slice %99 {offsets = [1, 0, 0], sizes = [8, 16, 2], strides = [1, 1, 1]} : vector<10x16x2xbf16> to vector<8x16x2xbf16>
    %115 = vector.shape_cast %114 : vector<8x16x2xbf16> to vector<128x2xbf16>
    %116 = vector.extract_strided_slice %101 {offsets = [1, 0, 0], sizes = [8, 16, 2], strides = [1, 1, 1]} : vector<10x16x2xbf16> to vector<8x16x2xbf16>
    %117 = vector.shape_cast %116 : vector<8x16x2xbf16> to vector<128x2xbf16>
    %c1_80 = arith.constant 1 : index
    %c2_81 = arith.constant 2 : index
    %c0_82 = arith.constant 0 : index
    %c0_83 = arith.constant 0 : index
    %118 = vector.load %arg6[%c1_80, %c2_81, %c0_82, %c0_83] : memref<3x3x2x2xbf16, #tpu.memory_space<vmem>>, vector<1x1x2x2xbf16>
    %119 = vector.shape_cast %118 : vector<1x1x2x2xbf16> to vector<2x2xbf16>
    %cst_84 = arith.constant dense<0.000000e+00> : vector<128x2xf32>
    %120 = tpu.matmul %115, %119, %cst_84 {dimension_numbers = #tpu.dot_dimension_numbers<[1], [0], [0], [1], [0, 0, 1, 1], [], []>} : vector<128x2xbf16>, vector<2x2xbf16>, vector<128x2xf32> -> vector<128x2xf32>
    %121 = arith.addf %109, %120 : vector<128x2xf32>
    %c1_85 = arith.constant 1 : index
    %c2_86 = arith.constant 2 : index
    %c0_87 = arith.constant 0 : index
    %c0_88 = arith.constant 0 : index
    %122 = vector.load %arg7[%c1_85, %c2_86, %c0_87, %c0_88] : memref<3x3x2x2xbf16, #tpu.memory_space<vmem>>, vector<1x1x2x2xbf16>
    %123 = vector.shape_cast %122 : vector<1x1x2x2xbf16> to vector<2x2xbf16>
    %cst_89 = arith.constant dense<0.000000e+00> : vector<128x2xf32>
    %124 = tpu.matmul %117, %123, %cst_89 {dimension_numbers = #tpu.dot_dimension_numbers<[1], [0], [0], [1], [0, 0, 1, 1], [], []>} : vector<128x2xbf16>, vector<2x2xbf16>, vector<128x2xf32> -> vector<128x2xf32>
    %125 = arith.addf %113, %124 : vector<128x2xf32>
    %126 = vector.extract_strided_slice %99 {offsets = [2, 0, 0], sizes = [8, 16, 2], strides = [1, 1, 1]} : vector<10x16x2xbf16> to vector<8x16x2xbf16>
    %127 = vector.shape_cast %126 : vector<8x16x2xbf16> to vector<128x2xbf16>
    %128 = vector.extract_strided_slice %101 {offsets = [2, 0, 0], sizes = [8, 16, 2], strides = [1, 1, 1]} : vector<10x16x2xbf16> to vector<8x16x2xbf16>
    %129 = vector.shape_cast %128 : vector<8x16x2xbf16> to vector<128x2xbf16>
    %c2_90 = arith.constant 2 : index
    %c2_91 = arith.constant 2 : index
    %c0_92 = arith.constant 0 : index
    %c0_93 = arith.constant 0 : index
    %130 = vector.load %arg6[%c2_90, %c2_91, %c0_92, %c0_93] : memref<3x3x2x2xbf16, #tpu.memory_space<vmem>>, vector<1x1x2x2xbf16>
    %131 = vector.shape_cast %130 : vector<1x1x2x2xbf16> to vector<2x2xbf16>
    %cst_94 = arith.constant dense<0.000000e+00> : vector<128x2xf32>
    %132 = tpu.matmul %127, %131, %cst_94 {dimension_numbers = #tpu.dot_dimension_numbers<[1], [0], [0], [1], [0, 0, 1, 1], [], []>} : vector<128x2xbf16>, vector<2x2xbf16>, vector<128x2xf32> -> vector<128x2xf32>
    %133 = arith.addf %121, %132 : vector<128x2xf32>
    %c2_95 = arith.constant 2 : index
    %c2_96 = arith.constant 2 : index
    %c0_97 = arith.constant 0 : index
    %c0_98 = arith.constant 0 : index
    %134 = vector.load %arg7[%c2_95, %c2_96, %c0_97, %c0_98] : memref<3x3x2x2xbf16, #tpu.memory_space<vmem>>, vector<1x1x2x2xbf16>
    %135 = vector.shape_cast %134 : vector<1x1x2x2xbf16> to vector<2x2xbf16>
    %cst_99 = arith.constant dense<0.000000e+00> : vector<128x2xf32>
    %136 = tpu.matmul %129, %135, %cst_99 {dimension_numbers = #tpu.dot_dimension_numbers<[1], [0], [0], [1], [0, 0, 1, 1], [], []>} : vector<128x2xbf16>, vector<2x2xbf16>, vector<128x2xf32> -> vector<128x2xf32>
    %137 = arith.addf %125, %136 : vector<128x2xf32>
    %cst_100 = arith.constant dense<0.000000e+00> : vector<2xf32>
    %138 = vector.multi_reduction <add>, %133, %cst_100 [0] : vector<128x2xf32> to vector<2xf32>
    %139 = vector.shape_cast %138 : vector<2xf32> to vector<1x2xf32>
    %c0_101 = arith.constant 0 : index
    %c0_102 = arith.constant 0 : index
    %c0_103 = arith.constant 0 : index
    %140 = vector.load %arg11[%c0_101, %c0_102, %c0_103] : memref<1x2x2xf32, #tpu.memory_space<vmem>>, vector<1x1x2xf32>
    %141 = vector.shape_cast %140 : vector<1x1x2xf32> to vector<1x2xf32>
    %142 = vector.shape_cast %139 : vector<1x2xf32> to vector<1x1x2xf32>
    tpu.vector_store %arg11[%c0_101, %c0_102, %c0_103], %142 {strides = array<i32>} : memref<1x2x2xf32, #tpu.memory_space<vmem>>, vector<1x1x2xf32>,
    %143 = arith.mulf %133, %133 : vector<128x2xf32>
    %cst_104 = arith.constant dense<0.000000e+00> : vector<2xf32>
    %144 = vector.multi_reduction <add>, %143, %cst_104 [0] : vector<128x2xf32> to vector<2xf32>
    %145 = vector.shape_cast %144 : vector<2xf32> to vector<1x2xf32>
    %c0_105 = arith.constant 0 : index
    %c1_106 = arith.constant 1 : index
    %c0_107 = arith.constant 0 : index
    %146 = vector.load %arg11[%c0_105, %c1_106, %c0_107] : memref<1x2x2xf32, #tpu.memory_space<vmem>>, vector<1x1x2xf32>
    %147 = vector.shape_cast %146 : vector<1x1x2xf32> to vector<1x2xf32>
    %148 = vector.shape_cast %145 : vector<1x2xf32> to vector<1x1x2xf32>
    tpu.vector_store %arg11[%c0_105, %c1_106, %c0_107], %148 {strides = array<i32>} : memref<1x2x2xf32, #tpu.memory_space<vmem>>, vector<1x1x2xf32>,
    %cst_108 = arith.constant dense<0.000000e+00> : vector<2xf32>
    %149 = vector.multi_reduction <add>, %137, %cst_108 [0] : vector<128x2xf32> to vector<2xf32>
    %150 = vector.shape_cast %149 : vector<2xf32> to vector<1x2xf32>
    %c0_109 = arith.constant 0 : index
    %c0_110 = arith.constant 0 : index
    %c0_111 = arith.constant 0 : index
    %151 = vector.load %arg12[%c0_109, %c0_110, %c0_111] : memref<1x2x2xf32, #tpu.memory_space<vmem>>, vector<1x1x2xf32>
    %152 = vector.shape_cast %151 : vector<1x1x2xf32> to vector<1x2xf32>
    %153 = vector.shape_cast %150 : vector<1x2xf32> to vector<1x1x2xf32>
    tpu.vector_store %arg12[%c0_109, %c0_110, %c0_111], %153 {strides = array<i32>} : memref<1x2x2xf32, #tpu.memory_space<vmem>>, vector<1x1x2xf32>,
    %154 = arith.mulf %137, %137 : vector<128x2xf32>
    %cst_112 = arith.constant dense<0.000000e+00> : vector<2xf32>
    %155 = vector.multi_reduction <add>, %154, %cst_112 [0] : vector<128x2xf32> to vector<2xf32>
    %156 = vector.shape_cast %155 : vector<2xf32> to vector<1x2xf32>
    %c0_113 = arith.constant 0 : index
    %c1_114 = arith.constant 1 : index
    %c0_115 = arith.constant 0 : index
    %157 = vector.load %arg12[%c0_113, %c1_114, %c0_115] : memref<1x2x2xf32, #tpu.memory_space<vmem>>, vector<1x1x2xf32>
    %158 = vector.shape_cast %157 : vector<1x1x2xf32> to vector<1x2xf32>
    %159 = vector.shape_cast %156 : vector<1x2xf32> to vector<1x1x2xf32>
    tpu.vector_store %arg12[%c0_113, %c1_114, %c0_115], %159 {strides = array<i32>} : memref<1x2x2xf32, #tpu.memory_space<vmem>>, vector<1x1x2xf32>,
    %160 = arith.truncf %133 : vector<128x2xf32> to vector<128x2xbf16>
    %c0_116 = arith.constant 0 : index
    %c0_117 = arith.constant 0 : index
    %161 = vector.load %arg9[%c0_116, %c0_117] : memref<128x2xbf16, #tpu.memory_space<vmem>>, vector<128x2xbf16>
    tpu.vector_store %arg9[%c0_116, %c0_117], %160 {strides = array<i32>} : memref<128x2xbf16, #tpu.memory_space<vmem>>, vector<128x2xbf16>,
    %162 = arith.truncf %137 : vector<128x2xf32> to vector<128x2xbf16>
    %c0_118 = arith.constant 0 : index
    %c0_119 = arith.constant 0 : index
    %163 = vector.load %arg10[%c0_118, %c0_119] : memref<128x2xbf16, #tpu.memory_space<vmem>>, vector<128x2xbf16>
    tpu.vector_store %arg10[%c0_118, %c0_119], %162 {strides = array<i32>} : memref<128x2xbf16, #tpu.memory_space<vmem>>, vector<128x2xbf16>,
    return
  }
  func.func @transform_0(%arg0: i32, %arg1: i32) -> (i32, i32, i32, i32) {
    %c0_i32 = arith.constant 0 : i32
    %c0_i32_0 = arith.constant 0 : i32
    %c0_i32_1 = arith.constant 0 : i32
    %c0_i32_2 = arith.constant 0 : i32
    return %arg0, %c0_i32, %c0_i32_0, %c0_i32_1 : i32, i32, i32, i32
  }
  func.func @transform_1(%arg0: i32, %arg1: i32) -> (i32, i32, i32, i32) {
    %c0_i32 = arith.constant 0 : i32
    %c0_i32_0 = arith.constant 0 : i32
    %c0_i32_1 = arith.constant 0 : i32
    %c0_i32_2 = arith.constant 0 : i32
    return %arg0, %c0_i32, %c0_i32_0, %c0_i32_1 : i32, i32, i32, i32
  }
  func.func @transform_2(%arg0: i32, %arg1: i32) -> (i32, i32) {
    %c2_i32 = arith.constant 2 : i32
    %0 = arith.muli %arg0, %c2_i32 : i32
    %1 = arith.addi %0, %arg1 : i32
    %c0_i32 = arith.constant 0 : i32
    %c0_i32_0 = arith.constant 0 : i32
    return %1, %c0_i32 : i32, i32
  }
  func.func @transform_3(%arg0: i32, %arg1: i32) -> (i32, i32) {
    %c2_i32 = arith.constant 2 : i32
    %0 = arith.muli %arg0, %c2_i32 : i32
    %1 = arith.addi %0, %arg1 : i32
    %c0_i32 = arith.constant 0 : i32
    %c0_i32_0 = arith.constant 0 : i32
    return %1, %c0_i32 : i32, i32
  }
  func.func @transform_4(%arg0: i32, %arg1: i32) -> (i32, i32, i32, i32) {
    %c0_i32 = arith.constant 0 : i32
    %c0_i32_0 = arith.constant 0 : i32
    %c0_i32_1 = arith.constant 0 : i32
    %c0_i32_2 = arith.constant 0 : i32
    %c0_i32_3 = arith.constant 0 : i32
    return %c0_i32, %c0_i32_0, %c0_i32_1, %c0_i32_2 : i32, i32, i32, i32
  }
  func.func @transform_5(%arg0: i32, %arg1: i32) -> (i32, i32, i32, i32) {
    %c0_i32 = arith.constant 0 : i32
    %c0_i32_0 = arith.constant 0 : i32
    %c0_i32_1 = arith.constant 0 : i32
    %c0_i32_2 = arith.constant 0 : i32
    %c0_i32_3 = arith.constant 0 : i32
    return %c0_i32, %c0_i32_0, %c0_i32_1, %c0_i32_2 : i32, i32, i32, i32
  }
  func.func @transform_6(%arg0: i32, %arg1: i32) -> (i32, i32) {
    %c0_i32 = arith.constant 0 : i32
    %c0_i32_0 = arith.constant 0 : i32
    %c0_i32_1 = arith.constant 0 : i32
    return %c0_i32, %c0_i32_0 : i32, i32
  }
  func.func @transform_7(%arg0: i32, %arg1: i32) -> (i32, i32) {
    %c2_i32 = arith.constant 2 : i32
    %0 = arith.muli %arg0, %c2_i32 : i32
    %1 = arith.addi %0, %arg1 : i32
    %c0_i32 = arith.constant 0 : i32
    %c0_i32_0 = arith.constant 0 : i32
    return %1, %c0_i32 : i32, i32
  }
  func.func @transform_8(%arg0: i32, %arg1: i32) -> (i32, i32) {
    %c2_i32 = arith.constant 2 : i32
    %0 = arith.muli %arg0, %c2_i32 : i32
    %1 = arith.addi %0, %arg1 : i32
    %c0_i32 = arith.constant 0 : i32
    %c0_i32_0 = arith.constant 0 : i32
    return %1, %c0_i32 : i32, i32
  }
  func.func @transform_9(%arg0: i32, %arg1: i32) -> (i32, i32, i32) {
    %c2_i32 = arith.constant 2 : i32
    %0 = arith.muli %arg0, %c2_i32 : i32
    %1 = arith.addi %0, %arg1 : i32
    %c0_i32 = arith.constant 0 : i32
    %c0_i32_0 = arith.constant 0 : i32
    %c0_i32_1 = arith.constant 0 : i32
    return %1, %c0_i32, %c0_i32_0 : i32, i32, i32
  }
  func.func @transform_10(%arg0: i32, %arg1: i32) -> (i32, i32, i32) {
    %c2_i32 = arith.constant 2 : i32
    %0 = arith.muli %arg0, %c2_i32 : i32
    %1 = arith.addi %0, %arg1 : i32
    %c0_i32 = arith.constant 0 : i32
    %c0_i32_0 = arith.constant 0 : i32
    %c0_i32_1 = arith.constant 0 : i32
    return %1, %c0_i32, %c0_i32_0 : i32, i32, i32
  }
}

module attributes {stable_mosaic.version = 11 : i64} {
  func.func @_bn_relu_kernel(%arg0: i32, %arg1: memref<128x2xbf16, #tpu.memory_space<vmem>>, %arg2: memref<1x2xf32, #tpu.memory_space<vmem>>, %arg3: memref<1x2xf32, #tpu.memory_space<vmem>>, %arg4: memref<128x2xbf16, #tpu.memory_space<vmem>>) attributes {dimension_semantics = [#tpu.dimension_semantics<parallel>], iteration_bounds = array<i64: 4>, scalar_prefetch = 0 : i64, scratch_operands = 0 : i64, tpu.core_type = #tpu.core_type<tc>, window_params = [{transform_indices = @transform_0, window_bounds = array<i64: 128, 2>}, {pipeline_mode = #tpu.pipeline_mode<synchronous>, transform_indices = @transform_1, window_bounds = array<i64: 1, 2>}, {pipeline_mode = #tpu.pipeline_mode<synchronous>, transform_indices = @transform_2, window_bounds = array<i64: 1, 2>}, {transform_indices = @transform_3, window_bounds = array<i64: 128, 2>}]} {
    %c0 = arith.constant 0 : index
    %c0_0 = arith.constant 0 : index
    %0 = vector.load %arg1[%c0, %c0_0] : memref<128x2xbf16, #tpu.memory_space<vmem>>, vector<128x2xbf16>
    %1 = arith.extf %0 : vector<128x2xbf16> to vector<128x2xf32>
    %c0_1 = arith.constant 0 : index
    %c0_2 = arith.constant 0 : index
    %2 = vector.load %arg2[%c0_1, %c0_2] : memref<1x2xf32, #tpu.memory_space<vmem>>, vector<1x2xf32>
    %3 = vector.broadcast %2 : vector<1x2xf32> to vector<128x2xf32>
    %4 = arith.mulf %1, %3 : vector<128x2xf32>
    %c0_3 = arith.constant 0 : index
    %c0_4 = arith.constant 0 : index
    %5 = vector.load %arg3[%c0_3, %c0_4] : memref<1x2xf32, #tpu.memory_space<vmem>>, vector<1x2xf32>
    %6 = vector.broadcast %5 : vector<1x2xf32> to vector<128x2xf32>
    %7 = arith.addf %4, %6 : vector<128x2xf32>
    %cst = arith.constant 0.000000e+00 : f32
    %8 = vector.broadcast %cst : f32 to vector<128x2xf32>
    %9 = arith.maximumf %7, %8 : vector<128x2xf32>
    %10 = arith.truncf %9 : vector<128x2xf32> to vector<128x2xbf16>
    %c0_5 = arith.constant 0 : index
    %c0_6 = arith.constant 0 : index
    %11 = vector.load %arg4[%c0_5, %c0_6] : memref<128x2xbf16, #tpu.memory_space<vmem>>, vector<128x2xbf16>
    tpu.vector_store %arg4[%c0_5, %c0_6], %10 {strides = array<i32>} : memref<128x2xbf16, #tpu.memory_space<vmem>>, vector<128x2xbf16>,
    return
  }
  func.func @transform_0(%arg0: i32) -> (i32, i32) {
    %c0_i32 = arith.constant 0 : i32
    %c0_i32_0 = arith.constant 0 : i32
    return %arg0, %c0_i32 : i32, i32
  }
  func.func @transform_1(%arg0: i32) -> (i32, i32) {
    %c0_i32 = arith.constant 0 : i32
    %c0_i32_0 = arith.constant 0 : i32
    %c0_i32_1 = arith.constant 0 : i32
    return %c0_i32, %c0_i32_0 : i32, i32
  }
  func.func @transform_2(%arg0: i32) -> (i32, i32) {
    %c0_i32 = arith.constant 0 : i32
    %c0_i32_0 = arith.constant 0 : i32
    %c0_i32_1 = arith.constant 0 : i32
    return %c0_i32, %c0_i32_0 : i32, i32
  }
  func.func @transform_3(%arg0: i32) -> (i32, i32) {
    %c0_i32 = arith.constant 0 : i32
    %c0_i32_0 = arith.constant 0 : i32
    return %arg0, %c0_i32 : i32, i32
  }
}

module attributes {stable_mosaic.version = 11 : i64} {
  func.func @_bn_relu_res_kernel(%arg0: i32, %arg1: memref<128x2xbf16, #tpu.memory_space<vmem>>, %arg2: memref<1x2xf32, #tpu.memory_space<vmem>>, %arg3: memref<1x2xf32, #tpu.memory_space<vmem>>, %arg4: memref<128x2xf32, #tpu.memory_space<vmem>>, %arg5: memref<128x2xf32, #tpu.memory_space<vmem>>) attributes {dimension_semantics = [#tpu.dimension_semantics<parallel>], iteration_bounds = array<i64: 4>, scalar_prefetch = 0 : i64, scratch_operands = 0 : i64, tpu.core_type = #tpu.core_type<tc>, window_params = [{transform_indices = @transform_0, window_bounds = array<i64: 128, 2>}, {pipeline_mode = #tpu.pipeline_mode<synchronous>, transform_indices = @transform_1, window_bounds = array<i64: 1, 2>}, {pipeline_mode = #tpu.pipeline_mode<synchronous>, transform_indices = @transform_2, window_bounds = array<i64: 1, 2>}, {transform_indices = @transform_3, window_bounds = array<i64: 128, 2>}, {transform_indices = @transform_4, window_bounds = array<i64: 128, 2>}]} {
    %c0 = arith.constant 0 : index
    %c0_0 = arith.constant 0 : index
    %0 = vector.load %arg1[%c0, %c0_0] : memref<128x2xbf16, #tpu.memory_space<vmem>>, vector<128x2xbf16>
    %1 = arith.extf %0 : vector<128x2xbf16> to vector<128x2xf32>
    %c0_1 = arith.constant 0 : index
    %c0_2 = arith.constant 0 : index
    %2 = vector.load %arg2[%c0_1, %c0_2] : memref<1x2xf32, #tpu.memory_space<vmem>>, vector<1x2xf32>
    %3 = vector.broadcast %2 : vector<1x2xf32> to vector<128x2xf32>
    %4 = arith.mulf %1, %3 : vector<128x2xf32>
    %c0_3 = arith.constant 0 : index
    %c0_4 = arith.constant 0 : index
    %5 = vector.load %arg3[%c0_3, %c0_4] : memref<1x2xf32, #tpu.memory_space<vmem>>, vector<1x2xf32>
    %6 = vector.broadcast %5 : vector<1x2xf32> to vector<128x2xf32>
    %7 = arith.addf %4, %6 : vector<128x2xf32>
    %cst = arith.constant 0.000000e+00 : f32
    %8 = vector.broadcast %cst : f32 to vector<128x2xf32>
    %9 = arith.maximumf %7, %8 : vector<128x2xf32>
    %c0_5 = arith.constant 0 : index
    %c0_6 = arith.constant 0 : index
    %10 = vector.load %arg4[%c0_5, %c0_6] : memref<128x2xf32, #tpu.memory_space<vmem>>, vector<128x2xf32>
    %11 = arith.addf %10, %9 : vector<128x2xf32>
    %c0_7 = arith.constant 0 : index
    %c0_8 = arith.constant 0 : index
    %12 = vector.load %arg5[%c0_7, %c0_8] : memref<128x2xf32, #tpu.memory_space<vmem>>, vector<128x2xf32>
    tpu.vector_store %arg5[%c0_7, %c0_8], %11 {strides = array<i32>} : memref<128x2xf32, #tpu.memory_space<vmem>>, vector<128x2xf32>,
    return
  }
  func.func @transform_0(%arg0: i32) -> (i32, i32) {
    %c0_i32 = arith.constant 0 : i32
    %c0_i32_0 = arith.constant 0 : i32
    return %arg0, %c0_i32 : i32, i32
  }
  func.func @transform_1(%arg0: i32) -> (i32, i32) {
    %c0_i32 = arith.constant 0 : i32
    %c0_i32_0 = arith.constant 0 : i32
    %c0_i32_1 = arith.constant 0 : i32
    return %c0_i32, %c0_i32_0 : i32, i32
  }
  func.func @transform_2(%arg0: i32) -> (i32, i32) {
    %c0_i32 = arith.constant 0 : i32
    %c0_i32_0 = arith.constant 0 : i32
    %c0_i32_1 = arith.constant 0 : i32
    return %c0_i32, %c0_i32_0 : i32, i32
  }
  func.func @transform_3(%arg0: i32) -> (i32, i32) {
    %c0_i32 = arith.constant 0 : i32
    %c0_i32_0 = arith.constant 0 : i32
    return %arg0, %c0_i32 : i32, i32
  }
  func.func @transform_4(%arg0: i32) -> (i32, i32) {
    %c0_i32 = arith.constant 0 : i32
    %c0_i32_0 = arith.constant 0 : i32
    return %arg0, %c0_i32 : i32, i32
  }
}

</mosaic_0001>

<llo_original>
// kernel: ffc_resnet_block.14
$region0: #{ffc_resnet_block.14}
  #allocation0 [shape = 'u32[]', space=smem, size = 0x4, offset = 0x4, fixed_abs, tag = 'smem constant byte address 0x4 - core index']
  #allocation1 [shape = 'u32[144,128]{1,0:T(1,128)}', space=vmem, size = 0x12000, scoped, tag = 'internal scratch']
  %s0 = inlined_call_operand.hbm [shape: bf16[512,2], index: 0, kind: input, shape index: {}]
  %s1 = inlined_call_operand.hbm [shape: bf16[2,1], index: 1, kind: input, shape index: {}]
  %s2 = inlined_call_operand.hbm [shape: bf16[512,1], index: 2, kind: output, shape index: {0}]
  %s3 = inlined_call_operand.hbm [shape: f32[4,2,1], index: 3, kind: output, shape index: {1}]
  %4 = xla_tuple %s2, %s3
  %s5 = sld [smem:[#allocation0]]
  $region57: #{ffc_resnet_block.14} parent=0
    _
  %s7 = ssub.s32 1, %s5
  %s8 = scalar_select 0, %s7, %s5
  $region1: #{ffc_resnet_block.14} parent=0
    #allocation2 [shape = 'u8[65536]{0}', space=vmem, size = 0x10000, scoped, tag = 'input window, operand 0']
    #allocation3 [shape = 's32[2]{0}', space=sflag, size = 0x8, scoped, tag = 'scoped memory for ffc_resnet_block.14']
    #allocation4 [shape = 's32[2]{0}', space=sflag, size = 0x8, scoped, tag = 'scoped memory for ffc_resnet_block.14']
    #allocation5 [shape = 'u8[512]{0}', space=vmem, size = 0x400, scoped, tag = 'input window, operand 1, single buffered']
    #allocation6 [shape = 's32[1]{0}', space=sflag, size = 0x4, scoped, tag = 'scoped memory for ffc_resnet_block.14']
    #allocation7 [shape = 'u8[65536]{0}', space=vmem, size = 0x10000, scoped, tag = 'output window, operand 0']
    #allocation8 [shape = 'u8[2048]{0}', space=vmem, size = 0x800, scoped, tag = 'output window, operand 1']
    #allocation9 [shape = 's32[2]{0}', space=sflag, size = 0x8, scoped, tag = 'scoped memory for ffc_resnet_block.14']
    %9 = vsyncpa [#allocation3], 0
    %s10 = scalar_lea.sflag [#allocation3], 1
    %11 = vsyncpa %s10, 0
    %12 = vsyncpa [#allocation6], 0
    %13 = vsyncpa [#allocation4], 0
    %s14 = scalar_lea.sflag [#allocation4], 1
    %15 = vsyncpa %s14, 0
    %16 = vsyncpa [#allocation9], 0
    %s17 = scalar_lea.sflag [#allocation9], 1
    %18 = vsyncpa %s17, 0
    loop: start=0, step=1, limit=6
    $region2: #{ffc_resnet_block.14} parent=1 // loop_pre_header
      _
    $region3: #{ffc_resnet_block.14} parent=1 // loop_header
      %s20 = sphi 0, %s24
      %p21 = scmp.ge.s32.totalorder %s20, 6
      %s30 = sphi 0, %s32
      %s33 = sphi 0, %s30
      %s34 = sphi 0, %s33
      %s50 = sphi 0, %s34
      %s54 = sphi 0, %s54
      %s56 = sphi 0, %s54
      %s57 = sphi 0, %s56
      %s71 = sphi 0, %s57
      %s77 = sphi 0, %s79
      %s80 = sphi 0, %s77
      %s81 = sphi 0, %s80
      %s97 = sphi 0, %s81
      %s103 = sphi 0, %s105
      %s106 = sphi 0, %s103
      %s107 = sphi 0, %s106
      %s123 = sphi 0, %s107
    $region4: #{ffc_resnet_block.14} parent=1 // loop_header_branch
      %23 = sbr.rel (%p21) target = $region8
    $region5: #{ffc_resnet_block.14} parent=1 // loop_body
      %s25 = ssub.s32 %s20, 1
      %s26 = ssub.s32 %s20, 2
      %s27 = sadd.s32 %s20, 1
      %s28 = ssub.s32 %s20, %s27
      %p29 = scmp.eq.s32.totalorder %s28, 0
      %s31 = sadd.s32 %s30, 1
      %s32 = scalar_select %p29, %s30, %s31
      %p35 = pneg %p29
      %p36 = scmp.eq.s32.totalorder %s20, 3
      %p37 = por %p35, %p36
      %p38 = scmp.ne.s32.totalorder %s30, %s33
      %p39 = scmp.eq.s32.totalorder %s20, 0
      %p40 = por %p38, %p39
      %p41 = scmp.ne.s32.totalorder %s30, %s33
      %p42 = scmp.eq.s32.totalorder %s25, 3
      %p43 = por %p41, %p42
      %p44 = scmp.ne.s32.totalorder %s33, %s34
      %p45 = scmp.eq.s32.totalorder %s25, 0
      %p46 = por %p44, %p45
      %p47 = scmp.ne.s32.totalorder %s33, %s34
      %p48 = scmp.eq.s32.totalorder %s26, 3
      %p49 = por %p47, %p48
      %p51 = scmp.ne.s32.totalorder %s34, %s50
      %p52 = scmp.eq.s32.totalorder %s26, 0
      %p53 = por %p51, %p52
      %s55 = sadd.s32 %s54, 1
      %p58 = scmp.eq.s32.totalorder %s20, 3
      %p59 = scmp.ne.s32.totalorder %s54, %s56
      %p60 = scmp.eq.s32.totalorder %s20, 0
      %p61 = por %p59, %p60
      %p62 = scmp.ne.s32.totalorder %s54, %s56
      %p63 = scmp.eq.s32.totalorder %s25, 3
      %p64 = por %p62, %p63
      %p65 = scmp.ne.s32.totalorder %s56, %s57
      %p66 = scmp.eq.s32.totalorder %s25, 0
      %p67 = por %p65, %p66
      %p68 = scmp.ne.s32.totalorder %s56, %s57
      %p69 = scmp.eq.s32.totalorder %s26, 3
      %p70 = por %p68, %p69
      %p72 = scmp.ne.s32.totalorder %s57, %s71
      %p73 = scmp.eq.s32.totalorder %s26, 0
      %p74 = por %p72, %p73
      %s75 = ssub.s32 %s20, %s27
      %p76 = scmp.eq.s32.totalorder %s75, 0
      %s78 = sadd.s32 %s77, 1
      %s79 = scalar_select %p76, %s77, %s78
      %p82 = pneg %p76
      %p83 = scmp.eq.s32.totalorder %s20, 3
      %p84 = por %p82, %p83
      %p85 = scmp.ne.s32.totalorder %s77, %s80
      %p86 = scmp.eq.s32.totalorder %s20, 0
      %p87 = por %p85, %p86
      %p88 = scmp.ne.s32.totalorder %s77, %s80
      %p89 = scmp.eq.s32.totalorder %s25, 3
      %p90 = por %p88, %p89
      %p91 = scmp.ne.s32.totalorder %s80, %s81
      %p92 = scmp.eq.s32.totalorder %s25, 0
      %p93 = por %p91, %p92
      %p94 = scmp.ne.s32.totalorder %s80, %s81
      %p95 = scmp.eq.s32.totalorder %s26, 3
      %p96 = por %p94, %p95
      %p98 = scmp.ne.s32.totalorder %s81, %s97
      %p99 = scmp.eq.s32.totalorder %s26, 0
      %p100 = por %p98, %p99
      %s101 = ssub.s32 %s20, %s27
      %p102 = scmp.eq.s32.totalorder %s101, 0
      %s104 = sadd.s32 %s103, 1
      %s105 = scalar_select %p102, %s103, %s104
      %p108 = pneg %p102
      %p109 = scmp.eq.s32.totalorder %s20, 3
      %p110 = por %p108, %p109
      %p111 = scmp.ne.s32.totalorder %s103, %s106
      %p112 = scmp.eq.s32.totalorder %s20, 0
      %p113 = por %p111, %p112
      %p114 = scmp.ne.s32.totalorder %s103, %s106
      %p115 = scmp.eq.s32.totalorder %s25, 3
      %p116 = por %p114, %p115
      %p117 = scmp.ne.s32.totalorder %s106, %s107
      %p118 = scmp.eq.s32.totalorder %s25, 0
      %p119 = por %p117, %p118
      %p120 = scmp.ne.s32.totalorder %s106, %s107
      %p121 = scmp.eq.s32.totalorder %s26, 3
      %p122 = por %p120, %p121
      %p124 = scmp.ne.s32.totalorder %s107, %s123
      %p125 = scmp.eq.s32.totalorder %s26, 0
      %p126 = por %p124, %p125
      %p127 = scmp.le.s32.totalorder 1, %s20
      %p128 = scmp.lt.s32.totalorder %s20, 5
      %p129 = pnand %p127, %p128
      %p130 = pneg %p129
      // Predicated region
      $region9: #{ffc_resnet_block.14} parent=5 // pred_check
        _
      $region10: #{ffc_resnet_block.14} parent=5 // pred_check_branch
        %132 = sbr.rel (%p129) target = $region12
      $region11: #{ffc_resnet_block.14} parent=5 // pred_region
        %s133 = ssub.s32 %s20, 1
        // Predicated region
        $region13: #{ffc_resnet_block.14} parent=11 // pred_check
          %p134 = pneg %p67
        $region14: #{ffc_resnet_block.14} parent=11 // pred_check_branch
          %136 = sbr.rel (%p134) target = $region16
        $region15: #{ffc_resnet_block.14} parent=11 // pred_region
          %s138 = ssub.s32 16, 16
          %139 = vsyncadd [#allocation6], %s138
          %s141 = sshll.u32 [#allocation5], 4
          %s142 = int_to_ptr.vmem [resolvable:$true] %s141
          %144 = dma.hbm_to_vmem [thread:$0]  %s1, 16, %s142, [#allocation6]
        $region16: #{ffc_resnet_block.14} parent=11 // pred_fallthru
          _
      $region12: #{ffc_resnet_block.14} parent=5 // pred_fallthru
        _
      %p145 = scmp.lt.s32.totalorder %s20, 4
      // Predicated region
      $region17: #{ffc_resnet_block.14} parent=5 // pred_check
        %p146 = pneg %p145
      $region18: #{ffc_resnet_block.14} parent=5 // pred_check_branch
        %148 = sbr.rel (%p146) target = $region20
      $region19: #{ffc_resnet_block.14} parent=5 // pred_region
        // Predicated region
        $region21: #{ffc_resnet_block.14} parent=19 // pred_check
          %p149 = pneg %p40
        $region22: #{ffc_resnet_block.14} parent=19 // pred_check_branch
          %151 = sbr.rel (%p149) target = $region24
        $region23: #{ffc_resnet_block.14} parent=19 // pred_region
          %s152 = sand.u32 %s30, 1
          %s153 = scalar_lea.sflag [#allocation3], %s152
          %s154 = sand.u32 %s30, 1
          %s155 = smul.addr %s154, 64
          %s156 = scalar_lea.vmem [#allocation2], %s155
          %s157 = smul.u32 16, %s20
          %s159 = ssub.s32 1024, 1024
          %160 = vsyncadd %s153, %s159
          %s161 = smul.addr %s157, 64
          %s162 = scalar_lea.hbm %s0, %s161
          %s163 = sshll.u32 %s156, 4
          %s164 = int_to_ptr.vmem [resolvable:$true] %s163
          %169 = dma.hbm_to_vmem [thread:$0]  %s162, 1024, %s164, %s153, 64, 64, 4
        $region24: #{ffc_resnet_block.14} parent=19 // pred_fallthru
          _
      $region20: #{ffc_resnet_block.14} parent=5 // pred_fallthru
        _
      %p170 = scmp.le.s32.totalorder 1, %s20
      %p171 = scmp.lt.s32.totalorder %s20, 5
      %p172 = pnand %p170, %p171
      %p173 = pneg %p172
      // Predicated region
      $region25: #{ffc_resnet_block.14} parent=5 // pred_check
        _
      $region26: #{ffc_resnet_block.14} parent=5 // pred_check_branch
        %175 = sbr.rel (%p172) target = $region28
      $region27: #{ffc_resnet_block.14} parent=5 // pred_region
        %s176 = ssub.s32 %s20, 1
        %s177 = sand.u32 %s33, 1
        %s178 = scalar_lea.sflag [#allocation3], %s177
        %s179 = sand.u32 %s33, 1
        %s180 = smul.addr %s179, 64
        %s181 = scalar_lea.vmem [#allocation2], %s180
        // Predicated region
        $region29: #{ffc_resnet_block.14} parent=27 // pred_check
          %p182 = pneg %p46
        $region30: #{ffc_resnet_block.14} parent=27 // pred_check_branch
          %184 = sbr.rel (%p182) target = $region32
        $region31: #{ffc_resnet_block.14} parent=27 // pred_region
          %185 = dma.done %s178, 1024
        $region32: #{ffc_resnet_block.14} parent=27 // pred_fallthru
          _
        // Predicated region
        $region33: #{ffc_resnet_block.14} parent=27 // pred_check
          %p186 = pneg %p67
        $region34: #{ffc_resnet_block.14} parent=27 // pred_check_branch
          %188 = sbr.rel (%p186) target = $region36
        $region35: #{ffc_resnet_block.14} parent=27 // pred_region
          %189 = dma.done [#allocation6], 16
        $region36: #{ffc_resnet_block.14} parent=27 // pred_fallthru
          _
        %s190 = sand.u32 %s33, 1
        %s191 = scalar_lea.sflag [#allocation3], %s190
        %s192 = sand.u32 %s33, 1
        %s193 = smul.addr %s192, 64
        %s194 = scalar_lea.vmem [#allocation2], %s193
        %p195 = pneg %p46
        %p196 = pneg %p43
        %p197 = pneg %p67
        %p198 = pneg %p64
        %p199 = pneg %p93
        %p200 = pneg %p90
        %s201 = sand.u32 %s80, 1
        %s202 = scalar_lea.sflag [#allocation4], %s201
        %s203 = sand.u32 %s80, 1
        %s204 = smul.addr %s203, 64
        %s205 = scalar_lea.vmem [#allocation7], %s204
        %p206 = pneg %p119
        %p207 = pneg %p116
        %s208 = sand.u32 %s106, 1
        %s209 = scalar_lea.sflag [#allocation9], %s208
        %s210 = sand.u32 %s106, 1
        %s211 = smul.addr %s210, 2
        %s212 = scalar_lea.vmem [#allocation8], %s211
        %s213 = smul.u32 16, %s25
        %s214 = smul.u32 16, %s25
        %v216 = vld [vmem:[%s181] sm:$0xf]
        %v217 = vld [vmem:[%s181 + $0x4] sm:$0xf]
        %v218 = vld [vmem:[%s181 + $0x8] sm:$0xf]
        %v219 = vld [vmem:[%s181 + $0xc] sm:$0xf]
        %v220 = vld [vmem:[%s181 + $0x10] sm:$0xf]
        %v221 = vld [vmem:[%s181 + $0x14] sm:$0xf]
        %v222 = vld [vmem:[%s181 + $0x18] sm:$0xf]
        %v223 = vld [vmem:[%s181 + $0x1c] sm:$0xf]
        %v224 = vld [vmem:[%s181 + $0x20] sm:$0xf]
        %v225 = vld [vmem:[%s181 + $0x24] sm:$0xf]
        %v226 = vld [vmem:[%s181 + $0x28] sm:$0xf]
        %v227 = vld [vmem:[%s181 + $0x2c] sm:$0xf]
        %v228 = vld [vmem:[%s181 + $0x30] sm:$0xf]
        %v229 = vld [vmem:[%s181 + $0x34] sm:$0xf]
        %v230 = vld [vmem:[%s181 + $0x38] sm:$0xf]
        %v231 = vld [vmem:[%s181 + $0x3c] sm:$0xf]
        %v232 = vld [vmem:[#allocation5] sm:$0x1]
        %v249 = vunpack.c.l.b16 %v216
        %v250 = vunpack.c.l.b16 %v217
        %v251 = vunpack.c.l.b16 %v218
        %v252 = vunpack.c.l.b16 %v219
        %v253 = vunpack.c.l.b16 %v220
        %v254 = vunpack.c.l.b16 %v221
        %v255 = vunpack.c.l.b16 %v222
        %v256 = vunpack.c.l.b16 %v223
        %v257 = vunpack.c.l.b16 %v224
        %v258 = vunpack.c.l.b16 %v225
        %v259 = vunpack.c.l.b16 %v226
        %v260 = vunpack.c.l.b16 %v227
        %v261 = vunpack.c.l.b16 %v228
        %v262 = vunpack.c.l.b16 %v229
        %v263 = vunpack.c.l.b16 %v230
        %v264 = vunpack.c.l.b16 %v231
        %v265 = vpack.c.b16 %v250, %v249
        %v266 = vpack.c.b16 %v252, %v251
        %v267 = vpack.c.b16 %v254, %v253
        %v268 = vpack.c.b16 %v256, %v255
        %v269 = vpack.c.b16 %v258, %v257
        %v270 = vpack.c.b16 %v260, %v259
        %v271 = vpack.c.b16 %v262, %v261
        %v272 = vpack.c.b16 %v264, %v263
        %vm273 = vcmask 15360
        %v275 = vsel %vm273, %v265, 0
        %v278 = vsel %vm273, %v266, 0
        %v281 = vsel %vm273, %v267, 0
        %v284 = vsel %vm273, %v268, 0
        %v287 = vsel %vm273, %v269, 0
        %v290 = vsel %vm273, %v270, 0
        %v293 = vsel %vm273, %v271, 0
        %v296 = vsel %vm273, %v272, 0
        %vm298 = vcmask 1040384
        %v300 = vsel %vm298, %v232, 0
        %302 = vmatprep.subr.bf16.mxu0 0
        %303 = vmatpush1.bf16.msra.mxu0 %v300
        %304 = vmatprep.subr.bf16.mxu0 0
        %305 = vmatpush1.bf16.msra.mxu0 0
        %306 = vmatprep.subr.bf16.mxu0 0
        %307 = vmatpush1.bf16.msra.mxu0 0
        %308 = vmatprep.subr.bf16.mxu0 0
        %309 = vmatpush1.bf16.msra.mxu0 0
        %310 = vmatprep.subr.bf16.mxu0 0
        %311 = vmatpush1.bf16.msra.mxu0 0
        %312 = vmatprep.subr.bf16.mxu0 0
        %313 = vmatpush1.bf16.msra.mxu0 0
        %314 = vmatprep.subr.bf16.mxu0 0
        %315 = vmatpush1.bf16.msra.mxu0 0
        %316 = vmatprep.subr.bf16.mxu0 0
        %317 = vmatpush1.bf16.msra.mxu0 0
        %318 = vmatprep.subr.bf16.mxu0 0
        %319 = vmatpush1.bf16.msra.mxu0 0
        %320 = vmatprep.subr.bf16.mxu0 0
        %321 = vmatpush1.bf16.msra.mxu0 0
        %322 = vmatprep.subr.bf16.mxu0 0
        %323 = vmatpush1.bf16.msra.mxu0 0
        %324 = vmatprep.subr.bf16.mxu0 0
        %325 = vmatpush1.bf16.msra.mxu0 0
        %326 = vmatprep.subr.bf16.mxu0 0
        %327 = vmatpush1.bf16.msra.mxu0 0
        %328 = vmatprep.subr.bf16.mxu0 0
        %329 = vmatpush1.bf16.msra.mxu0 0
        %330 = vmatprep.subr.bf16.mxu0 0
        %331 = vmatpush1.bf16.msra.mxu0 0
        %332 = vmatprep.subr.bf16.mxu0 0
        %333 = vmatpush1.bf16.msra.mxu0 0
        %334 = vmatprep.mubr.bf16.mxu0 0
        %335 = vmatmul.mubr.bf16.gmra.mrb[0].mxu0 %v275
        %v336 = vpop.f32.mrb[0].mxu0
        %v337 = vadd.f32 0.0, %v336
        %v338 = vpop.f32.mrb[0].mxu0
        %v339 = vpop.f32.mrb[0].mxu0
        %v340 = vadd.f32 0.0, %v339
        %v341 = vpop.f32.mrb[0].mxu0
        %342 = vmatprep.mubr.bf16.mxu0 0
        %343 = vmatmul.mubr.bf16.gmra.mrb[0].mxu0 %v278
        %v344 = vpop.f32.mrb[0].mxu0
        %v345 = vadd.f32 0.0, %v344
        %v346 = vpop.f32.mrb[0].mxu0
        %v347 = vpop.f32.mrb[0].mxu0
        %v348 = vadd.f32 0.0, %v347
        %v349 = vpop.f32.mrb[0].mxu0
        %350 = vmatprep.mubr.bf16.mxu0 0
        %351 = vmatmul.mubr.bf16.gmra.mrb[0].mxu0 %v281
        %v352 = vpop.f32.mrb[0].mxu0
        %v353 = vadd.f32 0.0, %v352
        %v354 = vpop.f32.mrb[0].mxu0
        %v355 = vpop.f32.mrb[0].mxu0
        %v356 = vadd.f32 0.0, %v355
        %v357 = vpop.f32.mrb[0].mxu0
        %358 = vmatprep.mubr.bf16.mxu0 0
        %359 = vmatmul.mubr.bf16.gmra.mrb[0].mxu0 %v284
        %v360 = vpop.f32.mrb[0].mxu0
        %v361 = vadd.f32 0.0, %v360
        %v362 = vpop.f32.mrb[0].mxu0
        %v363 = vpop.f32.mrb[0].mxu0
        %v364 = vadd.f32 0.0, %v363
        %v365 = vpop.f32.mrb[0].mxu0
        %366 = vmatprep.mubr.bf16.mxu0 0
        %367 = vmatmul.mubr.bf16.gmra.mrb[0].mxu0 %v287
        %v368 = vpop.f32.mrb[0].mxu0
        %v369 = vadd.f32 0.0, %v368
        %v370 = vpop.f32.mrb[0].mxu0
        %v371 = vpop.f32.mrb[0].mxu0
        %v372 = vadd.f32 0.0, %v371
        %v373 = vpop.f32.mrb[0].mxu0
        %374 = vmatprep.mubr.bf16.mxu0 0
        %375 = vmatmul.mubr.bf16.gmra.mrb[0].mxu0 %v290
        %v376 = vpop.f32.mrb[0].mxu0
        %v377 = vadd.f32 0.0, %v376
        %v378 = vpop.f32.mrb[0].mxu0
        %v379 = vpop.f32.mrb[0].mxu0
        %v380 = vadd.f32 0.0, %v379
        %v381 = vpop.f32.mrb[0].mxu0
        %382 = vmatprep.mubr.bf16.mxu0 0
        %383 = vmatmul.mubr.bf16.gmra.mrb[0].mxu0 %v293
        %v384 = vpop.f32.mrb[0].mxu0
        %v385 = vadd.f32 0.0, %v384
        %v386 = vpop.f32.mrb[0].mxu0
        %v387 = vpop.f32.mrb[0].mxu0
        %v388 = vadd.f32 0.0, %v387
        %v389 = vpop.f32.mrb[0].mxu0
        %390 = vmatprep.mubr.bf16.mxu0 0
        %391 = vmatmul.mubr.bf16.gmra.mrb[0].mxu0 %v296
        %v392 = vpop.f32.mrb[0].mxu0
        %v393 = vadd.f32 0.0, %v392
        %v394 = vpop.f32.mrb[0].mxu0
        %v395 = vpop.f32.mrb[0].mxu0
        %v396 = vadd.f32 0.0, %v395
        %v397 = vpop.f32.mrb[0].mxu0
        %398 = vdwg.mxu0
        %vm399 = vcmask 7168
        %v400 = vsel %vm399, %v337, 0.0
        %v401 = vsel %vm399, %v340, 0.0
        %v402 = vadd.f32 %v400, %v401
        %v403 = vsel %vm399, %v345, 0.0
        %v404 = vadd.f32 %v402, %v403
        %v405 = vsel %vm399, %v348, 0.0
        %v406 = vadd.f32 %v404, %v405
        %v407 = vsel %vm399, %v353, 0.0
        %v408 = vadd.f32 %v406, %v407
        %v409 = vsel %vm399, %v356, 0.0
        %v410 = vadd.f32 %v408, %v409
        %v411 = vsel %vm399, %v361, 0.0
        %v412 = vadd.f32 %v410, %v411
        %v413 = vsel %vm399, %v364, 0.0
        %v414 = vadd.f32 %v412, %v413
        %v415 = vsel %vm399, %v369, 0.0
        %v416 = vadd.f32 %v414, %v415
        %v417 = vsel %vm399, %v372, 0.0
        %v418 = vadd.f32 %v416, %v417
        %v419 = vsel %vm399, %v377, 0.0
        %v420 = vadd.f32 %v418, %v419
        %v421 = vsel %vm399, %v380, 0.0
        %v422 = vadd.f32 %v420, %v421
        %v423 = vsel %vm399, %v385, 0.0
        %v424 = vadd.f32 %v422, %v423
        %v425 = vsel %vm399, %v388, 0.0
        %v426 = vadd.f32 %v424, %v425
        %v427 = vsel %vm399, %v393, 0.0
        %v428 = vadd.f32 %v426, %v427
        %v429 = vsel %vm399, %v396, 0.0
        %v430 = vadd.f32 %v428, %v429
        %v431 = vrot.slane %v430, 4
        %v432 = vadd.f32 %v430, %v431
        %v433 = vrot.slane %v432, 2
        %v434 = vadd.f32 %v432, %v433
        %v435 = vrot.slane %v434, 1
        %v436 = vadd.f32 %v434, %v435
        %vm437 = vcmask 0
        %438 = vst.msk [vmem:[%s212] sm:$0x1] %vm437, %v436
        %v439 = vmul.f32 %v337, %v337
        %v440 = vmul.f32 %v340, %v340
        %v441 = vmul.f32 %v345, %v345
        %v442 = vmul.f32 %v348, %v348
        %v443 = vmul.f32 %v353, %v353
        %v444 = vmul.f32 %v356, %v356
        %v445 = vmul.f32 %v361, %v361
        %v446 = vmul.f32 %v364, %v364
        %v447 = vmul.f32 %v369, %v369
        %v448 = vmul.f32 %v372, %v372
        %v449 = vmul.f32 %v377, %v377
        %v450 = vmul.f32 %v380, %v380
        %v451 = vmul.f32 %v385, %v385
        %v452 = vmul.f32 %v388, %v388
        %v453 = vmul.f32 %v393, %v393
        %v454 = vmul.f32 %v396, %v396
        %v455 = vsel %vm399, %v439, 0.0
        %v456 = vsel %vm399, %v440, 0.0
        %v457 = vadd.f32 %v455, %v456
        %v458 = vsel %vm399, %v441, 0.0
        %v459 = vadd.f32 %v457, %v458
        %v460 = vsel %vm399, %v442, 0.0
        %v461 = vadd.f32 %v459, %v460
        %v462 = vsel %vm399, %v443, 0.0
        %v463 = vadd.f32 %v461, %v462
        %v464 = vsel %vm399, %v444, 0.0
        %v465 = vadd.f32 %v463, %v464
        %v466 = vsel %vm399, %v445, 0.0
        %v467 = vadd.f32 %v465, %v466
        %v468 = vsel %vm399, %v446, 0.0
        %v469 = vadd.f32 %v467, %v468
        %v470 = vsel %vm399, %v447, 0.0
        %v471 = vadd.f32 %v469, %v470
        %v472 = vsel %vm399, %v448, 0.0
        %v473 = vadd.f32 %v471, %v472
        %v474 = vsel %vm399, %v449, 0.0
        %v475 = vadd.f32 %v473, %v474
        %v476 = vsel %vm399, %v450, 0.0
        %v477 = vadd.f32 %v475, %v476
        %v478 = vsel %vm399, %v451, 0.0
        %v479 = vadd.f32 %v477, %v478
        %v480 = vsel %vm399, %v452, 0.0
        %v481 = vadd.f32 %v479, %v480
        %v482 = vsel %vm399, %v453, 0.0
        %v483 = vadd.f32 %v481, %v482
        %v484 = vsel %vm399, %v454, 0.0
        %v485 = vadd.f32 %v483, %v484
        %v486 = vrot.slane %v485, 4
        %v487 = vadd.f32 %v485, %v486
        %v488 = vrot.slane %v487, 2
        %v489 = vadd.f32 %v487, %v488
        %v490 = vrot.slane %v489, 1
        %v491 = vadd.f32 %v489, %v490
        %492 = vst.msk [vmem:[%s212 + $0x1] sm:$0x1] %vm437, %v491
        %v493 = vpack.c.bf16 %v340, %v337
        %v494 = vpack.c.bf16 %v348, %v345
        %v495 = vpack.c.bf16 %v356, %v353
        %v496 = vpack.c.bf16 %v364, %v361
        %v497 = vpack.c.bf16 %v372, %v369
        %v498 = vpack.c.bf16 %v380, %v377
        %v499 = vpack.c.bf16 %v388, %v385
        %v500 = vpack.c.bf16 %v396, %v393
        %v509 = vunpack.c.l.b16 %v493
        %v510 = vunpack.c.h.b16 %v493
        %v511 = vunpack.c.l.b16 %v494
        %v512 = vunpack.c.h.b16 %v494
        %v513 = vunpack.c.l.b16 %v495
        %v514 = vunpack.c.h.b16 %v495
        %v515 = vunpack.c.l.b16 %v496
        %v516 = vunpack.c.h.b16 %v496
        %v517 = vunpack.c.l.b16 %v497
        %v518 = vunpack.c.h.b16 %v497
        %v519 = vunpack.c.l.b16 %v498
        %v520 = vunpack.c.h.b16 %v498
        %v521 = vunpack.c.l.b16 %v499
        %v522 = vunpack.c.h.b16 %v499
        %v523 = vunpack.c.l.b16 %v500
        %v524 = vunpack.c.h.b16 %v500
        %v525 = vpack.c.b16 %v509, %v509
        %v526 = vpack.c.b16 %v510, %v510
        %v527 = vpack.c.b16 %v511, %v511
        %v528 = vpack.c.b16 %v512, %v512
        %v529 = vpack.c.b16 %v513, %v513
        %v530 = vpack.c.b16 %v514, %v514
        %v531 = vpack.c.b16 %v515, %v515
        %v532 = vpack.c.b16 %v516, %v516
        %v533 = vpack.c.b16 %v517, %v517
        %v534 = vpack.c.b16 %v518, %v518
        %v535 = vpack.c.b16 %v519, %v519
        %v536 = vpack.c.b16 %v520, %v520
        %v537 = vpack.c.b16 %v521, %v521
        %v538 = vpack.c.b16 %v522, %v522
        %v539 = vpack.c.b16 %v523, %v523
        %v540 = vpack.c.b16 %v524, %v524
        %vm557 = vcmask 3072
        %558 = vst.msk [vmem:[%s205] sm:$0xf] %vm557, %v525
        %559 = vst.msk [vmem:[%s205 + $0x4] sm:$0xf] %vm557, %v526
        %560 = vst.msk [vmem:[%s205 + $0x8] sm:$0xf] %vm557, %v527
        %561 = vst.msk [vmem:[%s205 + $0xc] sm:$0xf] %vm557, %v528
        %562 = vst.msk [vmem:[%s205 + $0x10] sm:$0xf] %vm557, %v529
        %563 = vst.msk [vmem:[%s205 + $0x14] sm:$0xf] %vm557, %v530
        %564 = vst.msk [vmem:[%s205 + $0x18] sm:$0xf] %vm557, %v531
        %565 = vst.msk [vmem:[%s205 + $0x1c] sm:$0xf] %vm557, %v532
        %566 = vst.msk [vmem:[%s205 + $0x20] sm:$0xf] %vm557, %v533
        %567 = vst.msk [vmem:[%s205 + $0x24] sm:$0xf] %vm557, %v534
        %568 = vst.msk [vmem:[%s205 + $0x28] sm:$0xf] %vm557, %v535
        %569 = vst.msk [vmem:[%s205 + $0x2c] sm:$0xf] %vm557, %v536
        %570 = vst.msk [vmem:[%s205 + $0x30] sm:$0xf] %vm557, %v537
        %571 = vst.msk [vmem:[%s205 + $0x34] sm:$0xf] %vm557, %v538
        %572 = vst.msk [vmem:[%s205 + $0x38] sm:$0xf] %vm557, %v539
        %573 = vst.msk [vmem:[%s205 + $0x3c] sm:$0xf] %vm557, %v540
        %s574 = sand.u32 %s80, 1
        %s575 = scalar_lea.sflag [#allocation4], %s574
        %s576 = sand.u32 %s80, 1
        %s577 = smul.addr %s576, 64
        %s578 = scalar_lea.vmem [#allocation7], %s577
        %s579 = sand.u32 %s106, 1
        %s580 = scalar_lea.sflag [#allocation9], %s579
        %s581 = sand.u32 %s106, 1
        %s582 = smul.addr %s581, 2
        %s583 = scalar_lea.vmem [#allocation8], %s582
        // Predicated region
        $region37: #{ffc_resnet_block.14} parent=27 // pred_check
          %p584 = pneg %p90
        $region38: #{ffc_resnet_block.14} parent=27 // pred_check_branch
          %586 = sbr.rel (%p584) target = $region40
        $region39: #{ffc_resnet_block.14} parent=27 // pred_region
          %s587 = smul.u32 16, %s25
          %s589 = ssub.s32 1024, 1024
          %590 = vsyncadd %s575, %s589
          %s591 = smul.addr %s587, 64
          %s592 = scalar_lea.hbm %s2, %s591
          %s593 = sshll.u32 %s578, 4
          %s594 = int_to_ptr.vmem [resolvable:$true] %s593
          %599 = dma.vmem_to_hbm [thread:$0]  %s594, 1024, %s592, %s575, 64, 64, 4
        $region40: #{ffc_resnet_block.14} parent=27 // pred_fallthru
          _
        // Predicated region
        $region41: #{ffc_resnet_block.14} parent=27 // pred_check
          %p600 = pneg %p116
        $region42: #{ffc_resnet_block.14} parent=27 // pred_check_branch
          %602 = sbr.rel (%p600) target = $region44
        $region43: #{ffc_resnet_block.14} parent=27 // pred_region
          %s604 = ssub.s32 32, 32
          %605 = vsyncadd %s580, %s604
          %s606 = smul.addr %s25, 32
          %s607 = scalar_lea.hbm %s3, %s606
          %s609 = sshll.u32 %s583, 4
          %s610 = int_to_ptr.vmem [resolvable:$true] %s609
          %612 = dma.vmem_to_hbm [thread:$0]  %s610, 32, %s607, %s580
        $region44: #{ffc_resnet_block.14} parent=27 // pred_fallthru
          _
      $region28: #{ffc_resnet_block.14} parent=5 // pred_fallthru
        _
      %p613 = scmp.le.s32.totalorder 2, %s20
      // Predicated region
      $region45: #{ffc_resnet_block.14} parent=5 // pred_check
        %p614 = pneg %p613
      $region46: #{ffc_resnet_block.14} parent=5 // pred_check_branch
        %616 = sbr.rel (%p614) target = $region48
      $region47: #{ffc_resnet_block.14} parent=5 // pred_region
        %s617 = ssub.s32 %s20, 2
        // Predicated region
        $region49: #{ffc_resnet_block.14} parent=47 // pred_check
          %p618 = pneg %p96
        $region50: #{ffc_resnet_block.14} parent=47 // pred_check_branch
          %620 = sbr.rel (%p618) target = $region52
        $region51: #{ffc_resnet_block.14} parent=47 // pred_region
          %s621 = sand.u32 %s81, 1
          %s622 = scalar_lea.sflag [#allocation4], %s621
          %s623 = sand.u32 %s81, 1
          %s624 = smul.addr %s623, 64
          %s625 = scalar_lea.vmem [#allocation7], %s624
          %626 = dma.done %s622, 1024
        $region52: #{ffc_resnet_block.14} parent=47 // pred_fallthru
          _
        // Predicated region
        $region53: #{ffc_resnet_block.14} parent=47 // pred_check
          %p627 = pneg %p122
        $region54: #{ffc_resnet_block.14} parent=47 // pred_check_branch
          %629 = sbr.rel (%p627) target = $region56
        $region55: #{ffc_resnet_block.14} parent=47 // pred_region
          %s630 = sand.u32 %s107, 1
          %s631 = scalar_lea.sflag [#allocation9], %s630
          %s632 = sand.u32 %s107, 1
          %s633 = smul.addr %s632, 2
          %s634 = scalar_lea.vmem [#allocation8], %s633
          %635 = dma.done %s631, 32
        $region56: #{ffc_resnet_block.14} parent=47 // pred_fallthru
          _
      $region48: #{ffc_resnet_block.14} parent=5 // pred_fallthru
        _
    $region6: #{ffc_resnet_block.14} parent=1 // loop_footer
      %s24 = sadd.s32 1, %s20
    $region7: #{ffc_resnet_block.14} parent=1 // loop_footer_branch
      %19 = sbr.rel target = $region3
    $region8: #{ffc_resnet_block.14} parent=1 // loop_exit
      _
    %636 = vsyncpa [#allocation3], 1
    %s637 = scalar_lea.sflag [#allocation3], 1
    %638 = vsyncpa %s637, 1
    %639 = vsyncpa [#allocation6], 1
    %640 = vsyncpa [#allocation4], 1
    %s641 = scalar_lea.sflag [#allocation4], 1
    %642 = vsyncpa %s641, 1
    %643 = vsyncpa [#allocation9], 1
    %s644 = scalar_lea.sflag [#allocation9], 1
    %645 = vsyncpa %s644, 1

// kernel: ffc_resnet_block.15
$region0: #{ffc_resnet_block.15}
  #allocation0 [shape = 'u32[]', space=smem, size = 0x4, offset = 0x4, fixed_abs, tag = 'smem constant byte address 0x4 - core index']
  #allocation1 [shape = 'u32[144,128]{1,0:T(1,128)}', space=vmem, size = 0x12000, scoped, tag = 'internal scratch']
  #allocation2 [shape = 'f32[1,1]{1,0:T(1,128)S(1)}', space=vmem, size = 0x200, scoped, tag = 'scoped memory for ffc_resnet_block.15']
  #allocation3 [shape = 'f32[1,1]{1,0:T(1,128)S(1)}', space=vmem, size = 0x200, scoped, tag = 'scoped memory for ffc_resnet_block.15']
  %s0 = inlined_call_operand.hbm [shape: bf16[512,1], index: 0, kind: input, shape index: {}]
  %s1 = inlined_call_operand.<no memory space> [shape: f32[1,1], index: 1, kind: input, shape index: {}]
  %s2 = inlined_call_operand.<no memory space> [shape: f32[1,1], index: 2, kind: input, shape index: {}]
  %s3 = inlined_call_operand.hbm [shape: f32[512,1], index: 3, kind: output, shape index: {}]
  %s4 = sld [smem:[#allocation0]]
  $region49: #{ffc_resnet_block.15} parent=0
    _
  %s6 = ssub.s32 1, %s4
  %s7 = scalar_select 0, %s6, %s4
  %v8 = vstv %s1
  %9 = vst [vmem:[#allocation2] sm:$0x1] %v8
  %v10 = vstv %s2
  %11 = vst [vmem:[#allocation3] sm:$0x1] %v10
  $region1: #{ffc_resnet_block.15} parent=0
    #allocation4 [shape = 'u8[65536]{0}', space=vmem, size = 0x10000, scoped, tag = 'input window, operand 0']
    #allocation5 [shape = 's32[2]{0}', space=sflag, size = 0x8, scoped, tag = 'scoped memory for ffc_resnet_block.15']
    #allocation6 [shape = 's32[2]{0}', space=sflag, size = 0x8, scoped, tag = 'scoped memory for ffc_resnet_block.15']
    #allocation7 [shape = 'u8[131072]{0}', space=vmem, size = 0x20000, scoped, tag = 'output window, operand 0']
    %12 = vsyncpa [#allocation5], 0
    %s13 = scalar_lea.sflag [#allocation5], 1
    %14 = vsyncpa %s13, 0
    %15 = vsyncpa [#allocation6], 0
    %s16 = scalar_lea.sflag [#allocation6], 1
    %17 = vsyncpa %s16, 0
    loop: start=0, step=1, limit=6
    $region2: #{ffc_resnet_block.15} parent=1 // loop_pre_header
      _
    $region3: #{ffc_resnet_block.15} parent=1 // loop_header
      %s19 = sphi 0, %s23
      %p20 = scmp.ge.s32.totalorder %s19, 6
      %s29 = sphi 0, %s31
      %s32 = sphi 0, %s29
      %s33 = sphi 0, %s32
      %s49 = sphi 0, %s33
      %s53 = sphi 0, %s53
      %s55 = sphi 0, %s53
      %s56 = sphi 0, %s55
      %s70 = sphi 0, %s56
      %s74 = sphi 0, %s74
      %s76 = sphi 0, %s74
      %s77 = sphi 0, %s76
      %s91 = sphi 0, %s77
      %s97 = sphi 0, %s99
      %s100 = sphi 0, %s97
      %s101 = sphi 0, %s100
      %s117 = sphi 0, %s101
    $region4: #{ffc_resnet_block.15} parent=1 // loop_header_branch
      %22 = sbr.rel (%p20) target = $region8
    $region5: #{ffc_resnet_block.15} parent=1 // loop_body
      %s24 = ssub.s32 %s19, 1
      %s25 = ssub.s32 %s19, 2
      %s26 = sadd.s32 %s19, 1
      %s27 = ssub.s32 %s19, %s26
      %p28 = scmp.eq.s32.totalorder %s27, 0
      %s30 = sadd.s32 %s29, 1
      %s31 = scalar_select %p28, %s29, %s30
      %p34 = pneg %p28
      %p35 = scmp.eq.s32.totalorder %s19, 3
      %p36 = por %p34, %p35
      %p37 = scmp.ne.s32.totalorder %s29, %s32
      %p38 = scmp.eq.s32.totalorder %s19, 0
      %p39 = por %p37, %p38
      %p40 = scmp.ne.s32.totalorder %s29, %s32
      %p41 = scmp.eq.s32.totalorder %s24, 3
      %p42 = por %p40, %p41
      %p43 = scmp.ne.s32.totalorder %s32, %s33
      %p44 = scmp.eq.s32.totalorder %s24, 0
      %p45 = por %p43, %p44
      %p46 = scmp.ne.s32.totalorder %s32, %s33
      %p47 = scmp.eq.s32.totalorder %s25, 3
      %p48 = por %p46, %p47
      %p50 = scmp.ne.s32.totalorder %s33, %s49
      %p51 = scmp.eq.s32.totalorder %s25, 0
      %p52 = por %p50, %p51
      %s54 = sadd.s32 %s53, 1
      %p57 = scmp.eq.s32.totalorder %s19, 3
      %p58 = scmp.ne.s32.totalorder %s53, %s55
      %p59 = scmp.eq.s32.totalorder %s19, 0
      %p60 = por %p58, %p59
      %p61 = scmp.ne.s32.totalorder %s53, %s55
      %p62 = scmp.eq.s32.totalorder %s24, 3
      %p63 = por %p61, %p62
      %p64 = scmp.ne.s32.totalorder %s55, %s56
      %p65 = scmp.eq.s32.totalorder %s24, 0
      %p66 = por %p64, %p65
      %p67 = scmp.ne.s32.totalorder %s55, %s56
      %p68 = scmp.eq.s32.totalorder %s25, 3
      %p69 = por %p67, %p68
      %p71 = scmp.ne.s32.totalorder %s56, %s70
      %p72 = scmp.eq.s32.totalorder %s25, 0
      %p73 = por %p71, %p72
      %s75 = sadd.s32 %s74, 1
      %p78 = scmp.eq.s32.totalorder %s19, 3
      %p79 = scmp.ne.s32.totalorder %s74, %s76
      %p80 = scmp.eq.s32.totalorder %s19, 0
      %p81 = por %p79, %p80
      %p82 = scmp.ne.s32.totalorder %s74, %s76
      %p83 = scmp.eq.s32.totalorder %s24, 3
      %p84 = por %p82, %p83
      %p85 = scmp.ne.s32.totalorder %s76, %s77
      %p86 = scmp.eq.s32.totalorder %s24, 0
      %p87 = por %p85, %p86
      %p88 = scmp.ne.s32.totalorder %s76, %s77
      %p89 = scmp.eq.s32.totalorder %s25, 3
      %p90 = por %p88, %p89
      %p92 = scmp.ne.s32.totalorder %s77, %s91
      %p93 = scmp.eq.s32.totalorder %s25, 0
      %p94 = por %p92, %p93
      %s95 = ssub.s32 %s19, %s26
      %p96 = scmp.eq.s32.totalorder %s95, 0
      %s98 = sadd.s32 %s97, 1
      %s99 = scalar_select %p96, %s97, %s98
      %p102 = pneg %p96
      %p103 = scmp.eq.s32.totalorder %s19, 3
      %p104 = por %p102, %p103
      %p105 = scmp.ne.s32.totalorder %s97, %s100
      %p106 = scmp.eq.s32.totalorder %s19, 0
      %p107 = por %p105, %p106
      %p108 = scmp.ne.s32.totalorder %s97, %s100
      %p109 = scmp.eq.s32.totalorder %s24, 3
      %p110 = por %p108, %p109
      %p111 = scmp.ne.s32.totalorder %s100, %s101
      %p112 = scmp.eq.s32.totalorder %s24, 0
      %p113 = por %p111, %p112
      %p114 = scmp.ne.s32.totalorder %s100, %s101
      %p115 = scmp.eq.s32.totalorder %s25, 3
      %p116 = por %p114, %p115
      %p118 = scmp.ne.s32.totalorder %s101, %s117
      %p119 = scmp.eq.s32.totalorder %s25, 0
      %p120 = por %p118, %p119
      %p121 = scmp.le.s32.totalorder 1, %s19
      %p122 = scmp.lt.s32.totalorder %s19, 5
      %p123 = pnand %p121, %p122
      %p124 = pneg %p123
      // Predicated region
      $region9: #{ffc_resnet_block.15} parent=5 // pred_check
        _
      $region10: #{ffc_resnet_block.15} parent=5 // pred_check_branch
        %126 = sbr.rel (%p123) target = $region12
      $region11: #{ffc_resnet_block.15} parent=5 // pred_region
        %s127 = ssub.s32 %s19, 1
        // Predicated region
        $region13: #{ffc_resnet_block.15} parent=11 // pred_check
          %p128 = pneg %p66
        $region14: #{ffc_resnet_block.15} parent=11 // pred_check_branch
          %130 = sbr.rel (%p128) target = $region16
        $region15: #{ffc_resnet_block.15} parent=11 // pred_region
          _
        $region16: #{ffc_resnet_block.15} parent=11 // pred_fallthru
          _
        // Predicated region
        $region17: #{ffc_resnet_block.15} parent=11 // pred_check
          %p131 = pneg %p87
        $region18: #{ffc_resnet_block.15} parent=11 // pred_check_branch
          %133 = sbr.rel (%p131) target = $region20
        $region19: #{ffc_resnet_block.15} parent=11 // pred_region
          _
        $region20: #{ffc_resnet_block.15} parent=11 // pred_fallthru
          _
      $region12: #{ffc_resnet_block.15} parent=5 // pred_fallthru
        _
      %p134 = scmp.lt.s32.totalorder %s19, 4
      // Predicated region
      $region21: #{ffc_resnet_block.15} parent=5 // pred_check
        %p135 = pneg %p134
      $region22: #{ffc_resnet_block.15} parent=5 // pred_check_branch
        %137 = sbr.rel (%p135) target = $region24
      $region23: #{ffc_resnet_block.15} parent=5 // pred_region
        // Predicated region
        $region25: #{ffc_resnet_block.15} parent=23 // pred_check
          %p138 = pneg %p39
        $region26: #{ffc_resnet_block.15} parent=23 // pred_check_branch
          %140 = sbr.rel (%p138) target = $region28
        $region27: #{ffc_resnet_block.15} parent=23 // pred_region
          %s141 = sand.u32 %s29, 1
          %s142 = scalar_lea.sflag [#allocation5], %s141
          %s143 = sand.u32 %s29, 1
          %s144 = smul.addr %s143, 64
          %s145 = scalar_lea.vmem [#allocation4], %s144
          %s146 = smul.u32 16, %s19
          %s148 = ssub.s32 1024, 1024
          %149 = vsyncadd %s142, %s148
          %s150 = smul.addr %s146, 64
          %s151 = scalar_lea.hbm %s0, %s150
          %s152 = sshll.u32 %s145, 4
          %s153 = int_to_ptr.vmem [resolvable:$true] %s152
          %158 = dma.hbm_to_vmem [thread:$0]  %s151, 1024, %s153, %s142, 64, 64, 4
        $region28: #{ffc_resnet_block.15} parent=23 // pred_fallthru
          _
      $region24: #{ffc_resnet_block.15} parent=5 // pred_fallthru
        _
      %p159 = scmp.le.s32.totalorder 1, %s19
      %p160 = scmp.lt.s32.totalorder %s19, 5
      %p161 = pnand %p159, %p160
      %p162 = pneg %p161
      // Predicated region
      $region29: #{ffc_resnet_block.15} parent=5 // pred_check
        _
      $region30: #{ffc_resnet_block.15} parent=5 // pred_check_branch
        %164 = sbr.rel (%p161) target = $region32
      $region31: #{ffc_resnet_block.15} parent=5 // pred_region
        %s165 = ssub.s32 %s19, 1
        %s166 = sand.u32 %s32, 1
        %s167 = scalar_lea.sflag [#allocation5], %s166
        %s168 = sand.u32 %s32, 1
        %s169 = smul.addr %s168, 64
        %s170 = scalar_lea.vmem [#allocation4], %s169
        // Predicated region
        $region33: #{ffc_resnet_block.15} parent=31 // pred_check
          %p171 = pneg %p45
        $region34: #{ffc_resnet_block.15} parent=31 // pred_check_branch
          %173 = sbr.rel (%p171) target = $region36
        $region35: #{ffc_resnet_block.15} parent=31 // pred_region
          %174 = dma.done %s167, 1024
        $region36: #{ffc_resnet_block.15} parent=31 // pred_fallthru
          _
        %s175 = sand.u32 %s32, 1
        %s176 = scalar_lea.sflag [#allocation5], %s175
        %s177 = sand.u32 %s32, 1
        %s178 = smul.addr %s177, 64
        %s179 = scalar_lea.vmem [#allocation4], %s178
        %p180 = pneg %p45
        %p181 = pneg %p42
        %p182 = pneg %p66
        %p183 = pneg %p63
        %p184 = pneg %p87
        %p185 = pneg %p84
        %p186 = pneg %p113
        %p187 = pneg %p110
        %s188 = sand.u32 %s100, 1
        %s189 = scalar_lea.sflag [#allocation6], %s188
        %s190 = sand.u32 %s100, 1
        %s191 = smul.addr %s190, 128
        %s192 = scalar_lea.vmem [#allocation7], %s191
        %s193 = smul.u32 16, %s24
        %s194 = smul.u32 16, %s24
        %v195 = vld [vmem:[%s170] sm:$0xf]
        %v196 = vld [vmem:[%s170 + $0x4] sm:$0xf]
        %v197 = vld [vmem:[%s170 + $0x8] sm:$0xf]
        %v198 = vld [vmem:[%s170 + $0xc] sm:$0xf]
        %v199 = vld [vmem:[%s170 + $0x10] sm:$0xf]
        %v200 = vld [vmem:[%s170 + $0x14] sm:$0xf]
        %v201 = vld [vmem:[%s170 + $0x18] sm:$0xf]
        %v202 = vld [vmem:[%s170 + $0x1c] sm:$0xf]
        %v203 = vld [vmem:[%s170 + $0x20] sm:$0xf]
        %v204 = vld [vmem:[%s170 + $0x24] sm:$0xf]
        %v205 = vld [vmem:[%s170 + $0x28] sm:$0xf]
        %v206 = vld [vmem:[%s170 + $0x2c] sm:$0xf]
        %v207 = vld [vmem:[%s170 + $0x30] sm:$0xf]
        %v208 = vld [vmem:[%s170 + $0x34] sm:$0xf]
        %v209 = vld [vmem:[%s170 + $0x38] sm:$0xf]
        %v210 = vld [vmem:[%s170 + $0x3c] sm:$0xf]
        %v211 = vunpack.c.l.bf16 %v195
        %v212 = vunpack.c.l.bf16 %v196
        %v213 = vunpack.c.l.bf16 %v197
        %v214 = vunpack.c.l.bf16 %v198
        %v215 = vunpack.c.l.bf16 %v199
        %v216 = vunpack.c.l.bf16 %v200
        %v217 = vunpack.c.l.bf16 %v201
        %v218 = vunpack.c.l.bf16 %v202
        %v219 = vunpack.c.l.bf16 %v203
        %v220 = vunpack.c.l.bf16 %v204
        %v221 = vunpack.c.l.bf16 %v205
        %v222 = vunpack.c.l.bf16 %v206
        %v223 = vunpack.c.l.bf16 %v207
        %v224 = vunpack.c.l.bf16 %v208
        %v225 = vunpack.c.l.bf16 %v209
        %v226 = vunpack.c.l.bf16 %v210
        %v227 = vld [vmem:[#allocation2] sm:$0x1]
        %v229 = vlaneseq
        %v230 = vshrl.u32 %v229, 7
        %v231 = vsub.s32 0, %v230
        %v232 = vrot.slane %v227, %v231
        %v234 = vmul.f32 %v211, %v232
        %v235 = vmul.f32 %v212, %v232
        %v236 = vmul.f32 %v213, %v232
        %v237 = vmul.f32 %v214, %v232
        %v238 = vmul.f32 %v215, %v232
        %v239 = vmul.f32 %v216, %v232
        %v240 = vmul.f32 %v217, %v232
        %v241 = vmul.f32 %v218, %v232
        %v242 = vmul.f32 %v219, %v232
        %v243 = vmul.f32 %v220, %v232
        %v244 = vmul.f32 %v221, %v232
        %v245 = vmul.f32 %v222, %v232
        %v246 = vmul.f32 %v223, %v232
        %v247 = vmul.f32 %v224, %v232
        %v248 = vmul.f32 %v225, %v232
        %v249 = vmul.f32 %v226, %v232
        %v250 = vld [vmem:[#allocation3] sm:$0x1]
        %v252 = vlaneseq
        %v253 = vshrl.u32 %v252, 7
        %v254 = vsub.s32 0, %v253
        %v255 = vrot.slane %v250, %v254
        %v257 = vadd.f32 %v234, %v255
        %v258 = vadd.f32 %v235, %v255
        %v259 = vadd.f32 %v236, %v255
        %v260 = vadd.f32 %v237, %v255
        %v261 = vadd.f32 %v238, %v255
        %v262 = vadd.f32 %v239, %v255
        %v263 = vadd.f32 %v240, %v255
        %v264 = vadd.f32 %v241, %v255
        %v265 = vadd.f32 %v242, %v255
        %v266 = vadd.f32 %v243, %v255
        %v267 = vadd.f32 %v244, %v255
        %v268 = vadd.f32 %v245, %v255
        %v269 = vadd.f32 %v246, %v255
        %v270 = vadd.f32 %v247, %v255
        %v271 = vadd.f32 %v248, %v255
        %v272 = vadd.f32 %v249, %v255
        %v273 = vmax.f32 %v257, 0.0
        %v274 = vmax.f32 %v258, 0.0
        %v275 = vmax.f32 %v259, 0.0
        %v276 = vmax.f32 %v260, 0.0
        %v277 = vmax.f32 %v261, 0.0
        %v278 = vmax.f32 %v262, 0.0
        %v279 = vmax.f32 %v263, 0.0
        %v280 = vmax.f32 %v264, 0.0
        %v281 = vmax.f32 %v265, 0.0
        %v282 = vmax.f32 %v266, 0.0
        %v283 = vmax.f32 %v267, 0.0
        %v284 = vmax.f32 %v268, 0.0
        %v285 = vmax.f32 %v269, 0.0
        %v286 = vmax.f32 %v270, 0.0
        %v287 = vmax.f32 %v271, 0.0
        %v288 = vmax.f32 %v272, 0.0
        %vm289 = vcmask 7168
        %290 = vst.msk [vmem:[%s192] sm:$0xff] %vm289, %v273
        %291 = vst.msk [vmem:[%s192 + $0x8] sm:$0xff] %vm289, %v274
        %292 = vst.msk [vmem:[%s192 + $0x10] sm:$0xff] %vm289, %v275
        %293 = vst.msk [vmem:[%s192 + $0x18] sm:$0xff] %vm289, %v276
        %294 = vst.msk [vmem:[%s192 + $0x20] sm:$0xff] %vm289, %v277
        %295 = vst.msk [vmem:[%s192 + $0x28] sm:$0xff] %vm289, %v278
        %296 = vst.msk [vmem:[%s192 + $0x30] sm:$0xff] %vm289, %v279
        %297 = vst.msk [vmem:[%s192 + $0x38] sm:$0xff] %vm289, %v280
        %298 = vst.msk [vmem:[%s192 + $0x40] sm:$0xff] %vm289, %v281
        %299 = vst.msk [vmem:[%s192 + $0x48] sm:$0xff] %vm289, %v282
        %300 = vst.msk [vmem:[%s192 + $0x50] sm:$0xff] %vm289, %v283
        %301 = vst.msk [vmem:[%s192 + $0x58] sm:$0xff] %vm289, %v284
        %302 = vst.msk [vmem:[%s192 + $0x60] sm:$0xff] %vm289, %v285
        %303 = vst.msk [vmem:[%s192 + $0x68] sm:$0xff] %vm289, %v286
        %304 = vst.msk [vmem:[%s192 + $0x70] sm:$0xff] %vm289, %v287
        %305 = vst.msk [vmem:[%s192 + $0x78] sm:$0xff] %vm289, %v288
        %s306 = sand.u32 %s100, 1
        %s307 = scalar_lea.sflag [#allocation6], %s306
        %s308 = sand.u32 %s100, 1
        %s309 = smul.addr %s308, 128
        %s310 = scalar_lea.vmem [#allocation7], %s309
        // Predicated region
        $region37: #{ffc_resnet_block.15} parent=31 // pred_check
          %p311 = pneg %p110
        $region38: #{ffc_resnet_block.15} parent=31 // pred_check_branch
          %313 = sbr.rel (%p311) target = $region40
        $region39: #{ffc_resnet_block.15} parent=31 // pred_region
          %s314 = smul.u32 16, %s24
          %s316 = ssub.s32 2048, 2048
          %317 = vsyncadd %s307, %s316
          %s318 = smul.addr %s314, 128
          %s319 = scalar_lea.hbm %s3, %s318
          %s320 = sshll.u32 %s310, 4
          %s321 = int_to_ptr.vmem [resolvable:$true] %s320
          %326 = dma.vmem_to_hbm [thread:$0]  %s321, 2048, %s319, %s307, 128, 128, 8
        $region40: #{ffc_resnet_block.15} parent=31 // pred_fallthru
          _
      $region32: #{ffc_resnet_block.15} parent=5 // pred_fallthru
        _
      %p327 = scmp.le.s32.totalorder 2, %s19
      // Predicated region
      $region41: #{ffc_resnet_block.15} parent=5 // pred_check
        %p328 = pneg %p327
      $region42: #{ffc_resnet_block.15} parent=5 // pred_check_branch
        %330 = sbr.rel (%p328) target = $region44
      $region43: #{ffc_resnet_block.15} parent=5 // pred_region
        %s331 = ssub.s32 %s19, 2
        // Predicated region
        $region45: #{ffc_resnet_block.15} parent=43 // pred_check
          %p332 = pneg %p116
        $region46: #{ffc_resnet_block.15} parent=43 // pred_check_branch
          %334 = sbr.rel (%p332) target = $region48
        $region47: #{ffc_resnet_block.15} parent=43 // pred_region
          %s335 = sand.u32 %s101, 1
          %s336 = scalar_lea.sflag [#allocation6], %s335
          %s337 = sand.u32 %s101, 1
          %s338 = smul.addr %s337, 128
          %s339 = scalar_lea.vmem [#allocation7], %s338
          %340 = dma.done %s336, 2048
        $region48: #{ffc_resnet_block.15} parent=43 // pred_fallthru
          _
      $region44: #{ffc_resnet_block.15} parent=5 // pred_fallthru
        _
    $region6: #{ffc_resnet_block.15} parent=1 // loop_footer
      %s23 = sadd.s32 1, %s19
    $region7: #{ffc_resnet_block.15} parent=1 // loop_footer_branch
      %18 = sbr.rel target = $region3
    $region8: #{ffc_resnet_block.15} parent=1 // loop_exit
      _
    %341 = vsyncpa [#allocation5], 1
    %s342 = scalar_lea.sflag [#allocation5], 1
    %343 = vsyncpa %s342, 1
    %344 = vsyncpa [#allocation6], 1
    %s345 = scalar_lea.sflag [#allocation6], 1
    %346 = vsyncpa %s345, 1

// kernel: ffc_resnet_block.17
$region0: #{ffc_resnet_block.17}
  #allocation0 [shape = 'u32[]', space=smem, size = 0x4, offset = 0x4, fixed_abs, tag = 'smem constant byte address 0x4 - core index']
  #allocation1 [shape = 'u32[144,128]{1,0:T(1,128)}', space=vmem, size = 0x12000, scoped, tag = 'internal scratch']
  %s0 = inlined_call_operand.hbm [shape: bf16[288,2], index: 0, kind: input, shape index: {}]
  %s1 = inlined_call_operand.hbm [shape: f32[1,2], index: 1, kind: input, shape index: {}]
  %s2 = inlined_call_operand.hbm [shape: f32[1,2], index: 2, kind: input, shape index: {}]
  %s3 = inlined_call_operand.hbm [shape: f32[288,2], index: 3, kind: output, shape index: {}]
  %s4 = sld [smem:[#allocation0]]
  $region57: #{ffc_resnet_block.17} parent=0
    _
  %s6 = ssub.s32 1, %s4
  %s7 = scalar_select 0, %s6, %s4
  $region1: #{ffc_resnet_block.17} parent=0
    #allocation2 [shape = 'u8[49152]{0}', space=vmem, size = 0xc000, scoped, tag = 'input window, operand 0']
    #allocation3 [shape = 's32[2]{0}', space=sflag, size = 0x8, scoped, tag = 'scoped memory for ffc_resnet_block.17']
    #allocation4 [shape = 's32[2]{0}', space=sflag, size = 0x8, scoped, tag = 'scoped memory for ffc_resnet_block.17']
    #allocation5 [shape = 'u8[512]{0}', space=vmem, size = 0x400, scoped, tag = 'input window, operand 1, single buffered']
    #allocation6 [shape = 's32[1]{0}', space=sflag, size = 0x4, scoped, tag = 'scoped memory for ffc_resnet_block.17']
    #allocation7 [shape = 'u8[512]{0}', space=vmem, size = 0x400, scoped, tag = 'input window, operand 2, single buffered']
    #allocation8 [shape = 'u8[98304]{0}', space=vmem, size = 0x18000, scoped, tag = 'output window, operand 0']
    %8 = vsyncpa [#allocation3], 0
    %s9 = scalar_lea.sflag [#allocation3], 1
    %10 = vsyncpa %s9, 0
    %11 = vsyncpa [#allocation6], 0
    %12 = vsyncpa [#allocation4], 0
    %s13 = scalar_lea.sflag [#allocation4], 1
    %14 = vsyncpa %s13, 0
    loop: start=0, step=1, limit=5
    $region2: #{ffc_resnet_block.17} parent=1 // loop_pre_header
      _
    $region3: #{ffc_resnet_block.17} parent=1 // loop_header
      %s16 = sphi 0, %s20
      %p17 = scmp.ge.s32.totalorder %s16, 5
      %s26 = sphi 0, %s28
      %s29 = sphi 0, %s26
      %s30 = sphi 0, %s29
      %s46 = sphi 0, %s30
      %s50 = sphi 0, %s50
      %s52 = sphi 0, %s50
      %s53 = sphi 0, %s52
      %s67 = sphi 0, %s53
      %s71 = sphi 0, %s71
      %s73 = sphi 0, %s71
      %s74 = sphi 0, %s73
      %s88 = sphi 0, %s74
      %s94 = sphi 0, %s96
      %s97 = sphi 0, %s94
      %s98 = sphi 0, %s97
      %s114 = sphi 0, %s98
    $region4: #{ffc_resnet_block.17} parent=1 // loop_header_branch
      %19 = sbr.rel (%p17) target = $region8
    $region5: #{ffc_resnet_block.17} parent=1 // loop_body
      %s21 = ssub.s32 %s16, 1
      %s22 = ssub.s32 %s16, 2
      %s23 = sadd.s32 %s16, 1
      %s24 = ssub.s32 %s16, %s23
      %p25 = scmp.eq.s32.totalorder %s24, 0
      %s27 = sadd.s32 %s26, 1
      %s28 = scalar_select %p25, %s26, %s27
      %p31 = pneg %p25
      %p32 = scmp.eq.s32.totalorder %s16, 2
      %p33 = por %p31, %p32
      %p34 = scmp.ne.s32.totalorder %s26, %s29
      %p35 = scmp.eq.s32.totalorder %s16, 0
      %p36 = por %p34, %p35
      %p37 = scmp.ne.s32.totalorder %s26, %s29
      %p38 = scmp.eq.s32.totalorder %s21, 2
      %p39 = por %p37, %p38
      %p40 = scmp.ne.s32.totalorder %s29, %s30
      %p41 = scmp.eq.s32.totalorder %s21, 0
      %p42 = por %p40, %p41
      %p43 = scmp.ne.s32.totalorder %s29, %s30
      %p44 = scmp.eq.s32.totalorder %s22, 2
      %p45 = por %p43, %p44
      %p47 = scmp.ne.s32.totalorder %s30, %s46
      %p48 = scmp.eq.s32.totalorder %s22, 0
      %p49 = por %p47, %p48
      %s51 = sadd.s32 %s50, 1
      %p54 = scmp.eq.s32.totalorder %s16, 2
      %p55 = scmp.ne.s32.totalorder %s50, %s52
      %p56 = scmp.eq.s32.totalorder %s16, 0
      %p57 = por %p55, %p56
      %p58 = scmp.ne.s32.totalorder %s50, %s52
      %p59 = scmp.eq.s32.totalorder %s21, 2
      %p60 = por %p58, %p59
      %p61 = scmp.ne.s32.totalorder %s52, %s53
      %p62 = scmp.eq.s32.totalorder %s21, 0
      %p63 = por %p61, %p62
      %p64 = scmp.ne.s32.totalorder %s52, %s53
      %p65 = scmp.eq.s32.totalorder %s22, 2
      %p66 = por %p64, %p65
      %p68 = scmp.ne.s32.totalorder %s53, %s67
      %p69 = scmp.eq.s32.totalorder %s22, 0
      %p70 = por %p68, %p69
      %s72 = sadd.s32 %s71, 1
      %p75 = scmp.eq.s32.totalorder %s16, 2
      %p76 = scmp.ne.s32.totalorder %s71, %s73
      %p77 = scmp.eq.s32.totalorder %s16, 0
      %p78 = por %p76, %p77
      %p79 = scmp.ne.s32.totalorder %s71, %s73
      %p80 = scmp.eq.s32.totalorder %s21, 2
      %p81 = por %p79, %p80
      %p82 = scmp.ne.s32.totalorder %s73, %s74
      %p83 = scmp.eq.s32.totalorder %s21, 0
      %p84 = por %p82, %p83
      %p85 = scmp.ne.s32.totalorder %s73, %s74
      %p86 = scmp.eq.s32.totalorder %s22, 2
      %p87 = por %p85, %p86
      %p89 = scmp.ne.s32.totalorder %s74, %s88
      %p90 = scmp.eq.s32.totalorder %s22, 0
      %p91 = por %p89, %p90
      %s92 = ssub.s32 %s16, %s23
      %p93 = scmp.eq.s32.totalorder %s92, 0
      %s95 = sadd.s32 %s94, 1
      %s96 = scalar_select %p93, %s94, %s95
      %p99 = pneg %p93
      %p100 = scmp.eq.s32.totalorder %s16, 2
      %p101 = por %p99, %p100
      %p102 = scmp.ne.s32.totalorder %s94, %s97
      %p103 = scmp.eq.s32.totalorder %s16, 0
      %p104 = por %p102, %p103
      %p105 = scmp.ne.s32.totalorder %s94, %s97
      %p106 = scmp.eq.s32.totalorder %s21, 2
      %p107 = por %p105, %p106
      %p108 = scmp.ne.s32.totalorder %s97, %s98
      %p109 = scmp.eq.s32.totalorder %s21, 0
      %p110 = por %p108, %p109
      %p111 = scmp.ne.s32.totalorder %s97, %s98
      %p112 = scmp.eq.s32.totalorder %s22, 2
      %p113 = por %p111, %p112
      %p115 = scmp.ne.s32.totalorder %s98, %s114
      %p116 = scmp.eq.s32.totalorder %s22, 0
      %p117 = por %p115, %p116
      %p118 = scmp.le.s32.totalorder 1, %s16
      %p119 = scmp.lt.s32.totalorder %s16, 4
      %p120 = pnand %p118, %p119
      %p121 = pneg %p120
      // Predicated region
      $region9: #{ffc_resnet_block.17} parent=5 // pred_check
        _
      $region10: #{ffc_resnet_block.17} parent=5 // pred_check_branch
        %123 = sbr.rel (%p120) target = $region12
      $region11: #{ffc_resnet_block.17} parent=5 // pred_region
        %s124 = ssub.s32 %s16, 1
        // Predicated region
        $region13: #{ffc_resnet_block.17} parent=11 // pred_check
          %p125 = pneg %p63
        $region14: #{ffc_resnet_block.17} parent=11 // pred_check_branch
          %127 = sbr.rel (%p125) target = $region16
        $region15: #{ffc_resnet_block.17} parent=11 // pred_region
          %s129 = ssub.s32 16, 16
          %130 = vsyncadd [#allocation6], %s129
          %s132 = sshll.u32 [#allocation5], 4
          %s133 = int_to_ptr.vmem [resolvable:$true] %s132
          %135 = dma.hbm_to_vmem [thread:$0]  %s1, 16, %s133, [#allocation6]
        $region16: #{ffc_resnet_block.17} parent=11 // pred_fallthru
          _
        // Predicated region
        $region17: #{ffc_resnet_block.17} parent=11 // pred_check
          %p136 = pneg %p84
        $region18: #{ffc_resnet_block.17} parent=11 // pred_check_branch
          %138 = sbr.rel (%p136) target = $region20
        $region19: #{ffc_resnet_block.17} parent=11 // pred_region
          %s140 = ssub.s32 16, 16
          %141 = vsyncadd [#allocation6], %s140
          %s143 = sshll.u32 [#allocation7], 4
          %s144 = int_to_ptr.vmem [resolvable:$true] %s143
          %146 = dma.hbm_to_vmem [thread:$0]  %s2, 16, %s144, [#allocation6]
        $region20: #{ffc_resnet_block.17} parent=11 // pred_fallthru
          _
      $region12: #{ffc_resnet_block.17} parent=5 // pred_fallthru
        _
      %p147 = scmp.lt.s32.totalorder %s16, 3
      // Predicated region
      $region21: #{ffc_resnet_block.17} parent=5 // pred_check
        %p148 = pneg %p147
      $region22: #{ffc_resnet_block.17} parent=5 // pred_check_branch
        %150 = sbr.rel (%p148) target = $region24
      $region23: #{ffc_resnet_block.17} parent=5 // pred_region
        // Predicated region
        $region25: #{ffc_resnet_block.17} parent=23 // pred_check
          %p151 = pneg %p36
        $region26: #{ffc_resnet_block.17} parent=23 // pred_check_branch
          %153 = sbr.rel (%p151) target = $region28
        $region27: #{ffc_resnet_block.17} parent=23 // pred_region
          %s154 = sand.u32 %s26, 1
          %s155 = scalar_lea.sflag [#allocation3], %s154
          %s156 = sand.u32 %s26, 1
          %s157 = smul.addr %s156, 48
          %s158 = scalar_lea.vmem [#allocation2], %s157
          %s159 = smul.u32 12, %s16
          %s161 = ssub.s32 768, 768
          %162 = vsyncadd %s155, %s161
          %s163 = smul.addr %s159, 64
          %s164 = scalar_lea.hbm %s0, %s163
          %s165 = sshll.u32 %s158, 4
          %s166 = int_to_ptr.vmem [resolvable:$true] %s165
          %171 = dma.hbm_to_vmem [thread:$0]  %s164, 768, %s166, %s155, 64, 64, 4
        $region28: #{ffc_resnet_block.17} parent=23 // pred_fallthru
          _
      $region24: #{ffc_resnet_block.17} parent=5 // pred_fallthru
        _
      %p172 = scmp.le.s32.totalorder 1, %s16
      %p173 = scmp.lt.s32.totalorder %s16, 4
      %p174 = pnand %p172, %p173
      %p175 = pneg %p174
      // Predicated region
      $region29: #{ffc_resnet_block.17} parent=5 // pred_check
        _
      $region30: #{ffc_resnet_block.17} parent=5 // pred_check_branch
        %177 = sbr.rel (%p174) target = $region32
      $region31: #{ffc_resnet_block.17} parent=5 // pred_region
        %s178 = ssub.s32 %s16, 1
        %s179 = sand.u32 %s29, 1
        %s180 = scalar_lea.sflag [#allocation3], %s179
        %s181 = sand.u32 %s29, 1
        %s182 = smul.addr %s181, 48
        %s183 = scalar_lea.vmem [#allocation2], %s182
        // Predicated region
        $region33: #{ffc_resnet_block.17} parent=31 // pred_check
          %p184 = pneg %p42
        $region34: #{ffc_resnet_block.17} parent=31 // pred_check_branch
          %186 = sbr.rel (%p184) target = $region36
        $region35: #{ffc_resnet_block.17} parent=31 // pred_region
          %187 = dma.done %s180, 768
        $region36: #{ffc_resnet_block.17} parent=31 // pred_fallthru
          _
        // Predicated region
        $region37: #{ffc_resnet_block.17} parent=31 // pred_check
          %p188 = pneg %p63
        $region38: #{ffc_resnet_block.17} parent=31 // pred_check_branch
          %190 = sbr.rel (%p188) target = $region40
        $region39: #{ffc_resnet_block.17} parent=31 // pred_region
          %191 = dma.done [#allocation6], 16
        $region40: #{ffc_resnet_block.17} parent=31 // pred_fallthru
          _
        // Predicated region
        $region41: #{ffc_resnet_block.17} parent=31 // pred_check
          %p192 = pneg %p84
        $region42: #{ffc_resnet_block.17} parent=31 // pred_check_branch
          %194 = sbr.rel (%p192) target = $region44
        $region43: #{ffc_resnet_block.17} parent=31 // pred_region
          %195 = dma.done [#allocation6], 16
        $region44: #{ffc_resnet_block.17} parent=31 // pred_fallthru
          _
        %s196 = sand.u32 %s29, 1
        %s197 = scalar_lea.sflag [#allocation3], %s196
        %s198 = sand.u32 %s29, 1
        %s199 = smul.addr %s198, 48
        %s200 = scalar_lea.vmem [#allocation2], %s199
        %p201 = pneg %p42
        %p202 = pneg %p39
        %p203 = pneg %p63
        %p204 = pneg %p60
        %p205 = pneg %p84
        %p206 = pneg %p81
        %p207 = pneg %p110
        %p208 = pneg %p107
        %s209 = sand.u32 %s97, 1
        %s210 = scalar_lea.sflag [#allocation4], %s209
        %s211 = sand.u32 %s97, 1
        %s212 = smul.addr %s211, 96
        %s213 = scalar_lea.vmem [#allocation8], %s212
        %s214 = smul.u32 12, %s21
        %s215 = smul.u32 12, %s21
        %v216 = vld [vmem:[%s183] sm:$0xf]
        %v217 = vld [vmem:[%s183 + $0x4] sm:$0xf]
        %v218 = vld [vmem:[%s183 + $0x8] sm:$0xf]
        %v219 = vld [vmem:[%s183 + $0xc] sm:$0xf]
        %v220 = vld [vmem:[%s183 + $0x10] sm:$0xf]
        %v221 = vld [vmem:[%s183 + $0x14] sm:$0xf]
        %v222 = vld [vmem:[%s183 + $0x18] sm:$0xf]
        %v223 = vld [vmem:[%s183 + $0x1c] sm:$0xf]
        %v224 = vld [vmem:[%s183 + $0x20] sm:$0xf]
        %v225 = vld [vmem:[%s183 + $0x24] sm:$0xf]
        %v226 = vld [vmem:[%s183 + $0x28] sm:$0xf]
        %v227 = vld [vmem:[%s183 + $0x2c] sm:$0xf]
        %v228 = vunpack.c.l.bf16 %v216
        %v229 = vunpack.c.l.bf16 %v217
        %v230 = vunpack.c.l.bf16 %v218
        %v231 = vunpack.c.l.bf16 %v219
        %v232 = vunpack.c.l.bf16 %v220
        %v233 = vunpack.c.l.bf16 %v221
        %v234 = vunpack.c.l.bf16 %v222
        %v235 = vunpack.c.l.bf16 %v223
        %v236 = vunpack.c.l.bf16 %v224
        %v237 = vunpack.c.l.bf16 %v225
        %v238 = vunpack.c.l.bf16 %v226
        %v239 = vunpack.c.l.bf16 %v227
        %v240 = vld [vmem:[#allocation5] sm:$0x1]
        %v242 = vlaneseq
        %v243 = vshrl.u32 %v242, 7
        %v244 = vsub.s32 0, %v243
        %v245 = vrot.slane %v240, %v244
        %v247 = vmul.f32 %v228, %v245
        %v248 = vmul.f32 %v229, %v245
        %v249 = vmul.f32 %v230, %v245
        %v250 = vmul.f32 %v231, %v245
        %v251 = vmul.f32 %v232, %v245
        %v252 = vmul.f32 %v233, %v245
        %v253 = vmul.f32 %v234, %v245
        %v254 = vmul.f32 %v235, %v245
        %v255 = vmul.f32 %v236, %v245
        %v256 = vmul.f32 %v237, %v245
        %v257 = vmul.f32 %v238, %v245
        %v258 = vmul.f32 %v239, %v245
        %v259 = vld [vmem:[#allocation7] sm:$0x1]
        %v261 = vlaneseq
        %v262 = vshrl.u32 %v261, 7
        %v263 = vsub.s32 0, %v262
        %v264 = vrot.slane %v259, %v263
        %v266 = vadd.f32 %v247, %v264
        %v267 = vadd.f32 %v248, %v264
        %v268 = vadd.f32 %v249, %v264
        %v269 = vadd.f32 %v250, %v264
        %v270 = vadd.f32 %v251, %v264
        %v271 = vadd.f32 %v252, %v264
        %v272 = vadd.f32 %v253, %v264
        %v273 = vadd.f32 %v254, %v264
        %v274 = vadd.f32 %v255, %v264
        %v275 = vadd.f32 %v256, %v264
        %v276 = vadd.f32 %v257, %v264
        %v277 = vadd.f32 %v258, %v264
        %v278 = vmax.f32 %v266, 0.0
        %v279 = vmax.f32 %v267, 0.0
        %v280 = vmax.f32 %v268, 0.0
        %v281 = vmax.f32 %v269, 0.0
        %v282 = vmax.f32 %v270, 0.0
        %v283 = vmax.f32 %v271, 0.0
        %v284 = vmax.f32 %v272, 0.0
        %v285 = vmax.f32 %v273, 0.0
        %v286 = vmax.f32 %v274, 0.0
        %v287 = vmax.f32 %v275, 0.0
        %v288 = vmax.f32 %v276, 0.0
        %v289 = vmax.f32 %v277, 0.0
        %vm290 = vcmask 15360
        %291 = vst.msk [vmem:[%s213] sm:$0xff] %vm290, %v278
        %292 = vst.msk [vmem:[%s213 + $0x8] sm:$0xff] %vm290, %v279
        %293 = vst.msk [vmem:[%s213 + $0x10] sm:$0xff] %vm290, %v280
        %294 = vst.msk [vmem:[%s213 + $0x18] sm:$0xff] %vm290, %v281
        %295 = vst.msk [vmem:[%s213 + $0x20] sm:$0xff] %vm290, %v282
        %296 = vst.msk [vmem:[%s213 + $0x28] sm:$0xff] %vm290, %v283
        %297 = vst.msk [vmem:[%s213 + $0x30] sm:$0xff] %vm290, %v284
        %298 = vst.msk [vmem:[%s213 + $0x38] sm:$0xff] %vm290, %v285
        %299 = vst.msk [vmem:[%s213 + $0x40] sm:$0xff] %vm290, %v286
        %300 = vst.msk [vmem:[%s213 + $0x48] sm:$0xff] %vm290, %v287
        %301 = vst.msk [vmem:[%s213 + $0x50] sm:$0xff] %vm290, %v288
        %302 = vst.msk [vmem:[%s213 + $0x58] sm:$0xff] %vm290, %v289
        %s303 = sand.u32 %s97, 1
        %s304 = scalar_lea.sflag [#allocation4], %s303
        %s305 = sand.u32 %s97, 1
        %s306 = smul.addr %s305, 96
        %s307 = scalar_lea.vmem [#allocation8], %s306
        // Predicated region
        $region45: #{ffc_resnet_block.17} parent=31 // pred_check
          %p308 = pneg %p107
        $region46: #{ffc_resnet_block.17} parent=31 // pred_check_branch
          %310 = sbr.rel (%p308) target = $region48
        $region47: #{ffc_resnet_block.17} parent=31 // pred_region
          %s311 = smul.u32 12, %s21
          %s313 = ssub.s32 1536, 1536
          %314 = vsyncadd %s304, %s313
          %s315 = smul.addr %s311, 128
          %s316 = scalar_lea.hbm %s3, %s315
          %s317 = sshll.u32 %s307, 4
          %s318 = int_to_ptr.vmem [resolvable:$true] %s317
          %323 = dma.vmem_to_hbm [thread:$0]  %s318, 1536, %s316, %s304, 128, 128, 8
        $region48: #{ffc_resnet_block.17} parent=31 // pred_fallthru
          _
      $region32: #{ffc_resnet_block.17} parent=5 // pred_fallthru
        _
      %p324 = scmp.le.s32.totalorder 2, %s16
      // Predicated region
      $region49: #{ffc_resnet_block.17} parent=5 // pred_check
        %p325 = pneg %p324
      $region50: #{ffc_resnet_block.17} parent=5 // pred_check_branch
        %327 = sbr.rel (%p325) target = $region52
      $region51: #{ffc_resnet_block.17} parent=5 // pred_region
        %s328 = ssub.s32 %s16, 2
        // Predicated region
        $region53: #{ffc_resnet_block.17} parent=51 // pred_check
          %p329 = pneg %p113
        $region54: #{ffc_resnet_block.17} parent=51 // pred_check_branch
          %331 = sbr.rel (%p329) target = $region56
        $region55: #{ffc_resnet_block.17} parent=51 // pred_region
          %s332 = sand.u32 %s98, 1
          %s333 = scalar_lea.sflag [#allocation4], %s332
          %s334 = sand.u32 %s98, 1
          %s335 = smul.addr %s334, 96
          %s336 = scalar_lea.vmem [#allocation8], %s335
          %337 = dma.done %s333, 1536
        $region56: #{ffc_resnet_block.17} parent=51 // pred_fallthru
          _
      $region52: #{ffc_resnet_block.17} parent=5 // pred_fallthru
        _
    $region6: #{ffc_resnet_block.17} parent=1 // loop_footer
      %s20 = sadd.s32 1, %s16
    $region7: #{ffc_resnet_block.17} parent=1 // loop_footer_branch
      %15 = sbr.rel target = $region3
    $region8: #{ffc_resnet_block.17} parent=1 // loop_exit
      _
    %338 = vsyncpa [#allocation3], 1
    %s339 = scalar_lea.sflag [#allocation3], 1
    %340 = vsyncpa %s339, 1
    %341 = vsyncpa [#allocation6], 1
    %342 = vsyncpa [#allocation4], 1
    %s343 = scalar_lea.sflag [#allocation4], 1
    %344 = vsyncpa %s343, 1

// kernel: reverse.5
$region0: #{reverse.5}
  %s0 = inlined_call_operand.vmem [shape: f32[2,1,16,7], index: 0, kind: input, shape index: {}]
  %s1 = inlined_call_operand.vmem [shape: f32[2,1,16,7], index: 1, kind: output, shape index: {}]
  $region1: #{reverse.5} parent=0
    #allocation0 [shape = 'u8[16384]{0}', space=vmem, size = 0x4000, scoped, tag = 'operand span for operand 0']
    #allocation1 [shape = 'u8[8192]{0}', space=vmem, size = 0x2000, scoped, tag = 'operand span for operand 1']
    %s2 = scalar_lea.vmem [#allocation0], 8
    // Predicated region
    $region2: #{reverse.5} parent=1 // pred_check
      _
    $region3: #{reverse.5} parent=1 // pred_check_branch
      %4 = sbr.rel (0) target = $region5
    $region4: #{reverse.5} parent=1 // pred_region
      // Predicated region
      $region6: #{reverse.5} parent=4 // pred_check
        _
      $region7: #{reverse.5} parent=4 // pred_check_branch
        %6 = sbr.rel (0) target = $region9
      $region8: #{reverse.5} parent=4 // pred_region
        // Predicated region
        $region21: #{reverse.5} parent=8 // pred_check
          _
        $region22: #{reverse.5} parent=8 // pred_check_branch
          %23 = sbr.rel (0) target = $region24
        $region23: #{reverse.5} parent=8 // pred_region
          loop: start=0, step=1, limit=1
          $region25: #{reverse.5} parent=23 // loop_pre_header
            _
          $region26: #{reverse.5} parent=23 // loop_header
            %s25 = sphi 0, %s29
            %p26 = scmp.ge.s32.totalorder %s25, 1
            %s30 = sphi %s0, %s0
            %s31 = sphi %s2, %s2
          $region27: #{reverse.5} parent=23 // loop_header_branch
            %28 = sbr.rel (%p26) target = $region31
          $region28: #{reverse.5} parent=23 // loop_body
            %v32 = vld [vmem:[%s30] sm:$0xff]
            %33 = vst [vmem:[%s31] sm:$0xff] %v32
            %v34 = vld [vmem:[%s30 + $0x8] sm:$0xff]
            %35 = vst [vmem:[%s31 + $0x10] sm:$0xff] %v34
          $region29: #{reverse.5} parent=23 // loop_footer
            %s29 = sadd.s32 1, %s25
          $region30: #{reverse.5} parent=23 // loop_footer_branch
            %24 = sbr.rel target = $region26
          $region31: #{reverse.5} parent=23 // loop_exit
            _
        $region24: #{reverse.5} parent=8 // pred_fallthru
          _
        // Predicated region
        $region32: #{reverse.5} parent=8 // pred_check
          _
        $region33: #{reverse.5} parent=8 // pred_check_branch
          %37 = sbr.rel target = $region35
        $region34: #{reverse.5} parent=8 // pred_region
          _
        $region35: #{reverse.5} parent=8 // pred_fallthru
          _
      $region9: #{reverse.5} parent=4 // pred_fallthru
        _
      // Predicated region
      $region10: #{reverse.5} parent=4 // pred_check
        _
      $region11: #{reverse.5} parent=4 // pred_check_branch
        %8 = sbr.rel target = $region13
      $region12: #{reverse.5} parent=4 // pred_region
        loop: start=0, step=1, limit=1
        $region14: #{reverse.5} parent=12 // loop_pre_header
          _
        $region15: #{reverse.5} parent=12 // loop_header
          %s11 = sphi 0, %s15
          %p12 = scmp.ge.s32.totalorder %s11, 1
          %s16 = sphi %s0, %s0
          %s17 = sphi %s2, %s2
        $region16: #{reverse.5} parent=12 // loop_header_branch
          %14 = sbr.rel (%p12) target = $region20
        $region17: #{reverse.5} parent=12 // loop_body
          %v18 = vld [vmem:[%s16] sm:$0xff]
          %19 = vst [vmem:[%s17] sm:$0xff] %v18
          %v20 = vld [vmem:[%s16 + $0x8] sm:$0xff]
          %21 = vst [vmem:[%s17 + $0x10] sm:$0xff] %v20
        $region18: #{reverse.5} parent=12 // loop_footer
          %s15 = sadd.s32 1, %s11
        $region19: #{reverse.5} parent=12 // loop_footer_branch
          %10 = sbr.rel target = $region15
        $region20: #{reverse.5} parent=12 // loop_exit
          _
      $region13: #{reverse.5} parent=4 // pred_fallthru
        _
    $region5: #{reverse.5} parent=1 // pred_fallthru
      _
    %38 = vnop
    %s39 = scalar_lea.vmem [#allocation0], 7
    %v40 = vld [vmem:[%s39] ss:$-1 sm:$0xff]
    %v41 = vrot.slane %v40, 1
    %42 = vst [vmem:[#allocation1] sm:$0xff] %v41
    %s43 = scalar_lea.vmem [#allocation0], 8
    %s44 = scalar_lea.vmem %s43, 7 [#allocation0]
    %v45 = vld [vmem:[%s44] ss:$-1 sm:$0xff]
    %v46 = vrot.slane %v45, 1
    %v47 = vlaneseq
    %v48 = vshrl.u32 %v47, 7
    %vm49 = vcmp.lt.s32.totalorder %v48, 7
    %50 = vst.msk [vmem:[#allocation1] sm:$0xff] %vm49, %v46
    %s51 = scalar_lea.vmem [#allocation1], 8
    %s52 = scalar_lea.vmem [#allocation0], 16
    %s53 = scalar_lea.vmem %s52, 7 [#allocation0]
    %v54 = vld [vmem:[%s53] ss:$-1 sm:$0xff]
    %v55 = vrot.slane %v54, 1
    %56 = vst [vmem:[%s51] sm:$0xff] %v55
    %s57 = scalar_lea.vmem %s52, 8 [#allocation0]
    %s58 = scalar_lea.vmem %s57, 7 [#allocation0]
    %v59 = vld [vmem:[%s58] ss:$-1 sm:$0xff]
    %v60 = vrot.slane %v59, 1
    %v61 = vlaneseq
    %v62 = vshrl.u32 %v61, 7
    %vm63 = vcmp.lt.s32.totalorder %v62, 7
    %64 = vst.msk [vmem:[%s51] sm:$0xff] %vm63, %v60
    // Predicated region
    $region36: #{reverse.5} parent=1 // pred_check
      _
    $region37: #{reverse.5} parent=1 // pred_check_branch
      %66 = sbr.rel (0) target = $region39
    $region38: #{reverse.5} parent=1 // pred_region
      // Predicated region
      $region40: #{reverse.5} parent=38 // pred_check
        _
      $region41: #{reverse.5} parent=38 // pred_check_branch
        %68 = sbr.rel (0) target = $region43
      $region42: #{reverse.5} parent=38 // pred_region
        // Predicated region
        $region55: #{reverse.5} parent=42 // pred_check
          _
        $region56: #{reverse.5} parent=42 // pred_check_branch
          %85 = sbr.rel (0) target = $region58
        $region57: #{reverse.5} parent=42 // pred_region
          loop: start=0, step=1, limit=1
          $region59: #{reverse.5} parent=57 // loop_pre_header
            _
          $region60: #{reverse.5} parent=57 // loop_header
            %s87 = sphi 0, %s91
            %p88 = scmp.ge.s32.totalorder %s87, 1
            %s92 = sphi [#allocation1], [#allocation1]
            %s93 = sphi %s1, %s1
          $region61: #{reverse.5} parent=57 // loop_header_branch
            %90 = sbr.rel (%p88) target = $region65
          $region62: #{reverse.5} parent=57 // loop_body
            %v94 = vld [vmem:[%s92] sm:$0xff]
            %95 = vst [vmem:[%s93] sm:$0xff] %v94
            %v96 = vld [vmem:[%s92 + $0x8] sm:$0xff]
            %97 = vst [vmem:[%s93 + $0x8] sm:$0xff] %v96
          $region63: #{reverse.5} parent=57 // loop_footer
            %s91 = sadd.s32 1, %s87
          $region64: #{reverse.5} parent=57 // loop_footer_branch
            %86 = sbr.rel target = $region60
          $region65: #{reverse.5} parent=57 // loop_exit
            _
        $region58: #{reverse.5} parent=42 // pred_fallthru
          _
        // Predicated region
        $region66: #{reverse.5} parent=42 // pred_check
          _
        $region67: #{reverse.5} parent=42 // pred_check_branch
          %99 = sbr.rel target = $region69
        $region68: #{reverse.5} parent=42 // pred_region
          _
        $region69: #{reverse.5} parent=42 // pred_fallthru
          _
      $region43: #{reverse.5} parent=38 // pred_fallthru
        _
      // Predicated region
      $region44: #{reverse.5} parent=38 // pred_check
        _
      $region45: #{reverse.5} parent=38 // pred_check_branch
        %70 = sbr.rel target = $region47
      $region46: #{reverse.5} parent=38 // pred_region
        loop: start=0, step=1, limit=1
        $region48: #{reverse.5} parent=46 // loop_pre_header
          _
        $region49: #{reverse.5} parent=46 // loop_header
          %s73 = sphi 0, %s77
          %p74 = scmp.ge.s32.totalorder %s73, 1
          %s78 = sphi [#allocation1], [#allocation1]
          %s79 = sphi %s1, %s1
        $region50: #{reverse.5} parent=46 // loop_header_branch
          %76 = sbr.rel (%p74) target = $region54
        $region51: #{reverse.5} parent=46 // loop_body
          %v80 = vld [vmem:[%s78] sm:$0xff]
          %81 = vst [vmem:[%s79] sm:$0xff] %v80
          %v82 = vld [vmem:[%s78 + $0x8] sm:$0xff]
          %83 = vst [vmem:[%s79 + $0x8] sm:$0xff] %v82
        $region52: #{reverse.5} parent=46 // loop_footer
          %s77 = sadd.s32 1, %s73
        $region53: #{reverse.5} parent=46 // loop_footer_branch
          %72 = sbr.rel target = $region49
        $region54: #{reverse.5} parent=46 // loop_exit
          _
      $region47: #{reverse.5} parent=38 // pred_fallthru
        _
    $region39: #{reverse.5} parent=1 // pred_fallthru
      _
    %100 = vnop

// kernel: ffc_resnet_block.16
$region0: #{ffc_resnet_block.16}
  #allocation0 [shape = 'u32[]', space=smem, size = 0x4, offset = 0x4, fixed_abs, tag = 'smem constant byte address 0x4 - core index']
  #allocation1 [shape = 'u32[144,128]{1,0:T(1,128)}', space=vmem, size = 0x12000, scoped, tag = 'internal scratch']
  %s0 = inlined_call_operand.hbm [shape: bf16[288,2], index: 0, kind: input, shape index: {}]
  %s1 = inlined_call_operand.hbm [shape: bf16[2,2], index: 1, kind: input, shape index: {}]
  %s2 = inlined_call_operand.hbm [shape: bf16[288,2], index: 2, kind: output, shape index: {0}]
  %s3 = inlined_call_operand.hbm [shape: f32[3,2,2], index: 3, kind: output, shape index: {1}]
  %4 = xla_tuple %s2, %s3
  %s5 = sld [smem:[#allocation0]]
  $region57: #{ffc_resnet_block.16} parent=0
    _
  %s7 = ssub.s32 1, %s5
  %s8 = scalar_select 0, %s7, %s5
  $region1: #{ffc_resnet_block.16} parent=0
    #allocation2 [shape = 'u8[49152]{0}', space=vmem, size = 0xc000, scoped, tag = 'input window, operand 0']
    #allocation3 [shape = 's32[2]{0}', space=sflag, size = 0x8, scoped, tag = 'scoped memory for ffc_resnet_block.16']
    #allocation4 [shape = 's32[2]{0}', space=sflag, size = 0x8, scoped, tag = 'scoped memory for ffc_resnet_block.16']
    #allocation5 [shape = 'u8[512]{0}', space=vmem, size = 0x400, scoped, tag = 'input window, operand 1, single buffered']
    #allocation6 [shape = 's32[1]{0}', space=sflag, size = 0x4, scoped, tag = 'scoped memory for ffc_resnet_block.16']
    #allocation7 [shape = 'u8[49152]{0}', space=vmem, size = 0xc000, scoped, tag = 'output window, operand 0']
    #allocation8 [shape = 'u8[2048]{0}', space=vmem, size = 0x800, scoped, tag = 'output window, operand 1']
    #allocation9 [shape = 's32[2]{0}', space=sflag, size = 0x8, scoped, tag = 'scoped memory for ffc_resnet_block.16']
    %9 = vsyncpa [#allocation3], 0
    %s10 = scalar_lea.sflag [#allocation3], 1
    %11 = vsyncpa %s10, 0
    %12 = vsyncpa [#allocation6], 0
    %13 = vsyncpa [#allocation4], 0
    %s14 = scalar_lea.sflag [#allocation4], 1
    %15 = vsyncpa %s14, 0
    %16 = vsyncpa [#allocation9], 0
    %s17 = scalar_lea.sflag [#allocation9], 1
    %18 = vsyncpa %s17, 0
    loop: start=0, step=1, limit=5
    $region2: #{ffc_resnet_block.16} parent=1 // loop_pre_header
      _
    $region3: #{ffc_resnet_block.16} parent=1 // loop_header
      %s20 = sphi 0, %s24
      %p21 = scmp.ge.s32.totalorder %s20, 5
      %s30 = sphi 0, %s32
      %s33 = sphi 0, %s30
      %s34 = sphi 0, %s33
      %s50 = sphi 0, %s34
      %s54 = sphi 0, %s54
      %s56 = sphi 0, %s54
      %s57 = sphi 0, %s56
      %s71 = sphi 0, %s57
      %s77 = sphi 0, %s79
      %s80 = sphi 0, %s77
      %s81 = sphi 0, %s80
      %s97 = sphi 0, %s81
      %s103 = sphi 0, %s105
      %s106 = sphi 0, %s103
      %s107 = sphi 0, %s106
      %s123 = sphi 0, %s107
    $region4: #{ffc_resnet_block.16} parent=1 // loop_header_branch
      %23 = sbr.rel (%p21) target = $region8
    $region5: #{ffc_resnet_block.16} parent=1 // loop_body
      %s25 = ssub.s32 %s20, 1
      %s26 = ssub.s32 %s20, 2
      %s27 = sadd.s32 %s20, 1
      %s28 = ssub.s32 %s20, %s27
      %p29 = scmp.eq.s32.totalorder %s28, 0
      %s31 = sadd.s32 %s30, 1
      %s32 = scalar_select %p29, %s30, %s31
      %p35 = pneg %p29
      %p36 = scmp.eq.s32.totalorder %s20, 2
      %p37 = por %p35, %p36
      %p38 = scmp.ne.s32.totalorder %s30, %s33
      %p39 = scmp.eq.s32.totalorder %s20, 0
      %p40 = por %p38, %p39
      %p41 = scmp.ne.s32.totalorder %s30, %s33
      %p42 = scmp.eq.s32.totalorder %s25, 2
      %p43 = por %p41, %p42
      %p44 = scmp.ne.s32.totalorder %s33, %s34
      %p45 = scmp.eq.s32.totalorder %s25, 0
      %p46 = por %p44, %p45
      %p47 = scmp.ne.s32.totalorder %s33, %s34
      %p48 = scmp.eq.s32.totalorder %s26, 2
      %p49 = por %p47, %p48
      %p51 = scmp.ne.s32.totalorder %s34, %s50
      %p52 = scmp.eq.s32.totalorder %s26, 0
      %p53 = por %p51, %p52
      %s55 = sadd.s32 %s54, 1
      %p58 = scmp.eq.s32.totalorder %s20, 2
      %p59 = scmp.ne.s32.totalorder %s54, %s56
      %p60 = scmp.eq.s32.totalorder %s20, 0
      %p61 = por %p59, %p60
      %p62 = scmp.ne.s32.totalorder %s54, %s56
      %p63 = scmp.eq.s32.totalorder %s25, 2
      %p64 = por %p62, %p63
      %p65 = scmp.ne.s32.totalorder %s56, %s57
      %p66 = scmp.eq.s32.totalorder %s25, 0
      %p67 = por %p65, %p66
      %p68 = scmp.ne.s32.totalorder %s56, %s57
      %p69 = scmp.eq.s32.totalorder %s26, 2
      %p70 = por %p68, %p69
      %p72 = scmp.ne.s32.totalorder %s57, %s71
      %p73 = scmp.eq.s32.totalorder %s26, 0
      %p74 = por %p72, %p73
      %s75 = ssub.s32 %s20, %s27
      %p76 = scmp.eq.s32.totalorder %s75, 0
      %s78 = sadd.s32 %s77, 1
      %s79 = scalar_select %p76, %s77, %s78
      %p82 = pneg %p76
      %p83 = scmp.eq.s32.totalorder %s20, 2
      %p84 = por %p82, %p83
      %p85 = scmp.ne.s32.totalorder %s77, %s80
      %p86 = scmp.eq.s32.totalorder %s20, 0
      %p87 = por %p85, %p86
      %p88 = scmp.ne.s32.totalorder %s77, %s80
      %p89 = scmp.eq.s32.totalorder %s25, 2
      %p90 = por %p88, %p89
      %p91 = scmp.ne.s32.totalorder %s80, %s81
      %p92 = scmp.eq.s32.totalorder %s25, 0
      %p93 = por %p91, %p92
      %p94 = scmp.ne.s32.totalorder %s80, %s81
      %p95 = scmp.eq.s32.totalorder %s26, 2
      %p96 = por %p94, %p95
      %p98 = scmp.ne.s32.totalorder %s81, %s97
      %p99 = scmp.eq.s32.totalorder %s26, 0
      %p100 = por %p98, %p99
      %s101 = ssub.s32 %s20, %s27
      %p102 = scmp.eq.s32.totalorder %s101, 0
      %s104 = sadd.s32 %s103, 1
      %s105 = scalar_select %p102, %s103, %s104
      %p108 = pneg %p102
      %p109 = scmp.eq.s32.totalorder %s20, 2
      %p110 = por %p108, %p109
      %p111 = scmp.ne.s32.totalorder %s103, %s106
      %p112 = scmp.eq.s32.totalorder %s20, 0
      %p113 = por %p111, %p112
      %p114 = scmp.ne.s32.totalorder %s103, %s106
      %p115 = scmp.eq.s32.totalorder %s25, 2
      %p116 = por %p114, %p115
      %p117 = scmp.ne.s32.totalorder %s106, %s107
      %p118 = scmp.eq.s32.totalorder %s25, 0
      %p119 = por %p117, %p118
      %p120 = scmp.ne.s32.totalorder %s106, %s107
      %p121 = scmp.eq.s32.totalorder %s26, 2
      %p122 = por %p120, %p121
      %p124 = scmp.ne.s32.totalorder %s107, %s123
      %p125 = scmp.eq.s32.totalorder %s26, 0
      %p126 = por %p124, %p125
      %p127 = scmp.le.s32.totalorder 1, %s20
      %p128 = scmp.lt.s32.totalorder %s20, 4
      %p129 = pnand %p127, %p128
      %p130 = pneg %p129
      // Predicated region
      $region9: #{ffc_resnet_block.16} parent=5 // pred_check
        _
      $region10: #{ffc_resnet_block.16} parent=5 // pred_check_branch
        %132 = sbr.rel (%p129) target = $region12
      $region11: #{ffc_resnet_block.16} parent=5 // pred_region
        %s133 = ssub.s32 %s20, 1
        // Predicated region
        $region13: #{ffc_resnet_block.16} parent=11 // pred_check
          %p134 = pneg %p67
        $region14: #{ffc_resnet_block.16} parent=11 // pred_check_branch
          %136 = sbr.rel (%p134) target = $region16
        $region15: #{ffc_resnet_block.16} parent=11 // pred_region
          %s138 = ssub.s32 16, 16
          %139 = vsyncadd [#allocation6], %s138
          %s141 = sshll.u32 [#allocation5], 4
          %s142 = int_to_ptr.vmem [resolvable:$true] %s141
          %144 = dma.hbm_to_vmem [thread:$0]  %s1, 16, %s142, [#allocation6]
        $region16: #{ffc_resnet_block.16} parent=11 // pred_fallthru
          _
      $region12: #{ffc_resnet_block.16} parent=5 // pred_fallthru
        _
      %p145 = scmp.lt.s32.totalorder %s20, 3
      // Predicated region
      $region17: #{ffc_resnet_block.16} parent=5 // pred_check
        %p146 = pneg %p145
      $region18: #{ffc_resnet_block.16} parent=5 // pred_check_branch
        %148 = sbr.rel (%p146) target = $region20
      $region19: #{ffc_resnet_block.16} parent=5 // pred_region
        // Predicated region
        $region21: #{ffc_resnet_block.16} parent=19 // pred_check
          %p149 = pneg %p40
        $region22: #{ffc_resnet_block.16} parent=19 // pred_check_branch
          %151 = sbr.rel (%p149) target = $region24
        $region23: #{ffc_resnet_block.16} parent=19 // pred_region
          %s152 = sand.u32 %s30, 1
          %s153 = scalar_lea.sflag [#allocation3], %s152
          %s154 = sand.u32 %s30, 1
          %s155 = smul.addr %s154, 48
          %s156 = scalar_lea.vmem [#allocation2], %s155
          %s157 = smul.u32 12, %s20
          %s159 = ssub.s32 768, 768
          %160 = vsyncadd %s153, %s159
          %s161 = smul.addr %s157, 64
          %s162 = scalar_lea.hbm %s0, %s161
          %s163 = sshll.u32 %s156, 4
          %s164 = int_to_ptr.vmem [resolvable:$true] %s163
          %169 = dma.hbm_to_vmem [thread:$0]  %s162, 768, %s164, %s153, 64, 64, 4
        $region24: #{ffc_resnet_block.16} parent=19 // pred_fallthru
          _
      $region20: #{ffc_resnet_block.16} parent=5 // pred_fallthru
        _
      %p170 = scmp.le.s32.totalorder 1, %s20
      %p171 = scmp.lt.s32.totalorder %s20, 4
      %p172 = pnand %p170, %p171
      %p173 = pneg %p172
      // Predicated region
      $region25: #{ffc_resnet_block.16} parent=5 // pred_check
        _
      $region26: #{ffc_resnet_block.16} parent=5 // pred_check_branch
        %175 = sbr.rel (%p172) target = $region28
      $region27: #{ffc_resnet_block.16} parent=5 // pred_region
        %s176 = ssub.s32 %s20, 1
        %s177 = sand.u32 %s33, 1
        %s178 = scalar_lea.sflag [#allocation3], %s177
        %s179 = sand.u32 %s33, 1
        %s180 = smul.addr %s179, 48
        %s181 = scalar_lea.vmem [#allocation2], %s180
        // Predicated region
        $region29: #{ffc_resnet_block.16} parent=27 // pred_check
          %p182 = pneg %p46
        $region30: #{ffc_resnet_block.16} parent=27 // pred_check_branch
          %184 = sbr.rel (%p182) target = $region32
        $region31: #{ffc_resnet_block.16} parent=27 // pred_region
          %185 = dma.done %s178, 768
        $region32: #{ffc_resnet_block.16} parent=27 // pred_fallthru
          _
        // Predicated region
        $region33: #{ffc_resnet_block.16} parent=27 // pred_check
          %p186 = pneg %p67
        $region34: #{ffc_resnet_block.16} parent=27 // pred_check_branch
          %188 = sbr.rel (%p186) target = $region36
        $region35: #{ffc_resnet_block.16} parent=27 // pred_region
          %189 = dma.done [#allocation6], 16
        $region36: #{ffc_resnet_block.16} parent=27 // pred_fallthru
          _
        %s190 = sand.u32 %s33, 1
        %s191 = scalar_lea.sflag [#allocation3], %s190
        %s192 = sand.u32 %s33, 1
        %s193 = smul.addr %s192, 48
        %s194 = scalar_lea.vmem [#allocation2], %s193
        %p195 = pneg %p46
        %p196 = pneg %p43
        %p197 = pneg %p67
        %p198 = pneg %p64
        %p199 = pneg %p93
        %p200 = pneg %p90
        %s201 = sand.u32 %s80, 1
        %s202 = scalar_lea.sflag [#allocation4], %s201
        %s203 = sand.u32 %s80, 1
        %s204 = smul.addr %s203, 48
        %s205 = scalar_lea.vmem [#allocation7], %s204
        %p206 = pneg %p119
        %p207 = pneg %p116
        %s208 = sand.u32 %s106, 1
        %s209 = scalar_lea.sflag [#allocation9], %s208
        %s210 = sand.u32 %s106, 1
        %s211 = smul.addr %s210, 2
        %s212 = scalar_lea.vmem [#allocation8], %s211
        %s213 = smul.u32 12, %s25
        %s214 = smul.u32 12, %s25
        %v216 = vld [vmem:[%s181] sm:$0xf]
        %v217 = vld [vmem:[%s181 + $0x4] sm:$0xf]
        %v218 = vld [vmem:[%s181 + $0x8] sm:$0xf]
        %v219 = vld [vmem:[%s181 + $0xc] sm:$0xf]
        %v220 = vld [vmem:[%s181 + $0x10] sm:$0xf]
        %v221 = vld [vmem:[%s181 + $0x14] sm:$0xf]
        %v222 = vld [vmem:[%s181 + $0x18] sm:$0xf]
        %v223 = vld [vmem:[%s181 + $0x1c] sm:$0xf]
        %v224 = vld [vmem:[%s181 + $0x20] sm:$0xf]
        %v225 = vld [vmem:[%s181 + $0x24] sm:$0xf]
        %v226 = vld [vmem:[%s181 + $0x28] sm:$0xf]
        %v227 = vld [vmem:[%s181 + $0x2c] sm:$0xf]
        %v228 = vld [vmem:[#allocation5] sm:$0x1]
        %v241 = vunpack.c.l.b16 %v216
        %v242 = vunpack.c.l.b16 %v217
        %v243 = vunpack.c.l.b16 %v218
        %v244 = vunpack.c.l.b16 %v219
        %v245 = vunpack.c.l.b16 %v220
        %v246 = vunpack.c.l.b16 %v221
        %v247 = vunpack.c.l.b16 %v222
        %v248 = vunpack.c.l.b16 %v223
        %v249 = vunpack.c.l.b16 %v224
        %v250 = vunpack.c.l.b16 %v225
        %v251 = vunpack.c.l.b16 %v226
        %v252 = vunpack.c.l.b16 %v227
        %v253 = vpack.c.b16 %v242, %v241
        %v254 = vpack.c.b16 %v244, %v243
        %v255 = vpack.c.b16 %v246, %v245
        %v256 = vpack.c.b16 %v248, %v247
        %v257 = vpack.c.b16 %v250, %v249
        %v258 = vpack.c.b16 %v252, %v251
        %vm259 = vcmask 15360
        %v261 = vsel %vm259, %v253, 0
        %v264 = vsel %vm259, %v254, 0
        %v267 = vsel %vm259, %v255, 0
        %v270 = vsel %vm259, %v256, 0
        %v273 = vsel %vm259, %v257, 0
        %v276 = vsel %vm259, %v258, 0
        %vm278 = vcmask 1040384
        %v280 = vsel %vm278, %v228, 0
        %282 = vmatprep.subr.bf16.mxu0 0
        %283 = vmatpush1.bf16.msra.mxu0 %v280
        %284 = vmatprep.subr.bf16.mxu0 0
        %285 = vmatpush1.bf16.msra.mxu0 0
        %286 = vmatprep.subr.bf16.mxu0 0
        %287 = vmatpush1.bf16.msra.mxu0 0
        %288 = vmatprep.subr.bf16.mxu0 0
        %289 = vmatpush1.bf16.msra.mxu0 0
        %290 = vmatprep.subr.bf16.mxu0 0
        %291 = vmatpush1.bf16.msra.mxu0 0
        %292 = vmatprep.subr.bf16.mxu0 0
        %293 = vmatpush1.bf16.msra.mxu0 0
        %294 = vmatprep.subr.bf16.mxu0 0
        %295 = vmatpush1.bf16.msra.mxu0 0
        %296 = vmatprep.subr.bf16.mxu0 0
        %297 = vmatpush1.bf16.msra.mxu0 0
        %298 = vmatprep.subr.bf16.mxu0 0
        %299 = vmatpush1.bf16.msra.mxu0 0
        %300 = vmatprep.subr.bf16.mxu0 0
        %301 = vmatpush1.bf16.msra.mxu0 0
        %302 = vmatprep.subr.bf16.mxu0 0
        %303 = vmatpush1.bf16.msra.mxu0 0
        %304 = vmatprep.subr.bf16.mxu0 0
        %305 = vmatpush1.bf16.msra.mxu0 0
        %306 = vmatprep.subr.bf16.mxu0 0
        %307 = vmatpush1.bf16.msra.mxu0 0
        %308 = vmatprep.subr.bf16.mxu0 0
        %309 = vmatpush1.bf16.msra.mxu0 0
        %310 = vmatprep.subr.bf16.mxu0 0
        %311 = vmatpush1.bf16.msra.mxu0 0
        %312 = vmatprep.subr.bf16.mxu0 0
        %313 = vmatpush1.bf16.msra.mxu0 0
        %314 = vmatprep.mubr.bf16.mxu0 0
        %315 = vmatmul.mubr.bf16.gmra.mrb[0].mxu0 %v261
        %v316 = vpop.f32.mrb[0].mxu0
        %v317 = vadd.f32 0.0, %v316
        %v318 = vpop.f32.mrb[0].mxu0
        %v319 = vpop.f32.mrb[0].mxu0
        %v320 = vadd.f32 0.0, %v319
        %v321 = vpop.f32.mrb[0].mxu0
        %322 = vmatprep.mubr.bf16.mxu0 0
        %323 = vmatmul.mubr.bf16.gmra.mrb[0].mxu0 %v264
        %v324 = vpop.f32.mrb[0].mxu0
        %v325 = vadd.f32 0.0, %v324
        %v326 = vpop.f32.mrb[0].mxu0
        %v327 = vpop.f32.mrb[0].mxu0
        %v328 = vadd.f32 0.0, %v327
        %v329 = vpop.f32.mrb[0].mxu0
        %330 = vmatprep.mubr.bf16.mxu0 0
        %331 = vmatmul.mubr.bf16.gmra.mrb[0].mxu0 %v267
        %v332 = vpop.f32.mrb[0].mxu0
        %v333 = vadd.f32 0.0, %v332
        %v334 = vpop.f32.mrb[0].mxu0
        %v335 = vpop.f32.mrb[0].mxu0
        %v336 = vadd.f32 0.0, %v335
        %v337 = vpop.f32.mrb[0].mxu0
        %338 = vmatprep.mubr.bf16.mxu0 0
        %339 = vmatmul.mubr.bf16.gmra.mrb[0].mxu0 %v270
        %v340 = vpop.f32.mrb[0].mxu0
        %v341 = vadd.f32 0.0, %v340
        %v342 = vpop.f32.mrb[0].mxu0
        %v343 = vpop.f32.mrb[0].mxu0
        %v344 = vadd.f32 0.0, %v343
        %v345 = vpop.f32.mrb[0].mxu0
        %346 = vmatprep.mubr.bf16.mxu0 0
        %347 = vmatmul.mubr.bf16.gmra.mrb[0].mxu0 %v273
        %v348 = vpop.f32.mrb[0].mxu0
        %v349 = vadd.f32 0.0, %v348
        %v350 = vpop.f32.mrb[0].mxu0
        %v351 = vpop.f32.mrb[0].mxu0
        %v352 = vadd.f32 0.0, %v351
        %v353 = vpop.f32.mrb[0].mxu0
        %354 = vmatprep.mubr.bf16.mxu0 0
        %355 = vmatmul.mubr.bf16.gmra.mrb[0].mxu0 %v276
        %v356 = vpop.f32.mrb[0].mxu0
        %v357 = vadd.f32 0.0, %v356
        %v358 = vpop.f32.mrb[0].mxu0
        %v359 = vpop.f32.mrb[0].mxu0
        %v360 = vadd.f32 0.0, %v359
        %v361 = vpop.f32.mrb[0].mxu0
        %362 = vdwg.mxu0
        %v363 = vsel %vm259, %v317, 0.0
        %v364 = vsel %vm259, %v320, 0.0
        %v365 = vadd.f32 %v363, %v364
        %v366 = vsel %vm259, %v325, 0.0
        %v367 = vadd.f32 %v365, %v366
        %v368 = vsel %vm259, %v328, 0.0
        %v369 = vadd.f32 %v367, %v368
        %v370 = vsel %vm259, %v333, 0.0
        %v371 = vadd.f32 %v369, %v370
        %v372 = vsel %vm259, %v336, 0.0
        %v373 = vadd.f32 %v371, %v372
        %v374 = vsel %vm259, %v341, 0.0
        %v375 = vadd.f32 %v373, %v374
        %v376 = vsel %vm259, %v344, 0.0
        %v377 = vadd.f32 %v375, %v376
        %v378 = vsel %vm259, %v349, 0.0
        %v379 = vadd.f32 %v377, %v378
        %v380 = vsel %vm259, %v352, 0.0
        %v381 = vadd.f32 %v379, %v380
        %v382 = vsel %vm259, %v357, 0.0
        %v383 = vadd.f32 %v381, %v382
        %v384 = vsel %vm259, %v360, 0.0
        %v385 = vadd.f32 %v383, %v384
        %v386 = vrot.slane %v385, 4
        %v387 = vadd.f32 %v385, %v386
        %v388 = vrot.slane %v387, 2
        %v389 = vadd.f32 %v387, %v388
        %v390 = vrot.slane %v389, 1
        %v391 = vadd.f32 %v389, %v390
        %vm392 = vcmask 8192
        %393 = vst.msk [vmem:[%s212] sm:$0x1] %vm392, %v391
        %v394 = vmul.f32 %v317, %v317
        %v395 = vmul.f32 %v320, %v320
        %v396 = vmul.f32 %v325, %v325
        %v397 = vmul.f32 %v328, %v328
        %v398 = vmul.f32 %v333, %v333
        %v399 = vmul.f32 %v336, %v336
        %v400 = vmul.f32 %v341, %v341
        %v401 = vmul.f32 %v344, %v344
        %v402 = vmul.f32 %v349, %v349
        %v403 = vmul.f32 %v352, %v352
        %v404 = vmul.f32 %v357, %v357
        %v405 = vmul.f32 %v360, %v360
        %v406 = vsel %vm259, %v394, 0.0
        %v407 = vsel %vm259, %v395, 0.0
        %v408 = vadd.f32 %v406, %v407
        %v409 = vsel %vm259, %v396, 0.0
        %v410 = vadd.f32 %v408, %v409
        %v411 = vsel %vm259, %v397, 0.0
        %v412 = vadd.f32 %v410, %v411
        %v413 = vsel %vm259, %v398, 0.0
        %v414 = vadd.f32 %v412, %v413
        %v415 = vsel %vm259, %v399, 0.0
        %v416 = vadd.f32 %v414, %v415
        %v417 = vsel %vm259, %v400, 0.0
        %v418 = vadd.f32 %v416, %v417
        %v419 = vsel %vm259, %v401, 0.0
        %v420 = vadd.f32 %v418, %v419
        %v421 = vsel %vm259, %v402, 0.0
        %v422 = vadd.f32 %v420, %v421
        %v423 = vsel %vm259, %v403, 0.0
        %v424 = vadd.f32 %v422, %v423
        %v425 = vsel %vm259, %v404, 0.0
        %v426 = vadd.f32 %v424, %v425
        %v427 = vsel %vm259, %v405, 0.0
        %v428 = vadd.f32 %v426, %v427
        %v429 = vrot.slane %v428, 4
        %v430 = vadd.f32 %v428, %v429
        %v431 = vrot.slane %v430, 2
        %v432 = vadd.f32 %v430, %v431
        %v433 = vrot.slane %v432, 1
        %v434 = vadd.f32 %v432, %v433
        %435 = vst.msk [vmem:[%s212 + $0x1] sm:$0x1] %vm392, %v434
        %v436 = vpack.c.bf16 %v320, %v317
        %v437 = vpack.c.bf16 %v328, %v325
        %v438 = vpack.c.bf16 %v336, %v333
        %v439 = vpack.c.bf16 %v344, %v341
        %v440 = vpack.c.bf16 %v352, %v349
        %v441 = vpack.c.bf16 %v360, %v357
        %v448 = vunpack.c.l.b16 %v436
        %v449 = vunpack.c.h.b16 %v436
        %v450 = vunpack.c.l.b16 %v437
        %v451 = vunpack.c.h.b16 %v437
        %v452 = vunpack.c.l.b16 %v438
        %v453 = vunpack.c.h.b16 %v438
        %v454 = vunpack.c.l.b16 %v439
        %v455 = vunpack.c.h.b16 %v439
        %v456 = vunpack.c.l.b16 %v440
        %v457 = vunpack.c.h.b16 %v440
        %v458 = vunpack.c.l.b16 %v441
        %v459 = vunpack.c.h.b16 %v441
        %v460 = vpack.c.b16 %v448, %v448
        %v461 = vpack.c.b16 %v449, %v449
        %v462 = vpack.c.b16 %v450, %v450
        %v463 = vpack.c.b16 %v451, %v451
        %v464 = vpack.c.b16 %v452, %v452
        %v465 = vpack.c.b16 %v453, %v453
        %v466 = vpack.c.b16 %v454, %v454
        %v467 = vpack.c.b16 %v455, %v455
        %v468 = vpack.c.b16 %v456, %v456
        %v469 = vpack.c.b16 %v457, %v457
        %v470 = vpack.c.b16 %v458, %v458
        %v471 = vpack.c.b16 %v459, %v459
        %vm484 = vcmask 11264
        %485 = vst.msk [vmem:[%s205] sm:$0xf] %vm484, %v460
        %486 = vst.msk [vmem:[%s205 + $0x4] sm:$0xf] %vm484, %v461
        %487 = vst.msk [vmem:[%s205 + $0x8] sm:$0xf] %vm484, %v462
        %488 = vst.msk [vmem:[%s205 + $0xc] sm:$0xf] %vm484, %v463
        %489 = vst.msk [vmem:[%s205 + $0x10] sm:$0xf] %vm484, %v464
        %490 = vst.msk [vmem:[%s205 + $0x14] sm:$0xf] %vm484, %v465
        %491 = vst.msk [vmem:[%s205 + $0x18] sm:$0xf] %vm484, %v466
        %492 = vst.msk [vmem:[%s205 + $0x1c] sm:$0xf] %vm484, %v467
        %493 = vst.msk [vmem:[%s205 + $0x20] sm:$0xf] %vm484, %v468
        %494 = vst.msk [vmem:[%s205 + $0x24] sm:$0xf] %vm484, %v469
        %495 = vst.msk [vmem:[%s205 + $0x28] sm:$0xf] %vm484, %v470
        %496 = vst.msk [vmem:[%s205 + $0x2c] sm:$0xf] %vm484, %v471
        %s497 = sand.u32 %s80, 1
        %s498 = scalar_lea.sflag [#allocation4], %s497
        %s499 = sand.u32 %s80, 1
        %s500 = smul.addr %s499, 48
        %s501 = scalar_lea.vmem [#allocation7], %s500
        %s502 = sand.u32 %s106, 1
        %s503 = scalar_lea.sflag [#allocation9], %s502
        %s504 = sand.u32 %s106, 1
        %s505 = smul.addr %s504, 2
        %s506 = scalar_lea.vmem [#allocation8], %s505
        // Predicated region
        $region37: #{ffc_resnet_block.16} parent=27 // pred_check
          %p507 = pneg %p90
        $region38: #{ffc_resnet_block.16} parent=27 // pred_check_branch
          %509 = sbr.rel (%p507) target = $region40
        $region39: #{ffc_resnet_block.16} parent=27 // pred_region
          %s510 = smul.u32 12, %s25
          %s512 = ssub.s32 768, 768
          %513 = vsyncadd %s498, %s512
          %s514 = smul.addr %s510, 64
          %s515 = scalar_lea.hbm %s2, %s514
          %s516 = sshll.u32 %s501, 4
          %s517 = int_to_ptr.vmem [resolvable:$true] %s516
          %522 = dma.vmem_to_hbm [thread:$0]  %s517, 768, %s515, %s498, 64, 64, 4
        $region40: #{ffc_resnet_block.16} parent=27 // pred_fallthru
          _
        // Predicated region
        $region41: #{ffc_resnet_block.16} parent=27 // pred_check
          %p523 = pneg %p116
        $region42: #{ffc_resnet_block.16} parent=27 // pred_check_branch
          %525 = sbr.rel (%p523) target = $region44
        $region43: #{ffc_resnet_block.16} parent=27 // pred_region
          %s527 = ssub.s32 32, 32
          %528 = vsyncadd %s503, %s527
          %s529 = smul.addr %s25, 32
          %s530 = scalar_lea.hbm %s3, %s529
          %s532 = sshll.u32 %s506, 4
          %s533 = int_to_ptr.vmem [resolvable:$true] %s532
          %535 = dma.vmem_to_hbm [thread:$0]  %s533, 32, %s530, %s503
        $region44: #{ffc_resnet_block.16} parent=27 // pred_fallthru
          _
      $region28: #{ffc_resnet_block.16} parent=5 // pred_fallthru
        _
      %p536 = scmp.le.s32.totalorder 2, %s20
      // Predicated region
      $region45: #{ffc_resnet_block.16} parent=5 // pred_check
        %p537 = pneg %p536
      $region46: #{ffc_resnet_block.16} parent=5 // pred_check_branch
        %539 = sbr.rel (%p537) target = $region48
      $region47: #{ffc_resnet_block.16} parent=5 // pred_region
        %s540 = ssub.s32 %s20, 2
        // Predicated region
        $region49: #{ffc_resnet_block.16} parent=47 // pred_check
          %p541 = pneg %p96
        $region50: #{ffc_resnet_block.16} parent=47 // pred_check_branch
          %543 = sbr.rel (%p541) target = $region52
        $region51: #{ffc_resnet_block.16} parent=47 // pred_region
          %s544 = sand.u32 %s81, 1
          %s545 = scalar_lea.sflag [#allocation4], %s544
          %s546 = sand.u32 %s81, 1
          %s547 = smul.addr %s546, 48
          %s548 = scalar_lea.vmem [#allocation7], %s547
          %549 = dma.done %s545, 768
        $region52: #{ffc_resnet_block.16} parent=47 // pred_fallthru
          _
        // Predicated region
        $region53: #{ffc_resnet_block.16} parent=47 // pred_check
          %p550 = pneg %p122
        $region54: #{ffc_resnet_block.16} parent=47 // pred_check_branch
          %552 = sbr.rel (%p550) target = $region56
        $region55: #{ffc_resnet_block.16} parent=47 // pred_region
          %s553 = sand.u32 %s107, 1
          %s554 = scalar_lea.sflag [#allocation9], %s553
          %s555 = sand.u32 %s107, 1
          %s556 = smul.addr %s555, 2
          %s557 = scalar_lea.vmem [#allocation8], %s556
          %558 = dma.done %s554, 32
        $region56: #{ffc_resnet_block.16} parent=47 // pred_fallthru
          _
      $region48: #{ffc_resnet_block.16} parent=5 // pred_fallthru
        _
    $region6: #{ffc_resnet_block.16} parent=1 // loop_footer
      %s24 = sadd.s32 1, %s20
    $region7: #{ffc_resnet_block.16} parent=1 // loop_footer_branch
      %19 = sbr.rel target = $region3
    $region8: #{ffc_resnet_block.16} parent=1 // loop_exit
      _
    %559 = vsyncpa [#allocation3], 1
    %s560 = scalar_lea.sflag [#allocation3], 1
    %561 = vsyncpa %s560, 1
    %562 = vsyncpa [#allocation6], 1
    %563 = vsyncpa [#allocation4], 1
    %s564 = scalar_lea.sflag [#allocation4], 1
    %565 = vsyncpa %s564, 1
    %566 = vsyncpa [#allocation9], 1
    %s567 = scalar_lea.sflag [#allocation9], 1
    %568 = vsyncpa %s567, 1

// kernel: ffc_resnet_block.20
$region0: #{ffc_resnet_block.20}
  #allocation0 [shape = 'u32[]', space=smem, size = 0x4, offset = 0x4, fixed_abs, tag = 'smem constant byte address 0x4 - core index']
  #allocation1 [shape = 'u32[144,128]{1,0:T(1,128)}', space=vmem, size = 0x12000, scoped, tag = 'internal scratch']
  %s0 = inlined_call_operand.hbm [shape: bf16[512,2], index: 0, kind: input, shape index: {}]
  %s1 = inlined_call_operand.hbm [shape: f32[1,2], index: 1, kind: input, shape index: {}]
  %s2 = inlined_call_operand.hbm [shape: f32[1,2], index: 2, kind: input, shape index: {}]
  %s3 = inlined_call_operand.hbm [shape: bf16[512,2], index: 3, kind: output, shape index: {}]
  %s4 = sld [smem:[#allocation0]]
  $region57: #{ffc_resnet_block.20} parent=0
    _
  %s6 = ssub.s32 1, %s4
  %s7 = scalar_select 0, %s6, %s4
  $region1: #{ffc_resnet_block.20} parent=0
    #allocation2 [shape = 'u8[65536]{0}', space=vmem, size = 0x10000, scoped, tag = 'input window, operand 0']
    #allocation3 [shape = 's32[2]{0}', space=sflag, size = 0x8, scoped, tag = 'scoped memory for ffc_resnet_block.20']
    #allocation4 [shape = 's32[2]{0}', space=sflag, size = 0x8, scoped, tag = 'scoped memory for ffc_resnet_block.20']
    #allocation5 [shape = 'u8[512]{0}', space=vmem, size = 0x400, scoped, tag = 'input window, operand 1, single buffered']
    #allocation6 [shape = 's32[1]{0}', space=sflag, size = 0x4, scoped, tag = 'scoped memory for ffc_resnet_block.20']
    #allocation7 [shape = 'u8[512]{0}', space=vmem, size = 0x400, scoped, tag = 'input window, operand 2, single buffered']
    #allocation8 [shape = 'u8[65536]{0}', space=vmem, size = 0x10000, scoped, tag = 'output window, operand 0']
    %8 = vsyncpa [#allocation3], 0
    %s9 = scalar_lea.sflag [#allocation3], 1
    %10 = vsyncpa %s9, 0
    %11 = vsyncpa [#allocation6], 0
    %12 = vsyncpa [#allocation4], 0
    %s13 = scalar_lea.sflag [#allocation4], 1
    %14 = vsyncpa %s13, 0
    loop: start=0, step=1, limit=6
    $region2: #{ffc_resnet_block.20} parent=1 // loop_pre_header
      _
    $region3: #{ffc_resnet_block.20} parent=1 // loop_header
      %s16 = sphi 0, %s20
      %p17 = scmp.ge.s32.totalorder %s16, 6
      %s26 = sphi 0, %s28
      %s29 = sphi 0, %s26
      %s30 = sphi 0, %s29
      %s46 = sphi 0, %s30
      %s50 = sphi 0, %s50
      %s52 = sphi 0, %s50
      %s53 = sphi 0, %s52
      %s67 = sphi 0, %s53
      %s71 = sphi 0, %s71
      %s73 = sphi 0, %s71
      %s74 = sphi 0, %s73
      %s88 = sphi 0, %s74
      %s94 = sphi 0, %s96
      %s97 = sphi 0, %s94
      %s98 = sphi 0, %s97
      %s114 = sphi 0, %s98
    $region4: #{ffc_resnet_block.20} parent=1 // loop_header_branch
      %19 = sbr.rel (%p17) target = $region8
    $region5: #{ffc_resnet_block.20} parent=1 // loop_body
      %s21 = ssub.s32 %s16, 1
      %s22 = ssub.s32 %s16, 2
      %s23 = sadd.s32 %s16, 1
      %s24 = ssub.s32 %s16, %s23
      %p25 = scmp.eq.s32.totalorder %s24, 0
      %s27 = sadd.s32 %s26, 1
      %s28 = scalar_select %p25, %s26, %s27
      %p31 = pneg %p25
      %p32 = scmp.eq.s32.totalorder %s16, 3
      %p33 = por %p31, %p32
      %p34 = scmp.ne.s32.totalorder %s26, %s29
      %p35 = scmp.eq.s32.totalorder %s16, 0
      %p36 = por %p34, %p35
      %p37 = scmp.ne.s32.totalorder %s26, %s29
      %p38 = scmp.eq.s32.totalorder %s21, 3
      %p39 = por %p37, %p38
      %p40 = scmp.ne.s32.totalorder %s29, %s30
      %p41 = scmp.eq.s32.totalorder %s21, 0
      %p42 = por %p40, %p41
      %p43 = scmp.ne.s32.totalorder %s29, %s30
      %p44 = scmp.eq.s32.totalorder %s22, 3
      %p45 = por %p43, %p44
      %p47 = scmp.ne.s32.totalorder %s30, %s46
      %p48 = scmp.eq.s32.totalorder %s22, 0
      %p49 = por %p47, %p48
      %s51 = sadd.s32 %s50, 1
      %p54 = scmp.eq.s32.totalorder %s16, 3
      %p55 = scmp.ne.s32.totalorder %s50, %s52
      %p56 = scmp.eq.s32.totalorder %s16, 0
      %p57 = por %p55, %p56
      %p58 = scmp.ne.s32.totalorder %s50, %s52
      %p59 = scmp.eq.s32.totalorder %s21, 3
      %p60 = por %p58, %p59
      %p61 = scmp.ne.s32.totalorder %s52, %s53
      %p62 = scmp.eq.s32.totalorder %s21, 0
      %p63 = por %p61, %p62
      %p64 = scmp.ne.s32.totalorder %s52, %s53
      %p65 = scmp.eq.s32.totalorder %s22, 3
      %p66 = por %p64, %p65
      %p68 = scmp.ne.s32.totalorder %s53, %s67
      %p69 = scmp.eq.s32.totalorder %s22, 0
      %p70 = por %p68, %p69
      %s72 = sadd.s32 %s71, 1
      %p75 = scmp.eq.s32.totalorder %s16, 3
      %p76 = scmp.ne.s32.totalorder %s71, %s73
      %p77 = scmp.eq.s32.totalorder %s16, 0
      %p78 = por %p76, %p77
      %p79 = scmp.ne.s32.totalorder %s71, %s73
      %p80 = scmp.eq.s32.totalorder %s21, 3
      %p81 = por %p79, %p80
      %p82 = scmp.ne.s32.totalorder %s73, %s74
      %p83 = scmp.eq.s32.totalorder %s21, 0
      %p84 = por %p82, %p83
      %p85 = scmp.ne.s32.totalorder %s73, %s74
      %p86 = scmp.eq.s32.totalorder %s22, 3
      %p87 = por %p85, %p86
      %p89 = scmp.ne.s32.totalorder %s74, %s88
      %p90 = scmp.eq.s32.totalorder %s22, 0
      %p91 = por %p89, %p90
      %s92 = ssub.s32 %s16, %s23
      %p93 = scmp.eq.s32.totalorder %s92, 0
      %s95 = sadd.s32 %s94, 1
      %s96 = scalar_select %p93, %s94, %s95
      %p99 = pneg %p93
      %p100 = scmp.eq.s32.totalorder %s16, 3
      %p101 = por %p99, %p100
      %p102 = scmp.ne.s32.totalorder %s94, %s97
      %p103 = scmp.eq.s32.totalorder %s16, 0
      %p104 = por %p102, %p103
      %p105 = scmp.ne.s32.totalorder %s94, %s97
      %p106 = scmp.eq.s32.totalorder %s21, 3
      %p107 = por %p105, %p106
      %p108 = scmp.ne.s32.totalorder %s97, %s98
      %p109 = scmp.eq.s32.totalorder %s21, 0
      %p110 = por %p108, %p109
      %p111 = scmp.ne.s32.totalorder %s97, %s98
      %p112 = scmp.eq.s32.totalorder %s22, 3
      %p113 = por %p111, %p112
      %p115 = scmp.ne.s32.totalorder %s98, %s114
      %p116 = scmp.eq.s32.totalorder %s22, 0
      %p117 = por %p115, %p116
      %p118 = scmp.le.s32.totalorder 1, %s16
      %p119 = scmp.lt.s32.totalorder %s16, 5
      %p120 = pnand %p118, %p119
      %p121 = pneg %p120
      // Predicated region
      $region9: #{ffc_resnet_block.20} parent=5 // pred_check
        _
      $region10: #{ffc_resnet_block.20} parent=5 // pred_check_branch
        %123 = sbr.rel (%p120) target = $region12
      $region11: #{ffc_resnet_block.20} parent=5 // pred_region
        %s124 = ssub.s32 %s16, 1
        // Predicated region
        $region13: #{ffc_resnet_block.20} parent=11 // pred_check
          %p125 = pneg %p63
        $region14: #{ffc_resnet_block.20} parent=11 // pred_check_branch
          %127 = sbr.rel (%p125) target = $region16
        $region15: #{ffc_resnet_block.20} parent=11 // pred_region
          %s129 = ssub.s32 16, 16
          %130 = vsyncadd [#allocation6], %s129
          %s132 = sshll.u32 [#allocation5], 4
          %s133 = int_to_ptr.vmem [resolvable:$true] %s132
          %135 = dma.hbm_to_vmem [thread:$0]  %s1, 16, %s133, [#allocation6]
        $region16: #{ffc_resnet_block.20} parent=11 // pred_fallthru
          _
        // Predicated region
        $region17: #{ffc_resnet_block.20} parent=11 // pred_check
          %p136 = pneg %p84
        $region18: #{ffc_resnet_block.20} parent=11 // pred_check_branch
          %138 = sbr.rel (%p136) target = $region20
        $region19: #{ffc_resnet_block.20} parent=11 // pred_region
          %s140 = ssub.s32 16, 16
          %141 = vsyncadd [#allocation6], %s140
          %s143 = sshll.u32 [#allocation7], 4
          %s144 = int_to_ptr.vmem [resolvable:$true] %s143
          %146 = dma.hbm_to_vmem [thread:$0]  %s2, 16, %s144, [#allocation6]
        $region20: #{ffc_resnet_block.20} parent=11 // pred_fallthru
          _
      $region12: #{ffc_resnet_block.20} parent=5 // pred_fallthru
        _
      %p147 = scmp.lt.s32.totalorder %s16, 4
      // Predicated region
      $region21: #{ffc_resnet_block.20} parent=5 // pred_check
        %p148 = pneg %p147
      $region22: #{ffc_resnet_block.20} parent=5 // pred_check_branch
        %150 = sbr.rel (%p148) target = $region24
      $region23: #{ffc_resnet_block.20} parent=5 // pred_region
        // Predicated region
        $region25: #{ffc_resnet_block.20} parent=23 // pred_check
          %p151 = pneg %p36
        $region26: #{ffc_resnet_block.20} parent=23 // pred_check_branch
          %153 = sbr.rel (%p151) target = $region28
        $region27: #{ffc_resnet_block.20} parent=23 // pred_region
          %s154 = sand.u32 %s26, 1
          %s155 = scalar_lea.sflag [#allocation3], %s154
          %s156 = sand.u32 %s26, 1
          %s157 = smul.addr %s156, 64
          %s158 = scalar_lea.vmem [#allocation2], %s157
          %s159 = smul.u32 16, %s16
          %s161 = ssub.s32 1024, 1024
          %162 = vsyncadd %s155, %s161
          %s163 = smul.addr %s159, 64
          %s164 = scalar_lea.hbm %s0, %s163
          %s165 = sshll.u32 %s158, 4
          %s166 = int_to_ptr.vmem [resolvable:$true] %s165
          %171 = dma.hbm_to_vmem [thread:$0]  %s164, 1024, %s166, %s155, 64, 64, 4
        $region28: #{ffc_resnet_block.20} parent=23 // pred_fallthru
          _
      $region24: #{ffc_resnet_block.20} parent=5 // pred_fallthru
        _
      %p172 = scmp.le.s32.totalorder 1, %s16
      %p173 = scmp.lt.s32.totalorder %s16, 5
      %p174 = pnand %p172, %p173
      %p175 = pneg %p174
      // Predicated region
      $region29: #{ffc_resnet_block.20} parent=5 // pred_check
        _
      $region30: #{ffc_resnet_block.20} parent=5 // pred_check_branch
        %177 = sbr.rel (%p174) target = $region32
      $region31: #{ffc_resnet_block.20} parent=5 // pred_region
        %s178 = ssub.s32 %s16, 1
        %s179 = sand.u32 %s29, 1
        %s180 = scalar_lea.sflag [#allocation3], %s179
        %s181 = sand.u32 %s29, 1
        %s182 = smul.addr %s181, 64
        %s183 = scalar_lea.vmem [#allocation2], %s182
        // Predicated region
        $region33: #{ffc_resnet_block.20} parent=31 // pred_check
          %p184 = pneg %p42
        $region34: #{ffc_resnet_block.20} parent=31 // pred_check_branch
          %186 = sbr.rel (%p184) target = $region36
        $region35: #{ffc_resnet_block.20} parent=31 // pred_region
          %187 = dma.done %s180, 1024
        $region36: #{ffc_resnet_block.20} parent=31 // pred_fallthru
          _
        // Predicated region
        $region37: #{ffc_resnet_block.20} parent=31 // pred_check
          %p188 = pneg %p63
        $region38: #{ffc_resnet_block.20} parent=31 // pred_check_branch
          %190 = sbr.rel (%p188) target = $region40
        $region39: #{ffc_resnet_block.20} parent=31 // pred_region
          %191 = dma.done [#allocation6], 16
        $region40: #{ffc_resnet_block.20} parent=31 // pred_fallthru
          _
        // Predicated region
        $region41: #{ffc_resnet_block.20} parent=31 // pred_check
          %p192 = pneg %p84
        $region42: #{ffc_resnet_block.20} parent=31 // pred_check_branch
          %194 = sbr.rel (%p192) target = $region44
        $region43: #{ffc_resnet_block.20} parent=31 // pred_region
          %195 = dma.done [#allocation6], 16
        $region44: #{ffc_resnet_block.20} parent=31 // pred_fallthru
          _
        %s196 = sand.u32 %s29, 1
        %s197 = scalar_lea.sflag [#allocation3], %s196
        %s198 = sand.u32 %s29, 1
        %s199 = smul.addr %s198, 64
        %s200 = scalar_lea.vmem [#allocation2], %s199
        %p201 = pneg %p42
        %p202 = pneg %p39
        %p203 = pneg %p63
        %p204 = pneg %p60
        %p205 = pneg %p84
        %p206 = pneg %p81
        %p207 = pneg %p110
        %p208 = pneg %p107
        %s209 = sand.u32 %s97, 1
        %s210 = scalar_lea.sflag [#allocation4], %s209
        %s211 = sand.u32 %s97, 1
        %s212 = smul.addr %s211, 64
        %s213 = scalar_lea.vmem [#allocation8], %s212
        %s214 = smul.u32 16, %s21
        %s215 = smul.u32 16, %s21
        %v216 = vld [vmem:[%s183] sm:$0xf]
        %v217 = vld [vmem:[%s183 + $0x4] sm:$0xf]
        %v218 = vld [vmem:[%s183 + $0x8] sm:$0xf]
        %v219 = vld [vmem:[%s183 + $0xc] sm:$0xf]
        %v220 = vld [vmem:[%s183 + $0x10] sm:$0xf]
        %v221 = vld [vmem:[%s183 + $0x14] sm:$0xf]
        %v222 = vld [vmem:[%s183 + $0x18] sm:$0xf]
        %v223 = vld [vmem:[%s183 + $0x1c] sm:$0xf]
        %v224 = vld [vmem:[%s183 + $0x20] sm:$0xf]
        %v225 = vld [vmem:[%s183 + $0x24] sm:$0xf]
        %v226 = vld [vmem:[%s183 + $0x28] sm:$0xf]
        %v227 = vld [vmem:[%s183 + $0x2c] sm:$0xf]
        %v228 = vld [vmem:[%s183 + $0x30] sm:$0xf]
        %v229 = vld [vmem:[%s183 + $0x34] sm:$0xf]
        %v230 = vld [vmem:[%s183 + $0x38] sm:$0xf]
        %v231 = vld [vmem:[%s183 + $0x3c] sm:$0xf]
        %v232 = vunpack.c.l.bf16 %v216
        %v233 = vunpack.c.l.bf16 %v217
        %v234 = vunpack.c.l.bf16 %v218
        %v235 = vunpack.c.l.bf16 %v219
        %v236 = vunpack.c.l.bf16 %v220
        %v237 = vunpack.c.l.bf16 %v221
        %v238 = vunpack.c.l.bf16 %v222
        %v239 = vunpack.c.l.bf16 %v223
        %v240 = vunpack.c.l.bf16 %v224
        %v241 = vunpack.c.l.bf16 %v225
        %v242 = vunpack.c.l.bf16 %v226
        %v243 = vunpack.c.l.bf16 %v227
        %v244 = vunpack.c.l.bf16 %v228
        %v245 = vunpack.c.l.bf16 %v229
        %v246 = vunpack.c.l.bf16 %v230
        %v247 = vunpack.c.l.bf16 %v231
        %v248 = vld [vmem:[#allocation5] sm:$0x1]
        %v250 = vlaneseq
        %v251 = vshrl.u32 %v250, 7
        %v252 = vsub.s32 0, %v251
        %v253 = vrot.slane %v248, %v252
        %v255 = vmul.f32 %v232, %v253
        %v256 = vmul.f32 %v233, %v253
        %v257 = vmul.f32 %v234, %v253
        %v258 = vmul.f32 %v235, %v253
        %v259 = vmul.f32 %v236, %v253
        %v260 = vmul.f32 %v237, %v253
        %v261 = vmul.f32 %v238, %v253
        %v262 = vmul.f32 %v239, %v253
        %v263 = vmul.f32 %v240, %v253
        %v264 = vmul.f32 %v241, %v253
        %v265 = vmul.f32 %v242, %v253
        %v266 = vmul.f32 %v243, %v253
        %v267 = vmul.f32 %v244, %v253
        %v268 = vmul.f32 %v245, %v253
        %v269 = vmul.f32 %v246, %v253
        %v270 = vmul.f32 %v247, %v253
        %v271 = vld [vmem:[#allocation7] sm:$0x1]
        %v273 = vlaneseq
        %v274 = vshrl.u32 %v273, 7
        %v275 = vsub.s32 0, %v274
        %v276 = vrot.slane %v271, %v275
        %v278 = vadd.f32 %v255, %v276
        %v279 = vadd.f32 %v256, %v276
        %v280 = vadd.f32 %v257, %v276
        %v281 = vadd.f32 %v258, %v276
        %v282 = vadd.f32 %v259, %v276
        %v283 = vadd.f32 %v260, %v276
        %v284 = vadd.f32 %v261, %v276
        %v285 = vadd.f32 %v262, %v276
        %v286 = vadd.f32 %v263, %v276
        %v287 = vadd.f32 %v264, %v276
        %v288 = vadd.f32 %v265, %v276
        %v289 = vadd.f32 %v266, %v276
        %v290 = vadd.f32 %v267, %v276
        %v291 = vadd.f32 %v268, %v276
        %v292 = vadd.f32 %v269, %v276
        %v293 = vadd.f32 %v270, %v276
        %v294 = vmax.f32 %v278, 0.0
        %v295 = vmax.f32 %v279, 0.0
        %v296 = vmax.f32 %v280, 0.0
        %v297 = vmax.f32 %v281, 0.0
        %v298 = vmax.f32 %v282, 0.0
        %v299 = vmax.f32 %v283, 0.0
        %v300 = vmax.f32 %v284, 0.0
        %v301 = vmax.f32 %v285, 0.0
        %v302 = vmax.f32 %v286, 0.0
        %v303 = vmax.f32 %v287, 0.0
        %v304 = vmax.f32 %v288, 0.0
        %v305 = vmax.f32 %v289, 0.0
        %v306 = vmax.f32 %v290, 0.0
        %v307 = vmax.f32 %v291, 0.0
        %v308 = vmax.f32 %v292, 0.0
        %v309 = vmax.f32 %v293, 0.0
        %v310 = vpack.c.bf16 %v295, %v294
        %v311 = vpack.c.bf16 %v297, %v296
        %v312 = vpack.c.bf16 %v299, %v298
        %v313 = vpack.c.bf16 %v301, %v300
        %v314 = vpack.c.bf16 %v303, %v302
        %v315 = vpack.c.bf16 %v305, %v304
        %v316 = vpack.c.bf16 %v307, %v306
        %v317 = vpack.c.bf16 %v309, %v308
        %v326 = vunpack.c.l.b16 %v310
        %v327 = vunpack.c.h.b16 %v310
        %v328 = vunpack.c.l.b16 %v311
        %v329 = vunpack.c.h.b16 %v311
        %v330 = vunpack.c.l.b16 %v312
        %v331 = vunpack.c.h.b16 %v312
        %v332 = vunpack.c.l.b16 %v313
        %v333 = vunpack.c.h.b16 %v313
        %v334 = vunpack.c.l.b16 %v314
        %v335 = vunpack.c.h.b16 %v314
        %v336 = vunpack.c.l.b16 %v315
        %v337 = vunpack.c.h.b16 %v315
        %v338 = vunpack.c.l.b16 %v316
        %v339 = vunpack.c.h.b16 %v316
        %v340 = vunpack.c.l.b16 %v317
        %v341 = vunpack.c.h.b16 %v317
        %v342 = vpack.c.b16 %v326, %v326
        %v343 = vpack.c.b16 %v327, %v327
        %v344 = vpack.c.b16 %v328, %v328
        %v345 = vpack.c.b16 %v329, %v329
        %v346 = vpack.c.b16 %v330, %v330
        %v347 = vpack.c.b16 %v331, %v331
        %v348 = vpack.c.b16 %v332, %v332
        %v349 = vpack.c.b16 %v333, %v333
        %v350 = vpack.c.b16 %v334, %v334
        %v351 = vpack.c.b16 %v335, %v335
        %v352 = vpack.c.b16 %v336, %v336
        %v353 = vpack.c.b16 %v337, %v337
        %v354 = vpack.c.b16 %v338, %v338
        %v355 = vpack.c.b16 %v339, %v339
        %v356 = vpack.c.b16 %v340, %v340
        %v357 = vpack.c.b16 %v341, %v341
        %vm374 = vcmask 11264
        %375 = vst.msk [vmem:[%s213] sm:$0xf] %vm374, %v342
        %376 = vst.msk [vmem:[%s213 + $0x4] sm:$0xf] %vm374, %v343
        %377 = vst.msk [vmem:[%s213 + $0x8] sm:$0xf] %vm374, %v344
        %378 = vst.msk [vmem:[%s213 + $0xc] sm:$0xf] %vm374, %v345
        %379 = vst.msk [vmem:[%s213 + $0x10] sm:$0xf] %vm374, %v346
        %380 = vst.msk [vmem:[%s213 + $0x14] sm:$0xf] %vm374, %v347
        %381 = vst.msk [vmem:[%s213 + $0x18] sm:$0xf] %vm374, %v348
        %382 = vst.msk [vmem:[%s213 + $0x1c] sm:$0xf] %vm374, %v349
        %383 = vst.msk [vmem:[%s213 + $0x20] sm:$0xf] %vm374, %v350
        %384 = vst.msk [vmem:[%s213 + $0x24] sm:$0xf] %vm374, %v351
        %385 = vst.msk [vmem:[%s213 + $0x28] sm:$0xf] %vm374, %v352
        %386 = vst.msk [vmem:[%s213 + $0x2c] sm:$0xf] %vm374, %v353
        %387 = vst.msk [vmem:[%s213 + $0x30] sm:$0xf] %vm374, %v354
        %388 = vst.msk [vmem:[%s213 + $0x34] sm:$0xf] %vm374, %v355
        %389 = vst.msk [vmem:[%s213 + $0x38] sm:$0xf] %vm374, %v356
        %390 = vst.msk [vmem:[%s213 + $0x3c] sm:$0xf] %vm374, %v357
        %s391 = sand.u32 %s97, 1
        %s392 = scalar_lea.sflag [#allocation4], %s391
        %s393 = sand.u32 %s97, 1
        %s394 = smul.addr %s393, 64
        %s395 = scalar_lea.vmem [#allocation8], %s394
        // Predicated region
        $region45: #{ffc_resnet_block.20} parent=31 // pred_check
          %p396 = pneg %p107
        $region46: #{ffc_resnet_block.20} parent=31 // pred_check_branch
          %398 = sbr.rel (%p396) target = $region48
        $region47: #{ffc_resnet_block.20} parent=31 // pred_region
          %s399 = smul.u32 16, %s21
          %s401 = ssub.s32 1024, 1024
          %402 = vsyncadd %s392, %s401
          %s403 = smul.addr %s399, 64
          %s404 = scalar_lea.hbm %s3, %s403
          %s405 = sshll.u32 %s395, 4
          %s406 = int_to_ptr.vmem [resolvable:$true] %s405
          %411 = dma.vmem_to_hbm [thread:$0]  %s406, 1024, %s404, %s392, 64, 64, 4
        $region48: #{ffc_resnet_block.20} parent=31 // pred_fallthru
          _
      $region32: #{ffc_resnet_block.20} parent=5 // pred_fallthru
        _
      %p412 = scmp.le.s32.totalorder 2, %s16
      // Predicated region
      $region49: #{ffc_resnet_block.20} parent=5 // pred_check
        %p413 = pneg %p412
      $region50: #{ffc_resnet_block.20} parent=5 // pred_check_branch
        %415 = sbr.rel (%p413) target = $region52
      $region51: #{ffc_resnet_block.20} parent=5 // pred_region
        %s416 = ssub.s32 %s16, 2
        // Predicated region
        $region53: #{ffc_resnet_block.20} parent=51 // pred_check
          %p417 = pneg %p113
        $region54: #{ffc_resnet_block.20} parent=51 // pred_check_branch
          %419 = sbr.rel (%p417) target = $region56
        $region55: #{ffc_resnet_block.20} parent=51 // pred_region
          %s420 = sand.u32 %s98, 1
          %s421 = scalar_lea.sflag [#allocation4], %s420
          %s422 = sand.u32 %s98, 1
          %s423 = smul.addr %s422, 64
          %s424 = scalar_lea.vmem [#allocation8], %s423
          %425 = dma.done %s421, 1024
        $region56: #{ffc_resnet_block.20} parent=51 // pred_fallthru
          _
      $region52: #{ffc_resnet_block.20} parent=5 // pred_fallthru
        _
    $region6: #{ffc_resnet_block.20} parent=1 // loop_footer
      %s20 = sadd.s32 1, %s16
    $region7: #{ffc_resnet_block.20} parent=1 // loop_footer_branch
      %15 = sbr.rel target = $region3
    $region8: #{ffc_resnet_block.20} parent=1 // loop_exit
      _
    %426 = vsyncpa [#allocation3], 1
    %s427 = scalar_lea.sflag [#allocation3], 1
    %428 = vsyncpa %s427, 1
    %429 = vsyncpa [#allocation6], 1
    %430 = vsyncpa [#allocation4], 1
    %s431 = scalar_lea.sflag [#allocation4], 1
    %432 = vsyncpa %s431, 1

// kernel: ffc_resnet_block.26
$region0: #{ffc_resnet_block.26}
  #allocation0 [shape = 'u32[]', space=smem, size = 0x4, offset = 0x4, fixed_abs, tag = 'smem constant byte address 0x4 - core index']
  #allocation1 [shape = 'u32[144,128]{1,0:T(1,128)}', space=vmem, size = 0x12000, scoped, tag = 'internal scratch']
  %s0 = inlined_call_operand.hbm [shape: bf16[512,2], index: 0, kind: input, shape index: {}]
  %s1 = inlined_call_operand.hbm [shape: f32[1,2], index: 1, kind: input, shape index: {}]
  %s2 = inlined_call_operand.hbm [shape: f32[1,2], index: 2, kind: input, shape index: {}]
  %s3 = inlined_call_operand.hbm [shape: f32[512,2], index: 3, kind: input, shape index: {}]
  %s4 = inlined_call_operand.hbm [shape: f32[512,2], index: 4, kind: output, shape index: {}]
  %s5 = sld [smem:[#allocation0]]
  $region65: #{ffc_resnet_block.26} parent=0
    _
  %s7 = ssub.s32 1, %s5
  %s8 = scalar_select 0, %s7, %s5
  $region1: #{ffc_resnet_block.26} parent=0
    #allocation2 [shape = 'u8[65536]{0}', space=vmem, size = 0x10000, scoped, tag = 'input window, operand 0']
    #allocation3 [shape = 's32[2]{0}', space=sflag, size = 0x8, scoped, tag = 'scoped memory for ffc_resnet_block.26']
    #allocation4 [shape = 's32[2]{0}', space=sflag, size = 0x8, scoped, tag = 'scoped memory for ffc_resnet_block.26']
    #allocation5 [shape = 'u8[512]{0}', space=vmem, size = 0x400, scoped, tag = 'input window, operand 1, single buffered']
    #allocation6 [shape = 's32[1]{0}', space=sflag, size = 0x4, scoped, tag = 'scoped memory for ffc_resnet_block.26']
    #allocation7 [shape = 'u8[512]{0}', space=vmem, size = 0x400, scoped, tag = 'input window, operand 2, single buffered']
    #allocation8 [shape = 'u8[131072]{0}', space=vmem, size = 0x20000, scoped, tag = 'input window, operand 3']
    #allocation9 [shape = 's32[2]{0}', space=sflag, size = 0x8, scoped, tag = 'scoped memory for ffc_resnet_block.26']
    #allocation10 [shape = 'u8[131072]{0}', space=vmem, size = 0x20000, scoped, tag = 'output window, operand 0']
    %9 = vsyncpa [#allocation3], 0
    %s10 = scalar_lea.sflag [#allocation3], 1
    %11 = vsyncpa %s10, 0
    %12 = vsyncpa [#allocation6], 0
    %13 = vsyncpa [#allocation9], 0
    %s14 = scalar_lea.sflag [#allocation9], 1
    %15 = vsyncpa %s14, 0
    %16 = vsyncpa [#allocation4], 0
    %s17 = scalar_lea.sflag [#allocation4], 1
    %18 = vsyncpa %s17, 0
    loop: start=0, step=1, limit=6
    $region2: #{ffc_resnet_block.26} parent=1 // loop_pre_header
      _
    $region3: #{ffc_resnet_block.26} parent=1 // loop_header
      %s20 = sphi 0, %s24
      %p21 = scmp.ge.s32.totalorder %s20, 6
      %s30 = sphi 0, %s32
      %s33 = sphi 0, %s30
      %s34 = sphi 0, %s33
      %s50 = sphi 0, %s34
      %s54 = sphi 0, %s54
      %s56 = sphi 0, %s54
      %s57 = sphi 0, %s56
      %s71 = sphi 0, %s57
      %s75 = sphi 0, %s75
      %s77 = sphi 0, %s75
      %s78 = sphi 0, %s77
      %s92 = sphi 0, %s78
      %s98 = sphi 0, %s100
      %s101 = sphi 0, %s98
      %s102 = sphi 0, %s101
      %s118 = sphi 0, %s102
      %s124 = sphi 0, %s126
      %s127 = sphi 0, %s124
      %s128 = sphi 0, %s127
      %s144 = sphi 0, %s128
    $region4: #{ffc_resnet_block.26} parent=1 // loop_header_branch
      %23 = sbr.rel (%p21) target = $region8
    $region5: #{ffc_resnet_block.26} parent=1 // loop_body
      %s25 = ssub.s32 %s20, 1
      %s26 = ssub.s32 %s20, 2
      %s27 = sadd.s32 %s20, 1
      %s28 = ssub.s32 %s20, %s27
      %p29 = scmp.eq.s32.totalorder %s28, 0
      %s31 = sadd.s32 %s30, 1
      %s32 = scalar_select %p29, %s30, %s31
      %p35 = pneg %p29
      %p36 = scmp.eq.s32.totalorder %s20, 3
      %p37 = por %p35, %p36
      %p38 = scmp.ne.s32.totalorder %s30, %s33
      %p39 = scmp.eq.s32.totalorder %s20, 0
      %p40 = por %p38, %p39
      %p41 = scmp.ne.s32.totalorder %s30, %s33
      %p42 = scmp.eq.s32.totalorder %s25, 3
      %p43 = por %p41, %p42
      %p44 = scmp.ne.s32.totalorder %s33, %s34
      %p45 = scmp.eq.s32.totalorder %s25, 0
      %p46 = por %p44, %p45
      %p47 = scmp.ne.s32.totalorder %s33, %s34
      %p48 = scmp.eq.s32.totalorder %s26, 3
      %p49 = por %p47, %p48
      %p51 = scmp.ne.s32.totalorder %s34, %s50
      %p52 = scmp.eq.s32.totalorder %s26, 0
      %p53 = por %p51, %p52
      %s55 = sadd.s32 %s54, 1
      %p58 = scmp.eq.s32.totalorder %s20, 3
      %p59 = scmp.ne.s32.totalorder %s54, %s56
      %p60 = scmp.eq.s32.totalorder %s20, 0
      %p61 = por %p59, %p60
      %p62 = scmp.ne.s32.totalorder %s54, %s56
      %p63 = scmp.eq.s32.totalorder %s25, 3
      %p64 = por %p62, %p63
      %p65 = scmp.ne.s32.totalorder %s56, %s57
      %p66 = scmp.eq.s32.totalorder %s25, 0
      %p67 = por %p65, %p66
      %p68 = scmp.ne.s32.totalorder %s56, %s57
      %p69 = scmp.eq.s32.totalorder %s26, 3
      %p70 = por %p68, %p69
      %p72 = scmp.ne.s32.totalorder %s57, %s71
      %p73 = scmp.eq.s32.totalorder %s26, 0
      %p74 = por %p72, %p73
      %s76 = sadd.s32 %s75, 1
      %p79 = scmp.eq.s32.totalorder %s20, 3
      %p80 = scmp.ne.s32.totalorder %s75, %s77
      %p81 = scmp.eq.s32.totalorder %s20, 0
      %p82 = por %p80, %p81
      %p83 = scmp.ne.s32.totalorder %s75, %s77
      %p84 = scmp.eq.s32.totalorder %s25, 3
      %p85 = por %p83, %p84
      %p86 = scmp.ne.s32.totalorder %s77, %s78
      %p87 = scmp.eq.s32.totalorder %s25, 0
      %p88 = por %p86, %p87
      %p89 = scmp.ne.s32.totalorder %s77, %s78
      %p90 = scmp.eq.s32.totalorder %s26, 3
      %p91 = por %p89, %p90
      %p93 = scmp.ne.s32.totalorder %s78, %s92
      %p94 = scmp.eq.s32.totalorder %s26, 0
      %p95 = por %p93, %p94
      %s96 = ssub.s32 %s20, %s27
      %p97 = scmp.eq.s32.totalorder %s96, 0
      %s99 = sadd.s32 %s98, 1
      %s100 = scalar_select %p97, %s98, %s99
      %p103 = pneg %p97
      %p104 = scmp.eq.s32.totalorder %s20, 3
      %p105 = por %p103, %p104
      %p106 = scmp.ne.s32.totalorder %s98, %s101
      %p107 = scmp.eq.s32.totalorder %s20, 0
      %p108 = por %p106, %p107
      %p109 = scmp.ne.s32.totalorder %s98, %s101
      %p110 = scmp.eq.s32.totalorder %s25, 3
      %p111 = por %p109, %p110
      %p112 = scmp.ne.s32.totalorder %s101, %s102
      %p113 = scmp.eq.s32.totalorder %s25, 0
      %p114 = por %p112, %p113
      %p115 = scmp.ne.s32.totalorder %s101, %s102
      %p116 = scmp.eq.s32.totalorder %s26, 3
      %p117 = por %p115, %p116
      %p119 = scmp.ne.s32.totalorder %s102, %s118
      %p120 = scmp.eq.s32.totalorder %s26, 0
      %p121 = por %p119, %p120
      %s122 = ssub.s32 %s20, %s27
      %p123 = scmp.eq.s32.totalorder %s122, 0
      %s125 = sadd.s32 %s124, 1
      %s126 = scalar_select %p123, %s124, %s125
      %p129 = pneg %p123
      %p130 = scmp.eq.s32.totalorder %s20, 3
      %p131 = por %p129, %p130
      %p132 = scmp.ne.s32.totalorder %s124, %s127
      %p133 = scmp.eq.s32.totalorder %s20, 0
      %p134 = por %p132, %p133
      %p135 = scmp.ne.s32.totalorder %s124, %s127
      %p136 = scmp.eq.s32.totalorder %s25, 3
      %p137 = por %p135, %p136
      %p138 = scmp.ne.s32.totalorder %s127, %s128
      %p139 = scmp.eq.s32.totalorder %s25, 0
      %p140 = por %p138, %p139
      %p141 = scmp.ne.s32.totalorder %s127, %s128
      %p142 = scmp.eq.s32.totalorder %s26, 3
      %p143 = por %p141, %p142
      %p145 = scmp.ne.s32.totalorder %s128, %s144
      %p146 = scmp.eq.s32.totalorder %s26, 0
      %p147 = por %p145, %p146
      %p148 = scmp.le.s32.totalorder 1, %s20
      %p149 = scmp.lt.s32.totalorder %s20, 5
      %p150 = pnand %p148, %p149
      %p151 = pneg %p150
      // Predicated region
      $region9: #{ffc_resnet_block.26} parent=5 // pred_check
        _
      $region10: #{ffc_resnet_block.26} parent=5 // pred_check_branch
        %153 = sbr.rel (%p150) target = $region12
      $region11: #{ffc_resnet_block.26} parent=5 // pred_region
        %s154 = ssub.s32 %s20, 1
        // Predicated region
        $region13: #{ffc_resnet_block.26} parent=11 // pred_check
          %p155 = pneg %p67
        $region14: #{ffc_resnet_block.26} parent=11 // pred_check_branch
          %157 = sbr.rel (%p155) target = $region16
        $region15: #{ffc_resnet_block.26} parent=11 // pred_region
          %s159 = ssub.s32 16, 16
          %160 = vsyncadd [#allocation6], %s159
          %s162 = sshll.u32 [#allocation5], 4
          %s163 = int_to_ptr.vmem [resolvable:$true] %s162
          %165 = dma.hbm_to_vmem [thread:$0]  %s1, 16, %s163, [#allocation6]
        $region16: #{ffc_resnet_block.26} parent=11 // pred_fallthru
          _
        // Predicated region
        $region17: #{ffc_resnet_block.26} parent=11 // pred_check
          %p166 = pneg %p88
        $region18: #{ffc_resnet_block.26} parent=11 // pred_check_branch
          %168 = sbr.rel (%p166) target = $region20
        $region19: #{ffc_resnet_block.26} parent=11 // pred_region
          %s170 = ssub.s32 16, 16
          %171 = vsyncadd [#allocation6], %s170
          %s173 = sshll.u32 [#allocation7], 4
          %s174 = int_to_ptr.vmem [resolvable:$true] %s173
          %176 = dma.hbm_to_vmem [thread:$0]  %s2, 16, %s174, [#allocation6]
        $region20: #{ffc_resnet_block.26} parent=11 // pred_fallthru
          _
      $region12: #{ffc_resnet_block.26} parent=5 // pred_fallthru
        _
      %p177 = scmp.lt.s32.totalorder %s20, 4
      // Predicated region
      $region21: #{ffc_resnet_block.26} parent=5 // pred_check
        %p178 = pneg %p177
      $region22: #{ffc_resnet_block.26} parent=5 // pred_check_branch
        %180 = sbr.rel (%p178) target = $region24
      $region23: #{ffc_resnet_block.26} parent=5 // pred_region
        // Predicated region
        $region25: #{ffc_resnet_block.26} parent=23 // pred_check
          %p181 = pneg %p40
        $region26: #{ffc_resnet_block.26} parent=23 // pred_check_branch
          %183 = sbr.rel (%p181) target = $region28
        $region27: #{ffc_resnet_block.26} parent=23 // pred_region
          %s184 = sand.u32 %s30, 1
          %s185 = scalar_lea.sflag [#allocation3], %s184
          %s186 = sand.u32 %s30, 1
          %s187 = smul.addr %s186, 64
          %s188 = scalar_lea.vmem [#allocation2], %s187
          %s189 = smul.u32 16, %s20
          %s191 = ssub.s32 1024, 1024
          %192 = vsyncadd %s185, %s191
          %s193 = smul.addr %s189, 64
          %s194 = scalar_lea.hbm %s0, %s193
          %s195 = sshll.u32 %s188, 4
          %s196 = int_to_ptr.vmem [resolvable:$true] %s195
          %201 = dma.hbm_to_vmem [thread:$0]  %s194, 1024, %s196, %s185, 64, 64, 4
        $region28: #{ffc_resnet_block.26} parent=23 // pred_fallthru
          _
        // Predicated region
        $region29: #{ffc_resnet_block.26} parent=23 // pred_check
          %p202 = pneg %p108
        $region30: #{ffc_resnet_block.26} parent=23 // pred_check_branch
          %204 = sbr.rel (%p202) target = $region32
        $region31: #{ffc_resnet_block.26} parent=23 // pred_region
          %s205 = sand.u32 %s98, 1
          %s206 = scalar_lea.sflag [#allocation9], %s205
          %s207 = sand.u32 %s98, 1
          %s208 = smul.addr %s207, 128
          %s209 = scalar_lea.vmem [#allocation8], %s208
          %s210 = smul.u32 16, %s20
          %s212 = ssub.s32 2048, 2048
          %213 = vsyncadd %s206, %s212
          %s214 = smul.addr %s210, 128
          %s215 = scalar_lea.hbm %s3, %s214
          %s216 = sshll.u32 %s209, 4
          %s217 = int_to_ptr.vmem [resolvable:$true] %s216
          %222 = dma.hbm_to_vmem [thread:$0]  %s215, 2048, %s217, %s206, 128, 128, 8
        $region32: #{ffc_resnet_block.26} parent=23 // pred_fallthru
          _
      $region24: #{ffc_resnet_block.26} parent=5 // pred_fallthru
        _
      %p223 = scmp.le.s32.totalorder 1, %s20
      %p224 = scmp.lt.s32.totalorder %s20, 5
      %p225 = pnand %p223, %p224
      %p226 = pneg %p225
      // Predicated region
      $region33: #{ffc_resnet_block.26} parent=5 // pred_check
        _
      $region34: #{ffc_resnet_block.26} parent=5 // pred_check_branch
        %228 = sbr.rel (%p225) target = $region36
      $region35: #{ffc_resnet_block.26} parent=5 // pred_region
        %s229 = ssub.s32 %s20, 1
        %s230 = sand.u32 %s33, 1
        %s231 = scalar_lea.sflag [#allocation3], %s230
        %s232 = sand.u32 %s33, 1
        %s233 = smul.addr %s232, 64
        %s234 = scalar_lea.vmem [#allocation2], %s233
        // Predicated region
        $region37: #{ffc_resnet_block.26} parent=35 // pred_check
          %p235 = pneg %p46
        $region38: #{ffc_resnet_block.26} parent=35 // pred_check_branch
          %237 = sbr.rel (%p235) target = $region40
        $region39: #{ffc_resnet_block.26} parent=35 // pred_region
          %238 = dma.done %s231, 1024
        $region40: #{ffc_resnet_block.26} parent=35 // pred_fallthru
          _
        // Predicated region
        $region41: #{ffc_resnet_block.26} parent=35 // pred_check
          %p239 = pneg %p67
        $region42: #{ffc_resnet_block.26} parent=35 // pred_check_branch
          %241 = sbr.rel (%p239) target = $region44
        $region43: #{ffc_resnet_block.26} parent=35 // pred_region
          %242 = dma.done [#allocation6], 16
        $region44: #{ffc_resnet_block.26} parent=35 // pred_fallthru
          _
        // Predicated region
        $region45: #{ffc_resnet_block.26} parent=35 // pred_check
          %p243 = pneg %p88
        $region46: #{ffc_resnet_block.26} parent=35 // pred_check_branch
          %245 = sbr.rel (%p243) target = $region48
        $region47: #{ffc_resnet_block.26} parent=35 // pred_region
          %246 = dma.done [#allocation6], 16
        $region48: #{ffc_resnet_block.26} parent=35 // pred_fallthru
          _
        %s247 = sand.u32 %s101, 1
        %s248 = scalar_lea.sflag [#allocation9], %s247
        %s249 = sand.u32 %s101, 1
        %s250 = smul.addr %s249, 128
        %s251 = scalar_lea.vmem [#allocation8], %s250
        // Predicated region
        $region49: #{ffc_resnet_block.26} parent=35 // pred_check
          %p252 = pneg %p114
        $region50: #{ffc_resnet_block.26} parent=35 // pred_check_branch
          %254 = sbr.rel (%p252) target = $region52
        $region51: #{ffc_resnet_block.26} parent=35 // pred_region
          %255 = dma.done %s248, 2048
        $region52: #{ffc_resnet_block.26} parent=35 // pred_fallthru
          _
        %s256 = sand.u32 %s33, 1
        %s257 = scalar_lea.sflag [#allocation3], %s256
        %s258 = sand.u32 %s33, 1
        %s259 = smul.addr %s258, 64
        %s260 = scalar_lea.vmem [#allocation2], %s259
        %p261 = pneg %p46
        %p262 = pneg %p43
        %p263 = pneg %p67
        %p264 = pneg %p64
        %p265 = pneg %p88
        %p266 = pneg %p85
        %s267 = sand.u32 %s101, 1
        %s268 = scalar_lea.sflag [#allocation9], %s267
        %s269 = sand.u32 %s101, 1
        %s270 = smul.addr %s269, 128
        %s271 = scalar_lea.vmem [#allocation8], %s270
        %p272 = pneg %p114
        %p273 = pneg %p111
        %p274 = pneg %p140
        %p275 = pneg %p137
        %s276 = sand.u32 %s127, 1
        %s277 = scalar_lea.sflag [#allocation4], %s276
        %s278 = sand.u32 %s127, 1
        %s279 = smul.addr %s278, 128
        %s280 = scalar_lea.vmem [#allocation10], %s279
        %s281 = smul.u32 16, %s25
        %s282 = smul.u32 16, %s25
        %s283 = smul.u32 16, %s25
        %v284 = vld [vmem:[%s234] sm:$0xf]
        %v285 = vld [vmem:[%s234 + $0x4] sm:$0xf]
        %v286 = vld [vmem:[%s234 + $0x8] sm:$0xf]
        %v287 = vld [vmem:[%s234 + $0xc] sm:$0xf]
        %v288 = vld [vmem:[%s234 + $0x10] sm:$0xf]
        %v289 = vld [vmem:[%s234 + $0x14] sm:$0xf]
        %v290 = vld [vmem:[%s234 + $0x18] sm:$0xf]
        %v291 = vld [vmem:[%s234 + $0x1c] sm:$0xf]
        %v292 = vld [vmem:[%s234 + $0x20] sm:$0xf]
        %v293 = vld [vmem:[%s234 + $0x24] sm:$0xf]
        %v294 = vld [vmem:[%s234 + $0x28] sm:$0xf]
        %v295 = vld [vmem:[%s234 + $0x2c] sm:$0xf]
        %v296 = vld [vmem:[%s234 + $0x30] sm:$0xf]
        %v297 = vld [vmem:[%s234 + $0x34] sm:$0xf]
        %v298 = vld [vmem:[%s234 + $0x38] sm:$0xf]
        %v299 = vld [vmem:[%s234 + $0x3c] sm:$0xf]
        %v300 = vunpack.c.l.bf16 %v284
        %v301 = vunpack.c.l.bf16 %v285
        %v302 = vunpack.c.l.bf16 %v286
        %v303 = vunpack.c.l.bf16 %v287
        %v304 = vunpack.c.l.bf16 %v288
        %v305 = vunpack.c.l.bf16 %v289
        %v306 = vunpack.c.l.bf16 %v290
        %v307 = vunpack.c.l.bf16 %v291
        %v308 = vunpack.c.l.bf16 %v292
        %v309 = vunpack.c.l.bf16 %v293
        %v310 = vunpack.c.l.bf16 %v294
        %v311 = vunpack.c.l.bf16 %v295
        %v312 = vunpack.c.l.bf16 %v296
        %v313 = vunpack.c.l.bf16 %v297
        %v314 = vunpack.c.l.bf16 %v298
        %v315 = vunpack.c.l.bf16 %v299
        %v316 = vld [vmem:[#allocation5] sm:$0x1]
        %v318 = vlaneseq
        %v319 = vshrl.u32 %v318, 7
        %v320 = vsub.s32 0, %v319
        %v321 = vrot.slane %v316, %v320
        %v323 = vmul.f32 %v300, %v321
        %v324 = vmul.f32 %v301, %v321
        %v325 = vmul.f32 %v302, %v321
        %v326 = vmul.f32 %v303, %v321
        %v327 = vmul.f32 %v304, %v321
        %v328 = vmul.f32 %v305, %v321
        %v329 = vmul.f32 %v306, %v321
        %v330 = vmul.f32 %v307, %v321
        %v331 = vmul.f32 %v308, %v321
        %v332 = vmul.f32 %v309, %v321
        %v333 = vmul.f32 %v310, %v321
        %v334 = vmul.f32 %v311, %v321
        %v335 = vmul.f32 %v312, %v321
        %v336 = vmul.f32 %v313, %v321
        %v337 = vmul.f32 %v314, %v321
        %v338 = vmul.f32 %v315, %v321
        %v339 = vld [vmem:[#allocation7] sm:$0x1]
        %v341 = vlaneseq
        %v342 = vshrl.u32 %v341, 7
        %v343 = vsub.s32 0, %v342
        %v344 = vrot.slane %v339, %v343
        %v346 = vadd.f32 %v323, %v344
        %v347 = vadd.f32 %v324, %v344
        %v348 = vadd.f32 %v325, %v344
        %v349 = vadd.f32 %v326, %v344
        %v350 = vadd.f32 %v327, %v344
        %v351 = vadd.f32 %v328, %v344
        %v352 = vadd.f32 %v329, %v344
        %v353 = vadd.f32 %v330, %v344
        %v354 = vadd.f32 %v331, %v344
        %v355 = vadd.f32 %v332, %v344
        %v356 = vadd.f32 %v333, %v344
        %v357 = vadd.f32 %v334, %v344
        %v358 = vadd.f32 %v335, %v344
        %v359 = vadd.f32 %v336, %v344
        %v360 = vadd.f32 %v337, %v344
        %v361 = vadd.f32 %v338, %v344
        %v362 = vmax.f32 %v346, 0.0
        %v363 = vmax.f32 %v347, 0.0
        %v364 = vmax.f32 %v348, 0.0
        %v365 = vmax.f32 %v349, 0.0
        %v366 = vmax.f32 %v350, 0.0
        %v367 = vmax.f32 %v351, 0.0
        %v368 = vmax.f32 %v352, 0.0
        %v369 = vmax.f32 %v353, 0.0
        %v370 = vmax.f32 %v354, 0.0
        %v371 = vmax.f32 %v355, 0.0
        %v372 = vmax.f32 %v356, 0.0
        %v373 = vmax.f32 %v357, 0.0
        %v374 = vmax.f32 %v358, 0.0
        %v375 = vmax.f32 %v359, 0.0
        %v376 = vmax.f32 %v360, 0.0
        %v377 = vmax.f32 %v361, 0.0
        %v378 = vld [vmem:[%s251] sm:$0xff]
        %v379 = vld [vmem:[%s251 + $0x8] sm:$0xff]
        %v380 = vld [vmem:[%s251 + $0x10] sm:$0xff]
        %v381 = vld [vmem:[%s251 + $0x18] sm:$0xff]
        %v382 = vld [vmem:[%s251 + $0x20] sm:$0xff]
        %v383 = vld [vmem:[%s251 + $0x28] sm:$0xff]
        %v384 = vld [vmem:[%s251 + $0x30] sm:$0xff]
        %v385 = vld [vmem:[%s251 + $0x38] sm:$0xff]
        %v386 = vld [vmem:[%s251 + $0x40] sm:$0xff]
        %v387 = vld [vmem:[%s251 + $0x48] sm:$0xff]
        %v388 = vld [vmem:[%s251 + $0x50] sm:$0xff]
        %v389 = vld [vmem:[%s251 + $0x58] sm:$0xff]
        %v390 = vld [vmem:[%s251 + $0x60] sm:$0xff]
        %v391 = vld [vmem:[%s251 + $0x68] sm:$0xff]
        %v392 = vld [vmem:[%s251 + $0x70] sm:$0xff]
        %v393 = vld [vmem:[%s251 + $0x78] sm:$0xff]
        %v394 = vadd.f32 %v378, %v362
        %v395 = vadd.f32 %v379, %v363
        %v396 = vadd.f32 %v380, %v364
        %v397 = vadd.f32 %v381, %v365
        %v398 = vadd.f32 %v382, %v366
        %v399 = vadd.f32 %v383, %v367
        %v400 = vadd.f32 %v384, %v368
        %v401 = vadd.f32 %v385, %v369
        %v402 = vadd.f32 %v386, %v370
        %v403 = vadd.f32 %v387, %v371
        %v404 = vadd.f32 %v388, %v372
        %v405 = vadd.f32 %v389, %v373
        %v406 = vadd.f32 %v390, %v374
        %v407 = vadd.f32 %v391, %v375
        %v408 = vadd.f32 %v392, %v376
        %v409 = vadd.f32 %v393, %v377
        %vm410 = vcmask 15360
        %411 = vst.msk [vmem:[%s280] sm:$0xff] %vm410, %v394
        %412 = vst.msk [vmem:[%s280 + $0x8] sm:$0xff] %vm410, %v395
        %413 = vst.msk [vmem:[%s280 + $0x10] sm:$0xff] %vm410, %v396
        %414 = vst.msk [vmem:[%s280 + $0x18] sm:$0xff] %vm410, %v397
        %415 = vst.msk [vmem:[%s280 + $0x20] sm:$0xff] %vm410, %v398
        %416 = vst.msk [vmem:[%s280 + $0x28] sm:$0xff] %vm410, %v399
        %417 = vst.msk [vmem:[%s280 + $0x30] sm:$0xff] %vm410, %v400
        %418 = vst.msk [vmem:[%s280 + $0x38] sm:$0xff] %vm410, %v401
        %419 = vst.msk [vmem:[%s280 + $0x40] sm:$0xff] %vm410, %v402
        %420 = vst.msk [vmem:[%s280 + $0x48] sm:$0xff] %vm410, %v403
        %421 = vst.msk [vmem:[%s280 + $0x50] sm:$0xff] %vm410, %v404
        %422 = vst.msk [vmem:[%s280 + $0x58] sm:$0xff] %vm410, %v405
        %423 = vst.msk [vmem:[%s280 + $0x60] sm:$0xff] %vm410, %v406
        %424 = vst.msk [vmem:[%s280 + $0x68] sm:$0xff] %vm410, %v407
        %425 = vst.msk [vmem:[%s280 + $0x70] sm:$0xff] %vm410, %v408
        %426 = vst.msk [vmem:[%s280 + $0x78] sm:$0xff] %vm410, %v409
        %s427 = sand.u32 %s127, 1
        %s428 = scalar_lea.sflag [#allocation4], %s427
        %s429 = sand.u32 %s127, 1
        %s430 = smul.addr %s429, 128
        %s431 = scalar_lea.vmem [#allocation10], %s430
        // Predicated region
        $region53: #{ffc_resnet_block.26} parent=35 // pred_check
          %p432 = pneg %p137
        $region54: #{ffc_resnet_block.26} parent=35 // pred_check_branch
          %434 = sbr.rel (%p432) target = $region56
        $region55: #{ffc_resnet_block.26} parent=35 // pred_region
          %s435 = smul.u32 16, %s25
          %s437 = ssub.s32 2048, 2048
          %438 = vsyncadd %s428, %s437
          %s439 = smul.addr %s435, 128
          %s440 = scalar_lea.hbm %s4, %s439
          %s441 = sshll.u32 %s431, 4
          %s442 = int_to_ptr.vmem [resolvable:$true] %s441
          %447 = dma.vmem_to_hbm [thread:$0]  %s442, 2048, %s440, %s428, 128, 128, 8
        $region56: #{ffc_resnet_block.26} parent=35 // pred_fallthru
          _
      $region36: #{ffc_resnet_block.26} parent=5 // pred_fallthru
        _
      %p448 = scmp.le.s32.totalorder 2, %s20
      // Predicated region
      $region57: #{ffc_resnet_block.26} parent=5 // pred_check
        %p449 = pneg %p448
      $region58: #{ffc_resnet_block.26} parent=5 // pred_check_branch
        %451 = sbr.rel (%p449) target = $region60
      $region59: #{ffc_resnet_block.26} parent=5 // pred_region
        %s452 = ssub.s32 %s20, 2
        // Predicated region
        $region61: #{ffc_resnet_block.26} parent=59 // pred_check
          %p453 = pneg %p143
        $region62: #{ffc_resnet_block.26} parent=59 // pred_check_branch
          %455 = sbr.rel (%p453) target = $region64
        $region63: #{ffc_resnet_block.26} parent=59 // pred_region
          %s456 = sand.u32 %s128, 1
          %s457 = scalar_lea.sflag [#allocation4], %s456
          %s458 = sand.u32 %s128, 1
          %s459 = smul.addr %s458, 128
          %s460 = scalar_lea.vmem [#allocation10], %s459
          %461 = dma.done %s457, 2048
        $region64: #{ffc_resnet_block.26} parent=59 // pred_fallthru
          _
      $region60: #{ffc_resnet_block.26} parent=5 // pred_fallthru
        _
    $region6: #{ffc_resnet_block.26} parent=1 // loop_footer
      %s24 = sadd.s32 1, %s20
    $region7: #{ffc_resnet_block.26} parent=1 // loop_footer_branch
      %19 = sbr.rel target = $region3
    $region8: #{ffc_resnet_block.26} parent=1 // loop_exit
      _
    %462 = vsyncpa [#allocation3], 1
    %s463 = scalar_lea.sflag [#allocation3], 1
    %464 = vsyncpa %s463, 1
    %465 = vsyncpa [#allocation6], 1
    %466 = vsyncpa [#allocation9], 1
    %s467 = scalar_lea.sflag [#allocation9], 1
    %468 = vsyncpa %s467, 1
    %469 = vsyncpa [#allocation4], 1
    %s470 = scalar_lea.sflag [#allocation4], 1
    %471 = vsyncpa %s470, 1

// kernel: ffc_resnet_block.18
$region0: #{ffc_resnet_block.18}
  #allocation0 [shape = 'u32[]', space=smem, size = 0x4, offset = 0x4, fixed_abs, tag = 'smem constant byte address 0x4 - core index']
  #allocation1 [shape = 'u32[144,128]{1,0:T(1,128)}', space=vmem, size = 0x12000, scoped, tag = 'internal scratch']
  %s0 = inlined_call_operand.hbm [shape: bf16[2,18,18,2], index: 0, kind: input, shape index: {}]
  %s1 = inlined_call_operand.hbm [shape: bf16[2,18,18,2], index: 1, kind: input, shape index: {}]
  %s2 = inlined_call_operand.hbm [shape: f32[512,1], index: 2, kind: input, shape index: {}]
  %s3 = inlined_call_operand.hbm [shape: f32[512,1], index: 3, kind: input, shape index: {}]
  %s4 = inlined_call_operand.hbm [shape: bf16[3,3,2,2], index: 4, kind: input, shape index: {}]
  %s5 = inlined_call_operand.hbm [shape: bf16[3,3,2,2], index: 5, kind: input, shape index: {}]
  %s6 = inlined_call_operand.hbm [shape: bf16[1,2], index: 6, kind: input, shape index: {}]
  %s7 = inlined_call_operand.hbm [shape: bf16[512,2], index: 7, kind: output, shape index: {0}]
  %s8 = inlined_call_operand.hbm [shape: bf16[512,2], index: 8, kind: output, shape index: {1}]
  %s9 = inlined_call_operand.hbm [shape: f32[4,2,2], index: 9, kind: output, shape index: {2}]
  %s10 = inlined_call_operand.hbm [shape: f32[4,2,2], index: 10, kind: output, shape index: {3}]
  %11 = xla_tuple %s7, %s8, %s9, %s10
  %s12 = sld [smem:[#allocation0]]
  $region113: #{ffc_resnet_block.18} parent=0
    _
  %s14 = ssub.s32 1, %s12
  %s15 = scalar_select 0, %s14, %s12
  $region1: #{ffc_resnet_block.18} parent=0
    #allocation2 [shape = 'u8[221184]{0}', space=vmem, size = 0x36000, scoped, tag = 'input window, operand 0']
    #allocation3 [shape = 's32[2]{0}', space=sflag, size = 0x8, scoped, tag = 'scoped memory for ffc_resnet_block.18']
    #allocation4 [shape = 's32[2]{0}', space=sflag, size = 0x8, scoped, tag = 'scoped memory for ffc_resnet_block.18']
    #allocation5 [shape = 'u8[221184]{0}', space=vmem, size = 0x36000, scoped, tag = 'input window, operand 1']
    #allocation6 [shape = 's32[2]{0}', space=sflag, size = 0x8, scoped, tag = 'scoped memory for ffc_resnet_block.18']
    #allocation7 [shape = 'u8[131072]{0}', space=vmem, size = 0x20000, scoped, tag = 'input window, operand 2']
    #allocation8 [shape = 'u8[131072]{0}', space=vmem, size = 0x20000, scoped, tag = 'input window, operand 3']
    #allocation9 [shape = 's32[2]{0}', space=sflag, size = 0x8, scoped, tag = 'scoped memory for ffc_resnet_block.18']
    #allocation10 [shape = 'u8[4608]{0}', space=vmem, size = 0x1400, scoped, tag = 'input window, operand 4, single buffered']
    #allocation11 [shape = 'u8[4608]{0}', space=vmem, size = 0x1400, scoped, tag = 'input window, operand 5, single buffered']
    #allocation12 [shape = 's32[1]{0}', space=sflag, size = 0x4, scoped, tag = 'scoped memory for ffc_resnet_block.18']
    #allocation13 [shape = 'u8[512]{0}', space=vmem, size = 0x400, scoped, tag = 'input window, operand 6, single buffered']
    #allocation14 [shape = 'u8[65536]{0}', space=vmem, size = 0x10000, scoped, tag = 'output window, operand 0']
    #allocation15 [shape = 'u8[65536]{0}', space=vmem, size = 0x10000, scoped, tag = 'output window, operand 1']
    #allocation16 [shape = 's32[2]{0}', space=sflag, size = 0x8, scoped, tag = 'scoped memory for ffc_resnet_block.18']
    #allocation17 [shape = 'u8[2048]{0}', space=vmem, size = 0x800, scoped, tag = 'output window, operand 2']
    #allocation18 [shape = 'u8[2048]{0}', space=vmem, size = 0x800, scoped, tag = 'output window, operand 3']
    #allocation19 [shape = 's32[2]{0}', space=sflag, size = 0x8, scoped, tag = 'scoped memory for ffc_resnet_block.18']
    %16 = vsyncpa [#allocation3], 0
    %s17 = scalar_lea.sflag [#allocation3], 1
    %18 = vsyncpa %s17, 0
    %19 = vsyncpa [#allocation6], 0
    %s20 = scalar_lea.sflag [#allocation6], 1
    %21 = vsyncpa %s20, 0
    %22 = vsyncpa [#allocation9], 0
    %s23 = scalar_lea.sflag [#allocation9], 1
    %24 = vsyncpa %s23, 0
    %25 = vsyncpa [#allocation12], 0
    %26 = vsyncpa [#allocation4], 0
    %s27 = scalar_lea.sflag [#allocation4], 1
    %28 = vsyncpa %s27, 0
    %29 = vsyncpa [#allocation16], 0
    %s30 = scalar_lea.sflag [#allocation16], 1
    %31 = vsyncpa %s30, 0
    %32 = vsyncpa [#allocation19], 0
    %s33 = scalar_lea.sflag [#allocation19], 1
    %34 = vsyncpa %s33, 0
    loop: start=0, step=1, limit=6
    $region2: #{ffc_resnet_block.18} parent=1 // loop_pre_header
      _
    $region3: #{ffc_resnet_block.18} parent=1 // loop_header
      %s36 = sphi 0, %s40
      %p37 = scmp.ge.s32.totalorder %s36, 6
      %s43 = sphi 0, %s55
      %s44 = sphi 0, %s51
      %s45 = sphi 0, %s43
      %s46 = sphi 0, %s44
      %s47 = sphi 0, %s45
      %s48 = sphi 0, %s46
      %s58 = sphi 0, %s60
      %s61 = sphi 0, %s58
      %s62 = sphi 0, %s61
      %s78 = sphi 0, %s62
      %s84 = sphi 0, %s86
      %s87 = sphi 0, %s84
      %s88 = sphi 0, %s87
      %s104 = sphi 0, %s88
      %s114 = sphi 0, %s116
      %s117 = sphi 0, %s114
      %s118 = sphi 0, %s117
      %s134 = sphi 0, %s118
      %s144 = sphi 0, %s146
      %s147 = sphi 0, %s144
      %s148 = sphi 0, %s147
      %s164 = sphi 0, %s148
      %s168 = sphi 0, %s168
      %s170 = sphi 0, %s168
      %s171 = sphi 0, %s170
      %s185 = sphi 0, %s171
      %s189 = sphi 0, %s189
      %s191 = sphi 0, %s189
      %s192 = sphi 0, %s191
      %s206 = sphi 0, %s192
      %s210 = sphi 0, %s210
      %s212 = sphi 0, %s210
      %s213 = sphi 0, %s212
      %s227 = sphi 0, %s213
      %s237 = sphi 0, %s239
      %s240 = sphi 0, %s237
      %s241 = sphi 0, %s240
      %s257 = sphi 0, %s241
      %s267 = sphi 0, %s269
      %s270 = sphi 0, %s267
      %s271 = sphi 0, %s270
      %s287 = sphi 0, %s271
      %s297 = sphi 0, %s299
      %s300 = sphi 0, %s297
      %s301 = sphi 0, %s300
      %s317 = sphi 0, %s301
      %s327 = sphi 0, %s329
      %s330 = sphi 0, %s327
      %s331 = sphi 0, %s330
      %s347 = sphi 0, %s331
    $region4: #{ffc_resnet_block.18} parent=1 // loop_header_branch
      %39 = sbr.rel (%p37) target = $region8
    $region5: #{ffc_resnet_block.18} parent=1 // loop_body
      %s41 = ssub.s32 %s36, 1
      %s42 = ssub.s32 %s36, 2
      %s49 = sadd.s32 1, %s44
      %p50 = scmp.ge.s32.totalorder %s49, 2
      %s51 = scalar_select %p50, 0, %s49
      %s52 = sadd.s32 1, %s43
      %s53 = scalar_select %p50, %s52, %s43
      %p54 = scmp.ge.s32.totalorder %s53, 2
      %s55 = scalar_select %p54, 0, %s53
      %s56 = ssub.s32 %s43, %s55
      %p57 = scmp.eq.s32.totalorder %s56, 0
      %s59 = sadd.s32 %s58, 1
      %s60 = scalar_select %p57, %s58, %s59
      %p63 = pneg %p57
      %p64 = scmp.eq.s32.totalorder %s36, 3
      %p65 = por %p63, %p64
      %p66 = scmp.ne.s32.totalorder %s58, %s61
      %p67 = scmp.eq.s32.totalorder %s36, 0
      %p68 = por %p66, %p67
      %p69 = scmp.ne.s32.totalorder %s58, %s61
      %p70 = scmp.eq.s32.totalorder %s41, 3
      %p71 = por %p69, %p70
      %p72 = scmp.ne.s32.totalorder %s61, %s62
      %p73 = scmp.eq.s32.totalorder %s41, 0
      %p74 = por %p72, %p73
      %p75 = scmp.ne.s32.totalorder %s61, %s62
      %p76 = scmp.eq.s32.totalorder %s42, 3
      %p77 = por %p75, %p76
      %p79 = scmp.ne.s32.totalorder %s62, %s78
      %p80 = scmp.eq.s32.totalorder %s42, 0
      %p81 = por %p79, %p80
      %s82 = ssub.s32 %s43, %s55
      %p83 = scmp.eq.s32.totalorder %s82, 0
      %s85 = sadd.s32 %s84, 1
      %s86 = scalar_select %p83, %s84, %s85
      %p89 = pneg %p83
      %p90 = scmp.eq.s32.totalorder %s36, 3
      %p91 = por %p89, %p90
      %p92 = scmp.ne.s32.totalorder %s84, %s87
      %p93 = scmp.eq.s32.totalorder %s36, 0
      %p94 = por %p92, %p93
      %p95 = scmp.ne.s32.totalorder %s84, %s87
      %p96 = scmp.eq.s32.totalorder %s41, 3
      %p97 = por %p95, %p96
      %p98 = scmp.ne.s32.totalorder %s87, %s88
      %p99 = scmp.eq.s32.totalorder %s41, 0
      %p100 = por %p98, %p99
      %p101 = scmp.ne.s32.totalorder %s87, %s88
      %p102 = scmp.eq.s32.totalorder %s42, 3
      %p103 = por %p101, %p102
      %p105 = scmp.ne.s32.totalorder %s88, %s104
      %p106 = scmp.eq.s32.totalorder %s42, 0
      %p107 = por %p105, %p106
      %s108 = smul.u32 %s43, 2
      %s109 = sadd.s32 %s108, %s44
      %s110 = smul.u32 %s55, 2
      %s111 = sadd.s32 %s110, %s51
      %s112 = ssub.s32 %s109, %s111
      %p113 = scmp.eq.s32.totalorder %s112, 0
      %s115 = sadd.s32 %s114, 1
      %s116 = scalar_select %p113, %s114, %s115
      %p119 = pneg %p113
      %p120 = scmp.eq.s32.totalorder %s36, 3
      %p121 = por %p119, %p120
      %p122 = scmp.ne.s32.totalorder %s114, %s117
      %p123 = scmp.eq.s32.totalorder %s36, 0
      %p124 = por %p122, %p123
      %p125 = scmp.ne.s32.totalorder %s114, %s117
      %p126 = scmp.eq.s32.totalorder %s41, 3
      %p127 = por %p125, %p126
      %p128 = scmp.ne.s32.totalorder %s117, %s118
      %p129 = scmp.eq.s32.totalorder %s41, 0
      %p130 = por %p128, %p129
      %p131 = scmp.ne.s32.totalorder %s117, %s118
      %p132 = scmp.eq.s32.totalorder %s42, 3
      %p133 = por %p131, %p132
      %p135 = scmp.ne.s32.totalorder %s118, %s134
      %p136 = scmp.eq.s32.totalorder %s42, 0
      %p137 = por %p135, %p136
      %s138 = smul.u32 %s43, 2
      %s139 = sadd.s32 %s138, %s44
      %s140 = smul.u32 %s55, 2
      %s141 = sadd.s32 %s140, %s51
      %s142 = ssub.s32 %s139, %s141
      %p143 = scmp.eq.s32.totalorder %s142, 0
      %s145 = sadd.s32 %s144, 1
      %s146 = scalar_select %p143, %s144, %s145
      %p149 = pneg %p143
      %p150 = scmp.eq.s32.totalorder %s36, 3
      %p151 = por %p149, %p150
      %p152 = scmp.ne.s32.totalorder %s144, %s147
      %p153 = scmp.eq.s32.totalorder %s36, 0
      %p154 = por %p152, %p153
      %p155 = scmp.ne.s32.totalorder %s144, %s147
      %p156 = scmp.eq.s32.totalorder %s41, 3
      %p157 = por %p155, %p156
      %p158 = scmp.ne.s32.totalorder %s147, %s148
      %p159 = scmp.eq.s32.totalorder %s41, 0
      %p160 = por %p158, %p159
      %p161 = scmp.ne.s32.totalorder %s147, %s148
      %p162 = scmp.eq.s32.totalorder %s42, 3
      %p163 = por %p161, %p162
      %p165 = scmp.ne.s32.totalorder %s148, %s164
      %p166 = scmp.eq.s32.totalorder %s42, 0
      %p167 = por %p165, %p166
      %s169 = sadd.s32 %s168, 1
      %p172 = scmp.eq.s32.totalorder %s36, 3
      %p173 = scmp.ne.s32.totalorder %s168, %s170
      %p174 = scmp.eq.s32.totalorder %s36, 0
      %p175 = por %p173, %p174
      %p176 = scmp.ne.s32.totalorder %s168, %s170
      %p177 = scmp.eq.s32.totalorder %s41, 3
      %p178 = por %p176, %p177
      %p179 = scmp.ne.s32.totalorder %s170, %s171
      %p180 = scmp.eq.s32.totalorder %s41, 0
      %p181 = por %p179, %p180
      %p182 = scmp.ne.s32.totalorder %s170, %s171
      %p183 = scmp.eq.s32.totalorder %s42, 3
      %p184 = por %p182, %p183
      %p186 = scmp.ne.s32.totalorder %s171, %s185
      %p187 = scmp.eq.s32.totalorder %s42, 0
      %p188 = por %p186, %p187
      %s190 = sadd.s32 %s189, 1
      %p193 = scmp.eq.s32.totalorder %s36, 3
      %p194 = scmp.ne.s32.totalorder %s189, %s191
      %p195 = scmp.eq.s32.totalorder %s36, 0
      %p196 = por %p194, %p195
      %p197 = scmp.ne.s32.totalorder %s189, %s191
      %p198 = scmp.eq.s32.totalorder %s41, 3
      %p199 = por %p197, %p198
      %p200 = scmp.ne.s32.totalorder %s191, %s192
      %p201 = scmp.eq.s32.totalorder %s41, 0
      %p202 = por %p200, %p201
      %p203 = scmp.ne.s32.totalorder %s191, %s192
      %p204 = scmp.eq.s32.totalorder %s42, 3
      %p205 = por %p203, %p204
      %p207 = scmp.ne.s32.totalorder %s192, %s206
      %p208 = scmp.eq.s32.totalorder %s42, 0
      %p209 = por %p207, %p208
      %s211 = sadd.s32 %s210, 1
      %p214 = scmp.eq.s32.totalorder %s36, 3
      %p215 = scmp.ne.s32.totalorder %s210, %s212
      %p216 = scmp.eq.s32.totalorder %s36, 0
      %p217 = por %p215, %p216
      %p218 = scmp.ne.s32.totalorder %s210, %s212
      %p219 = scmp.eq.s32.totalorder %s41, 3
      %p220 = por %p218, %p219
      %p221 = scmp.ne.s32.totalorder %s212, %s213
      %p222 = scmp.eq.s32.totalorder %s41, 0
      %p223 = por %p221, %p222
      %p224 = scmp.ne.s32.totalorder %s212, %s213
      %p225 = scmp.eq.s32.totalorder %s42, 3
      %p226 = por %p224, %p225
      %p228 = scmp.ne.s32.totalorder %s213, %s227
      %p229 = scmp.eq.s32.totalorder %s42, 0
      %p230 = por %p228, %p229
      %s231 = smul.u32 %s43, 2
      %s232 = sadd.s32 %s231, %s44
      %s233 = smul.u32 %s55, 2
      %s234 = sadd.s32 %s233, %s51
      %s235 = ssub.s32 %s232, %s234
      %p236 = scmp.eq.s32.totalorder %s235, 0
      %s238 = sadd.s32 %s237, 1
      %s239 = scalar_select %p236, %s237, %s238
      %p242 = pneg %p236
      %p243 = scmp.eq.s32.totalorder %s36, 3
      %p244 = por %p242, %p243
      %p245 = scmp.ne.s32.totalorder %s237, %s240
      %p246 = scmp.eq.s32.totalorder %s36, 0
      %p247 = por %p245, %p246
      %p248 = scmp.ne.s32.totalorder %s237, %s240
      %p249 = scmp.eq.s32.totalorder %s41, 3
      %p250 = por %p248, %p249
      %p251 = scmp.ne.s32.totalorder %s240, %s241
      %p252 = scmp.eq.s32.totalorder %s41, 0
      %p253 = por %p251, %p252
      %p254 = scmp.ne.s32.totalorder %s240, %s241
      %p255 = scmp.eq.s32.totalorder %s42, 3
      %p256 = por %p254, %p255
      %p258 = scmp.ne.s32.totalorder %s241, %s257
      %p259 = scmp.eq.s32.totalorder %s42, 0
      %p260 = por %p258, %p259
      %s261 = smul.u32 %s43, 2
      %s262 = sadd.s32 %s261, %s44
      %s263 = smul.u32 %s55, 2
      %s264 = sadd.s32 %s263, %s51
      %s265 = ssub.s32 %s262, %s264
      %p266 = scmp.eq.s32.totalorder %s265, 0
      %s268 = sadd.s32 %s267, 1
      %s269 = scalar_select %p266, %s267, %s268
      %p272 = pneg %p266
      %p273 = scmp.eq.s32.totalorder %s36, 3
      %p274 = por %p272, %p273
      %p275 = scmp.ne.s32.totalorder %s267, %s270
      %p276 = scmp.eq.s32.totalorder %s36, 0
      %p277 = por %p275, %p276
      %p278 = scmp.ne.s32.totalorder %s267, %s270
      %p279 = scmp.eq.s32.totalorder %s41, 3
      %p280 = por %p278, %p279
      %p281 = scmp.ne.s32.totalorder %s270, %s271
      %p282 = scmp.eq.s32.totalorder %s41, 0
      %p283 = por %p281, %p282
      %p284 = scmp.ne.s32.totalorder %s270, %s271
      %p285 = scmp.eq.s32.totalorder %s42, 3
      %p286 = por %p284, %p285
      %p288 = scmp.ne.s32.totalorder %s271, %s287
      %p289 = scmp.eq.s32.totalorder %s42, 0
      %p290 = por %p288, %p289
      %s291 = smul.u32 %s43, 2
      %s292 = sadd.s32 %s291, %s44
      %s293 = smul.u32 %s55, 2
      %s294 = sadd.s32 %s293, %s51
      %s295 = ssub.s32 %s292, %s294
      %p296 = scmp.eq.s32.totalorder %s295, 0
      %s298 = sadd.s32 %s297, 1
      %s299 = scalar_select %p296, %s297, %s298
      %p302 = pneg %p296
      %p303 = scmp.eq.s32.totalorder %s36, 3
      %p304 = por %p302, %p303
      %p305 = scmp.ne.s32.totalorder %s297, %s300
      %p306 = scmp.eq.s32.totalorder %s36, 0
      %p307 = por %p305, %p306
      %p308 = scmp.ne.s32.totalorder %s297, %s300
      %p309 = scmp.eq.s32.totalorder %s41, 3
      %p310 = por %p308, %p309
      %p311 = scmp.ne.s32.totalorder %s300, %s301
      %p312 = scmp.eq.s32.totalorder %s41, 0
      %p313 = por %p311, %p312
      %p314 = scmp.ne.s32.totalorder %s300, %s301
      %p315 = scmp.eq.s32.totalorder %s42, 3
      %p316 = por %p314, %p315
      %p318 = scmp.ne.s32.totalorder %s301, %s317
      %p319 = scmp.eq.s32.totalorder %s42, 0
      %p320 = por %p318, %p319
      %s321 = smul.u32 %s43, 2
      %s322 = sadd.s32 %s321, %s44
      %s323 = smul.u32 %s55, 2
      %s324 = sadd.s32 %s323, %s51
      %s325 = ssub.s32 %s322, %s324
      %p326 = scmp.eq.s32.totalorder %s325, 0
      %s328 = sadd.s32 %s327, 1
      %s329 = scalar_select %p326, %s327, %s328
      %p332 = pneg %p326
      %p333 = scmp.eq.s32.totalorder %s36, 3
      %p334 = por %p332, %p333
      %p335 = scmp.ne.s32.totalorder %s327, %s330
      %p336 = scmp.eq.s32.totalorder %s36, 0
      %p337 = por %p335, %p336
      %p338 = scmp.ne.s32.totalorder %s327, %s330
      %p339 = scmp.eq.s32.totalorder %s41, 3
      %p340 = por %p338, %p339
      %p341 = scmp.ne.s32.totalorder %s330, %s331
      %p342 = scmp.eq.s32.totalorder %s41, 0
      %p343 = por %p341, %p342
      %p344 = scmp.ne.s32.totalorder %s330, %s331
      %p345 = scmp.eq.s32.totalorder %s42, 3
      %p346 = por %p344, %p345
      %p348 = scmp.ne.s32.totalorder %s331, %s347
      %p349 = scmp.eq.s32.totalorder %s42, 0
      %p350 = por %p348, %p349
      %p351 = scmp.le.s32.totalorder 1, %s36
      %p352 = scmp.lt.s32.totalorder %s36, 5
      %p353 = pnand %p351, %p352
      %p354 = pneg %p353
      // Predicated region
      $region9: #{ffc_resnet_block.18} parent=5 // pred_check
        _
      $region10: #{ffc_resnet_block.18} parent=5 // pred_check_branch
        %356 = sbr.rel (%p353) target = $region12
      $region11: #{ffc_resnet_block.18} parent=5 // pred_region
        %s357 = ssub.s32 %s36, 1
        // Predicated region
        $region13: #{ffc_resnet_block.18} parent=11 // pred_check
          %p358 = pneg %p181
        $region14: #{ffc_resnet_block.18} parent=11 // pred_check_branch
          %360 = sbr.rel (%p358) target = $region16
        $region15: #{ffc_resnet_block.18} parent=11 // pred_region
          %s362 = ssub.s32 144, 144
          %363 = vsyncadd [#allocation9], %s362
          %s364 = sshll.u32 [#allocation10], 4
          %s365 = int_to_ptr.vmem [resolvable:$true] %s364
          %370 = dma.hbm_to_vmem [thread:$0]  %s4, 144, %s365, [#allocation9], 16, 16, 1
        $region16: #{ffc_resnet_block.18} parent=11 // pred_fallthru
          _
        // Predicated region
        $region17: #{ffc_resnet_block.18} parent=11 // pred_check
          %p371 = pneg %p202
        $region18: #{ffc_resnet_block.18} parent=11 // pred_check_branch
          %373 = sbr.rel (%p371) target = $region20
        $region19: #{ffc_resnet_block.18} parent=11 // pred_region
          %s375 = ssub.s32 144, 144
          %376 = vsyncadd [#allocation12], %s375
          %s377 = sshll.u32 [#allocation11], 4
          %s378 = int_to_ptr.vmem [resolvable:$true] %s377
          %383 = dma.hbm_to_vmem [thread:$0]  %s5, 144, %s378, [#allocation12], 16, 16, 1
        $region20: #{ffc_resnet_block.18} parent=11 // pred_fallthru
          _
        // Predicated region
        $region21: #{ffc_resnet_block.18} parent=11 // pred_check
          %p384 = pneg %p223
        $region22: #{ffc_resnet_block.18} parent=11 // pred_check_branch
          %386 = sbr.rel (%p384) target = $region24
        $region23: #{ffc_resnet_block.18} parent=11 // pred_region
          %s388 = ssub.s32 16, 16
          %389 = vsyncadd [#allocation12], %s388
          %s391 = sshll.u32 [#allocation13], 4
          %s392 = int_to_ptr.vmem [resolvable:$true] %s391
          %394 = dma.hbm_to_vmem [thread:$0]  %s6, 16, %s392, [#allocation12]
        $region24: #{ffc_resnet_block.18} parent=11 // pred_fallthru
          _
      $region12: #{ffc_resnet_block.18} parent=5 // pred_fallthru
        _
      %p395 = scmp.lt.s32.totalorder %s36, 4
      // Predicated region
      $region25: #{ffc_resnet_block.18} parent=5 // pred_check
        %p396 = pneg %p395
      $region26: #{ffc_resnet_block.18} parent=5 // pred_check_branch
        %398 = sbr.rel (%p396) target = $region28
      $region27: #{ffc_resnet_block.18} parent=5 // pred_region
        // Predicated region
        $region29: #{ffc_resnet_block.18} parent=27 // pred_check
          %p399 = pneg %p68
        $region30: #{ffc_resnet_block.18} parent=27 // pred_check_branch
          %401 = sbr.rel (%p399) target = $region32
        $region31: #{ffc_resnet_block.18} parent=27 // pred_region
          %s402 = sand.u32 %s58, 1
          %s403 = scalar_lea.sflag [#allocation3], %s402
          %s404 = sand.u32 %s58, 1
          %s405 = smul.addr %s404, 216
          %s406 = scalar_lea.vmem [#allocation2], %s405
          %s408 = ssub.s32 3456, 3456
          %409 = vsyncadd %s403, %s408
          %s410 = smul.addr %s43, 54
          %s411 = smul.addr %s410, 64
          %s412 = scalar_lea.hbm %s0, %s411
          %s413 = sshll.u32 %s406, 4
          %s414 = int_to_ptr.vmem [resolvable:$true] %s413
          %419 = dma.hbm_to_vmem [thread:$0]  %s412, 3456, %s414, %s403, 64, 64, 4
        $region32: #{ffc_resnet_block.18} parent=27 // pred_fallthru
          _
        // Predicated region
        $region33: #{ffc_resnet_block.18} parent=27 // pred_check
          %p420 = pneg %p94
        $region34: #{ffc_resnet_block.18} parent=27 // pred_check_branch
          %422 = sbr.rel (%p420) target = $region36
        $region35: #{ffc_resnet_block.18} parent=27 // pred_region
          %s423 = sand.u32 %s36, 1
          %s424 = scalar_lea.sflag [#allocation6], %s423
          %s425 = sand.u32 %s84, 1
          %s426 = smul.addr %s425, 216
          %s427 = scalar_lea.vmem [#allocation5], %s426
          %s429 = ssub.s32 3456, 3456
          %430 = vsyncadd %s424, %s429
          %s431 = smul.addr %s43, 54
          %s432 = smul.addr %s431, 64
          %s433 = scalar_lea.hbm %s1, %s432
          %s434 = sshll.u32 %s427, 4
          %s435 = int_to_ptr.vmem [resolvable:$true] %s434
          %440 = dma.hbm_to_vmem [thread:$0]  %s433, 3456, %s435, %s424, 64, 64, 4
        $region36: #{ffc_resnet_block.18} parent=27 // pred_fallthru
          _
        // Predicated region
        $region37: #{ffc_resnet_block.18} parent=27 // pred_check
          %p441 = pneg %p124
        $region38: #{ffc_resnet_block.18} parent=27 // pred_check_branch
          %443 = sbr.rel (%p441) target = $region40
        $region39: #{ffc_resnet_block.18} parent=27 // pred_region
          %s444 = sand.u32 %s36, 1
          %s445 = scalar_lea.sflag [#allocation6], %s444
          %s446 = sand.u32 %s114, 1
          %s447 = smul.addr %s446, 128
          %s448 = scalar_lea.vmem [#allocation7], %s447
          %s449 = smul.u32 %s43, 2
          %s450 = sadd.s32 %s449, %s44
          %s451 = smul.u32 16, %s450
          %s453 = ssub.s32 2048, 2048
          %454 = vsyncadd %s445, %s453
          %s455 = smul.addr %s451, 128
          %s456 = scalar_lea.hbm %s2, %s455
          %s457 = sshll.u32 %s448, 4
          %s458 = int_to_ptr.vmem [resolvable:$true] %s457
          %463 = dma.hbm_to_vmem [thread:$0]  %s456, 2048, %s458, %s445, 128, 128, 8
        $region40: #{ffc_resnet_block.18} parent=27 // pred_fallthru
          _
        // Predicated region
        $region41: #{ffc_resnet_block.18} parent=27 // pred_check
          %p464 = pneg %p154
        $region42: #{ffc_resnet_block.18} parent=27 // pred_check_branch
          %466 = sbr.rel (%p464) target = $region44
        $region43: #{ffc_resnet_block.18} parent=27 // pred_region
          %s467 = sand.u32 %s36, 1
          %s468 = scalar_lea.sflag [#allocation9], %s467
          %s469 = sand.u32 %s144, 1
          %s470 = smul.addr %s469, 128
          %s471 = scalar_lea.vmem [#allocation8], %s470
          %s472 = smul.u32 %s43, 2
          %s473 = sadd.s32 %s472, %s44
          %s474 = smul.u32 16, %s473
          %s476 = ssub.s32 2048, 2048
          %477 = vsyncadd %s468, %s476
          %s478 = smul.addr %s474, 128
          %s479 = scalar_lea.hbm %s3, %s478
          %s480 = sshll.u32 %s471, 4
          %s481 = int_to_ptr.vmem [resolvable:$true] %s480
          %486 = dma.hbm_to_vmem [thread:$0]  %s479, 2048, %s481, %s468, 128, 128, 8
        $region44: #{ffc_resnet_block.18} parent=27 // pred_fallthru
          _
      $region28: #{ffc_resnet_block.18} parent=5 // pred_fallthru
        _
      %p487 = scmp.le.s32.totalorder 1, %s36
      %p488 = scmp.lt.s32.totalorder %s36, 5
      %p489 = pnand %p487, %p488
      %p490 = pneg %p489
      // Predicated region
      $region45: #{ffc_resnet_block.18} parent=5 // pred_check
        _
      $region46: #{ffc_resnet_block.18} parent=5 // pred_check_branch
        %492 = sbr.rel (%p489) target = $region48
      $region47: #{ffc_resnet_block.18} parent=5 // pred_region
        %s493 = ssub.s32 %s36, 1
        %s494 = sand.u32 %s61, 1
        %s495 = scalar_lea.sflag [#allocation3], %s494
        %s496 = sand.u32 %s61, 1
        %s497 = smul.addr %s496, 216
        %s498 = scalar_lea.vmem [#allocation2], %s497
        // Predicated region
        $region49: #{ffc_resnet_block.18} parent=47 // pred_check
          %p499 = pneg %p74
        $region50: #{ffc_resnet_block.18} parent=47 // pred_check_branch
          %501 = sbr.rel (%p499) target = $region52
        $region51: #{ffc_resnet_block.18} parent=47 // pred_region
          %502 = dma.done %s495, 3456
        $region52: #{ffc_resnet_block.18} parent=47 // pred_fallthru
          _
        %s503 = sand.u32 %s41, 1
        %s504 = scalar_lea.sflag [#allocation6], %s503
        %s505 = sand.u32 %s87, 1
        %s506 = smul.addr %s505, 216
        %s507 = scalar_lea.vmem [#allocation5], %s506
        // Predicated region
        $region53: #{ffc_resnet_block.18} parent=47 // pred_check
          %p508 = pneg %p100
        $region54: #{ffc_resnet_block.18} parent=47 // pred_check_branch
          %510 = sbr.rel (%p508) target = $region56
        $region55: #{ffc_resnet_block.18} parent=47 // pred_region
          %511 = dma.done %s504, 3456
        $region56: #{ffc_resnet_block.18} parent=47 // pred_fallthru
          _
        %s512 = sand.u32 %s41, 1
        %s513 = scalar_lea.sflag [#allocation6], %s512
        %s514 = sand.u32 %s117, 1
        %s515 = smul.addr %s514, 128
        %s516 = scalar_lea.vmem [#allocation7], %s515
        // Predicated region
        $region57: #{ffc_resnet_block.18} parent=47 // pred_check
          %p517 = pneg %p130
        $region58: #{ffc_resnet_block.18} parent=47 // pred_check_branch
          %519 = sbr.rel (%p517) target = $region60
        $region59: #{ffc_resnet_block.18} parent=47 // pred_region
          %520 = dma.done %s513, 2048
        $region60: #{ffc_resnet_block.18} parent=47 // pred_fallthru
          _
        %s521 = sand.u32 %s41, 1
        %s522 = scalar_lea.sflag [#allocation9], %s521
        %s523 = sand.u32 %s147, 1
        %s524 = smul.addr %s523, 128
        %s525 = scalar_lea.vmem [#allocation8], %s524
        // Predicated region
        $region61: #{ffc_resnet_block.18} parent=47 // pred_check
          %p526 = pneg %p160
        $region62: #{ffc_resnet_block.18} parent=47 // pred_check_branch
          %528 = sbr.rel (%p526) target = $region64
        $region63: #{ffc_resnet_block.18} parent=47 // pred_region
          %529 = dma.done %s522, 2048
        $region64: #{ffc_resnet_block.18} parent=47 // pred_fallthru
          _
        // Predicated region
        $region65: #{ffc_resnet_block.18} parent=47 // pred_check
          %p530 = pneg %p181
        $region66: #{ffc_resnet_block.18} parent=47 // pred_check_branch
          %532 = sbr.rel (%p530) target = $region68
        $region67: #{ffc_resnet_block.18} parent=47 // pred_region
          %533 = dma.done [#allocation9], 144
        $region68: #{ffc_resnet_block.18} parent=47 // pred_fallthru
          _
        // Predicated region
        $region69: #{ffc_resnet_block.18} parent=47 // pred_check
          %p534 = pneg %p202
        $region70: #{ffc_resnet_block.18} parent=47 // pred_check_branch
          %536 = sbr.rel (%p534) target = $region72
        $region71: #{ffc_resnet_block.18} parent=47 // pred_region
          %537 = dma.done [#allocation12], 144
        $region72: #{ffc_resnet_block.18} parent=47 // pred_fallthru
          _
        // Predicated region
        $region73: #{ffc_resnet_block.18} parent=47 // pred_check
          %p538 = pneg %p223
        $region74: #{ffc_resnet_block.18} parent=47 // pred_check_branch
          %540 = sbr.rel (%p538) target = $region76
        $region75: #{ffc_resnet_block.18} parent=47 // pred_region
          %541 = dma.done [#allocation12], 16
        $region76: #{ffc_resnet_block.18} parent=47 // pred_fallthru
          _
        %s542 = sand.u32 %s61, 1
        %s543 = scalar_lea.sflag [#allocation3], %s542
        %s544 = sand.u32 %s61, 1
        %s545 = smul.addr %s544, 216
        %s546 = scalar_lea.vmem [#allocation2], %s545
        %p547 = pneg %p74
        %p548 = pneg %p71
        %s549 = sand.u32 %s41, 1
        %s550 = scalar_lea.sflag [#allocation6], %s549
        %s551 = sand.u32 %s87, 1
        %s552 = smul.addr %s551, 216
        %s553 = scalar_lea.vmem [#allocation5], %s552
        %p554 = pneg %p100
        %p555 = pneg %p97
        %s556 = sand.u32 %s41, 1
        %s557 = scalar_lea.sflag [#allocation6], %s556
        %s558 = sand.u32 %s117, 1
        %s559 = smul.addr %s558, 128
        %s560 = scalar_lea.vmem [#allocation7], %s559
        %p561 = pneg %p130
        %p562 = pneg %p127
        %s563 = sand.u32 %s41, 1
        %s564 = scalar_lea.sflag [#allocation9], %s563
        %s565 = sand.u32 %s147, 1
        %s566 = smul.addr %s565, 128
        %s567 = scalar_lea.vmem [#allocation8], %s566
        %p568 = pneg %p160
        %p569 = pneg %p157
        %p570 = pneg %p181
        %p571 = pneg %p178
        %p572 = pneg %p202
        %p573 = pneg %p199
        %p574 = pneg %p223
        %p575 = pneg %p220
        %p576 = pneg %p253
        %p577 = pneg %p250
        %s578 = sand.u32 %s240, 1
        %s579 = scalar_lea.sflag [#allocation4], %s578
        %s580 = sand.u32 %s240, 1
        %s581 = smul.addr %s580, 64
        %s582 = scalar_lea.vmem [#allocation14], %s581
        %p583 = pneg %p283
        %p584 = pneg %p280
        %s585 = sand.u32 %s41, 1
        %s586 = scalar_lea.sflag [#allocation16], %s585
        %s587 = sand.u32 %s270, 1
        %s588 = smul.addr %s587, 64
        %s589 = scalar_lea.vmem [#allocation15], %s588
        %p590 = pneg %p313
        %p591 = pneg %p310
        %s592 = sand.u32 %s41, 1
        %s593 = scalar_lea.sflag [#allocation16], %s592
        %s594 = sand.u32 %s300, 1
        %s595 = smul.addr %s594, 2
        %s596 = scalar_lea.vmem [#allocation17], %s595
        %p597 = pneg %p343
        %p598 = pneg %p340
        %s599 = sand.u32 %s330, 1
        %s600 = scalar_lea.sflag [#allocation19], %s599
        %s601 = sand.u32 %s330, 1
        %s602 = smul.addr %s601, 2
        %s603 = scalar_lea.vmem [#allocation18], %s602
        %s604 = smul.u32 %s45, 2
        %s605 = sadd.s32 %s604, %s46
        %s606 = smul.u32 16, %s605
        %s607 = smul.u32 %s45, 2
        %s608 = sadd.s32 %s607, %s46
        %s609 = smul.u32 16, %s608
        %s610 = smul.u32 %s45, 2
        %s611 = sadd.s32 %s610, %s46
        %s612 = smul.u32 16, %s611
        %s613 = smul.u32 %s45, 2
        %s614 = sadd.s32 %s613, %s46
        %s615 = smul.u32 16, %s614
        %s616 = smul.u32 %s45, 2
        %s617 = sadd.s32 %s616, %s46
        %s618 = smul.u32 %s45, 2
        %s619 = sadd.s32 %s618, %s46
        %s621 = smul.u32 %s46, 8
        %v622 = vld [vmem:[%s516] sm:$0xff]
        %v623 = vld [vmem:[%s516 + $0x8] sm:$0xff]
        %v624 = vld [vmem:[%s516 + $0x10] sm:$0xff]
        %v625 = vld [vmem:[%s516 + $0x18] sm:$0xff]
        %v626 = vld [vmem:[%s516 + $0x20] sm:$0xff]
        %v627 = vld [vmem:[%s516 + $0x28] sm:$0xff]
        %v628 = vld [vmem:[%s516 + $0x30] sm:$0xff]
        %v629 = vld [vmem:[%s516 + $0x38] sm:$0xff]
        %v630 = vld [vmem:[%s516 + $0x40] sm:$0xff]
        %v631 = vld [vmem:[%s516 + $0x48] sm:$0xff]
        %v632 = vld [vmem:[%s516 + $0x50] sm:$0xff]
        %v633 = vld [vmem:[%s516 + $0x58] sm:$0xff]
        %v634 = vld [vmem:[%s516 + $0x60] sm:$0xff]
        %v635 = vld [vmem:[%s516 + $0x68] sm:$0xff]
        %v636 = vld [vmem:[%s516 + $0x70] sm:$0xff]
        %v637 = vld [vmem:[%s516 + $0x78] sm:$0xff]
        %v638 = vld [vmem:[%s525] sm:$0xff]
        %v639 = vld [vmem:[%s525 + $0x8] sm:$0xff]
        %v640 = vld [vmem:[%s525 + $0x10] sm:$0xff]
        %v641 = vld [vmem:[%s525 + $0x18] sm:$0xff]
        %v642 = vld [vmem:[%s525 + $0x20] sm:$0xff]
        %v643 = vld [vmem:[%s525 + $0x28] sm:$0xff]
        %v644 = vld [vmem:[%s525 + $0x30] sm:$0xff]
        %v645 = vld [vmem:[%s525 + $0x38] sm:$0xff]
        %v646 = vld [vmem:[%s525 + $0x40] sm:$0xff]
        %v647 = vld [vmem:[%s525 + $0x48] sm:$0xff]
        %v648 = vld [vmem:[%s525 + $0x50] sm:$0xff]
        %v649 = vld [vmem:[%s525 + $0x58] sm:$0xff]
        %v650 = vld [vmem:[%s525 + $0x60] sm:$0xff]
        %v651 = vld [vmem:[%s525 + $0x68] sm:$0xff]
        %v652 = vld [vmem:[%s525 + $0x70] sm:$0xff]
        %v653 = vld [vmem:[%s525 + $0x78] sm:$0xff]
        %v654 = vadd.f32 %v622, %v638
        %v655 = vadd.f32 %v623, %v639
        %v656 = vadd.f32 %v624, %v640
        %v657 = vadd.f32 %v625, %v641
        %v658 = vadd.f32 %v626, %v642
        %v659 = vadd.f32 %v627, %v643
        %v660 = vadd.f32 %v628, %v644
        %v661 = vadd.f32 %v629, %v645
        %v662 = vadd.f32 %v630, %v646
        %v663 = vadd.f32 %v631, %v647
        %v664 = vadd.f32 %v632, %v648
        %v665 = vadd.f32 %v633, %v649
        %v666 = vadd.f32 %v634, %v650
        %v667 = vadd.f32 %v635, %v651
        %v668 = vadd.f32 %v636, %v652
        %v669 = vadd.f32 %v637, %v653
        %v670 = vpack.c.bf16 %v655, %v654
        %v671 = vpack.c.bf16 %v657, %v656
        %v672 = vpack.c.bf16 %v659, %v658
        %v673 = vpack.c.bf16 %v661, %v660
        %v674 = vpack.c.bf16 %v663, %v662
        %v675 = vpack.c.bf16 %v665, %v664
        %v676 = vpack.c.bf16 %v667, %v666
        %v677 = vpack.c.bf16 %v669, %v668
        %v678 = vld [vmem:[#allocation13] sm:$0x1]
        %s679 = smul.u32 %s621, 3
        %s680 = smul.addr %s679, 4
        %s681 = scalar_lea.vmem %s498, %s680 [#allocation2]
        %v682 = vld [vmem:[%s681] sm:$0xf]
        %v683 = vld [vmem:[%s681 + $0x4] sm:$0xf]
        %v684 = vld [vmem:[%s681 + $0x8] sm:$0x1]
        %v685 = vld [vmem:[%s681 + $0xc] sm:$0xf]
        %v686 = vld [vmem:[%s681 + $0x10] sm:$0xf]
        %v687 = vld [vmem:[%s681 + $0x14] sm:$0x1]
        %v688 = vld [vmem:[%s681 + $0x18] sm:$0xf]
        %v689 = vld [vmem:[%s681 + $0x1c] sm:$0xf]
        %v690 = vld [vmem:[%s681 + $0x20] sm:$0x1]
        %v691 = vld [vmem:[%s681 + $0x24] sm:$0xf]
        %v692 = vld [vmem:[%s681 + $0x28] sm:$0xf]
        %v693 = vld [vmem:[%s681 + $0x2c] sm:$0x1]
        %v694 = vld [vmem:[%s681 + $0x30] sm:$0xf]
        %v695 = vld [vmem:[%s681 + $0x34] sm:$0xf]
        %v696 = vld [vmem:[%s681 + $0x38] sm:$0x1]
        %v697 = vld [vmem:[%s681 + $0x3c] sm:$0xf]
        %v698 = vld [vmem:[%s681 + $0x40] sm:$0xf]
        %v699 = vld [vmem:[%s681 + $0x44] sm:$0x1]
        %v700 = vld [vmem:[%s681 + $0x48] sm:$0xf]
        %v701 = vld [vmem:[%s681 + $0x4c] sm:$0xf]
        %v702 = vld [vmem:[%s681 + $0x50] sm:$0x1]
        %v703 = vld [vmem:[%s681 + $0x54] sm:$0xf]
        %v704 = vld [vmem:[%s681 + $0x58] sm:$0xf]
        %v705 = vld [vmem:[%s681 + $0x5c] sm:$0x1]
        %v706 = vld [vmem:[%s681 + $0x60] sm:$0xf]
        %v707 = vld [vmem:[%s681 + $0x64] sm:$0xf]
        %v708 = vld [vmem:[%s681 + $0x68] sm:$0x1]
        %v709 = vld [vmem:[%s681 + $0x6c] sm:$0xf]
        %v710 = vld [vmem:[%s681 + $0x70] sm:$0xf]
        %v711 = vld [vmem:[%s681 + $0x74] sm:$0x1]
        %v712 = vunpack.c.l.bf16 %v682
        %v713 = vunpack.c.l.bf16 %v683
        %v714 = vunpack.c.l.bf16 %v684
        %v715 = vunpack.c.l.bf16 %v685
        %v716 = vunpack.c.l.bf16 %v686
        %v717 = vunpack.c.l.bf16 %v687
        %v718 = vunpack.c.l.bf16 %v688
        %v719 = vunpack.c.l.bf16 %v689
        %v720 = vunpack.c.l.bf16 %v690
        %v721 = vunpack.c.l.bf16 %v691
        %v722 = vunpack.c.l.bf16 %v692
        %v723 = vunpack.c.l.bf16 %v693
        %v724 = vunpack.c.l.bf16 %v694
        %v725 = vunpack.c.l.bf16 %v695
        %v726 = vunpack.c.l.bf16 %v696
        %v727 = vunpack.c.l.bf16 %v697
        %v728 = vunpack.c.l.bf16 %v698
        %v729 = vunpack.c.l.bf16 %v699
        %v730 = vunpack.c.l.bf16 %v700
        %v731 = vunpack.c.l.bf16 %v701
        %v732 = vunpack.c.l.bf16 %v702
        %v733 = vunpack.c.l.bf16 %v703
        %v734 = vunpack.c.l.bf16 %v704
        %v735 = vunpack.c.l.bf16 %v705
        %v736 = vunpack.c.l.bf16 %v706
        %v737 = vunpack.c.l.bf16 %v707
        %v738 = vunpack.c.l.bf16 %v708
        %v739 = vunpack.c.l.bf16 %v709
        %v740 = vunpack.c.l.bf16 %v710
        %v741 = vunpack.c.l.bf16 %v711
        %s742 = smul.addr %s679, 4
        %s743 = scalar_lea.vmem %s507, %s742 [#allocation5]
        %v744 = vld [vmem:[%s743] sm:$0xf]
        %v745 = vld [vmem:[%s743 + $0x4] sm:$0xf]
        %v746 = vld [vmem:[%s743 + $0x8] sm:$0x1]
        %v747 = vld [vmem:[%s743 + $0xc] sm:$0xf]
        %v748 = vld [vmem:[%s743 + $0x10] sm:$0xf]
        %v749 = vld [vmem:[%s743 + $0x14] sm:$0x1]
        %v750 = vld [vmem:[%s743 + $0x18] sm:$0xf]
        %v751 = vld [vmem:[%s743 + $0x1c] sm:$0xf]
        %v752 = vld [vmem:[%s743 + $0x20] sm:$0x1]
        %v753 = vld [vmem:[%s743 + $0x24] sm:$0xf]
        %v754 = vld [vmem:[%s743 + $0x28] sm:$0xf]
        %v755 = vld [vmem:[%s743 + $0x2c] sm:$0x1]
        %v756 = vld [vmem:[%s743 + $0x30] sm:$0xf]
        %v757 = vld [vmem:[%s743 + $0x34] sm:$0xf]
        %v758 = vld [vmem:[%s743 + $0x38] sm:$0x1]
        %v759 = vld [vmem:[%s743 + $0x3c] sm:$0xf]
        %v760 = vld [vmem:[%s743 + $0x40] sm:$0xf]
        %v761 = vld [vmem:[%s743 + $0x44] sm:$0x1]
        %v762 = vld [vmem:[%s743 + $0x48] sm:$0xf]
        %v763 = vld [vmem:[%s743 + $0x4c] sm:$0xf]
        %v764 = vld [vmem:[%s743 + $0x50] sm:$0x1]
        %v765 = vld [vmem:[%s743 + $0x54] sm:$0xf]
        %v766 = vld [vmem:[%s743 + $0x58] sm:$0xf]
        %v767 = vld [vmem:[%s743 + $0x5c] sm:$0x1]
        %v768 = vld [vmem:[%s743 + $0x60] sm:$0xf]
        %v769 = vld [vmem:[%s743 + $0x64] sm:$0xf]
        %v770 = vld [vmem:[%s743 + $0x68] sm:$0x1]
        %v771 = vld [vmem:[%s743 + $0x6c] sm:$0xf]
        %v772 = vld [vmem:[%s743 + $0x70] sm:$0xf]
        %v773 = vld [vmem:[%s743 + $0x74] sm:$0x1]
        %v774 = vunpack.c.l.bf16 %v744
        %v775 = vunpack.c.l.bf16 %v745
        %v776 = vunpack.c.l.bf16 %v746
        %v777 = vunpack.c.l.bf16 %v747
        %v778 = vunpack.c.l.bf16 %v748
        %v779 = vunpack.c.l.bf16 %v749
        %v780 = vunpack.c.l.bf16 %v750
        %v781 = vunpack.c.l.bf16 %v751
        %v782 = vunpack.c.l.bf16 %v752
        %v783 = vunpack.c.l.bf16 %v753
        %v784 = vunpack.c.l.bf16 %v754
        %v785 = vunpack.c.l.bf16 %v755
        %v786 = vunpack.c.l.bf16 %v756
        %v787 = vunpack.c.l.bf16 %v757
        %v788 = vunpack.c.l.bf16 %v758
        %v789 = vunpack.c.l.bf16 %v759
        %v790 = vunpack.c.l.bf16 %v760
        %v791 = vunpack.c.l.bf16 %v761
        %v792 = vunpack.c.l.bf16 %v762
        %v793 = vunpack.c.l.bf16 %v763
        %v794 = vunpack.c.l.bf16 %v764
        %v795 = vunpack.c.l.bf16 %v765
        %v796 = vunpack.c.l.bf16 %v766
        %v797 = vunpack.c.l.bf16 %v767
        %v798 = vunpack.c.l.bf16 %v768
        %v799 = vunpack.c.l.bf16 %v769
        %v800 = vunpack.c.l.bf16 %v770
        %v801 = vunpack.c.l.bf16 %v771
        %v802 = vunpack.c.l.bf16 %v772
        %v803 = vunpack.c.l.bf16 %v773
        %v804 = vadd.f32 %v712, %v774
        %v805 = vadd.f32 %v713, %v775
        %v806 = vadd.f32 %v714, %v776
        %v807 = vadd.f32 %v715, %v777
        %v808 = vadd.f32 %v716, %v778
        %v809 = vadd.f32 %v717, %v779
        %v810 = vadd.f32 %v718, %v780
        %v811 = vadd.f32 %v719, %v781
        %v812 = vadd.f32 %v720, %v782
        %v813 = vadd.f32 %v721, %v783
        %v814 = vadd.f32 %v722, %v784
        %v815 = vadd.f32 %v723, %v785
        %v816 = vadd.f32 %v724, %v786
        %v817 = vadd.f32 %v725, %v787
        %v818 = vadd.f32 %v726, %v788
        %v819 = vadd.f32 %v727, %v789
        %v820 = vadd.f32 %v728, %v790
        %v821 = vadd.f32 %v729, %v791
        %v822 = vadd.f32 %v730, %v792
        %v823 = vadd.f32 %v731, %v793
        %v824 = vadd.f32 %v732, %v794
        %v825 = vadd.f32 %v733, %v795
        %v826 = vadd.f32 %v734, %v796
        %v827 = vadd.f32 %v735, %v797
        %v828 = vadd.f32 %v736, %v798
        %v829 = vadd.f32 %v737, %v799
        %v830 = vadd.f32 %v738, %v800
        %v831 = vadd.f32 %v739, %v801
        %v832 = vadd.f32 %v740, %v802
        %v833 = vadd.f32 %v741, %v803
        %v834 = vpack.c.bf16 %v805, %v804
        %v835 = vpack.c.bf16 %v808, %v807
        %v836 = vpack.c.bf16 %v811, %v810
        %v837 = vpack.c.bf16 %v814, %v813
        %v838 = vpack.c.bf16 %v817, %v816
        %v839 = vpack.c.bf16 %v820, %v819
        %v840 = vpack.c.bf16 %v823, %v822
        %v841 = vpack.c.bf16 %v826, %v825
        %v842 = vpack.c.bf16 %v829, %v828
        %v843 = vpack.c.bf16 %v832, %v831
        %v844 = vpack.c.bf16 %v713, %v712
        %v845 = vpack.c.bf16 %v716, %v715
        %v846 = vpack.c.bf16 %v719, %v718
        %v847 = vpack.c.bf16 %v722, %v721
        %v848 = vpack.c.bf16 %v725, %v724
        %v849 = vpack.c.bf16 %v728, %v727
        %v850 = vpack.c.bf16 %v731, %v730
        %v851 = vpack.c.bf16 %v734, %v733
        %v852 = vpack.c.bf16 %v737, %v736
        %v853 = vpack.c.bf16 %v740, %v739
        %v854 = vld [vmem:[#allocation10] sm:$0x1]
        %v855 = vld [vmem:[#allocation11] sm:$0x1]
        %vm856 = vcmask 15360
        %v858 = vsel %vm856, %v844, 0
        %v861 = vsel %vm856, %v845, 0
        %v864 = vsel %vm856, %v846, 0
        %v867 = vsel %vm856, %v847, 0
        %v870 = vsel %vm856, %v848, 0
        %v873 = vsel %vm856, %v849, 0
        %v876 = vsel %vm856, %v850, 0
        %v879 = vsel %vm856, %v851, 0
        %vm881 = vcmask 1040384
        %v883 = vsel %vm881, %v855, 0
        %885 = vmatprep.subr.bf16.mxu0 0
        %886 = vmatpush1.bf16.msra.mxu0 %v883
        %887 = vmatprep.subr.bf16.mxu0 0
        %888 = vmatpush1.bf16.msra.mxu0 0
        %889 = vmatprep.subr.bf16.mxu0 0
        %890 = vmatpush1.bf16.msra.mxu0 0
        %891 = vmatprep.subr.bf16.mxu0 0
        %892 = vmatpush1.bf16.msra.mxu0 0
        %893 = vmatprep.subr.bf16.mxu0 0
        %894 = vmatpush1.bf16.msra.mxu0 0
        %895 = vmatprep.subr.bf16.mxu0 0
        %896 = vmatpush1.bf16.msra.mxu0 0
        %897 = vmatprep.subr.bf16.mxu0 0
        %898 = vmatpush1.bf16.msra.mxu0 0
        %899 = vmatprep.subr.bf16.mxu0 0
        %900 = vmatpush1.bf16.msra.mxu0 0
        %901 = vmatprep.subr.bf16.mxu0 0
        %902 = vmatpush1.bf16.msra.mxu0 0
        %903 = vmatprep.subr.bf16.mxu0 0
        %904 = vmatpush1.bf16.msra.mxu0 0
        %905 = vmatprep.subr.bf16.mxu0 0
        %906 = vmatpush1.bf16.msra.mxu0 0
        %907 = vmatprep.subr.bf16.mxu0 0
        %908 = vmatpush1.bf16.msra.mxu0 0
        %909 = vmatprep.subr.bf16.mxu0 0
        %910 = vmatpush1.bf16.msra.mxu0 0
        %911 = vmatprep.subr.bf16.mxu0 0
        %912 = vmatpush1.bf16.msra.mxu0 0
        %913 = vmatprep.subr.bf16.mxu0 0
        %914 = vmatpush1.bf16.msra.mxu0 0
        %915 = vmatprep.subr.bf16.mxu0 0
        %916 = vmatpush1.bf16.msra.mxu0 0
        %917 = vmatprep.mubr.bf16.mxu0 0
        %918 = vmatmul.mubr.bf16.gmra.mrb[0].mxu0 %v858
        %v919 = vpop.f32.mrb[0].mxu0
        %v920 = vadd.f32 0.0, %v919
        %v921 = vpop.f32.mrb[0].mxu0
        %v922 = vpop.f32.mrb[0].mxu0
        %v923 = vadd.f32 0.0, %v922
        %v924 = vpop.f32.mrb[0].mxu0
        %925 = vmatprep.mubr.bf16.mxu0 0
        %926 = vmatmul.mubr.bf16.gmra.mrb[0].mxu0 %v861
        %v927 = vpop.f32.mrb[0].mxu0
        %v928 = vadd.f32 0.0, %v927
        %v929 = vpop.f32.mrb[0].mxu0
        %v930 = vpop.f32.mrb[0].mxu0
        %v931 = vadd.f32 0.0, %v930
        %v932 = vpop.f32.mrb[0].mxu0
        %933 = vmatprep.mubr.bf16.mxu0 0
        %934 = vmatmul.mubr.bf16.gmra.mrb[0].mxu0 %v864
        %v935 = vpop.f32.mrb[0].mxu0
        %v936 = vadd.f32 0.0, %v935
        %v937 = vpop.f32.mrb[0].mxu0
        %v938 = vpop.f32.mrb[0].mxu0
        %v939 = vadd.f32 0.0, %v938
        %v940 = vpop.f32.mrb[0].mxu0
        %941 = vmatprep.mubr.bf16.mxu0 0
        %942 = vmatmul.mubr.bf16.gmra.mrb[0].mxu0 %v867
        %v943 = vpop.f32.mrb[0].mxu0
        %v944 = vadd.f32 0.0, %v943
        %v945 = vpop.f32.mrb[0].mxu0
        %v946 = vpop.f32.mrb[0].mxu0
        %v947 = vadd.f32 0.0, %v946
        %v948 = vpop.f32.mrb[0].mxu0
        %949 = vmatprep.mubr.bf16.mxu0 0
        %950 = vmatmul.mubr.bf16.gmra.mrb[0].mxu0 %v870
        %v951 = vpop.f32.mrb[0].mxu0
        %v952 = vadd.f32 0.0, %v951
        %v953 = vpop.f32.mrb[0].mxu0
        %v954 = vpop.f32.mrb[0].mxu0
        %v955 = vadd.f32 0.0, %v954
        %v956 = vpop.f32.mrb[0].mxu0
        %957 = vmatprep.mubr.bf16.mxu0 0
        %958 = vmatmul.mubr.bf16.gmra.mrb[0].mxu0 %v873
        %v959 = vpop.f32.mrb[0].mxu0
        %v960 = vadd.f32 0.0, %v959
        %v961 = vpop.f32.mrb[0].mxu0
        %v962 = vpop.f32.mrb[0].mxu0
        %v963 = vadd.f32 0.0, %v962
        %v964 = vpop.f32.mrb[0].mxu0
        %965 = vmatprep.mubr.bf16.mxu0 0
        %966 = vmatmul.mubr.bf16.gmra.mrb[0].mxu0 %v876
        %v967 = vpop.f32.mrb[0].mxu0
        %v968 = vadd.f32 0.0, %v967
        %v969 = vpop.f32.mrb[0].mxu0
        %v970 = vpop.f32.mrb[0].mxu0
        %v971 = vadd.f32 0.0, %v970
        %v972 = vpop.f32.mrb[0].mxu0
        %973 = vmatprep.mubr.bf16.mxu0 0
        %974 = vmatmul.mubr.bf16.gmra.mrb[0].mxu0 %v879
        %v975 = vpop.f32.mrb[0].mxu0
        %v976 = vadd.f32 0.0, %v975
        %v977 = vpop.f32.mrb[0].mxu0
        %v978 = vpop.f32.mrb[0].mxu0
        %v979 = vadd.f32 0.0, %v978
        %v980 = vpop.f32.mrb[0].mxu0
        %981 = vdwg.mxu0
        %vm982 = vcmask 7168
        %v984 = vsel %vm982, %v670, 0
        %v987 = vsel %vm982, %v671, 0
        %v990 = vsel %vm982, %v672, 0
        %v993 = vsel %vm982, %v673, 0
        %v996 = vsel %vm982, %v674, 0
        %v999 = vsel %vm982, %v675, 0
        %v1002 = vsel %vm982, %v676, 0
        %v1005 = vsel %vm982, %v677, 0
        %v1007 = vsel 0, 4294967295, 65535
        %v1008 = vsel %vm881, %v1007, 0
        %v1010 = vand.u32 %v678, %v1008
        %1012 = vmatprep.subr.bf16.mxu0 0
        %1013 = vmatpush1.bf16.msra.mxu0 %v1010
        %1014 = vmatprep.subr.bf16.mxu0 0
        %1015 = vmatpush1.bf16.msra.mxu0 0
        %1016 = vmatprep.subr.bf16.mxu0 0
        %1017 = vmatpush1.bf16.msra.mxu0 0
        %1018 = vmatprep.subr.bf16.mxu0 0
        %1019 = vmatpush1.bf16.msra.mxu0 0
        %1020 = vmatprep.subr.bf16.mxu0 0
        %1021 = vmatpush1.bf16.msra.mxu0 0
        %1022 = vmatprep.subr.bf16.mxu0 0
        %1023 = vmatpush1.bf16.msra.mxu0 0
        %1024 = vmatprep.subr.bf16.mxu0 0
        %1025 = vmatpush1.bf16.msra.mxu0 0
        %1026 = vmatprep.subr.bf16.mxu0 0
        %1027 = vmatpush1.bf16.msra.mxu0 0
        %1028 = vmatprep.subr.bf16.mxu0 0
        %1029 = vmatpush1.bf16.msra.mxu0 0
        %1030 = vmatprep.subr.bf16.mxu0 0
        %1031 = vmatpush1.bf16.msra.mxu0 0
        %1032 = vmatprep.subr.bf16.mxu0 0
        %1033 = vmatpush1.bf16.msra.mxu0 0
        %1034 = vmatprep.subr.bf16.mxu0 0
        %1035 = vmatpush1.bf16.msra.mxu0 0
        %1036 = vmatprep.subr.bf16.mxu0 0
        %1037 = vmatpush1.bf16.msra.mxu0 0
        %1038 = vmatprep.subr.bf16.mxu0 0
        %1039 = vmatpush1.bf16.msra.mxu0 0
        %1040 = vmatprep.subr.bf16.mxu0 0
        %1041 = vmatpush1.bf16.msra.mxu0 0
        %1042 = vmatprep.subr.bf16.mxu0 0
        %1043 = vmatpush1.bf16.msra.mxu0 0
        %1044 = vmatprep.mubr.bf16.mxu0 0
        %1045 = vmatmul.mubr.bf16.gmra.mrb[0].mxu0 %v984
        %v1046 = vpop.f32.mrb[0].mxu0
        %v1047 = vadd.f32 %v920, %v1046
        %v1048 = vpop.f32.mrb[0].mxu0
        %v1049 = vpop.f32.mrb[0].mxu0
        %v1050 = vadd.f32 %v923, %v1049
        %v1051 = vpop.f32.mrb[0].mxu0
        %1052 = vmatprep.mubr.bf16.mxu0 0
        %1053 = vmatmul.mubr.bf16.gmra.mrb[0].mxu0 %v987
        %v1054 = vpop.f32.mrb[0].mxu0
        %v1055 = vadd.f32 %v928, %v1054
        %v1056 = vpop.f32.mrb[0].mxu0
        %v1057 = vpop.f32.mrb[0].mxu0
        %v1058 = vadd.f32 %v931, %v1057
        %v1059 = vpop.f32.mrb[0].mxu0
        %1060 = vmatprep.mubr.bf16.mxu0 0
        %1061 = vmatmul.mubr.bf16.gmra.mrb[0].mxu0 %v990
        %v1062 = vpop.f32.mrb[0].mxu0
        %v1063 = vadd.f32 %v936, %v1062
        %v1064 = vpop.f32.mrb[0].mxu0
        %v1065 = vpop.f32.mrb[0].mxu0
        %v1066 = vadd.f32 %v939, %v1065
        %v1067 = vpop.f32.mrb[0].mxu0
        %1068 = vmatprep.mubr.bf16.mxu0 0
        %1069 = vmatmul.mubr.bf16.gmra.mrb[0].mxu0 %v993
        %v1070 = vpop.f32.mrb[0].mxu0
        %v1071 = vadd.f32 %v944, %v1070
        %v1072 = vpop.f32.mrb[0].mxu0
        %v1073 = vpop.f32.mrb[0].mxu0
        %v1074 = vadd.f32 %v947, %v1073
        %v1075 = vpop.f32.mrb[0].mxu0
        %1076 = vmatprep.mubr.bf16.mxu0 0
        %1077 = vmatmul.mubr.bf16.gmra.mrb[0].mxu0 %v996
        %v1078 = vpop.f32.mrb[0].mxu0
        %v1079 = vadd.f32 %v952, %v1078
        %v1080 = vpop.f32.mrb[0].mxu0
        %v1081 = vpop.f32.mrb[0].mxu0
        %v1082 = vadd.f32 %v955, %v1081
        %v1083 = vpop.f32.mrb[0].mxu0
        %1084 = vmatprep.mubr.bf16.mxu0 0
        %1085 = vmatmul.mubr.bf16.gmra.mrb[0].mxu0 %v999
        %v1086 = vpop.f32.mrb[0].mxu0
        %v1087 = vadd.f32 %v960, %v1086
        %v1088 = vpop.f32.mrb[0].mxu0
        %v1089 = vpop.f32.mrb[0].mxu0
        %v1090 = vadd.f32 %v963, %v1089
        %v1091 = vpop.f32.mrb[0].mxu0
        %1092 = vmatprep.mubr.bf16.mxu0 0
        %1093 = vmatmul.mubr.bf16.gmra.mrb[0].mxu0 %v1002
        %v1094 = vpop.f32.mrb[0].mxu0
        %v1095 = vadd.f32 %v968, %v1094
        %v1096 = vpop.f32.mrb[0].mxu0
        %v1097 = vpop.f32.mrb[0].mxu0
        %v1098 = vadd.f32 %v971, %v1097
        %v1099 = vpop.f32.mrb[0].mxu0
        %1100 = vmatprep.mubr.bf16.mxu0 0
        %1101 = vmatmul.mubr.bf16.gmra.mrb[0].mxu0 %v1005
        %v1102 = vpop.f32.mrb[0].mxu0
        %v1103 = vadd.f32 %v976, %v1102
        %v1104 = vpop.f32.mrb[0].mxu0
        %v1105 = vpop.f32.mrb[0].mxu0
        %v1106 = vadd.f32 %v979, %v1105
        %v1107 = vpop.f32.mrb[0].mxu0
        %1108 = vdwg.mxu0
        %s1109 = scalar_lea.vmem [#allocation10], 3
        %v1110 = vld [vmem:[%s1109] sm:$0x1]
        %v1112 = vsel %vm856, %v835, 0
        %v1115 = vsel %vm856, %v836, 0
        %v1118 = vsel %vm856, %v837, 0
        %v1121 = vsel %vm856, %v838, 0
        %v1124 = vsel %vm856, %v839, 0
        %v1127 = vsel %vm856, %v840, 0
        %v1130 = vsel %vm856, %v841, 0
        %v1133 = vsel %vm856, %v842, 0
        %v1136 = vsel %vm881, %v1110, 0
        %1138 = vmatprep.subr.bf16.mxu0 0
        %1139 = vmatpush1.bf16.msra.mxu0 %v1136
        %1140 = vmatprep.subr.bf16.mxu0 0
        %1141 = vmatpush1.bf16.msra.mxu0 0
        %1142 = vmatprep.subr.bf16.mxu0 0
        %1143 = vmatpush1.bf16.msra.mxu0 0
        %1144 = vmatprep.subr.bf16.mxu0 0
        %1145 = vmatpush1.bf16.msra.mxu0 0
        %1146 = vmatprep.subr.bf16.mxu0 0
        %1147 = vmatpush1.bf16.msra.mxu0 0
        %1148 = vmatprep.subr.bf16.mxu0 0
        %1149 = vmatpush1.bf16.msra.mxu0 0
        %1150 = vmatprep.subr.bf16.mxu0 0
        %1151 = vmatpush1.bf16.msra.mxu0 0
        %1152 = vmatprep.subr.bf16.mxu0 0
        %1153 = vmatpush1.bf16.msra.mxu0 0
        %1154 = vmatprep.subr.bf16.mxu0 0
        %1155 = vmatpush1.bf16.msra.mxu0 0
        %1156 = vmatprep.subr.bf16.mxu0 0
        %1157 = vmatpush1.bf16.msra.mxu0 0
        %1158 = vmatprep.subr.bf16.mxu0 0
        %1159 = vmatpush1.bf16.msra.mxu0 0
        %1160 = vmatprep.subr.bf16.mxu0 0
        %1161 = vmatpush1.bf16.msra.mxu0 0
        %1162 = vmatprep.subr.bf16.mxu0 0
        %1163 = vmatpush1.bf16.msra.mxu0 0
        %1164 = vmatprep.subr.bf16.mxu0 0
        %1165 = vmatpush1.bf16.msra.mxu0 0
        %1166 = vmatprep.subr.bf16.mxu0 0
        %1167 = vmatpush1.bf16.msra.mxu0 0
        %1168 = vmatprep.subr.bf16.mxu0 0
        %1169 = vmatpush1.bf16.msra.mxu0 0
        %1170 = vmatprep.mubr.bf16.mxu0 0
        %1171 = vmatmul.mubr.bf16.gmra.mrb[0].mxu0 %v1112
        %v1172 = vpop.f32.mrb[0].mxu0
        %v1173 = vadd.f32 0.0, %v1172
        %v1174 = vpop.f32.mrb[0].mxu0
        %v1175 = vpop.f32.mrb[0].mxu0
        %v1176 = vadd.f32 0.0, %v1175
        %v1177 = vpop.f32.mrb[0].mxu0
        %1178 = vmatprep.mubr.bf16.mxu0 0
        %1179 = vmatmul.mubr.bf16.gmra.mrb[0].mxu0 %v1115
        %v1180 = vpop.f32.mrb[0].mxu0
        %v1181 = vadd.f32 0.0, %v1180
        %v1182 = vpop.f32.mrb[0].mxu0
        %v1183 = vpop.f32.mrb[0].mxu0
        %v1184 = vadd.f32 0.0, %v1183
        %v1185 = vpop.f32.mrb[0].mxu0
        %1186 = vmatprep.mubr.bf16.mxu0 0
        %1187 = vmatmul.mubr.bf16.gmra.mrb[0].mxu0 %v1118
        %v1188 = vpop.f32.mrb[0].mxu0
        %v1189 = vadd.f32 0.0, %v1188
        %v1190 = vpop.f32.mrb[0].mxu0
        %v1191 = vpop.f32.mrb[0].mxu0
        %v1192 = vadd.f32 0.0, %v1191
        %v1193 = vpop.f32.mrb[0].mxu0
        %1194 = vmatprep.mubr.bf16.mxu0 0
        %1195 = vmatmul.mubr.bf16.gmra.mrb[0].mxu0 %v1121
        %v1196 = vpop.f32.mrb[0].mxu0
        %v1197 = vadd.f32 0.0, %v1196
        %v1198 = vpop.f32.mrb[0].mxu0
        %v1199 = vpop.f32.mrb[0].mxu0
        %v1200 = vadd.f32 0.0, %v1199
        %v1201 = vpop.f32.mrb[0].mxu0
        %1202 = vmatprep.mubr.bf16.mxu0 0
        %1203 = vmatmul.mubr.bf16.gmra.mrb[0].mxu0 %v1124
        %v1204 = vpop.f32.mrb[0].mxu0
        %v1205 = vadd.f32 0.0, %v1204
        %v1206 = vpop.f32.mrb[0].mxu0
        %v1207 = vpop.f32.mrb[0].mxu0
        %v1208 = vadd.f32 0.0, %v1207
        %v1209 = vpop.f32.mrb[0].mxu0
        %1210 = vmatprep.mubr.bf16.mxu0 0
        %1211 = vmatmul.mubr.bf16.gmra.mrb[0].mxu0 %v1127
        %v1212 = vpop.f32.mrb[0].mxu0
        %v1213 = vadd.f32 0.0, %v1212
        %v1214 = vpop.f32.mrb[0].mxu0
        %v1215 = vpop.f32.mrb[0].mxu0
        %v1216 = vadd.f32 0.0, %v1215
        %v1217 = vpop.f32.mrb[0].mxu0
        %1218 = vmatprep.mubr.bf16.mxu0 0
        %1219 = vmatmul.mubr.bf16.gmra.mrb[0].mxu0 %v1130
        %v1220 = vpop.f32.mrb[0].mxu0
        %v1221 = vadd.f32 0.0, %v1220
        %v1222 = vpop.f32.mrb[0].mxu0
        %v1223 = vpop.f32.mrb[0].mxu0
        %v1224 = vadd.f32 0.0, %v1223
        %v1225 = vpop.f32.mrb[0].mxu0
        %1226 = vmatprep.mubr.bf16.mxu0 0
        %1227 = vmatmul.mubr.bf16.gmra.mrb[0].mxu0 %v1133
        %v1228 = vpop.f32.mrb[0].mxu0
        %v1229 = vadd.f32 0.0, %v1228
        %v1230 = vpop.f32.mrb[0].mxu0
        %v1231 = vpop.f32.mrb[0].mxu0
        %v1232 = vadd.f32 0.0, %v1231
        %v1233 = vpop.f32.mrb[0].mxu0
        %1234 = vdwg.mxu0
        %v1236 = vsel %vm856, %v834, 0
        %v1239 = vsel %vm881, %v854, 0
        %1241 = vmatprep.subr.bf16.mxu0 0
        %1242 = vmatpush1.bf16.msra.mxu0 %v1239
        %1243 = vmatprep.subr.bf16.mxu0 0
        %1244 = vmatpush1.bf16.msra.mxu0 0
        %1245 = vmatprep.subr.bf16.mxu0 0
        %1246 = vmatpush1.bf16.msra.mxu0 0
        %1247 = vmatprep.subr.bf16.mxu0 0
        %1248 = vmatpush1.bf16.msra.mxu0 0
        %1249 = vmatprep.subr.bf16.mxu0 0
        %1250 = vmatpush1.bf16.msra.mxu0 0
        %1251 = vmatprep.subr.bf16.mxu0 0
        %1252 = vmatpush1.bf16.msra.mxu0 0
        %1253 = vmatprep.subr.bf16.mxu0 0
        %1254 = vmatpush1.bf16.msra.mxu0 0
        %1255 = vmatprep.subr.bf16.mxu0 0
        %1256 = vmatpush1.bf16.msra.mxu0 0
        %1257 = vmatprep.subr.bf16.mxu0 0
        %1258 = vmatpush1.bf16.msra.mxu0 0
        %1259 = vmatprep.subr.bf16.mxu0 0
        %1260 = vmatpush1.bf16.msra.mxu0 0
        %1261 = vmatprep.subr.bf16.mxu0 0
        %1262 = vmatpush1.bf16.msra.mxu0 0
        %1263 = vmatprep.subr.bf16.mxu0 0
        %1264 = vmatpush1.bf16.msra.mxu0 0
        %1265 = vmatprep.subr.bf16.mxu0 0
        %1266 = vmatpush1.bf16.msra.mxu0 0
        %1267 = vmatprep.subr.bf16.mxu0 0
        %1268 = vmatpush1.bf16.msra.mxu0 0
        %1269 = vmatprep.subr.bf16.mxu0 0
        %1270 = vmatpush1.bf16.msra.mxu0 0
        %1271 = vmatprep.subr.bf16.mxu0 0
        %1272 = vmatpush1.bf16.msra.mxu0 0
        %1273 = vmatprep.mubr.bf16.mxu0 0
        %1274 = vmatmul.mubr.bf16.gmra.mrb[0].mxu0 %v1236
        %v1275 = vpop.f32.mrb[0].mxu0
        %v1276 = vadd.f32 %v1173, %v1275
        %v1277 = vpop.f32.mrb[0].mxu0
        %v1278 = vpop.f32.mrb[0].mxu0
        %v1279 = vadd.f32 %v1176, %v1278
        %v1280 = vpop.f32.mrb[0].mxu0
        %1281 = vmatprep.mubr.bf16.mxu0 0
        %1282 = vmatmul.mubr.bf16.gmra.mrb[0].mxu0 %v1112
        %v1283 = vpop.f32.mrb[0].mxu0
        %v1284 = vadd.f32 %v1181, %v1283
        %v1285 = vpop.f32.mrb[0].mxu0
        %v1286 = vpop.f32.mrb[0].mxu0
        %v1287 = vadd.f32 %v1184, %v1286
        %v1288 = vpop.f32.mrb[0].mxu0
        %1289 = vmatprep.mubr.bf16.mxu0 0
        %1290 = vmatmul.mubr.bf16.gmra.mrb[0].mxu0 %v1115
        %v1291 = vpop.f32.mrb[0].mxu0
        %v1292 = vadd.f32 %v1189, %v1291
        %v1293 = vpop.f32.mrb[0].mxu0
        %v1294 = vpop.f32.mrb[0].mxu0
        %v1295 = vadd.f32 %v1192, %v1294
        %v1296 = vpop.f32.mrb[0].mxu0
        %1297 = vmatprep.mubr.bf16.mxu0 0
        %1298 = vmatmul.mubr.bf16.gmra.mrb[0].mxu0 %v1118
        %v1299 = vpop.f32.mrb[0].mxu0
        %v1300 = vadd.f32 %v1197, %v1299
        %v1301 = vpop.f32.mrb[0].mxu0
        %v1302 = vpop.f32.mrb[0].mxu0
        %v1303 = vadd.f32 %v1200, %v1302
        %v1304 = vpop.f32.mrb[0].mxu0
        %1305 = vmatprep.mubr.bf16.mxu0 0
        %1306 = vmatmul.mubr.bf16.gmra.mrb[0].mxu0 %v1121
        %v1307 = vpop.f32.mrb[0].mxu0
        %v1308 = vadd.f32 %v1205, %v1307
        %v1309 = vpop.f32.mrb[0].mxu0
        %v1310 = vpop.f32.mrb[0].mxu0
        %v1311 = vadd.f32 %v1208, %v1310
        %v1312 = vpop.f32.mrb[0].mxu0
        %1313 = vmatprep.mubr.bf16.mxu0 0
        %1314 = vmatmul.mubr.bf16.gmra.mrb[0].mxu0 %v1124
        %v1315 = vpop.f32.mrb[0].mxu0
        %v1316 = vadd.f32 %v1213, %v1315
        %v1317 = vpop.f32.mrb[0].mxu0
        %v1318 = vpop.f32.mrb[0].mxu0
        %v1319 = vadd.f32 %v1216, %v1318
        %v1320 = vpop.f32.mrb[0].mxu0
        %1321 = vmatprep.mubr.bf16.mxu0 0
        %1322 = vmatmul.mubr.bf16.gmra.mrb[0].mxu0 %v1127
        %v1323 = vpop.f32.mrb[0].mxu0
        %v1324 = vadd.f32 %v1221, %v1323
        %v1325 = vpop.f32.mrb[0].mxu0
        %v1326 = vpop.f32.mrb[0].mxu0
        %v1327 = vadd.f32 %v1224, %v1326
        %v1328 = vpop.f32.mrb[0].mxu0
        %1329 = vmatprep.mubr.bf16.mxu0 0
        %1330 = vmatmul.mubr.bf16.gmra.mrb[0].mxu0 %v1130
        %v1331 = vpop.f32.mrb[0].mxu0
        %v1332 = vadd.f32 %v1229, %v1331
        %v1333 = vpop.f32.mrb[0].mxu0
        %v1334 = vpop.f32.mrb[0].mxu0
        %v1335 = vadd.f32 %v1232, %v1334
        %v1336 = vpop.f32.mrb[0].mxu0
        %1337 = vdwg.mxu0
        %s1338 = scalar_lea.vmem [#allocation11], 3
        %v1339 = vld [vmem:[%s1338] sm:$0x1]
        %v1341 = vsel %vm856, %v852, 0
        %v1344 = vsel %vm881, %v1339, 0
        %1346 = vmatprep.subr.bf16.mxu0 0
        %1347 = vmatpush1.bf16.msra.mxu0 %v1344
        %1348 = vmatprep.subr.bf16.mxu0 0
        %1349 = vmatpush1.bf16.msra.mxu0 0
        %1350 = vmatprep.subr.bf16.mxu0 0
        %1351 = vmatpush1.bf16.msra.mxu0 0
        %1352 = vmatprep.subr.bf16.mxu0 0
        %1353 = vmatpush1.bf16.msra.mxu0 0
        %1354 = vmatprep.subr.bf16.mxu0 0
        %1355 = vmatpush1.bf16.msra.mxu0 0
        %1356 = vmatprep.subr.bf16.mxu0 0
        %1357 = vmatpush1.bf16.msra.mxu0 0
        %1358 = vmatprep.subr.bf16.mxu0 0
        %1359 = vmatpush1.bf16.msra.mxu0 0
        %1360 = vmatprep.subr.bf16.mxu0 0
        %1361 = vmatpush1.bf16.msra.mxu0 0
        %1362 = vmatprep.subr.bf16.mxu0 0
        %1363 = vmatpush1.bf16.msra.mxu0 0
        %1364 = vmatprep.subr.bf16.mxu0 0
        %1365 = vmatpush1.bf16.msra.mxu0 0
        %1366 = vmatprep.subr.bf16.mxu0 0
        %1367 = vmatpush1.bf16.msra.mxu0 0
        %1368 = vmatprep.subr.bf16.mxu0 0
        %1369 = vmatpush1.bf16.msra.mxu0 0
        %1370 = vmatprep.subr.bf16.mxu0 0
        %1371 = vmatpush1.bf16.msra.mxu0 0
        %1372 = vmatprep.subr.bf16.mxu0 0
        %1373 = vmatpush1.bf16.msra.mxu0 0
        %1374 = vmatprep.subr.bf16.mxu0 0
        %1375 = vmatpush1.bf16.msra.mxu0 0
        %1376 = vmatprep.subr.bf16.mxu0 0
        %1377 = vmatpush1.bf16.msra.mxu0 0
        %1378 = vmatprep.mubr.bf16.mxu0 0
        %1379 = vmatmul.mubr.bf16.gmra.mrb[0].mxu0 %v861
        %v1380 = vpop.f32.mrb[0].mxu0
        %v1381 = vadd.f32 0.0, %v1380
        %v1382 = vpop.f32.mrb[0].mxu0
        %v1383 = vpop.f32.mrb[0].mxu0
        %v1384 = vadd.f32 0.0, %v1383
        %v1385 = vpop.f32.mrb[0].mxu0
        %1386 = vmatprep.mubr.bf16.mxu0 0
        %1387 = vmatmul.mubr.bf16.gmra.mrb[0].mxu0 %v864
        %v1388 = vpop.f32.mrb[0].mxu0
        %v1389 = vadd.f32 0.0, %v1388
        %v1390 = vpop.f32.mrb[0].mxu0
        %v1391 = vpop.f32.mrb[0].mxu0
        %v1392 = vadd.f32 0.0, %v1391
        %v1393 = vpop.f32.mrb[0].mxu0
        %1394 = vmatprep.mubr.bf16.mxu0 0
        %1395 = vmatmul.mubr.bf16.gmra.mrb[0].mxu0 %v867
        %v1396 = vpop.f32.mrb[0].mxu0
        %v1397 = vadd.f32 0.0, %v1396
        %v1398 = vpop.f32.mrb[0].mxu0
        %v1399 = vpop.f32.mrb[0].mxu0
        %v1400 = vadd.f32 0.0, %v1399
        %v1401 = vpop.f32.mrb[0].mxu0
        %1402 = vmatprep.mubr.bf16.mxu0 0
        %1403 = vmatmul.mubr.bf16.gmra.mrb[0].mxu0 %v870
        %v1404 = vpop.f32.mrb[0].mxu0
        %v1405 = vadd.f32 0.0, %v1404
        %v1406 = vpop.f32.mrb[0].mxu0
        %v1407 = vpop.f32.mrb[0].mxu0
        %v1408 = vadd.f32 0.0, %v1407
        %v1409 = vpop.f32.mrb[0].mxu0
        %1410 = vmatprep.mubr.bf16.mxu0 0
        %1411 = vmatmul.mubr.bf16.gmra.mrb[0].mxu0 %v873
        %v1412 = vpop.f32.mrb[0].mxu0
        %v1413 = vadd.f32 0.0, %v1412
        %v1414 = vpop.f32.mrb[0].mxu0
        %v1415 = vpop.f32.mrb[0].mxu0
        %v1416 = vadd.f32 0.0, %v1415
        %v1417 = vpop.f32.mrb[0].mxu0
        %1418 = vmatprep.mubr.bf16.mxu0 0
        %1419 = vmatmul.mubr.bf16.gmra.mrb[0].mxu0 %v876
        %v1420 = vpop.f32.mrb[0].mxu0
        %v1421 = vadd.f32 0.0, %v1420
        %v1422 = vpop.f32.mrb[0].mxu0
        %v1423 = vpop.f32.mrb[0].mxu0
        %v1424 = vadd.f32 0.0, %v1423
        %v1425 = vpop.f32.mrb[0].mxu0
        %1426 = vmatprep.mubr.bf16.mxu0 0
        %1427 = vmatmul.mubr.bf16.gmra.mrb[0].mxu0 %v879
        %v1428 = vpop.f32.mrb[0].mxu0
        %v1429 = vadd.f32 0.0, %v1428
        %v1430 = vpop.f32.mrb[0].mxu0
        %v1431 = vpop.f32.mrb[0].mxu0
        %v1432 = vadd.f32 0.0, %v1431
        %v1433 = vpop.f32.mrb[0].mxu0
        %1434 = vmatprep.mubr.bf16.mxu0 0
        %1435 = vmatmul.mubr.bf16.gmra.mrb[0].mxu0 %v1341
        %v1436 = vpop.f32.mrb[0].mxu0
        %v1437 = vadd.f32 0.0, %v1436
        %v1438 = vpop.f32.mrb[0].mxu0
        %v1439 = vpop.f32.mrb[0].mxu0
        %v1440 = vadd.f32 0.0, %v1439
        %v1441 = vpop.f32.mrb[0].mxu0
        %1442 = vdwg.mxu0
        %v1443 = vadd.f32 %v1047, %v1381
        %v1444 = vadd.f32 %v1050, %v1384
        %v1445 = vadd.f32 %v1055, %v1389
        %v1446 = vadd.f32 %v1058, %v1392
        %v1447 = vadd.f32 %v1063, %v1397
        %v1448 = vadd.f32 %v1066, %v1400
        %v1449 = vadd.f32 %v1071, %v1405
        %v1450 = vadd.f32 %v1074, %v1408
        %v1451 = vadd.f32 %v1079, %v1413
        %v1452 = vadd.f32 %v1082, %v1416
        %v1453 = vadd.f32 %v1087, %v1421
        %v1454 = vadd.f32 %v1090, %v1424
        %v1455 = vadd.f32 %v1095, %v1429
        %v1456 = vadd.f32 %v1098, %v1432
        %v1457 = vadd.f32 %v1103, %v1437
        %v1458 = vadd.f32 %v1106, %v1440
        %s1459 = scalar_lea.vmem [#allocation10], 6
        %v1460 = vld [vmem:[%s1459] sm:$0x1]
        %v1462 = vsel %vm856, %v843, 0
        %v1465 = vsel %vm881, %v1460, 0
        %1467 = vmatprep.subr.bf16.mxu0 0
        %1468 = vmatpush1.bf16.msra.mxu0 %v1465
        %1469 = vmatprep.subr.bf16.mxu0 0
        %1470 = vmatpush1.bf16.msra.mxu0 0
        %1471 = vmatprep.subr.bf16.mxu0 0
        %1472 = vmatpush1.bf16.msra.mxu0 0
        %1473 = vmatprep.subr.bf16.mxu0 0
        %1474 = vmatpush1.bf16.msra.mxu0 0
        %1475 = vmatprep.subr.bf16.mxu0 0
        %1476 = vmatpush1.bf16.msra.mxu0 0
        %1477 = vmatprep.subr.bf16.mxu0 0
        %1478 = vmatpush1.bf16.msra.mxu0 0
        %1479 = vmatprep.subr.bf16.mxu0 0
        %1480 = vmatpush1.bf16.msra.mxu0 0
        %1481 = vmatprep.subr.bf16.mxu0 0
        %1482 = vmatpush1.bf16.msra.mxu0 0
        %1483 = vmatprep.subr.bf16.mxu0 0
        %1484 = vmatpush1.bf16.msra.mxu0 0
        %1485 = vmatprep.subr.bf16.mxu0 0
        %1486 = vmatpush1.bf16.msra.mxu0 0
        %1487 = vmatprep.subr.bf16.mxu0 0
        %1488 = vmatpush1.bf16.msra.mxu0 0
        %1489 = vmatprep.subr.bf16.mxu0 0
        %1490 = vmatpush1.bf16.msra.mxu0 0
        %1491 = vmatprep.subr.bf16.mxu0 0
        %1492 = vmatpush1.bf16.msra.mxu0 0
        %1493 = vmatprep.subr.bf16.mxu0 0
        %1494 = vmatpush1.bf16.msra.mxu0 0
        %1495 = vmatprep.subr.bf16.mxu0 0
        %1496 = vmatpush1.bf16.msra.mxu0 0
        %1497 = vmatprep.subr.bf16.mxu0 0
        %1498 = vmatpush1.bf16.msra.mxu0 0
        %1499 = vmatprep.mubr.bf16.mxu0 0
        %1500 = vmatmul.mubr.bf16.gmra.mrb[0].mxu0 %v1115
        %v1501 = vpop.f32.mrb[0].mxu0
        %v1502 = vadd.f32 0.0, %v1501
        %v1503 = vpop.f32.mrb[0].mxu0
        %v1504 = vpop.f32.mrb[0].mxu0
        %v1505 = vadd.f32 0.0, %v1504
        %v1506 = vpop.f32.mrb[0].mxu0
        %1507 = vmatprep.mubr.bf16.mxu0 0
        %1508 = vmatmul.mubr.bf16.gmra.mrb[0].mxu0 %v1118
        %v1509 = vpop.f32.mrb[0].mxu0
        %v1510 = vadd.f32 0.0, %v1509
        %v1511 = vpop.f32.mrb[0].mxu0
        %v1512 = vpop.f32.mrb[0].mxu0
        %v1513 = vadd.f32 0.0, %v1512
        %v1514 = vpop.f32.mrb[0].mxu0
        %1515 = vmatprep.mubr.bf16.mxu0 0
        %1516 = vmatmul.mubr.bf16.gmra.mrb[0].mxu0 %v1121
        %v1517 = vpop.f32.mrb[0].mxu0
        %v1518 = vadd.f32 0.0, %v1517
        %v1519 = vpop.f32.mrb[0].mxu0
        %v1520 = vpop.f32.mrb[0].mxu0
        %v1521 = vadd.f32 0.0, %v1520
        %v1522 = vpop.f32.mrb[0].mxu0
        %1523 = vmatprep.mubr.bf16.mxu0 0
        %1524 = vmatmul.mubr.bf16.gmra.mrb[0].mxu0 %v1124
        %v1525 = vpop.f32.mrb[0].mxu0
        %v1526 = vadd.f32 0.0, %v1525
        %v1527 = vpop.f32.mrb[0].mxu0
        %v1528 = vpop.f32.mrb[0].mxu0
        %v1529 = vadd.f32 0.0, %v1528
        %v1530 = vpop.f32.mrb[0].mxu0
        %1531 = vmatprep.mubr.bf16.mxu0 0
        %1532 = vmatmul.mubr.bf16.gmra.mrb[0].mxu0 %v1127
        %v1533 = vpop.f32.mrb[0].mxu0
        %v1534 = vadd.f32 0.0, %v1533
        %v1535 = vpop.f32.mrb[0].mxu0
        %v1536 = vpop.f32.mrb[0].mxu0
        %v1537 = vadd.f32 0.0, %v1536
        %v1538 = vpop.f32.mrb[0].mxu0
        %1539 = vmatprep.mubr.bf16.mxu0 0
        %1540 = vmatmul.mubr.bf16.gmra.mrb[0].mxu0 %v1130
        %v1541 = vpop.f32.mrb[0].mxu0
        %v1542 = vadd.f32 0.0, %v1541
        %v1543 = vpop.f32.mrb[0].mxu0
        %v1544 = vpop.f32.mrb[0].mxu0
        %v1545 = vadd.f32 0.0, %v1544
        %v1546 = vpop.f32.mrb[0].mxu0
        %1547 = vmatprep.mubr.bf16.mxu0 0
        %1548 = vmatmul.mubr.bf16.gmra.mrb[0].mxu0 %v1133
        %v1549 = vpop.f32.mrb[0].mxu0
        %v1550 = vadd.f32 0.0, %v1549
        %v1551 = vpop.f32.mrb[0].mxu0
        %v1552 = vpop.f32.mrb[0].mxu0
        %v1553 = vadd.f32 0.0, %v1552
        %v1554 = vpop.f32.mrb[0].mxu0
        %1555 = vmatprep.mubr.bf16.mxu0 0
        %1556 = vmatmul.mubr.bf16.gmra.mrb[0].mxu0 %v1462
        %v1557 = vpop.f32.mrb[0].mxu0
        %v1558 = vadd.f32 0.0, %v1557
        %v1559 = vpop.f32.mrb[0].mxu0
        %v1560 = vpop.f32.mrb[0].mxu0
        %v1561 = vadd.f32 0.0, %v1560
        %v1562 = vpop.f32.mrb[0].mxu0
        %1563 = vdwg.mxu0
        %v1564 = vadd.f32 %v1276, %v1502
        %v1565 = vadd.f32 %v1279, %v1505
        %v1566 = vadd.f32 %v1284, %v1510
        %v1567 = vadd.f32 %v1287, %v1513
        %v1568 = vadd.f32 %v1292, %v1518
        %v1569 = vadd.f32 %v1295, %v1521
        %v1570 = vadd.f32 %v1300, %v1526
        %v1571 = vadd.f32 %v1303, %v1529
        %v1572 = vadd.f32 %v1308, %v1534
        %v1573 = vadd.f32 %v1311, %v1537
        %v1574 = vadd.f32 %v1316, %v1542
        %v1575 = vadd.f32 %v1319, %v1545
        %v1576 = vadd.f32 %v1324, %v1550
        %v1577 = vadd.f32 %v1327, %v1553
        %v1578 = vadd.f32 %v1332, %v1558
        %v1579 = vadd.f32 %v1335, %v1561
        %s1580 = scalar_lea.vmem [#allocation11], 6
        %v1581 = vld [vmem:[%s1580] sm:$0x1]
        %v1583 = vsel %vm856, %v853, 0
        %v1586 = vsel %vm881, %v1581, 0
        %1588 = vmatprep.subr.bf16.mxu0 0
        %1589 = vmatpush1.bf16.msra.mxu0 %v1586
        %1590 = vmatprep.subr.bf16.mxu0 0
        %1591 = vmatpush1.bf16.msra.mxu0 0
        %1592 = vmatprep.subr.bf16.mxu0 0
        %1593 = vmatpush1.bf16.msra.mxu0 0
        %1594 = vmatprep.subr.bf16.mxu0 0
        %1595 = vmatpush1.bf16.msra.mxu0 0
        %1596 = vmatprep.subr.bf16.mxu0 0
        %1597 = vmatpush1.bf16.msra.mxu0 0
        %1598 = vmatprep.subr.bf16.mxu0 0
        %1599 = vmatpush1.bf16.msra.mxu0 0
        %1600 = vmatprep.subr.bf16.mxu0 0
        %1601 = vmatpush1.bf16.msra.mxu0 0
        %1602 = vmatprep.subr.bf16.mxu0 0
        %1603 = vmatpush1.bf16.msra.mxu0 0
        %1604 = vmatprep.subr.bf16.mxu0 0
        %1605 = vmatpush1.bf16.msra.mxu0 0
        %1606 = vmatprep.subr.bf16.mxu0 0
        %1607 = vmatpush1.bf16.msra.mxu0 0
        %1608 = vmatprep.subr.bf16.mxu0 0
        %1609 = vmatpush1.bf16.msra.mxu0 0
        %1610 = vmatprep.subr.bf16.mxu0 0
        %1611 = vmatpush1.bf16.msra.mxu0 0
        %1612 = vmatprep.subr.bf16.mxu0 0
        %1613 = vmatpush1.bf16.msra.mxu0 0
        %1614 = vmatprep.subr.bf16.mxu0 0
        %1615 = vmatpush1.bf16.msra.mxu0 0
        %1616 = vmatprep.subr.bf16.mxu0 0
        %1617 = vmatpush1.bf16.msra.mxu0 0
        %1618 = vmatprep.subr.bf16.mxu0 0
        %1619 = vmatpush1.bf16.msra.mxu0 0
        %1620 = vmatprep.mubr.bf16.mxu0 0
        %1621 = vmatmul.mubr.bf16.gmra.mrb[0].mxu0 %v864
        %v1622 = vpop.f32.mrb[0].mxu0
        %v1623 = vadd.f32 0.0, %v1622
        %v1624 = vpop.f32.mrb[0].mxu0
        %v1625 = vpop.f32.mrb[0].mxu0
        %v1626 = vadd.f32 0.0, %v1625
        %v1627 = vpop.f32.mrb[0].mxu0
        %1628 = vmatprep.mubr.bf16.mxu0 0
        %1629 = vmatmul.mubr.bf16.gmra.mrb[0].mxu0 %v867
        %v1630 = vpop.f32.mrb[0].mxu0
        %v1631 = vadd.f32 0.0, %v1630
        %v1632 = vpop.f32.mrb[0].mxu0
        %v1633 = vpop.f32.mrb[0].mxu0
        %v1634 = vadd.f32 0.0, %v1633
        %v1635 = vpop.f32.mrb[0].mxu0
        %1636 = vmatprep.mubr.bf16.mxu0 0
        %1637 = vmatmul.mubr.bf16.gmra.mrb[0].mxu0 %v870
        %v1638 = vpop.f32.mrb[0].mxu0
        %v1639 = vadd.f32 0.0, %v1638
        %v1640 = vpop.f32.mrb[0].mxu0
        %v1641 = vpop.f32.mrb[0].mxu0
        %v1642 = vadd.f32 0.0, %v1641
        %v1643 = vpop.f32.mrb[0].mxu0
        %1644 = vmatprep.mubr.bf16.mxu0 0
        %1645 = vmatmul.mubr.bf16.gmra.mrb[0].mxu0 %v873
        %v1646 = vpop.f32.mrb[0].mxu0
        %v1647 = vadd.f32 0.0, %v1646
        %v1648 = vpop.f32.mrb[0].mxu0
        %v1649 = vpop.f32.mrb[0].mxu0
        %v1650 = vadd.f32 0.0, %v1649
        %v1651 = vpop.f32.mrb[0].mxu0
        %1652 = vmatprep.mubr.bf16.mxu0 0
        %1653 = vmatmul.mubr.bf16.gmra.mrb[0].mxu0 %v876
        %v1654 = vpop.f32.mrb[0].mxu0
        %v1655 = vadd.f32 0.0, %v1654
        %v1656 = vpop.f32.mrb[0].mxu0
        %v1657 = vpop.f32.mrb[0].mxu0
        %v1658 = vadd.f32 0.0, %v1657
        %v1659 = vpop.f32.mrb[0].mxu0
        %1660 = vmatprep.mubr.bf16.mxu0 0
        %1661 = vmatmul.mubr.bf16.gmra.mrb[0].mxu0 %v879
        %v1662 = vpop.f32.mrb[0].mxu0
        %v1663 = vadd.f32 0.0, %v1662
        %v1664 = vpop.f32.mrb[0].mxu0
        %v1665 = vpop.f32.mrb[0].mxu0
        %v1666 = vadd.f32 0.0, %v1665
        %v1667 = vpop.f32.mrb[0].mxu0
        %1668 = vmatprep.mubr.bf16.mxu0 0
        %1669 = vmatmul.mubr.bf16.gmra.mrb[0].mxu0 %v1341
        %v1670 = vpop.f32.mrb[0].mxu0
        %v1671 = vadd.f32 0.0, %v1670
        %v1672 = vpop.f32.mrb[0].mxu0
        %v1673 = vpop.f32.mrb[0].mxu0
        %v1674 = vadd.f32 0.0, %v1673
        %v1675 = vpop.f32.mrb[0].mxu0
        %1676 = vmatprep.mubr.bf16.mxu0 0
        %1677 = vmatmul.mubr.bf16.gmra.mrb[0].mxu0 %v1583
        %v1678 = vpop.f32.mrb[0].mxu0
        %v1679 = vadd.f32 0.0, %v1678
        %v1680 = vpop.f32.mrb[0].mxu0
        %v1681 = vpop.f32.mrb[0].mxu0
        %v1682 = vadd.f32 0.0, %v1681
        %v1683 = vpop.f32.mrb[0].mxu0
        %1684 = vdwg.mxu0
        %v1685 = vadd.f32 %v1443, %v1623
        %v1686 = vadd.f32 %v1444, %v1626
        %v1687 = vadd.f32 %v1445, %v1631
        %v1688 = vadd.f32 %v1446, %v1634
        %v1689 = vadd.f32 %v1447, %v1639
        %v1690 = vadd.f32 %v1448, %v1642
        %v1691 = vadd.f32 %v1449, %v1647
        %v1692 = vadd.f32 %v1450, %v1650
        %v1693 = vadd.f32 %v1451, %v1655
        %v1694 = vadd.f32 %v1452, %v1658
        %v1695 = vadd.f32 %v1453, %v1663
        %v1696 = vadd.f32 %v1454, %v1666
        %v1697 = vadd.f32 %v1455, %v1671
        %v1698 = vadd.f32 %v1456, %v1674
        %v1699 = vadd.f32 %v1457, %v1679
        %v1700 = vadd.f32 %v1458, %v1682
        %v1701 = vpack.c.bf16 %v806, %v806
        %v1702 = vpack.c.bf16 %v809, %v809
        %v1703 = vpack.c.bf16 %v812, %v812
        %v1704 = vpack.c.bf16 %v815, %v815
        %v1705 = vpack.c.bf16 %v818, %v818
        %v1706 = vpack.c.bf16 %v821, %v821
        %v1707 = vpack.c.bf16 %v824, %v824
        %v1708 = vpack.c.bf16 %v827, %v827
        %v1709 = vpack.c.bf16 %v830, %v830
        %v1710 = vpack.c.bf16 %v833, %v833
        %v1711 = vpack.c.bf16 %v714, %v714
        %v1712 = vpack.c.bf16 %v717, %v717
        %v1713 = vpack.c.bf16 %v720, %v720
        %v1714 = vpack.c.bf16 %v723, %v723
        %v1715 = vpack.c.bf16 %v726, %v726
        %v1716 = vpack.c.bf16 %v729, %v729
        %v1717 = vpack.c.bf16 %v732, %v732
        %v1718 = vpack.c.bf16 %v735, %v735
        %v1719 = vpack.c.bf16 %v738, %v738
        %v1720 = vpack.c.bf16 %v741, %v741
        %vm1721 = vsmask.f32 7424
        %v1722 = vshrl.u32 %v834, 16
        %v1724 = vshll.u32 %v834, 16
        %v1726 = vrot.slane %v1724, 1
        %v1727 = vor.u32 %v1722, %v1726
        %v1729 = vshll.u32 %v1701, 16
        %v1731 = vrot.slane %v1729, 1
        %v1732 = vsel %vm1721, %v1727, %v1731
        %v1733 = vshrl.u32 %v835, 16
        %v1735 = vshll.u32 %v835, 16
        %v1737 = vrot.slane %v1735, 1
        %v1738 = vor.u32 %v1733, %v1737
        %v1740 = vshll.u32 %v1702, 16
        %v1742 = vrot.slane %v1740, 1
        %v1743 = vsel %vm1721, %v1738, %v1742
        %v1744 = vshrl.u32 %v836, 16
        %v1746 = vshll.u32 %v836, 16
        %v1748 = vrot.slane %v1746, 1
        %v1749 = vor.u32 %v1744, %v1748
        %v1751 = vshll.u32 %v1703, 16
        %v1753 = vrot.slane %v1751, 1
        %v1754 = vsel %vm1721, %v1749, %v1753
        %v1755 = vshrl.u32 %v837, 16
        %v1757 = vshll.u32 %v837, 16
        %v1759 = vrot.slane %v1757, 1
        %v1760 = vor.u32 %v1755, %v1759
        %v1762 = vshll.u32 %v1704, 16
        %v1764 = vrot.slane %v1762, 1
        %v1765 = vsel %vm1721, %v1760, %v1764
        %v1766 = vshrl.u32 %v838, 16
        %v1768 = vshll.u32 %v838, 16
        %v1770 = vrot.slane %v1768, 1
        %v1771 = vor.u32 %v1766, %v1770
        %v1773 = vshll.u32 %v1705, 16
        %v1775 = vrot.slane %v1773, 1
        %v1776 = vsel %vm1721, %v1771, %v1775
        %v1777 = vshrl.u32 %v839, 16
        %v1779 = vshll.u32 %v839, 16
        %v1781 = vrot.slane %v1779, 1
        %v1782 = vor.u32 %v1777, %v1781
        %v1784 = vshll.u32 %v1706, 16
        %v1786 = vrot.slane %v1784, 1
        %v1787 = vsel %vm1721, %v1782, %v1786
        %v1788 = vshrl.u32 %v840, 16
        %v1790 = vshll.u32 %v840, 16
        %v1792 = vrot.slane %v1790, 1
        %v1793 = vor.u32 %v1788, %v1792
        %v1795 = vshll.u32 %v1707, 16
        %v1797 = vrot.slane %v1795, 1
        %v1798 = vsel %vm1721, %v1793, %v1797
        %v1799 = vshrl.u32 %v841, 16
        %v1801 = vshll.u32 %v841, 16
        %v1803 = vrot.slane %v1801, 1
        %v1804 = vor.u32 %v1799, %v1803
        %v1806 = vshll.u32 %v1708, 16
        %v1808 = vrot.slane %v1806, 1
        %v1809 = vsel %vm1721, %v1804, %v1808
        %v1810 = vshrl.u32 %v844, 16
        %v1812 = vshll.u32 %v844, 16
        %v1814 = vrot.slane %v1812, 1
        %v1815 = vor.u32 %v1810, %v1814
        %v1817 = vshll.u32 %v1711, 16
        %v1819 = vrot.slane %v1817, 1
        %v1820 = vsel %vm1721, %v1815, %v1819
        %v1821 = vshrl.u32 %v845, 16
        %v1823 = vshll.u32 %v845, 16
        %v1825 = vrot.slane %v1823, 1
        %v1826 = vor.u32 %v1821, %v1825
        %v1828 = vshll.u32 %v1712, 16
        %v1830 = vrot.slane %v1828, 1
        %v1831 = vsel %vm1721, %v1826, %v1830
        %v1832 = vshrl.u32 %v846, 16
        %v1834 = vshll.u32 %v846, 16
        %v1836 = vrot.slane %v1834, 1
        %v1837 = vor.u32 %v1832, %v1836
        %v1839 = vshll.u32 %v1713, 16
        %v1841 = vrot.slane %v1839, 1
        %v1842 = vsel %vm1721, %v1837, %v1841
        %v1843 = vshrl.u32 %v847, 16
        %v1845 = vshll.u32 %v847, 16
        %v1847 = vrot.slane %v1845, 1
        %v1848 = vor.u32 %v1843, %v1847
        %v1850 = vshll.u32 %v1714, 16
        %v1852 = vrot.slane %v1850, 1
        %v1853 = vsel %vm1721, %v1848, %v1852
        %v1854 = vshrl.u32 %v848, 16
        %v1856 = vshll.u32 %v848, 16
        %v1858 = vrot.slane %v1856, 1
        %v1859 = vor.u32 %v1854, %v1858
        %v1861 = vshll.u32 %v1715, 16
        %v1863 = vrot.slane %v1861, 1
        %v1864 = vsel %vm1721, %v1859, %v1863
        %v1865 = vshrl.u32 %v849, 16
        %v1867 = vshll.u32 %v849, 16
        %v1869 = vrot.slane %v1867, 1
        %v1870 = vor.u32 %v1865, %v1869
        %v1872 = vshll.u32 %v1716, 16
        %v1874 = vrot.slane %v1872, 1
        %v1875 = vsel %vm1721, %v1870, %v1874
        %v1876 = vshrl.u32 %v850, 16
        %v1878 = vshll.u32 %v850, 16
        %v1880 = vrot.slane %v1878, 1
        %v1881 = vor.u32 %v1876, %v1880
        %v1883 = vshll.u32 %v1717, 16
        %v1885 = vrot.slane %v1883, 1
        %v1886 = vsel %vm1721, %v1881, %v1885
        %v1887 = vshrl.u32 %v851, 16
        %v1889 = vshll.u32 %v851, 16
        %v1891 = vrot.slane %v1889, 1
        %v1892 = vor.u32 %v1887, %v1891
        %v1894 = vshll.u32 %v1718, 16
        %v1896 = vrot.slane %v1894, 1
        %v1897 = vsel %vm1721, %v1892, %v1896
        %s1898 = scalar_lea.vmem [#allocation10], 1
        %v1899 = vld [vmem:[%s1898] sm:$0x1]
        %v1901 = vsel %vm856, %v1732, 0
        %v1904 = vsel %vm856, %v1743, 0
        %v1907 = vsel %vm856, %v1754, 0
        %v1910 = vsel %vm856, %v1765, 0
        %v1913 = vsel %vm856, %v1776, 0
        %v1916 = vsel %vm856, %v1787, 0
        %v1919 = vsel %vm856, %v1798, 0
        %v1922 = vsel %vm856, %v1809, 0
        %v1925 = vsel %vm881, %v1899, 0
        %1927 = vmatprep.subr.bf16.mxu0 0
        %1928 = vmatpush1.bf16.msra.mxu0 %v1925
        %1929 = vmatprep.subr.bf16.mxu0 0
        %1930 = vmatpush1.bf16.msra.mxu0 0
        %1931 = vmatprep.subr.bf16.mxu0 0
        %1932 = vmatpush1.bf16.msra.mxu0 0
        %1933 = vmatprep.subr.bf16.mxu0 0
        %1934 = vmatpush1.bf16.msra.mxu0 0
        %1935 = vmatprep.subr.bf16.mxu0 0
        %1936 = vmatpush1.bf16.msra.mxu0 0
        %1937 = vmatprep.subr.bf16.mxu0 0
        %1938 = vmatpush1.bf16.msra.mxu0 0
        %1939 = vmatprep.subr.bf16.mxu0 0
        %1940 = vmatpush1.bf16.msra.mxu0 0
        %1941 = vmatprep.subr.bf16.mxu0 0
        %1942 = vmatpush1.bf16.msra.mxu0 0
        %1943 = vmatprep.subr.bf16.mxu0 0
        %1944 = vmatpush1.bf16.msra.mxu0 0
        %1945 = vmatprep.subr.bf16.mxu0 0
        %1946 = vmatpush1.bf16.msra.mxu0 0
        %1947 = vmatprep.subr.bf16.mxu0 0
        %1948 = vmatpush1.bf16.msra.mxu0 0
        %1949 = vmatprep.subr.bf16.mxu0 0
        %1950 = vmatpush1.bf16.msra.mxu0 0
        %1951 = vmatprep.subr.bf16.mxu0 0
        %1952 = vmatpush1.bf16.msra.mxu0 0
        %1953 = vmatprep.subr.bf16.mxu0 0
        %1954 = vmatpush1.bf16.msra.mxu0 0
        %1955 = vmatprep.subr.bf16.mxu0 0
        %1956 = vmatpush1.bf16.msra.mxu0 0
        %1957 = vmatprep.subr.bf16.mxu0 0
        %1958 = vmatpush1.bf16.msra.mxu0 0
        %1959 = vmatprep.mubr.bf16.mxu0 0
        %1960 = vmatmul.mubr.bf16.gmra.mrb[0].mxu0 %v1901
        %v1961 = vpop.f32.mrb[0].mxu0
        %v1962 = vadd.f32 0.0, %v1961
        %v1963 = vpop.f32.mrb[0].mxu0
        %v1964 = vpop.f32.mrb[0].mxu0
        %v1965 = vadd.f32 0.0, %v1964
        %v1966 = vpop.f32.mrb[0].mxu0
        %1967 = vmatprep.mubr.bf16.mxu0 0
        %1968 = vmatmul.mubr.bf16.gmra.mrb[0].mxu0 %v1904
        %v1969 = vpop.f32.mrb[0].mxu0
        %v1970 = vadd.f32 0.0, %v1969
        %v1971 = vpop.f32.mrb[0].mxu0
        %v1972 = vpop.f32.mrb[0].mxu0
        %v1973 = vadd.f32 0.0, %v1972
        %v1974 = vpop.f32.mrb[0].mxu0
        %1975 = vmatprep.mubr.bf16.mxu0 0
        %1976 = vmatmul.mubr.bf16.gmra.mrb[0].mxu0 %v1907
        %v1977 = vpop.f32.mrb[0].mxu0
        %v1978 = vadd.f32 0.0, %v1977
        %v1979 = vpop.f32.mrb[0].mxu0
        %v1980 = vpop.f32.mrb[0].mxu0
        %v1981 = vadd.f32 0.0, %v1980
        %v1982 = vpop.f32.mrb[0].mxu0
        %1983 = vmatprep.mubr.bf16.mxu0 0
        %1984 = vmatmul.mubr.bf16.gmra.mrb[0].mxu0 %v1910
        %v1985 = vpop.f32.mrb[0].mxu0
        %v1986 = vadd.f32 0.0, %v1985
        %v1987 = vpop.f32.mrb[0].mxu0
        %v1988 = vpop.f32.mrb[0].mxu0
        %v1989 = vadd.f32 0.0, %v1988
        %v1990 = vpop.f32.mrb[0].mxu0
        %1991 = vmatprep.mubr.bf16.mxu0 0
        %1992 = vmatmul.mubr.bf16.gmra.mrb[0].mxu0 %v1913
        %v1993 = vpop.f32.mrb[0].mxu0
        %v1994 = vadd.f32 0.0, %v1993
        %v1995 = vpop.f32.mrb[0].mxu0
        %v1996 = vpop.f32.mrb[0].mxu0
        %v1997 = vadd.f32 0.0, %v1996
        %v1998 = vpop.f32.mrb[0].mxu0
        %1999 = vmatprep.mubr.bf16.mxu0 0
        %2000 = vmatmul.mubr.bf16.gmra.mrb[0].mxu0 %v1916
        %v2001 = vpop.f32.mrb[0].mxu0
        %v2002 = vadd.f32 0.0, %v2001
        %v2003 = vpop.f32.mrb[0].mxu0
        %v2004 = vpop.f32.mrb[0].mxu0
        %v2005 = vadd.f32 0.0, %v2004
        %v2006 = vpop.f32.mrb[0].mxu0
        %2007 = vmatprep.mubr.bf16.mxu0 0
        %2008 = vmatmul.mubr.bf16.gmra.mrb[0].mxu0 %v1919
        %v2009 = vpop.f32.mrb[0].mxu0
        %v2010 = vadd.f32 0.0, %v2009
        %v2011 = vpop.f32.mrb[0].mxu0
        %v2012 = vpop.f32.mrb[0].mxu0
        %v2013 = vadd.f32 0.0, %v2012
        %v2014 = vpop.f32.mrb[0].mxu0
        %2015 = vmatprep.mubr.bf16.mxu0 0
        %2016 = vmatmul.mubr.bf16.gmra.mrb[0].mxu0 %v1922
        %v2017 = vpop.f32.mrb[0].mxu0
        %v2018 = vadd.f32 0.0, %v2017
        %v2019 = vpop.f32.mrb[0].mxu0
        %v2020 = vpop.f32.mrb[0].mxu0
        %v2021 = vadd.f32 0.0, %v2020
        %v2022 = vpop.f32.mrb[0].mxu0
        %2023 = vdwg.mxu0
        %v2024 = vadd.f32 %v1564, %v1962
        %v2025 = vadd.f32 %v1565, %v1965
        %v2026 = vadd.f32 %v1566, %v1970
        %v2027 = vadd.f32 %v1567, %v1973
        %v2028 = vadd.f32 %v1568, %v1978
        %v2029 = vadd.f32 %v1569, %v1981
        %v2030 = vadd.f32 %v1570, %v1986
        %v2031 = vadd.f32 %v1571, %v1989
        %v2032 = vadd.f32 %v1572, %v1994
        %v2033 = vadd.f32 %v1573, %v1997
        %v2034 = vadd.f32 %v1574, %v2002
        %v2035 = vadd.f32 %v1575, %v2005
        %v2036 = vadd.f32 %v1576, %v2010
        %v2037 = vadd.f32 %v1577, %v2013
        %v2038 = vadd.f32 %v1578, %v2018
        %v2039 = vadd.f32 %v1579, %v2021
        %s2040 = scalar_lea.vmem [#allocation11], 1
        %v2041 = vld [vmem:[%s2040] sm:$0x1]
        %v2043 = vsel %vm856, %v1820, 0
        %v2046 = vsel %vm856, %v1831, 0
        %v2049 = vsel %vm856, %v1842, 0
        %v2052 = vsel %vm856, %v1853, 0
        %v2055 = vsel %vm856, %v1864, 0
        %v2058 = vsel %vm856, %v1875, 0
        %v2061 = vsel %vm856, %v1886, 0
        %v2064 = vsel %vm856, %v1897, 0
        %v2067 = vsel %vm881, %v2041, 0
        %2069 = vmatprep.subr.bf16.mxu0 0
        %2070 = vmatpush1.bf16.msra.mxu0 %v2067
        %2071 = vmatprep.subr.bf16.mxu0 0
        %2072 = vmatpush1.bf16.msra.mxu0 0
        %2073 = vmatprep.subr.bf16.mxu0 0
        %2074 = vmatpush1.bf16.msra.mxu0 0
        %2075 = vmatprep.subr.bf16.mxu0 0
        %2076 = vmatpush1.bf16.msra.mxu0 0
        %2077 = vmatprep.subr.bf16.mxu0 0
        %2078 = vmatpush1.bf16.msra.mxu0 0
        %2079 = vmatprep.subr.bf16.mxu0 0
        %2080 = vmatpush1.bf16.msra.mxu0 0
        %2081 = vmatprep.subr.bf16.mxu0 0
        %2082 = vmatpush1.bf16.msra.mxu0 0
        %2083 = vmatprep.subr.bf16.mxu0 0
        %2084 = vmatpush1.bf16.msra.mxu0 0
        %2085 = vmatprep.subr.bf16.mxu0 0
        %2086 = vmatpush1.bf16.msra.mxu0 0
        %2087 = vmatprep.subr.bf16.mxu0 0
        %2088 = vmatpush1.bf16.msra.mxu0 0
        %2089 = vmatprep.subr.bf16.mxu0 0
        %2090 = vmatpush1.bf16.msra.mxu0 0
        %2091 = vmatprep.subr.bf16.mxu0 0
        %2092 = vmatpush1.bf16.msra.mxu0 0
        %2093 = vmatprep.subr.bf16.mxu0 0
        %2094 = vmatpush1.bf16.msra.mxu0 0
        %2095 = vmatprep.subr.bf16.mxu0 0
        %2096 = vmatpush1.bf16.msra.mxu0 0
        %2097 = vmatprep.subr.bf16.mxu0 0
        %2098 = vmatpush1.bf16.msra.mxu0 0
        %2099 = vmatprep.subr.bf16.mxu0 0
        %2100 = vmatpush1.bf16.msra.mxu0 0
        %2101 = vmatprep.mubr.bf16.mxu0 0
        %2102 = vmatmul.mubr.bf16.gmra.mrb[0].mxu0 %v2043
        %v2103 = vpop.f32.mrb[0].mxu0
        %v2104 = vadd.f32 0.0, %v2103
        %v2105 = vpop.f32.mrb[0].mxu0
        %v2106 = vpop.f32.mrb[0].mxu0
        %v2107 = vadd.f32 0.0, %v2106
        %v2108 = vpop.f32.mrb[0].mxu0
        %2109 = vmatprep.mubr.bf16.mxu0 0
        %2110 = vmatmul.mubr.bf16.gmra.mrb[0].mxu0 %v2046
        %v2111 = vpop.f32.mrb[0].mxu0
        %v2112 = vadd.f32 0.0, %v2111
        %v2113 = vpop.f32.mrb[0].mxu0
        %v2114 = vpop.f32.mrb[0].mxu0
        %v2115 = vadd.f32 0.0, %v2114
        %v2116 = vpop.f32.mrb[0].mxu0
        %2117 = vmatprep.mubr.bf16.mxu0 0
        %2118 = vmatmul.mubr.bf16.gmra.mrb[0].mxu0 %v2049
        %v2119 = vpop.f32.mrb[0].mxu0
        %v2120 = vadd.f32 0.0, %v2119
        %v2121 = vpop.f32.mrb[0].mxu0
        %v2122 = vpop.f32.mrb[0].mxu0
        %v2123 = vadd.f32 0.0, %v2122
        %v2124 = vpop.f32.mrb[0].mxu0
        %2125 = vmatprep.mubr.bf16.mxu0 0
        %2126 = vmatmul.mubr.bf16.gmra.mrb[0].mxu0 %v2052
        %v2127 = vpop.f32.mrb[0].mxu0
        %v2128 = vadd.f32 0.0, %v2127
        %v2129 = vpop.f32.mrb[0].mxu0
        %v2130 = vpop.f32.mrb[0].mxu0
        %v2131 = vadd.f32 0.0, %v2130
        %v2132 = vpop.f32.mrb[0].mxu0
        %2133 = vmatprep.mubr.bf16.mxu0 0
        %2134 = vmatmul.mubr.bf16.gmra.mrb[0].mxu0 %v2055
        %v2135 = vpop.f32.mrb[0].mxu0
        %v2136 = vadd.f32 0.0, %v2135
        %v2137 = vpop.f32.mrb[0].mxu0
        %v2138 = vpop.f32.mrb[0].mxu0
        %v2139 = vadd.f32 0.0, %v2138
        %v2140 = vpop.f32.mrb[0].mxu0
        %2141 = vmatprep.mubr.bf16.mxu0 0
        %2142 = vmatmul.mubr.bf16.gmra.mrb[0].mxu0 %v2058
        %v2143 = vpop.f32.mrb[0].mxu0
        %v2144 = vadd.f32 0.0, %v2143
        %v2145 = vpop.f32.mrb[0].mxu0
        %v2146 = vpop.f32.mrb[0].mxu0
        %v2147 = vadd.f32 0.0, %v2146
        %v2148 = vpop.f32.mrb[0].mxu0
        %2149 = vmatprep.mubr.bf16.mxu0 0
        %2150 = vmatmul.mubr.bf16.gmra.mrb[0].mxu0 %v2061
        %v2151 = vpop.f32.mrb[0].mxu0
        %v2152 = vadd.f32 0.0, %v2151
        %v2153 = vpop.f32.mrb[0].mxu0
        %v2154 = vpop.f32.mrb[0].mxu0
        %v2155 = vadd.f32 0.0, %v2154
        %v2156 = vpop.f32.mrb[0].mxu0
        %2157 = vmatprep.mubr.bf16.mxu0 0
        %2158 = vmatmul.mubr.bf16.gmra.mrb[0].mxu0 %v2064
        %v2159 = vpop.f32.mrb[0].mxu0
        %v2160 = vadd.f32 0.0, %v2159
        %v2161 = vpop.f32.mrb[0].mxu0
        %v2162 = vpop.f32.mrb[0].mxu0
        %v2163 = vadd.f32 0.0, %v2162
        %v2164 = vpop.f32.mrb[0].mxu0
        %2165 = vdwg.mxu0
        %v2166 = vadd.f32 %v1685, %v2104
        %v2167 = vadd.f32 %v1686, %v2107
        %v2168 = vadd.f32 %v1687, %v2112
        %v2169 = vadd.f32 %v1688, %v2115
        %v2170 = vadd.f32 %v1689, %v2120
        %v2171 = vadd.f32 %v1690, %v2123
        %v2172 = vadd.f32 %v1691, %v2128
        %v2173 = vadd.f32 %v1692, %v2131
        %v2174 = vadd.f32 %v1693, %v2136
        %v2175 = vadd.f32 %v1694, %v2139
        %v2176 = vadd.f32 %v1695, %v2144
        %v2177 = vadd.f32 %v1696, %v2147
        %v2178 = vadd.f32 %v1697, %v2152
        %v2179 = vadd.f32 %v1698, %v2155
        %v2180 = vadd.f32 %v1699, %v2160
        %v2181 = vadd.f32 %v1700, %v2163
        %v2182 = vshrl.u32 %v842, 16
        %v2184 = vshll.u32 %v842, 16
        %v2186 = vrot.slane %v2184, 1
        %v2187 = vor.u32 %v2182, %v2186
        %v2189 = vshll.u32 %v1709, 16
        %v2191 = vrot.slane %v2189, 1
        %v2192 = vsel %vm1721, %v2187, %v2191
        %v2193 = vshrl.u32 %v852, 16
        %v2195 = vshll.u32 %v852, 16
        %v2197 = vrot.slane %v2195, 1
        %v2198 = vor.u32 %v2193, %v2197
        %v2200 = vshll.u32 %v1719, 16
        %v2202 = vrot.slane %v2200, 1
        %v2203 = vsel %vm1721, %v2198, %v2202
        %s2204 = scalar_lea.vmem [#allocation10], 4
        %v2205 = vld [vmem:[%s2204] sm:$0x1]
        %v2207 = vsel %vm856, %v2192, 0
        %v2210 = vsel %vm881, %v2205, 0
        %2212 = vmatprep.subr.bf16.mxu0 0
        %2213 = vmatpush1.bf16.msra.mxu0 %v2210
        %2214 = vmatprep.subr.bf16.mxu0 0
        %2215 = vmatpush1.bf16.msra.mxu0 0
        %2216 = vmatprep.subr.bf16.mxu0 0
        %2217 = vmatpush1.bf16.msra.mxu0 0
        %2218 = vmatprep.subr.bf16.mxu0 0
        %2219 = vmatpush1.bf16.msra.mxu0 0
        %2220 = vmatprep.subr.bf16.mxu0 0
        %2221 = vmatpush1.bf16.msra.mxu0 0
        %2222 = vmatprep.subr.bf16.mxu0 0
        %2223 = vmatpush1.bf16.msra.mxu0 0
        %2224 = vmatprep.subr.bf16.mxu0 0
        %2225 = vmatpush1.bf16.msra.mxu0 0
        %2226 = vmatprep.subr.bf16.mxu0 0
        %2227 = vmatpush1.bf16.msra.mxu0 0
        %2228 = vmatprep.subr.bf16.mxu0 0
        %2229 = vmatpush1.bf16.msra.mxu0 0
        %2230 = vmatprep.subr.bf16.mxu0 0
        %2231 = vmatpush1.bf16.msra.mxu0 0
        %2232 = vmatprep.subr.bf16.mxu0 0
        %2233 = vmatpush1.bf16.msra.mxu0 0
        %2234 = vmatprep.subr.bf16.mxu0 0
        %2235 = vmatpush1.bf16.msra.mxu0 0
        %2236 = vmatprep.subr.bf16.mxu0 0
        %2237 = vmatpush1.bf16.msra.mxu0 0
        %2238 = vmatprep.subr.bf16.mxu0 0
        %2239 = vmatpush1.bf16.msra.mxu0 0
        %2240 = vmatprep.subr.bf16.mxu0 0
        %2241 = vmatpush1.bf16.msra.mxu0 0
        %2242 = vmatprep.subr.bf16.mxu0 0
        %2243 = vmatpush1.bf16.msra.mxu0 0
        %2244 = vmatprep.mubr.bf16.mxu0 0
        %2245 = vmatmul.mubr.bf16.gmra.mrb[0].mxu0 %v1904
        %v2246 = vpop.f32.mrb[0].mxu0
        %v2247 = vadd.f32 0.0, %v2246
        %v2248 = vpop.f32.mrb[0].mxu0
        %v2249 = vpop.f32.mrb[0].mxu0
        %v2250 = vadd.f32 0.0, %v2249
        %v2251 = vpop.f32.mrb[0].mxu0
        %2252 = vmatprep.mubr.bf16.mxu0 0
        %2253 = vmatmul.mubr.bf16.gmra.mrb[0].mxu0 %v1907
        %v2254 = vpop.f32.mrb[0].mxu0
        %v2255 = vadd.f32 0.0, %v2254
        %v2256 = vpop.f32.mrb[0].mxu0
        %v2257 = vpop.f32.mrb[0].mxu0
        %v2258 = vadd.f32 0.0, %v2257
        %v2259 = vpop.f32.mrb[0].mxu0
        %2260 = vmatprep.mubr.bf16.mxu0 0
        %2261 = vmatmul.mubr.bf16.gmra.mrb[0].mxu0 %v1910
        %v2262 = vpop.f32.mrb[0].mxu0
        %v2263 = vadd.f32 0.0, %v2262
        %v2264 = vpop.f32.mrb[0].mxu0
        %v2265 = vpop.f32.mrb[0].mxu0
        %v2266 = vadd.f32 0.0, %v2265
        %v2267 = vpop.f32.mrb[0].mxu0
        %2268 = vmatprep.mubr.bf16.mxu0 0
        %2269 = vmatmul.mubr.bf16.gmra.mrb[0].mxu0 %v1913
        %v2270 = vpop.f32.mrb[0].mxu0
        %v2271 = vadd.f32 0.0, %v2270
        %v2272 = vpop.f32.mrb[0].mxu0
        %v2273 = vpop.f32.mrb[0].mxu0
        %v2274 = vadd.f32 0.0, %v2273
        %v2275 = vpop.f32.mrb[0].mxu0
        %2276 = vmatprep.mubr.bf16.mxu0 0
        %2277 = vmatmul.mubr.bf16.gmra.mrb[0].mxu0 %v1916
        %v2278 = vpop.f32.mrb[0].mxu0
        %v2279 = vadd.f32 0.0, %v2278
        %v2280 = vpop.f32.mrb[0].mxu0
        %v2281 = vpop.f32.mrb[0].mxu0
        %v2282 = vadd.f32 0.0, %v2281
        %v2283 = vpop.f32.mrb[0].mxu0
        %2284 = vmatprep.mubr.bf16.mxu0 0
        %2285 = vmatmul.mubr.bf16.gmra.mrb[0].mxu0 %v1919
        %v2286 = vpop.f32.mrb[0].mxu0
        %v2287 = vadd.f32 0.0, %v2286
        %v2288 = vpop.f32.mrb[0].mxu0
        %v2289 = vpop.f32.mrb[0].mxu0
        %v2290 = vadd.f32 0.0, %v2289
        %v2291 = vpop.f32.mrb[0].mxu0
        %2292 = vmatprep.mubr.bf16.mxu0 0
        %2293 = vmatmul.mubr.bf16.gmra.mrb[0].mxu0 %v1922
        %v2294 = vpop.f32.mrb[0].mxu0
        %v2295 = vadd.f32 0.0, %v2294
        %v2296 = vpop.f32.mrb[0].mxu0
        %v2297 = vpop.f32.mrb[0].mxu0
        %v2298 = vadd.f32 0.0, %v2297
        %v2299 = vpop.f32.mrb[0].mxu0
        %2300 = vmatprep.mubr.bf16.mxu0 0
        %2301 = vmatmul.mubr.bf16.gmra.mrb[0].mxu0 %v2207
        %v2302 = vpop.f32.mrb[0].mxu0
        %v2303 = vadd.f32 0.0, %v2302
        %v2304 = vpop.f32.mrb[0].mxu0
        %v2305 = vpop.f32.mrb[0].mxu0
        %v2306 = vadd.f32 0.0, %v2305
        %v2307 = vpop.f32.mrb[0].mxu0
        %2308 = vdwg.mxu0
        %v2309 = vadd.f32 %v2024, %v2247
        %v2310 = vadd.f32 %v2025, %v2250
        %v2311 = vadd.f32 %v2026, %v2255
        %v2312 = vadd.f32 %v2027, %v2258
        %v2313 = vadd.f32 %v2028, %v2263
        %v2314 = vadd.f32 %v2029, %v2266
        %v2315 = vadd.f32 %v2030, %v2271
        %v2316 = vadd.f32 %v2031, %v2274
        %v2317 = vadd.f32 %v2032, %v2279
        %v2318 = vadd.f32 %v2033, %v2282
        %v2319 = vadd.f32 %v2034, %v2287
        %v2320 = vadd.f32 %v2035, %v2290
        %v2321 = vadd.f32 %v2036, %v2295
        %v2322 = vadd.f32 %v2037, %v2298
        %v2323 = vadd.f32 %v2038, %v2303
        %v2324 = vadd.f32 %v2039, %v2306
        %s2325 = scalar_lea.vmem [#allocation11], 4
        %v2326 = vld [vmem:[%s2325] sm:$0x1]
        %v2328 = vsel %vm856, %v2203, 0
        %v2331 = vsel %vm881, %v2326, 0
        %2333 = vmatprep.subr.bf16.mxu0 0
        %2334 = vmatpush1.bf16.msra.mxu0 %v2331
        %2335 = vmatprep.subr.bf16.mxu0 0
        %2336 = vmatpush1.bf16.msra.mxu0 0
        %2337 = vmatprep.subr.bf16.mxu0 0
        %2338 = vmatpush1.bf16.msra.mxu0 0
        %2339 = vmatprep.subr.bf16.mxu0 0
        %2340 = vmatpush1.bf16.msra.mxu0 0
        %2341 = vmatprep.subr.bf16.mxu0 0
        %2342 = vmatpush1.bf16.msra.mxu0 0
        %2343 = vmatprep.subr.bf16.mxu0 0
        %2344 = vmatpush1.bf16.msra.mxu0 0
        %2345 = vmatprep.subr.bf16.mxu0 0
        %2346 = vmatpush1.bf16.msra.mxu0 0
        %2347 = vmatprep.subr.bf16.mxu0 0
        %2348 = vmatpush1.bf16.msra.mxu0 0
        %2349 = vmatprep.subr.bf16.mxu0 0
        %2350 = vmatpush1.bf16.msra.mxu0 0
        %2351 = vmatprep.subr.bf16.mxu0 0
        %2352 = vmatpush1.bf16.msra.mxu0 0
        %2353 = vmatprep.subr.bf16.mxu0 0
        %2354 = vmatpush1.bf16.msra.mxu0 0
        %2355 = vmatprep.subr.bf16.mxu0 0
        %2356 = vmatpush1.bf16.msra.mxu0 0
        %2357 = vmatprep.subr.bf16.mxu0 0
        %2358 = vmatpush1.bf16.msra.mxu0 0
        %2359 = vmatprep.subr.bf16.mxu0 0
        %2360 = vmatpush1.bf16.msra.mxu0 0
        %2361 = vmatprep.subr.bf16.mxu0 0
        %2362 = vmatpush1.bf16.msra.mxu0 0
        %2363 = vmatprep.subr.bf16.mxu0 0
        %2364 = vmatpush1.bf16.msra.mxu0 0
        %2365 = vmatprep.mubr.bf16.mxu0 0
        %2366 = vmatmul.mubr.bf16.gmra.mrb[0].mxu0 %v2046
        %v2367 = vpop.f32.mrb[0].mxu0
        %v2368 = vadd.f32 0.0, %v2367
        %v2369 = vpop.f32.mrb[0].mxu0
        %v2370 = vpop.f32.mrb[0].mxu0
        %v2371 = vadd.f32 0.0, %v2370
        %v2372 = vpop.f32.mrb[0].mxu0
        %2373 = vmatprep.mubr.bf16.mxu0 0
        %2374 = vmatmul.mubr.bf16.gmra.mrb[0].mxu0 %v2049
        %v2375 = vpop.f32.mrb[0].mxu0
        %v2376 = vadd.f32 0.0, %v2375
        %v2377 = vpop.f32.mrb[0].mxu0
        %v2378 = vpop.f32.mrb[0].mxu0
        %v2379 = vadd.f32 0.0, %v2378
        %v2380 = vpop.f32.mrb[0].mxu0
        %2381 = vmatprep.mubr.bf16.mxu0 0
        %2382 = vmatmul.mubr.bf16.gmra.mrb[0].mxu0 %v2052
        %v2383 = vpop.f32.mrb[0].mxu0
        %v2384 = vadd.f32 0.0, %v2383
        %v2385 = vpop.f32.mrb[0].mxu0
        %v2386 = vpop.f32.mrb[0].mxu0
        %v2387 = vadd.f32 0.0, %v2386
        %v2388 = vpop.f32.mrb[0].mxu0
        %2389 = vmatprep.mubr.bf16.mxu0 0
        %2390 = vmatmul.mubr.bf16.gmra.mrb[0].mxu0 %v2055
        %v2391 = vpop.f32.mrb[0].mxu0
        %v2392 = vadd.f32 0.0, %v2391
        %v2393 = vpop.f32.mrb[0].mxu0
        %v2394 = vpop.f32.mrb[0].mxu0
        %v2395 = vadd.f32 0.0, %v2394
        %v2396 = vpop.f32.mrb[0].mxu0
        %2397 = vmatprep.mubr.bf16.mxu0 0
        %2398 = vmatmul.mubr.bf16.gmra.mrb[0].mxu0 %v2058
        %v2399 = vpop.f32.mrb[0].mxu0
        %v2400 = vadd.f32 0.0, %v2399
        %v2401 = vpop.f32.mrb[0].mxu0
        %v2402 = vpop.f32.mrb[0].mxu0
        %v2403 = vadd.f32 0.0, %v2402
        %v2404 = vpop.f32.mrb[0].mxu0
        %2405 = vmatprep.mubr.bf16.mxu0 0
        %2406 = vmatmul.mubr.bf16.gmra.mrb[0].mxu0 %v2061
        %v2407 = vpop.f32.mrb[0].mxu0
        %v2408 = vadd.f32 0.0, %v2407
        %v2409 = vpop.f32.mrb[0].mxu0
        %v2410 = vpop.f32.mrb[0].mxu0
        %v2411 = vadd.f32 0.0, %v2410
        %v2412 = vpop.f32.mrb[0].mxu0
        %2413 = vmatprep.mubr.bf16.mxu0 0
        %2414 = vmatmul.mubr.bf16.gmra.mrb[0].mxu0 %v2064
        %v2415 = vpop.f32.mrb[0].mxu0
        %v2416 = vadd.f32 0.0, %v2415
        %v2417 = vpop.f32.mrb[0].mxu0
        %v2418 = vpop.f32.mrb[0].mxu0
        %v2419 = vadd.f32 0.0, %v2418
        %v2420 = vpop.f32.mrb[0].mxu0
        %2421 = vmatprep.mubr.bf16.mxu0 0
        %2422 = vmatmul.mubr.bf16.gmra.mrb[0].mxu0 %v2328
        %v2423 = vpop.f32.mrb[0].mxu0
        %v2424 = vadd.f32 0.0, %v2423
        %v2425 = vpop.f32.mrb[0].mxu0
        %v2426 = vpop.f32.mrb[0].mxu0
        %v2427 = vadd.f32 0.0, %v2426
        %v2428 = vpop.f32.mrb[0].mxu0
        %2429 = vdwg.mxu0
        %v2430 = vadd.f32 %v2166, %v2368
        %v2431 = vadd.f32 %v2167, %v2371
        %v2432 = vadd.f32 %v2168, %v2376
        %v2433 = vadd.f32 %v2169, %v2379
        %v2434 = vadd.f32 %v2170, %v2384
        %v2435 = vadd.f32 %v2171, %v2387
        %v2436 = vadd.f32 %v2172, %v2392
        %v2437 = vadd.f32 %v2173, %v2395
        %v2438 = vadd.f32 %v2174, %v2400
        %v2439 = vadd.f32 %v2175, %v2403
        %v2440 = vadd.f32 %v2176, %v2408
        %v2441 = vadd.f32 %v2177, %v2411
        %v2442 = vadd.f32 %v2178, %v2416
        %v2443 = vadd.f32 %v2179, %v2419
        %v2444 = vadd.f32 %v2180, %v2424
        %v2445 = vadd.f32 %v2181, %v2427
        %v2446 = vshrl.u32 %v843, 16
        %v2448 = vshll.u32 %v843, 16
        %v2450 = vrot.slane %v2448, 1
        %v2451 = vor.u32 %v2446, %v2450
        %v2453 = vshll.u32 %v1710, 16
        %v2455 = vrot.slane %v2453, 1
        %v2456 = vsel %vm1721, %v2451, %v2455
        %v2457 = vshrl.u32 %v853, 16
        %v2459 = vshll.u32 %v853, 16
        %v2461 = vrot.slane %v2459, 1
        %v2462 = vor.u32 %v2457, %v2461
        %v2464 = vshll.u32 %v1720, 16
        %v2466 = vrot.slane %v2464, 1
        %v2467 = vsel %vm1721, %v2462, %v2466
        %s2468 = scalar_lea.vmem [#allocation10], 7
        %v2469 = vld [vmem:[%s2468] sm:$0x1]
        %v2471 = vsel %vm856, %v2456, 0
        %v2474 = vsel %vm881, %v2469, 0
        %2476 = vmatprep.subr.bf16.mxu0 0
        %2477 = vmatpush1.bf16.msra.mxu0 %v2474
        %2478 = vmatprep.subr.bf16.mxu0 0
        %2479 = vmatpush1.bf16.msra.mxu0 0
        %2480 = vmatprep.subr.bf16.mxu0 0
        %2481 = vmatpush1.bf16.msra.mxu0 0
        %2482 = vmatprep.subr.bf16.mxu0 0
        %2483 = vmatpush1.bf16.msra.mxu0 0
        %2484 = vmatprep.subr.bf16.mxu0 0
        %2485 = vmatpush1.bf16.msra.mxu0 0
        %2486 = vmatprep.subr.bf16.mxu0 0
        %2487 = vmatpush1.bf16.msra.mxu0 0
        %2488 = vmatprep.subr.bf16.mxu0 0
        %2489 = vmatpush1.bf16.msra.mxu0 0
        %2490 = vmatprep.subr.bf16.mxu0 0
        %2491 = vmatpush1.bf16.msra.mxu0 0
        %2492 = vmatprep.subr.bf16.mxu0 0
        %2493 = vmatpush1.bf16.msra.mxu0 0
        %2494 = vmatprep.subr.bf16.mxu0 0
        %2495 = vmatpush1.bf16.msra.mxu0 0
        %2496 = vmatprep.subr.bf16.mxu0 0
        %2497 = vmatpush1.bf16.msra.mxu0 0
        %2498 = vmatprep.subr.bf16.mxu0 0
        %2499 = vmatpush1.bf16.msra.mxu0 0
        %2500 = vmatprep.subr.bf16.mxu0 0
        %2501 = vmatpush1.bf16.msra.mxu0 0
        %2502 = vmatprep.subr.bf16.mxu0 0
        %2503 = vmatpush1.bf16.msra.mxu0 0
        %2504 = vmatprep.subr.bf16.mxu0 0
        %2505 = vmatpush1.bf16.msra.mxu0 0
        %2506 = vmatprep.subr.bf16.mxu0 0
        %2507 = vmatpush1.bf16.msra.mxu0 0
        %2508 = vmatprep.mubr.bf16.mxu0 0
        %2509 = vmatmul.mubr.bf16.gmra.mrb[0].mxu0 %v1907
        %v2510 = vpop.f32.mrb[0].mxu0
        %v2511 = vadd.f32 0.0, %v2510
        %v2512 = vpop.f32.mrb[0].mxu0
        %v2513 = vpop.f32.mrb[0].mxu0
        %v2514 = vadd.f32 0.0, %v2513
        %v2515 = vpop.f32.mrb[0].mxu0
        %2516 = vmatprep.mubr.bf16.mxu0 0
        %2517 = vmatmul.mubr.bf16.gmra.mrb[0].mxu0 %v1910
        %v2518 = vpop.f32.mrb[0].mxu0
        %v2519 = vadd.f32 0.0, %v2518
        %v2520 = vpop.f32.mrb[0].mxu0
        %v2521 = vpop.f32.mrb[0].mxu0
        %v2522 = vadd.f32 0.0, %v2521
        %v2523 = vpop.f32.mrb[0].mxu0
        %2524 = vmatprep.mubr.bf16.mxu0 0
        %2525 = vmatmul.mubr.bf16.gmra.mrb[0].mxu0 %v1913
        %v2526 = vpop.f32.mrb[0].mxu0
        %v2527 = vadd.f32 0.0, %v2526
        %v2528 = vpop.f32.mrb[0].mxu0
        %v2529 = vpop.f32.mrb[0].mxu0
        %v2530 = vadd.f32 0.0, %v2529
        %v2531 = vpop.f32.mrb[0].mxu0
        %2532 = vmatprep.mubr.bf16.mxu0 0
        %2533 = vmatmul.mubr.bf16.gmra.mrb[0].mxu0 %v1916
        %v2534 = vpop.f32.mrb[0].mxu0
        %v2535 = vadd.f32 0.0, %v2534
        %v2536 = vpop.f32.mrb[0].mxu0
        %v2537 = vpop.f32.mrb[0].mxu0
        %v2538 = vadd.f32 0.0, %v2537
        %v2539 = vpop.f32.mrb[0].mxu0
        %2540 = vmatprep.mubr.bf16.mxu0 0
        %2541 = vmatmul.mubr.bf16.gmra.mrb[0].mxu0 %v1919
        %v2542 = vpop.f32.mrb[0].mxu0
        %v2543 = vadd.f32 0.0, %v2542
        %v2544 = vpop.f32.mrb[0].mxu0
        %v2545 = vpop.f32.mrb[0].mxu0
        %v2546 = vadd.f32 0.0, %v2545
        %v2547 = vpop.f32.mrb[0].mxu0
        %2548 = vmatprep.mubr.bf16.mxu0 0
        %2549 = vmatmul.mubr.bf16.gmra.mrb[0].mxu0 %v1922
        %v2550 = vpop.f32.mrb[0].mxu0
        %v2551 = vadd.f32 0.0, %v2550
        %v2552 = vpop.f32.mrb[0].mxu0
        %v2553 = vpop.f32.mrb[0].mxu0
        %v2554 = vadd.f32 0.0, %v2553
        %v2555 = vpop.f32.mrb[0].mxu0
        %2556 = vmatprep.mubr.bf16.mxu0 0
        %2557 = vmatmul.mubr.bf16.gmra.mrb[0].mxu0 %v2207
        %v2558 = vpop.f32.mrb[0].mxu0
        %v2559 = vadd.f32 0.0, %v2558
        %v2560 = vpop.f32.mrb[0].mxu0
        %v2561 = vpop.f32.mrb[0].mxu0
        %v2562 = vadd.f32 0.0, %v2561
        %v2563 = vpop.f32.mrb[0].mxu0
        %2564 = vmatprep.mubr.bf16.mxu0 0
        %2565 = vmatmul.mubr.bf16.gmra.mrb[0].mxu0 %v2471
        %v2566 = vpop.f32.mrb[0].mxu0
        %v2567 = vadd.f32 0.0, %v2566
        %v2568 = vpop.f32.mrb[0].mxu0
        %v2569 = vpop.f32.mrb[0].mxu0
        %v2570 = vadd.f32 0.0, %v2569
        %v2571 = vpop.f32.mrb[0].mxu0
        %2572 = vdwg.mxu0
        %v2573 = vadd.f32 %v2309, %v2511
        %v2574 = vadd.f32 %v2310, %v2514
        %v2575 = vadd.f32 %v2311, %v2519
        %v2576 = vadd.f32 %v2312, %v2522
        %v2577 = vadd.f32 %v2313, %v2527
        %v2578 = vadd.f32 %v2314, %v2530
        %v2579 = vadd.f32 %v2315, %v2535
        %v2580 = vadd.f32 %v2316, %v2538
        %v2581 = vadd.f32 %v2317, %v2543
        %v2582 = vadd.f32 %v2318, %v2546
        %v2583 = vadd.f32 %v2319, %v2551
        %v2584 = vadd.f32 %v2320, %v2554
        %v2585 = vadd.f32 %v2321, %v2559
        %v2586 = vadd.f32 %v2322, %v2562
        %v2587 = vadd.f32 %v2323, %v2567
        %v2588 = vadd.f32 %v2324, %v2570
        %s2589 = scalar_lea.vmem [#allocation11], 7
        %v2590 = vld [vmem:[%s2589] sm:$0x1]
        %v2592 = vsel %vm856, %v2467, 0
        %v2595 = vsel %vm881, %v2590, 0
        %2597 = vmatprep.subr.bf16.mxu0 0
        %2598 = vmatpush1.bf16.msra.mxu0 %v2595
        %2599 = vmatprep.subr.bf16.mxu0 0
        %2600 = vmatpush1.bf16.msra.mxu0 0
        %2601 = vmatprep.subr.bf16.mxu0 0
        %2602 = vmatpush1.bf16.msra.mxu0 0
        %2603 = vmatprep.subr.bf16.mxu0 0
        %2604 = vmatpush1.bf16.msra.mxu0 0
        %2605 = vmatprep.subr.bf16.mxu0 0
        %2606 = vmatpush1.bf16.msra.mxu0 0
        %2607 = vmatprep.subr.bf16.mxu0 0
        %2608 = vmatpush1.bf16.msra.mxu0 0
        %2609 = vmatprep.subr.bf16.mxu0 0
        %2610 = vmatpush1.bf16.msra.mxu0 0
        %2611 = vmatprep.subr.bf16.mxu0 0
        %2612 = vmatpush1.bf16.msra.mxu0 0
        %2613 = vmatprep.subr.bf16.mxu0 0
        %2614 = vmatpush1.bf16.msra.mxu0 0
        %2615 = vmatprep.subr.bf16.mxu0 0
        %2616 = vmatpush1.bf16.msra.mxu0 0
        %2617 = vmatprep.subr.bf16.mxu0 0
        %2618 = vmatpush1.bf16.msra.mxu0 0
        %2619 = vmatprep.subr.bf16.mxu0 0
        %2620 = vmatpush1.bf16.msra.mxu0 0
        %2621 = vmatprep.subr.bf16.mxu0 0
        %2622 = vmatpush1.bf16.msra.mxu0 0
        %2623 = vmatprep.subr.bf16.mxu0 0
        %2624 = vmatpush1.bf16.msra.mxu0 0
        %2625 = vmatprep.subr.bf16.mxu0 0
        %2626 = vmatpush1.bf16.msra.mxu0 0
        %2627 = vmatprep.subr.bf16.mxu0 0
        %2628 = vmatpush1.bf16.msra.mxu0 0
        %2629 = vmatprep.mubr.bf16.mxu0 0
        %2630 = vmatmul.mubr.bf16.gmra.mrb[0].mxu0 %v2049
        %v2631 = vpop.f32.mrb[0].mxu0
        %v2632 = vadd.f32 0.0, %v2631
        %v2633 = vpop.f32.mrb[0].mxu0
        %v2634 = vpop.f32.mrb[0].mxu0
        %v2635 = vadd.f32 0.0, %v2634
        %v2636 = vpop.f32.mrb[0].mxu0
        %2637 = vmatprep.mubr.bf16.mxu0 0
        %2638 = vmatmul.mubr.bf16.gmra.mrb[0].mxu0 %v2052
        %v2639 = vpop.f32.mrb[0].mxu0
        %v2640 = vadd.f32 0.0, %v2639
        %v2641 = vpop.f32.mrb[0].mxu0
        %v2642 = vpop.f32.mrb[0].mxu0
        %v2643 = vadd.f32 0.0, %v2642
        %v2644 = vpop.f32.mrb[0].mxu0
        %2645 = vmatprep.mubr.bf16.mxu0 0
        %2646 = vmatmul.mubr.bf16.gmra.mrb[0].mxu0 %v2055
        %v2647 = vpop.f32.mrb[0].mxu0
        %v2648 = vadd.f32 0.0, %v2647
        %v2649 = vpop.f32.mrb[0].mxu0
        %v2650 = vpop.f32.mrb[0].mxu0
        %v2651 = vadd.f32 0.0, %v2650
        %v2652 = vpop.f32.mrb[0].mxu0
        %2653 = vmatprep.mubr.bf16.mxu0 0
        %2654 = vmatmul.mubr.bf16.gmra.mrb[0].mxu0 %v2058
        %v2655 = vpop.f32.mrb[0].mxu0
        %v2656 = vadd.f32 0.0, %v2655
        %v2657 = vpop.f32.mrb[0].mxu0
        %v2658 = vpop.f32.mrb[0].mxu0
        %v2659 = vadd.f32 0.0, %v2658
        %v2660 = vpop.f32.mrb[0].mxu0
        %2661 = vmatprep.mubr.bf16.mxu0 0
        %2662 = vmatmul.mubr.bf16.gmra.mrb[0].mxu0 %v2061
        %v2663 = vpop.f32.mrb[0].mxu0
        %v2664 = vadd.f32 0.0, %v2663
        %v2665 = vpop.f32.mrb[0].mxu0
        %v2666 = vpop.f32.mrb[0].mxu0
        %v2667 = vadd.f32 0.0, %v2666
        %v2668 = vpop.f32.mrb[0].mxu0
        %2669 = vmatprep.mubr.bf16.mxu0 0
        %2670 = vmatmul.mubr.bf16.gmra.mrb[0].mxu0 %v2064
        %v2671 = vpop.f32.mrb[0].mxu0
        %v2672 = vadd.f32 0.0, %v2671
        %v2673 = vpop.f32.mrb[0].mxu0
        %v2674 = vpop.f32.mrb[0].mxu0
        %v2675 = vadd.f32 0.0, %v2674
        %v2676 = vpop.f32.mrb[0].mxu0
        %2677 = vmatprep.mubr.bf16.mxu0 0
        %2678 = vmatmul.mubr.bf16.gmra.mrb[0].mxu0 %v2328
        %v2679 = vpop.f32.mrb[0].mxu0
        %v2680 = vadd.f32 0.0, %v2679
        %v2681 = vpop.f32.mrb[0].mxu0
        %v2682 = vpop.f32.mrb[0].mxu0
        %v2683 = vadd.f32 0.0, %v2682
        %v2684 = vpop.f32.mrb[0].mxu0
        %2685 = vmatprep.mubr.bf16.mxu0 0
        %2686 = vmatmul.mubr.bf16.gmra.mrb[0].mxu0 %v2592
        %v2687 = vpop.f32.mrb[0].mxu0
        %v2688 = vadd.f32 0.0, %v2687
        %v2689 = vpop.f32.mrb[0].mxu0
        %v2690 = vpop.f32.mrb[0].mxu0
        %v2691 = vadd.f32 0.0, %v2690
        %v2692 = vpop.f32.mrb[0].mxu0
        %2693 = vdwg.mxu0
        %v2694 = vadd.f32 %v2430, %v2632
        %v2695 = vadd.f32 %v2431, %v2635
        %v2696 = vadd.f32 %v2432, %v2640
        %v2697 = vadd.f32 %v2433, %v2643
        %v2698 = vadd.f32 %v2434, %v2648
        %v2699 = vadd.f32 %v2435, %v2651
        %v2700 = vadd.f32 %v2436, %v2656
        %v2701 = vadd.f32 %v2437, %v2659
        %v2702 = vadd.f32 %v2438, %v2664
        %v2703 = vadd.f32 %v2439, %v2667
        %v2704 = vadd.f32 %v2440, %v2672
        %v2705 = vadd.f32 %v2441, %v2675
        %v2706 = vadd.f32 %v2442, %v2680
        %v2707 = vadd.f32 %v2443, %v2683
        %v2708 = vadd.f32 %v2444, %v2688
        %v2709 = vadd.f32 %v2445, %v2691
        %vm2726 = vcmask 1046528
        %v2727 = vrot.slane %v834, 1
        %v2728 = vrot.slane %v1701, 1
        %v2729 = vsel %vm2726, %v2727, %v2728
        %v2730 = vrot.slane %v835, 1
        %v2731 = vrot.slane %v1702, 1
        %v2732 = vsel %vm2726, %v2730, %v2731
        %v2733 = vrot.slane %v836, 1
        %v2734 = vrot.slane %v1703, 1
        %v2735 = vsel %vm2726, %v2733, %v2734
        %v2736 = vrot.slane %v837, 1
        %v2737 = vrot.slane %v1704, 1
        %v2738 = vsel %vm2726, %v2736, %v2737
        %v2739 = vrot.slane %v838, 1
        %v2740 = vrot.slane %v1705, 1
        %v2741 = vsel %vm2726, %v2739, %v2740
        %v2742 = vrot.slane %v839, 1
        %v2743 = vrot.slane %v1706, 1
        %v2744 = vsel %vm2726, %v2742, %v2743
        %v2745 = vrot.slane %v840, 1
        %v2746 = vrot.slane %v1707, 1
        %v2747 = vsel %vm2726, %v2745, %v2746
        %v2748 = vrot.slane %v841, 1
        %v2749 = vrot.slane %v1708, 1
        %v2750 = vsel %vm2726, %v2748, %v2749
        %v2767 = vrot.slane %v844, 1
        %v2768 = vrot.slane %v1711, 1
        %v2769 = vsel %vm2726, %v2767, %v2768
        %v2770 = vrot.slane %v845, 1
        %v2771 = vrot.slane %v1712, 1
        %v2772 = vsel %vm2726, %v2770, %v2771
        %v2773 = vrot.slane %v846, 1
        %v2774 = vrot.slane %v1713, 1
        %v2775 = vsel %vm2726, %v2773, %v2774
        %v2776 = vrot.slane %v847, 1
        %v2777 = vrot.slane %v1714, 1
        %v2778 = vsel %vm2726, %v2776, %v2777
        %v2779 = vrot.slane %v848, 1
        %v2780 = vrot.slane %v1715, 1
        %v2781 = vsel %vm2726, %v2779, %v2780
        %v2782 = vrot.slane %v849, 1
        %v2783 = vrot.slane %v1716, 1
        %v2784 = vsel %vm2726, %v2782, %v2783
        %v2785 = vrot.slane %v850, 1
        %v2786 = vrot.slane %v1717, 1
        %v2787 = vsel %vm2726, %v2785, %v2786
        %v2788 = vrot.slane %v851, 1
        %v2789 = vrot.slane %v1718, 1
        %v2790 = vsel %vm2726, %v2788, %v2789
        %s2791 = scalar_lea.vmem [#allocation10], 2
        %v2792 = vld [vmem:[%s2791] sm:$0x1]
        %v2794 = vsel %vm856, %v2729, 0
        %v2797 = vsel %vm856, %v2732, 0
        %v2800 = vsel %vm856, %v2735, 0
        %v2803 = vsel %vm856, %v2738, 0
        %v2806 = vsel %vm856, %v2741, 0
        %v2809 = vsel %vm856, %v2744, 0
        %v2812 = vsel %vm856, %v2747, 0
        %v2815 = vsel %vm856, %v2750, 0
        %v2818 = vsel %vm881, %v2792, 0
        %2820 = vmatprep.subr.bf16.mxu0 0
        %2821 = vmatpush1.bf16.msra.mxu0 %v2818
        %2822 = vmatprep.subr.bf16.mxu0 0
        %2823 = vmatpush1.bf16.msra.mxu0 0
        %2824 = vmatprep.subr.bf16.mxu0 0
        %2825 = vmatpush1.bf16.msra.mxu0 0
        %2826 = vmatprep.subr.bf16.mxu0 0
        %2827 = vmatpush1.bf16.msra.mxu0 0
        %2828 = vmatprep.subr.bf16.mxu0 0
        %2829 = vmatpush1.bf16.msra.mxu0 0
        %2830 = vmatprep.subr.bf16.mxu0 0
        %2831 = vmatpush1.bf16.msra.mxu0 0
        %2832 = vmatprep.subr.bf16.mxu0 0
        %2833 = vmatpush1.bf16.msra.mxu0 0
        %2834 = vmatprep.subr.bf16.mxu0 0
        %2835 = vmatpush1.bf16.msra.mxu0 0
        %2836 = vmatprep.subr.bf16.mxu0 0
        %2837 = vmatpush1.bf16.msra.mxu0 0
        %2838 = vmatprep.subr.bf16.mxu0 0
        %2839 = vmatpush1.bf16.msra.mxu0 0
        %2840 = vmatprep.subr.bf16.mxu0 0
        %2841 = vmatpush1.bf16.msra.mxu0 0
        %2842 = vmatprep.subr.bf16.mxu0 0
        %2843 = vmatpush1.bf16.msra.mxu0 0
        %2844 = vmatprep.subr.bf16.mxu0 0
        %2845 = vmatpush1.bf16.msra.mxu0 0
        %2846 = vmatprep.subr.bf16.mxu0 0
        %2847 = vmatpush1.bf16.msra.mxu0 0
        %2848 = vmatprep.subr.bf16.mxu0 0
        %2849 = vmatpush1.bf16.msra.mxu0 0
        %2850 = vmatprep.subr.bf16.mxu0 0
        %2851 = vmatpush1.bf16.msra.mxu0 0
        %2852 = vmatprep.mubr.bf16.mxu0 0
        %2853 = vmatmul.mubr.bf16.gmra.mrb[0].mxu0 %v2794
        %v2854 = vpop.f32.mrb[0].mxu0
        %v2855 = vadd.f32 0.0, %v2854
        %v2856 = vpop.f32.mrb[0].mxu0
        %v2857 = vpop.f32.mrb[0].mxu0
        %v2858 = vadd.f32 0.0, %v2857
        %v2859 = vpop.f32.mrb[0].mxu0
        %2860 = vmatprep.mubr.bf16.mxu0 0
        %2861 = vmatmul.mubr.bf16.gmra.mrb[0].mxu0 %v2797
        %v2862 = vpop.f32.mrb[0].mxu0
        %v2863 = vadd.f32 0.0, %v2862
        %v2864 = vpop.f32.mrb[0].mxu0
        %v2865 = vpop.f32.mrb[0].mxu0
        %v2866 = vadd.f32 0.0, %v2865
        %v2867 = vpop.f32.mrb[0].mxu0
        %2868 = vmatprep.mubr.bf16.mxu0 0
        %2869 = vmatmul.mubr.bf16.gmra.mrb[0].mxu0 %v2800
        %v2870 = vpop.f32.mrb[0].mxu0
        %v2871 = vadd.f32 0.0, %v2870
        %v2872 = vpop.f32.mrb[0].mxu0
        %v2873 = vpop.f32.mrb[0].mxu0
        %v2874 = vadd.f32 0.0, %v2873
        %v2875 = vpop.f32.mrb[0].mxu0
        %2876 = vmatprep.mubr.bf16.mxu0 0
        %2877 = vmatmul.mubr.bf16.gmra.mrb[0].mxu0 %v2803
        %v2878 = vpop.f32.mrb[0].mxu0
        %v2879 = vadd.f32 0.0, %v2878
        %v2880 = vpop.f32.mrb[0].mxu0
        %v2881 = vpop.f32.mrb[0].mxu0
        %v2882 = vadd.f32 0.0, %v2881
        %v2883 = vpop.f32.mrb[0].mxu0
        %2884 = vmatprep.mubr.bf16.mxu0 0
        %2885 = vmatmul.mubr.bf16.gmra.mrb[0].mxu0 %v2806
        %v2886 = vpop.f32.mrb[0].mxu0
        %v2887 = vadd.f32 0.0, %v2886
        %v2888 = vpop.f32.mrb[0].mxu0
        %v2889 = vpop.f32.mrb[0].mxu0
        %v2890 = vadd.f32 0.0, %v2889
        %v2891 = vpop.f32.mrb[0].mxu0
        %2892 = vmatprep.mubr.bf16.mxu0 0
        %2893 = vmatmul.mubr.bf16.gmra.mrb[0].mxu0 %v2809
        %v2894 = vpop.f32.mrb[0].mxu0
        %v2895 = vadd.f32 0.0, %v2894
        %v2896 = vpop.f32.mrb[0].mxu0
        %v2897 = vpop.f32.mrb[0].mxu0
        %v2898 = vadd.f32 0.0, %v2897
        %v2899 = vpop.f32.mrb[0].mxu0
        %2900 = vmatprep.mubr.bf16.mxu0 0
        %2901 = vmatmul.mubr.bf16.gmra.mrb[0].mxu0 %v2812
        %v2902 = vpop.f32.mrb[0].mxu0
        %v2903 = vadd.f32 0.0, %v2902
        %v2904 = vpop.f32.mrb[0].mxu0
        %v2905 = vpop.f32.mrb[0].mxu0
        %v2906 = vadd.f32 0.0, %v2905
        %v2907 = vpop.f32.mrb[0].mxu0
        %2908 = vmatprep.mubr.bf16.mxu0 0
        %2909 = vmatmul.mubr.bf16.gmra.mrb[0].mxu0 %v2815
        %v2910 = vpop.f32.mrb[0].mxu0
        %v2911 = vadd.f32 0.0, %v2910
        %v2912 = vpop.f32.mrb[0].mxu0
        %v2913 = vpop.f32.mrb[0].mxu0
        %v2914 = vadd.f32 0.0, %v2913
        %v2915 = vpop.f32.mrb[0].mxu0
        %2916 = vdwg.mxu0
        %v2917 = vadd.f32 %v2573, %v2855
        %v2918 = vadd.f32 %v2574, %v2858
        %v2919 = vadd.f32 %v2575, %v2863
        %v2920 = vadd.f32 %v2576, %v2866
        %v2921 = vadd.f32 %v2577, %v2871
        %v2922 = vadd.f32 %v2578, %v2874
        %v2923 = vadd.f32 %v2579, %v2879
        %v2924 = vadd.f32 %v2580, %v2882
        %v2925 = vadd.f32 %v2581, %v2887
        %v2926 = vadd.f32 %v2582, %v2890
        %v2927 = vadd.f32 %v2583, %v2895
        %v2928 = vadd.f32 %v2584, %v2898
        %v2929 = vadd.f32 %v2585, %v2903
        %v2930 = vadd.f32 %v2586, %v2906
        %v2931 = vadd.f32 %v2587, %v2911
        %v2932 = vadd.f32 %v2588, %v2914
        %s2933 = scalar_lea.vmem [#allocation11], 2
        %v2934 = vld [vmem:[%s2933] sm:$0x1]
        %v2936 = vsel %vm856, %v2769, 0
        %v2939 = vsel %vm856, %v2772, 0
        %v2942 = vsel %vm856, %v2775, 0
        %v2945 = vsel %vm856, %v2778, 0
        %v2948 = vsel %vm856, %v2781, 0
        %v2951 = vsel %vm856, %v2784, 0
        %v2954 = vsel %vm856, %v2787, 0
        %v2957 = vsel %vm856, %v2790, 0
        %v2960 = vsel %vm881, %v2934, 0
        %2962 = vmatprep.subr.bf16.mxu0 0
        %2963 = vmatpush1.bf16.msra.mxu0 %v2960
        %2964 = vmatprep.subr.bf16.mxu0 0
        %2965 = vmatpush1.bf16.msra.mxu0 0
        %2966 = vmatprep.subr.bf16.mxu0 0
        %2967 = vmatpush1.bf16.msra.mxu0 0
        %2968 = vmatprep.subr.bf16.mxu0 0
        %2969 = vmatpush1.bf16.msra.mxu0 0
        %2970 = vmatprep.subr.bf16.mxu0 0
        %2971 = vmatpush1.bf16.msra.mxu0 0
        %2972 = vmatprep.subr.bf16.mxu0 0
        %2973 = vmatpush1.bf16.msra.mxu0 0
        %2974 = vmatprep.subr.bf16.mxu0 0
        %2975 = vmatpush1.bf16.msra.mxu0 0
        %2976 = vmatprep.subr.bf16.mxu0 0
        %2977 = vmatpush1.bf16.msra.mxu0 0
        %2978 = vmatprep.subr.bf16.mxu0 0
        %2979 = vmatpush1.bf16.msra.mxu0 0
        %2980 = vmatprep.subr.bf16.mxu0 0
        %2981 = vmatpush1.bf16.msra.mxu0 0
        %2982 = vmatprep.subr.bf16.mxu0 0
        %2983 = vmatpush1.bf16.msra.mxu0 0
        %2984 = vmatprep.subr.bf16.mxu0 0
        %2985 = vmatpush1.bf16.msra.mxu0 0
        %2986 = vmatprep.subr.bf16.mxu0 0
        %2987 = vmatpush1.bf16.msra.mxu0 0
        %2988 = vmatprep.subr.bf16.mxu0 0
        %2989 = vmatpush1.bf16.msra.mxu0 0
        %2990 = vmatprep.subr.bf16.mxu0 0
        %2991 = vmatpush1.bf16.msra.mxu0 0
        %2992 = vmatprep.subr.bf16.mxu0 0
        %2993 = vmatpush1.bf16.msra.mxu0 0
        %2994 = vmatprep.mubr.bf16.mxu0 0
        %2995 = vmatmul.mubr.bf16.gmra.mrb[0].mxu0 %v2936
        %v2996 = vpop.f32.mrb[0].mxu0
        %v2997 = vadd.f32 0.0, %v2996
        %v2998 = vpop.f32.mrb[0].mxu0
        %v2999 = vpop.f32.mrb[0].mxu0
        %v3000 = vadd.f32 0.0, %v2999
        %v3001 = vpop.f32.mrb[0].mxu0
        %3002 = vmatprep.mubr.bf16.mxu0 0
        %3003 = vmatmul.mubr.bf16.gmra.mrb[0].mxu0 %v2939
        %v3004 = vpop.f32.mrb[0].mxu0
        %v3005 = vadd.f32 0.0, %v3004
        %v3006 = vpop.f32.mrb[0].mxu0
        %v3007 = vpop.f32.mrb[0].mxu0
        %v3008 = vadd.f32 0.0, %v3007
        %v3009 = vpop.f32.mrb[0].mxu0
        %3010 = vmatprep.mubr.bf16.mxu0 0
        %3011 = vmatmul.mubr.bf16.gmra.mrb[0].mxu0 %v2942
        %v3012 = vpop.f32.mrb[0].mxu0
        %v3013 = vadd.f32 0.0, %v3012
        %v3014 = vpop.f32.mrb[0].mxu0
        %v3015 = vpop.f32.mrb[0].mxu0
        %v3016 = vadd.f32 0.0, %v3015
        %v3017 = vpop.f32.mrb[0].mxu0
        %3018 = vmatprep.mubr.bf16.mxu0 0
        %3019 = vmatmul.mubr.bf16.gmra.mrb[0].mxu0 %v2945
        %v3020 = vpop.f32.mrb[0].mxu0
        %v3021 = vadd.f32 0.0, %v3020
        %v3022 = vpop.f32.mrb[0].mxu0
        %v3023 = vpop.f32.mrb[0].mxu0
        %v3024 = vadd.f32 0.0, %v3023
        %v3025 = vpop.f32.mrb[0].mxu0
        %3026 = vmatprep.mubr.bf16.mxu0 0
        %3027 = vmatmul.mubr.bf16.gmra.mrb[0].mxu0 %v2948
        %v3028 = vpop.f32.mrb[0].mxu0
        %v3029 = vadd.f32 0.0, %v3028
        %v3030 = vpop.f32.mrb[0].mxu0
        %v3031 = vpop.f32.mrb[0].mxu0
        %v3032 = vadd.f32 0.0, %v3031
        %v3033 = vpop.f32.mrb[0].mxu0
        %3034 = vmatprep.mubr.bf16.mxu0 0
        %3035 = vmatmul.mubr.bf16.gmra.mrb[0].mxu0 %v2951
        %v3036 = vpop.f32.mrb[0].mxu0
        %v3037 = vadd.f32 0.0, %v3036
        %v3038 = vpop.f32.mrb[0].mxu0
        %v3039 = vpop.f32.mrb[0].mxu0
        %v3040 = vadd.f32 0.0, %v3039
        %v3041 = vpop.f32.mrb[0].mxu0
        %3042 = vmatprep.mubr.bf16.mxu0 0
        %3043 = vmatmul.mubr.bf16.gmra.mrb[0].mxu0 %v2954
        %v3044 = vpop.f32.mrb[0].mxu0
        %v3045 = vadd.f32 0.0, %v3044
        %v3046 = vpop.f32.mrb[0].mxu0
        %v3047 = vpop.f32.mrb[0].mxu0
        %v3048 = vadd.f32 0.0, %v3047
        %v3049 = vpop.f32.mrb[0].mxu0
        %3050 = vmatprep.mubr.bf16.mxu0 0
        %3051 = vmatmul.mubr.bf16.gmra.mrb[0].mxu0 %v2957
        %v3052 = vpop.f32.mrb[0].mxu0
        %v3053 = vadd.f32 0.0, %v3052
        %v3054 = vpop.f32.mrb[0].mxu0
        %v3055 = vpop.f32.mrb[0].mxu0
        %v3056 = vadd.f32 0.0, %v3055
        %v3057 = vpop.f32.mrb[0].mxu0
        %3058 = vdwg.mxu0
        %v3059 = vadd.f32 %v2694, %v2997
        %v3060 = vadd.f32 %v2695, %v3000
        %v3061 = vadd.f32 %v2696, %v3005
        %v3062 = vadd.f32 %v2697, %v3008
        %v3063 = vadd.f32 %v2698, %v3013
        %v3064 = vadd.f32 %v2699, %v3016
        %v3065 = vadd.f32 %v2700, %v3021
        %v3066 = vadd.f32 %v2701, %v3024
        %v3067 = vadd.f32 %v2702, %v3029
        %v3068 = vadd.f32 %v2703, %v3032
        %v3069 = vadd.f32 %v2704, %v3037
        %v3070 = vadd.f32 %v2705, %v3040
        %v3071 = vadd.f32 %v2706, %v3045
        %v3072 = vadd.f32 %v2707, %v3048
        %v3073 = vadd.f32 %v2708, %v3053
        %v3074 = vadd.f32 %v2709, %v3056
        %v3077 = vrot.slane %v842, 1
        %v3078 = vrot.slane %v1709, 1
        %v3079 = vsel %vm2726, %v3077, %v3078
        %v3082 = vrot.slane %v852, 1
        %v3083 = vrot.slane %v1719, 1
        %v3084 = vsel %vm2726, %v3082, %v3083
        %s3085 = scalar_lea.vmem [#allocation10], 5
        %v3086 = vld [vmem:[%s3085] sm:$0x1]
        %v3088 = vsel %vm856, %v3079, 0
        %v3091 = vsel %vm881, %v3086, 0
        %3093 = vmatprep.subr.bf16.mxu0 0
        %3094 = vmatpush1.bf16.msra.mxu0 %v3091
        %3095 = vmatprep.subr.bf16.mxu0 0
        %3096 = vmatpush1.bf16.msra.mxu0 0
        %3097 = vmatprep.subr.bf16.mxu0 0
        %3098 = vmatpush1.bf16.msra.mxu0 0
        %3099 = vmatprep.subr.bf16.mxu0 0
        %3100 = vmatpush1.bf16.msra.mxu0 0
        %3101 = vmatprep.subr.bf16.mxu0 0
        %3102 = vmatpush1.bf16.msra.mxu0 0
        %3103 = vmatprep.subr.bf16.mxu0 0
        %3104 = vmatpush1.bf16.msra.mxu0 0
        %3105 = vmatprep.subr.bf16.mxu0 0
        %3106 = vmatpush1.bf16.msra.mxu0 0
        %3107 = vmatprep.subr.bf16.mxu0 0
        %3108 = vmatpush1.bf16.msra.mxu0 0
        %3109 = vmatprep.subr.bf16.mxu0 0
        %3110 = vmatpush1.bf16.msra.mxu0 0
        %3111 = vmatprep.subr.bf16.mxu0 0
        %3112 = vmatpush1.bf16.msra.mxu0 0
        %3113 = vmatprep.subr.bf16.mxu0 0
        %3114 = vmatpush1.bf16.msra.mxu0 0
        %3115 = vmatprep.subr.bf16.mxu0 0
        %3116 = vmatpush1.bf16.msra.mxu0 0
        %3117 = vmatprep.subr.bf16.mxu0 0
        %3118 = vmatpush1.bf16.msra.mxu0 0
        %3119 = vmatprep.subr.bf16.mxu0 0
        %3120 = vmatpush1.bf16.msra.mxu0 0
        %3121 = vmatprep.subr.bf16.mxu0 0
        %3122 = vmatpush1.bf16.msra.mxu0 0
        %3123 = vmatprep.subr.bf16.mxu0 0
        %3124 = vmatpush1.bf16.msra.mxu0 0
        %3125 = vmatprep.mubr.bf16.mxu0 0
        %3126 = vmatmul.mubr.bf16.gmra.mrb[0].mxu0 %v2797
        %v3127 = vpop.f32.mrb[0].mxu0
        %v3128 = vadd.f32 0.0, %v3127
        %v3129 = vpop.f32.mrb[0].mxu0
        %v3130 = vpop.f32.mrb[0].mxu0
        %v3131 = vadd.f32 0.0, %v3130
        %v3132 = vpop.f32.mrb[0].mxu0
        %3133 = vmatprep.mubr.bf16.mxu0 0
        %3134 = vmatmul.mubr.bf16.gmra.mrb[0].mxu0 %v2800
        %v3135 = vpop.f32.mrb[0].mxu0
        %v3136 = vadd.f32 0.0, %v3135
        %v3137 = vpop.f32.mrb[0].mxu0
        %v3138 = vpop.f32.mrb[0].mxu0
        %v3139 = vadd.f32 0.0, %v3138
        %v3140 = vpop.f32.mrb[0].mxu0
        %3141 = vmatprep.mubr.bf16.mxu0 0
        %3142 = vmatmul.mubr.bf16.gmra.mrb[0].mxu0 %v2803
        %v3143 = vpop.f32.mrb[0].mxu0
        %v3144 = vadd.f32 0.0, %v3143
        %v3145 = vpop.f32.mrb[0].mxu0
        %v3146 = vpop.f32.mrb[0].mxu0
        %v3147 = vadd.f32 0.0, %v3146
        %v3148 = vpop.f32.mrb[0].mxu0
        %3149 = vmatprep.mubr.bf16.mxu0 0
        %3150 = vmatmul.mubr.bf16.gmra.mrb[0].mxu0 %v2806
        %v3151 = vpop.f32.mrb[0].mxu0
        %v3152 = vadd.f32 0.0, %v3151
        %v3153 = vpop.f32.mrb[0].mxu0
        %v3154 = vpop.f32.mrb[0].mxu0
        %v3155 = vadd.f32 0.0, %v3154
        %v3156 = vpop.f32.mrb[0].mxu0
        %3157 = vmatprep.mubr.bf16.mxu0 0
        %3158 = vmatmul.mubr.bf16.gmra.mrb[0].mxu0 %v2809
        %v3159 = vpop.f32.mrb[0].mxu0
        %v3160 = vadd.f32 0.0, %v3159
        %v3161 = vpop.f32.mrb[0].mxu0
        %v3162 = vpop.f32.mrb[0].mxu0
        %v3163 = vadd.f32 0.0, %v3162
        %v3164 = vpop.f32.mrb[0].mxu0
        %3165 = vmatprep.mubr.bf16.mxu0 0
        %3166 = vmatmul.mubr.bf16.gmra.mrb[0].mxu0 %v2812
        %v3167 = vpop.f32.mrb[0].mxu0
        %v3168 = vadd.f32 0.0, %v3167
        %v3169 = vpop.f32.mrb[0].mxu0
        %v3170 = vpop.f32.mrb[0].mxu0
        %v3171 = vadd.f32 0.0, %v3170
        %v3172 = vpop.f32.mrb[0].mxu0
        %3173 = vmatprep.mubr.bf16.mxu0 0
        %3174 = vmatmul.mubr.bf16.gmra.mrb[0].mxu0 %v2815
        %v3175 = vpop.f32.mrb[0].mxu0
        %v3176 = vadd.f32 0.0, %v3175
        %v3177 = vpop.f32.mrb[0].mxu0
        %v3178 = vpop.f32.mrb[0].mxu0
        %v3179 = vadd.f32 0.0, %v3178
        %v3180 = vpop.f32.mrb[0].mxu0
        %3181 = vmatprep.mubr.bf16.mxu0 0
        %3182 = vmatmul.mubr.bf16.gmra.mrb[0].mxu0 %v3088
        %v3183 = vpop.f32.mrb[0].mxu0
        %v3184 = vadd.f32 0.0, %v3183
        %v3185 = vpop.f32.mrb[0].mxu0
        %v3186 = vpop.f32.mrb[0].mxu0
        %v3187 = vadd.f32 0.0, %v3186
        %v3188 = vpop.f32.mrb[0].mxu0
        %3189 = vdwg.mxu0
        %v3190 = vadd.f32 %v2917, %v3128
        %v3191 = vadd.f32 %v2918, %v3131
        %v3192 = vadd.f32 %v2919, %v3136
        %v3193 = vadd.f32 %v2920, %v3139
        %v3194 = vadd.f32 %v2921, %v3144
        %v3195 = vadd.f32 %v2922, %v3147
        %v3196 = vadd.f32 %v2923, %v3152
        %v3197 = vadd.f32 %v2924, %v3155
        %v3198 = vadd.f32 %v2925, %v3160
        %v3199 = vadd.f32 %v2926, %v3163
        %v3200 = vadd.f32 %v2927, %v3168
        %v3201 = vadd.f32 %v2928, %v3171
        %v3202 = vadd.f32 %v2929, %v3176
        %v3203 = vadd.f32 %v2930, %v3179
        %v3204 = vadd.f32 %v2931, %v3184
        %v3205 = vadd.f32 %v2932, %v3187
        %s3206 = scalar_lea.vmem [#allocation11], 5
        %v3207 = vld [vmem:[%s3206] sm:$0x1]
        %v3209 = vsel %vm856, %v3084, 0
        %v3212 = vsel %vm881, %v3207, 0
        %3214 = vmatprep.subr.bf16.mxu0 0
        %3215 = vmatpush1.bf16.msra.mxu0 %v3212
        %3216 = vmatprep.subr.bf16.mxu0 0
        %3217 = vmatpush1.bf16.msra.mxu0 0
        %3218 = vmatprep.subr.bf16.mxu0 0
        %3219 = vmatpush1.bf16.msra.mxu0 0
        %3220 = vmatprep.subr.bf16.mxu0 0
        %3221 = vmatpush1.bf16.msra.mxu0 0
        %3222 = vmatprep.subr.bf16.mxu0 0
        %3223 = vmatpush1.bf16.msra.mxu0 0
        %3224 = vmatprep.subr.bf16.mxu0 0
        %3225 = vmatpush1.bf16.msra.mxu0 0
        %3226 = vmatprep.subr.bf16.mxu0 0
        %3227 = vmatpush1.bf16.msra.mxu0 0
        %3228 = vmatprep.subr.bf16.mxu0 0
        %3229 = vmatpush1.bf16.msra.mxu0 0
        %3230 = vmatprep.subr.bf16.mxu0 0
        %3231 = vmatpush1.bf16.msra.mxu0 0
        %3232 = vmatprep.subr.bf16.mxu0 0
        %3233 = vmatpush1.bf16.msra.mxu0 0
        %3234 = vmatprep.subr.bf16.mxu0 0
        %3235 = vmatpush1.bf16.msra.mxu0 0
        %3236 = vmatprep.subr.bf16.mxu0 0
        %3237 = vmatpush1.bf16.msra.mxu0 0
        %3238 = vmatprep.subr.bf16.mxu0 0
        %3239 = vmatpush1.bf16.msra.mxu0 0
        %3240 = vmatprep.subr.bf16.mxu0 0
        %3241 = vmatpush1.bf16.msra.mxu0 0
        %3242 = vmatprep.subr.bf16.mxu0 0
        %3243 = vmatpush1.bf16.msra.mxu0 0
        %3244 = vmatprep.subr.bf16.mxu0 0
        %3245 = vmatpush1.bf16.msra.mxu0 0
        %3246 = vmatprep.mubr.bf16.mxu0 0
        %3247 = vmatmul.mubr.bf16.gmra.mrb[0].mxu0 %v2939
        %v3248 = vpop.f32.mrb[0].mxu0
        %v3249 = vadd.f32 0.0, %v3248
        %v3250 = vpop.f32.mrb[0].mxu0
        %v3251 = vpop.f32.mrb[0].mxu0
        %v3252 = vadd.f32 0.0, %v3251
        %v3253 = vpop.f32.mrb[0].mxu0
        %3254 = vmatprep.mubr.bf16.mxu0 0
        %3255 = vmatmul.mubr.bf16.gmra.mrb[0].mxu0 %v2942
        %v3256 = vpop.f32.mrb[0].mxu0
        %v3257 = vadd.f32 0.0, %v3256
        %v3258 = vpop.f32.mrb[0].mxu0
        %v3259 = vpop.f32.mrb[0].mxu0
        %v3260 = vadd.f32 0.0, %v3259
        %v3261 = vpop.f32.mrb[0].mxu0
        %3262 = vmatprep.mubr.bf16.mxu0 0
        %3263 = vmatmul.mubr.bf16.gmra.mrb[0].mxu0 %v2945
        %v3264 = vpop.f32.mrb[0].mxu0
        %v3265 = vadd.f32 0.0, %v3264
        %v3266 = vpop.f32.mrb[0].mxu0
        %v3267 = vpop.f32.mrb[0].mxu0
        %v3268 = vadd.f32 0.0, %v3267
        %v3269 = vpop.f32.mrb[0].mxu0
        %3270 = vmatprep.mubr.bf16.mxu0 0
        %3271 = vmatmul.mubr.bf16.gmra.mrb[0].mxu0 %v2948
        %v3272 = vpop.f32.mrb[0].mxu0
        %v3273 = vadd.f32 0.0, %v3272
        %v3274 = vpop.f32.mrb[0].mxu0
        %v3275 = vpop.f32.mrb[0].mxu0
        %v3276 = vadd.f32 0.0, %v3275
        %v3277 = vpop.f32.mrb[0].mxu0
        %3278 = vmatprep.mubr.bf16.mxu0 0
        %3279 = vmatmul.mubr.bf16.gmra.mrb[0].mxu0 %v2951
        %v3280 = vpop.f32.mrb[0].mxu0
        %v3281 = vadd.f32 0.0, %v3280
        %v3282 = vpop.f32.mrb[0].mxu0
        %v3283 = vpop.f32.mrb[0].mxu0
        %v3284 = vadd.f32 0.0, %v3283
        %v3285 = vpop.f32.mrb[0].mxu0
        %3286 = vmatprep.mubr.bf16.mxu0 0
        %3287 = vmatmul.mubr.bf16.gmra.mrb[0].mxu0 %v2954
        %v3288 = vpop.f32.mrb[0].mxu0
        %v3289 = vadd.f32 0.0, %v3288
        %v3290 = vpop.f32.mrb[0].mxu0
        %v3291 = vpop.f32.mrb[0].mxu0
        %v3292 = vadd.f32 0.0, %v3291
        %v3293 = vpop.f32.mrb[0].mxu0
        %3294 = vmatprep.mubr.bf16.mxu0 0
        %3295 = vmatmul.mubr.bf16.gmra.mrb[0].mxu0 %v2957
        %v3296 = vpop.f32.mrb[0].mxu0
        %v3297 = vadd.f32 0.0, %v3296
        %v3298 = vpop.f32.mrb[0].mxu0
        %v3299 = vpop.f32.mrb[0].mxu0
        %v3300 = vadd.f32 0.0, %v3299
        %v3301 = vpop.f32.mrb[0].mxu0
        %3302 = vmatprep.mubr.bf16.mxu0 0
        %3303 = vmatmul.mubr.bf16.gmra.mrb[0].mxu0 %v3209
        %v3304 = vpop.f32.mrb[0].mxu0
        %v3305 = vadd.f32 0.0, %v3304
        %v3306 = vpop.f32.mrb[0].mxu0
        %v3307 = vpop.f32.mrb[0].mxu0
        %v3308 = vadd.f32 0.0, %v3307
        %v3309 = vpop.f32.mrb[0].mxu0
        %3310 = vdwg.mxu0
        %v3311 = vadd.f32 %v3059, %v3249
        %v3312 = vadd.f32 %v3060, %v3252
        %v3313 = vadd.f32 %v3061, %v3257
        %v3314 = vadd.f32 %v3062, %v3260
        %v3315 = vadd.f32 %v3063, %v3265
        %v3316 = vadd.f32 %v3064, %v3268
        %v3317 = vadd.f32 %v3065, %v3273
        %v3318 = vadd.f32 %v3066, %v3276
        %v3319 = vadd.f32 %v3067, %v3281
        %v3320 = vadd.f32 %v3068, %v3284
        %v3321 = vadd.f32 %v3069, %v3289
        %v3322 = vadd.f32 %v3070, %v3292
        %v3323 = vadd.f32 %v3071, %v3297
        %v3324 = vadd.f32 %v3072, %v3300
        %v3325 = vadd.f32 %v3073, %v3305
        %v3326 = vadd.f32 %v3074, %v3308
        %v3329 = vrot.slane %v843, 1
        %v3330 = vrot.slane %v1710, 1
        %v3331 = vsel %vm2726, %v3329, %v3330
        %v3334 = vrot.slane %v853, 1
        %v3335 = vrot.slane %v1720, 1
        %v3336 = vsel %vm2726, %v3334, %v3335
        %s3337 = scalar_lea.vmem [#allocation10], 8
        %v3338 = vld [vmem:[%s3337] sm:$0x1]
        %v3340 = vsel %vm856, %v3331, 0
        %v3343 = vsel %vm881, %v3338, 0
        %3345 = vmatprep.subr.bf16.mxu0 0
        %3346 = vmatpush1.bf16.msra.mxu0 %v3343
        %3347 = vmatprep.subr.bf16.mxu0 0
        %3348 = vmatpush1.bf16.msra.mxu0 0
        %3349 = vmatprep.subr.bf16.mxu0 0
        %3350 = vmatpush1.bf16.msra.mxu0 0
        %3351 = vmatprep.subr.bf16.mxu0 0
        %3352 = vmatpush1.bf16.msra.mxu0 0
        %3353 = vmatprep.subr.bf16.mxu0 0
        %3354 = vmatpush1.bf16.msra.mxu0 0
        %3355 = vmatprep.subr.bf16.mxu0 0
        %3356 = vmatpush1.bf16.msra.mxu0 0
        %3357 = vmatprep.subr.bf16.mxu0 0
        %3358 = vmatpush1.bf16.msra.mxu0 0
        %3359 = vmatprep.subr.bf16.mxu0 0
        %3360 = vmatpush1.bf16.msra.mxu0 0
        %3361 = vmatprep.subr.bf16.mxu0 0
        %3362 = vmatpush1.bf16.msra.mxu0 0
        %3363 = vmatprep.subr.bf16.mxu0 0
        %3364 = vmatpush1.bf16.msra.mxu0 0
        %3365 = vmatprep.subr.bf16.mxu0 0
        %3366 = vmatpush1.bf16.msra.mxu0 0
        %3367 = vmatprep.subr.bf16.mxu0 0
        %3368 = vmatpush1.bf16.msra.mxu0 0
        %3369 = vmatprep.subr.bf16.mxu0 0
        %3370 = vmatpush1.bf16.msra.mxu0 0
        %3371 = vmatprep.subr.bf16.mxu0 0
        %3372 = vmatpush1.bf16.msra.mxu0 0
        %3373 = vmatprep.subr.bf16.mxu0 0
        %3374 = vmatpush1.bf16.msra.mxu0 0
        %3375 = vmatprep.subr.bf16.mxu0 0
        %3376 = vmatpush1.bf16.msra.mxu0 0
        %3377 = vmatprep.mubr.bf16.mxu0 0
        %3378 = vmatmul.mubr.bf16.gmra.mrb[0].mxu0 %v2800
        %v3379 = vpop.f32.mrb[0].mxu0
        %v3380 = vadd.f32 0.0, %v3379
        %v3381 = vpop.f32.mrb[0].mxu0
        %v3382 = vpop.f32.mrb[0].mxu0
        %v3383 = vadd.f32 0.0, %v3382
        %v3384 = vpop.f32.mrb[0].mxu0
        %3385 = vmatprep.mubr.bf16.mxu0 0
        %3386 = vmatmul.mubr.bf16.gmra.mrb[0].mxu0 %v2803
        %v3387 = vpop.f32.mrb[0].mxu0
        %v3388 = vadd.f32 0.0, %v3387
        %v3389 = vpop.f32.mrb[0].mxu0
        %v3390 = vpop.f32.mrb[0].mxu0
        %v3391 = vadd.f32 0.0, %v3390
        %v3392 = vpop.f32.mrb[0].mxu0
        %3393 = vmatprep.mubr.bf16.mxu0 0
        %3394 = vmatmul.mubr.bf16.gmra.mrb[0].mxu0 %v2806
        %v3395 = vpop.f32.mrb[0].mxu0
        %v3396 = vadd.f32 0.0, %v3395
        %v3397 = vpop.f32.mrb[0].mxu0
        %v3398 = vpop.f32.mrb[0].mxu0
        %v3399 = vadd.f32 0.0, %v3398
        %v3400 = vpop.f32.mrb[0].mxu0
        %3401 = vmatprep.mubr.bf16.mxu0 0
        %3402 = vmatmul.mubr.bf16.gmra.mrb[0].mxu0 %v2809
        %v3403 = vpop.f32.mrb[0].mxu0
        %v3404 = vadd.f32 0.0, %v3403
        %v3405 = vpop.f32.mrb[0].mxu0
        %v3406 = vpop.f32.mrb[0].mxu0
        %v3407 = vadd.f32 0.0, %v3406
        %v3408 = vpop.f32.mrb[0].mxu0
        %3409 = vmatprep.mubr.bf16.mxu0 0
        %3410 = vmatmul.mubr.bf16.gmra.mrb[0].mxu0 %v2812
        %v3411 = vpop.f32.mrb[0].mxu0
        %v3412 = vadd.f32 0.0, %v3411
        %v3413 = vpop.f32.mrb[0].mxu0
        %v3414 = vpop.f32.mrb[0].mxu0
        %v3415 = vadd.f32 0.0, %v3414
        %v3416 = vpop.f32.mrb[0].mxu0
        %3417 = vmatprep.mubr.bf16.mxu0 0
        %3418 = vmatmul.mubr.bf16.gmra.mrb[0].mxu0 %v2815
        %v3419 = vpop.f32.mrb[0].mxu0
        %v3420 = vadd.f32 0.0, %v3419
        %v3421 = vpop.f32.mrb[0].mxu0
        %v3422 = vpop.f32.mrb[0].mxu0
        %v3423 = vadd.f32 0.0, %v3422
        %v3424 = vpop.f32.mrb[0].mxu0
        %3425 = vmatprep.mubr.bf16.mxu0 0
        %3426 = vmatmul.mubr.bf16.gmra.mrb[0].mxu0 %v3088
        %v3427 = vpop.f32.mrb[0].mxu0
        %v3428 = vadd.f32 0.0, %v3427
        %v3429 = vpop.f32.mrb[0].mxu0
        %v3430 = vpop.f32.mrb[0].mxu0
        %v3431 = vadd.f32 0.0, %v3430
        %v3432 = vpop.f32.mrb[0].mxu0
        %3433 = vmatprep.mubr.bf16.mxu0 0
        %3434 = vmatmul.mubr.bf16.gmra.mrb[0].mxu0 %v3340
        %v3435 = vpop.f32.mrb[0].mxu0
        %v3436 = vadd.f32 0.0, %v3435
        %v3437 = vpop.f32.mrb[0].mxu0
        %v3438 = vpop.f32.mrb[0].mxu0
        %v3439 = vadd.f32 0.0, %v3438
        %v3440 = vpop.f32.mrb[0].mxu0
        %3441 = vdwg.mxu0
        %v3442 = vadd.f32 %v3190, %v3380
        %v3443 = vadd.f32 %v3191, %v3383
        %v3444 = vadd.f32 %v3192, %v3388
        %v3445 = vadd.f32 %v3193, %v3391
        %v3446 = vadd.f32 %v3194, %v3396
        %v3447 = vadd.f32 %v3195, %v3399
        %v3448 = vadd.f32 %v3196, %v3404
        %v3449 = vadd.f32 %v3197, %v3407
        %v3450 = vadd.f32 %v3198, %v3412
        %v3451 = vadd.f32 %v3199, %v3415
        %v3452 = vadd.f32 %v3200, %v3420
        %v3453 = vadd.f32 %v3201, %v3423
        %v3454 = vadd.f32 %v3202, %v3428
        %v3455 = vadd.f32 %v3203, %v3431
        %v3456 = vadd.f32 %v3204, %v3436
        %v3457 = vadd.f32 %v3205, %v3439
        %s3458 = scalar_lea.vmem [#allocation11], 8
        %v3459 = vld [vmem:[%s3458] sm:$0x1]
        %v3461 = vsel %vm856, %v3336, 0
        %v3464 = vsel %vm881, %v3459, 0
        %3466 = vmatprep.subr.bf16.mxu0 0
        %3467 = vmatpush1.bf16.msra.mxu0 %v3464
        %3468 = vmatprep.subr.bf16.mxu0 0
        %3469 = vmatpush1.bf16.msra.mxu0 0
        %3470 = vmatprep.subr.bf16.mxu0 0
        %3471 = vmatpush1.bf16.msra.mxu0 0
        %3472 = vmatprep.subr.bf16.mxu0 0
        %3473 = vmatpush1.bf16.msra.mxu0 0
        %3474 = vmatprep.subr.bf16.mxu0 0
        %3475 = vmatpush1.bf16.msra.mxu0 0
        %3476 = vmatprep.subr.bf16.mxu0 0
        %3477 = vmatpush1.bf16.msra.mxu0 0
        %3478 = vmatprep.subr.bf16.mxu0 0
        %3479 = vmatpush1.bf16.msra.mxu0 0
        %3480 = vmatprep.subr.bf16.mxu0 0
        %3481 = vmatpush1.bf16.msra.mxu0 0
        %3482 = vmatprep.subr.bf16.mxu0 0
        %3483 = vmatpush1.bf16.msra.mxu0 0
        %3484 = vmatprep.subr.bf16.mxu0 0
        %3485 = vmatpush1.bf16.msra.mxu0 0
        %3486 = vmatprep.subr.bf16.mxu0 0
        %3487 = vmatpush1.bf16.msra.mxu0 0
        %3488 = vmatprep.subr.bf16.mxu0 0
        %3489 = vmatpush1.bf16.msra.mxu0 0
        %3490 = vmatprep.subr.bf16.mxu0 0
        %3491 = vmatpush1.bf16.msra.mxu0 0
        %3492 = vmatprep.subr.bf16.mxu0 0
        %3493 = vmatpush1.bf16.msra.mxu0 0
        %3494 = vmatprep.subr.bf16.mxu0 0
        %3495 = vmatpush1.bf16.msra.mxu0 0
        %3496 = vmatprep.subr.bf16.mxu0 0
        %3497 = vmatpush1.bf16.msra.mxu0 0
        %3498 = vmatprep.mubr.bf16.mxu0 0
        %3499 = vmatmul.mubr.bf16.gmra.mrb[0].mxu0 %v2942
        %v3500 = vpop.f32.mrb[0].mxu0
        %v3501 = vadd.f32 0.0, %v3500
        %v3502 = vpop.f32.mrb[0].mxu0
        %v3503 = vpop.f32.mrb[0].mxu0
        %v3504 = vadd.f32 0.0, %v3503
        %v3505 = vpop.f32.mrb[0].mxu0
        %3506 = vmatprep.mubr.bf16.mxu0 0
        %3507 = vmatmul.mubr.bf16.gmra.mrb[0].mxu0 %v2945
        %v3508 = vpop.f32.mrb[0].mxu0
        %v3509 = vadd.f32 0.0, %v3508
        %v3510 = vpop.f32.mrb[0].mxu0
        %v3511 = vpop.f32.mrb[0].mxu0
        %v3512 = vadd.f32 0.0, %v3511
        %v3513 = vpop.f32.mrb[0].mxu0
        %3514 = vmatprep.mubr.bf16.mxu0 0
        %3515 = vmatmul.mubr.bf16.gmra.mrb[0].mxu0 %v2948
        %v3516 = vpop.f32.mrb[0].mxu0
        %v3517 = vadd.f32 0.0, %v3516
        %v3518 = vpop.f32.mrb[0].mxu0
        %v3519 = vpop.f32.mrb[0].mxu0
        %v3520 = vadd.f32 0.0, %v3519
        %v3521 = vpop.f32.mrb[0].mxu0
        %3522 = vmatprep.mubr.bf16.mxu0 0
        %3523 = vmatmul.mubr.bf16.gmra.mrb[0].mxu0 %v2951
        %v3524 = vpop.f32.mrb[0].mxu0
        %v3525 = vadd.f32 0.0, %v3524
        %v3526 = vpop.f32.mrb[0].mxu0
        %v3527 = vpop.f32.mrb[0].mxu0
        %v3528 = vadd.f32 0.0, %v3527
        %v3529 = vpop.f32.mrb[0].mxu0
        %3530 = vmatprep.mubr.bf16.mxu0 0
        %3531 = vmatmul.mubr.bf16.gmra.mrb[0].mxu0 %v2954
        %v3532 = vpop.f32.mrb[0].mxu0
        %v3533 = vadd.f32 0.0, %v3532
        %v3534 = vpop.f32.mrb[0].mxu0
        %v3535 = vpop.f32.mrb[0].mxu0
        %v3536 = vadd.f32 0.0, %v3535
        %v3537 = vpop.f32.mrb[0].mxu0
        %3538 = vmatprep.mubr.bf16.mxu0 0
        %3539 = vmatmul.mubr.bf16.gmra.mrb[0].mxu0 %v2957
        %v3540 = vpop.f32.mrb[0].mxu0
        %v3541 = vadd.f32 0.0, %v3540
        %v3542 = vpop.f32.mrb[0].mxu0
        %v3543 = vpop.f32.mrb[0].mxu0
        %v3544 = vadd.f32 0.0, %v3543
        %v3545 = vpop.f32.mrb[0].mxu0
        %3546 = vmatprep.mubr.bf16.mxu0 0
        %3547 = vmatmul.mubr.bf16.gmra.mrb[0].mxu0 %v3209
        %v3548 = vpop.f32.mrb[0].mxu0
        %v3549 = vadd.f32 0.0, %v3548
        %v3550 = vpop.f32.mrb[0].mxu0
        %v3551 = vpop.f32.mrb[0].mxu0
        %v3552 = vadd.f32 0.0, %v3551
        %v3553 = vpop.f32.mrb[0].mxu0
        %3554 = vmatprep.mubr.bf16.mxu0 0
        %3555 = vmatmul.mubr.bf16.gmra.mrb[0].mxu0 %v3461
        %v3556 = vpop.f32.mrb[0].mxu0
        %v3557 = vadd.f32 0.0, %v3556
        %v3558 = vpop.f32.mrb[0].mxu0
        %v3559 = vpop.f32.mrb[0].mxu0
        %v3560 = vadd.f32 0.0, %v3559
        %v3561 = vpop.f32.mrb[0].mxu0
        %3562 = vdwg.mxu0
        %v3563 = vadd.f32 %v3311, %v3501
        %v3564 = vadd.f32 %v3312, %v3504
        %v3565 = vadd.f32 %v3313, %v3509
        %v3566 = vadd.f32 %v3314, %v3512
        %v3567 = vadd.f32 %v3315, %v3517
        %v3568 = vadd.f32 %v3316, %v3520
        %v3569 = vadd.f32 %v3317, %v3525
        %v3570 = vadd.f32 %v3318, %v3528
        %v3571 = vadd.f32 %v3319, %v3533
        %v3572 = vadd.f32 %v3320, %v3536
        %v3573 = vadd.f32 %v3321, %v3541
        %v3574 = vadd.f32 %v3322, %v3544
        %v3575 = vadd.f32 %v3323, %v3549
        %v3576 = vadd.f32 %v3324, %v3552
        %v3577 = vadd.f32 %v3325, %v3557
        %v3578 = vadd.f32 %v3326, %v3560
        %v3579 = vsel %vm856, %v3442, 0.0
        %v3580 = vsel %vm856, %v3443, 0.0
        %v3581 = vadd.f32 %v3579, %v3580
        %v3582 = vsel %vm856, %v3444, 0.0
        %v3583 = vadd.f32 %v3581, %v3582
        %v3584 = vsel %vm856, %v3445, 0.0
        %v3585 = vadd.f32 %v3583, %v3584
        %v3586 = vsel %vm856, %v3446, 0.0
        %v3587 = vadd.f32 %v3585, %v3586
        %v3588 = vsel %vm856, %v3447, 0.0
        %v3589 = vadd.f32 %v3587, %v3588
        %v3590 = vsel %vm856, %v3448, 0.0
        %v3591 = vadd.f32 %v3589, %v3590
        %v3592 = vsel %vm856, %v3449, 0.0
        %v3593 = vadd.f32 %v3591, %v3592
        %v3594 = vsel %vm856, %v3450, 0.0
        %v3595 = vadd.f32 %v3593, %v3594
        %v3596 = vsel %vm856, %v3451, 0.0
        %v3597 = vadd.f32 %v3595, %v3596
        %v3598 = vsel %vm856, %v3452, 0.0
        %v3599 = vadd.f32 %v3597, %v3598
        %v3600 = vsel %vm856, %v3453, 0.0
        %v3601 = vadd.f32 %v3599, %v3600
        %v3602 = vsel %vm856, %v3454, 0.0
        %v3603 = vadd.f32 %v3601, %v3602
        %v3604 = vsel %vm856, %v3455, 0.0
        %v3605 = vadd.f32 %v3603, %v3604
        %v3606 = vsel %vm856, %v3456, 0.0
        %v3607 = vadd.f32 %v3605, %v3606
        %v3608 = vsel %vm856, %v3457, 0.0
        %v3609 = vadd.f32 %v3607, %v3608
        %v3610 = vrot.slane %v3609, 4
        %v3611 = vadd.f32 %v3609, %v3610
        %v3612 = vrot.slane %v3611, 2
        %v3613 = vadd.f32 %v3611, %v3612
        %v3614 = vrot.slane %v3613, 1
        %v3615 = vadd.f32 %v3613, %v3614
        %vm3616 = vcmask 8192
        %3617 = vst.msk [vmem:[%s596] sm:$0x1] %vm3616, %v3615
        %v3618 = vmul.f32 %v3442, %v3442
        %v3619 = vmul.f32 %v3443, %v3443
        %v3620 = vmul.f32 %v3444, %v3444
        %v3621 = vmul.f32 %v3445, %v3445
        %v3622 = vmul.f32 %v3446, %v3446
        %v3623 = vmul.f32 %v3447, %v3447
        %v3624 = vmul.f32 %v3448, %v3448
        %v3625 = vmul.f32 %v3449, %v3449
        %v3626 = vmul.f32 %v3450, %v3450
        %v3627 = vmul.f32 %v3451, %v3451
        %v3628 = vmul.f32 %v3452, %v3452
        %v3629 = vmul.f32 %v3453, %v3453
        %v3630 = vmul.f32 %v3454, %v3454
        %v3631 = vmul.f32 %v3455, %v3455
        %v3632 = vmul.f32 %v3456, %v3456
        %v3633 = vmul.f32 %v3457, %v3457
        %v3634 = vsel %vm856, %v3618, 0.0
        %v3635 = vsel %vm856, %v3619, 0.0
        %v3636 = vadd.f32 %v3634, %v3635
        %v3637 = vsel %vm856, %v3620, 0.0
        %v3638 = vadd.f32 %v3636, %v3637
        %v3639 = vsel %vm856, %v3621, 0.0
        %v3640 = vadd.f32 %v3638, %v3639
        %v3641 = vsel %vm856, %v3622, 0.0
        %v3642 = vadd.f32 %v3640, %v3641
        %v3643 = vsel %vm856, %v3623, 0.0
        %v3644 = vadd.f32 %v3642, %v3643
        %v3645 = vsel %vm856, %v3624, 0.0
        %v3646 = vadd.f32 %v3644, %v3645
        %v3647 = vsel %vm856, %v3625, 0.0
        %v3648 = vadd.f32 %v3646, %v3647
        %v3649 = vsel %vm856, %v3626, 0.0
        %v3650 = vadd.f32 %v3648, %v3649
        %v3651 = vsel %vm856, %v3627, 0.0
        %v3652 = vadd.f32 %v3650, %v3651
        %v3653 = vsel %vm856, %v3628, 0.0
        %v3654 = vadd.f32 %v3652, %v3653
        %v3655 = vsel %vm856, %v3629, 0.0
        %v3656 = vadd.f32 %v3654, %v3655
        %v3657 = vsel %vm856, %v3630, 0.0
        %v3658 = vadd.f32 %v3656, %v3657
        %v3659 = vsel %vm856, %v3631, 0.0
        %v3660 = vadd.f32 %v3658, %v3659
        %v3661 = vsel %vm856, %v3632, 0.0
        %v3662 = vadd.f32 %v3660, %v3661
        %v3663 = vsel %vm856, %v3633, 0.0
        %v3664 = vadd.f32 %v3662, %v3663
        %v3665 = vrot.slane %v3664, 4
        %v3666 = vadd.f32 %v3664, %v3665
        %v3667 = vrot.slane %v3666, 2
        %v3668 = vadd.f32 %v3666, %v3667
        %v3669 = vrot.slane %v3668, 1
        %v3670 = vadd.f32 %v3668, %v3669
        %3671 = vst.msk [vmem:[%s596 + $0x1] sm:$0x1] %vm3616, %v3670
        %v3672 = vsel %vm856, %v3563, 0.0
        %v3673 = vsel %vm856, %v3564, 0.0
        %v3674 = vadd.f32 %v3672, %v3673
        %v3675 = vsel %vm856, %v3565, 0.0
        %v3676 = vadd.f32 %v3674, %v3675
        %v3677 = vsel %vm856, %v3566, 0.0
        %v3678 = vadd.f32 %v3676, %v3677
        %v3679 = vsel %vm856, %v3567, 0.0
        %v3680 = vadd.f32 %v3678, %v3679
        %v3681 = vsel %vm856, %v3568, 0.0
        %v3682 = vadd.f32 %v3680, %v3681
        %v3683 = vsel %vm856, %v3569, 0.0
        %v3684 = vadd.f32 %v3682, %v3683
        %v3685 = vsel %vm856, %v3570, 0.0
        %v3686 = vadd.f32 %v3684, %v3685
        %v3687 = vsel %vm856, %v3571, 0.0
        %v3688 = vadd.f32 %v3686, %v3687
        %v3689 = vsel %vm856, %v3572, 0.0
        %v3690 = vadd.f32 %v3688, %v3689
        %v3691 = vsel %vm856, %v3573, 0.0
        %v3692 = vadd.f32 %v3690, %v3691
        %v3693 = vsel %vm856, %v3574, 0.0
        %v3694 = vadd.f32 %v3692, %v3693
        %v3695 = vsel %vm856, %v3575, 0.0
        %v3696 = vadd.f32 %v3694, %v3695
        %v3697 = vsel %vm856, %v3576, 0.0
        %v3698 = vadd.f32 %v3696, %v3697
        %v3699 = vsel %vm856, %v3577, 0.0
        %v3700 = vadd.f32 %v3698, %v3699
        %v3701 = vsel %vm856, %v3578, 0.0
        %v3702 = vadd.f32 %v3700, %v3701
        %v3703 = vrot.slane %v3702, 4
        %v3704 = vadd.f32 %v3702, %v3703
        %v3705 = vrot.slane %v3704, 2
        %v3706 = vadd.f32 %v3704, %v3705
        %v3707 = vrot.slane %v3706, 1
        %v3708 = vadd.f32 %v3706, %v3707
        %3709 = vst.msk [vmem:[%s603] sm:$0x1] %vm3616, %v3708
        %v3710 = vmul.f32 %v3563, %v3563
        %v3711 = vmul.f32 %v3564, %v3564
        %v3712 = vmul.f32 %v3565, %v3565
        %v3713 = vmul.f32 %v3566, %v3566
        %v3714 = vmul.f32 %v3567, %v3567
        %v3715 = vmul.f32 %v3568, %v3568
        %v3716 = vmul.f32 %v3569, %v3569
        %v3717 = vmul.f32 %v3570, %v3570
        %v3718 = vmul.f32 %v3571, %v3571
        %v3719 = vmul.f32 %v3572, %v3572
        %v3720 = vmul.f32 %v3573, %v3573
        %v3721 = vmul.f32 %v3574, %v3574
        %v3722 = vmul.f32 %v3575, %v3575
        %v3723 = vmul.f32 %v3576, %v3576
        %v3724 = vmul.f32 %v3577, %v3577
        %v3725 = vmul.f32 %v3578, %v3578
        %v3726 = vsel %vm856, %v3710, 0.0
        %v3727 = vsel %vm856, %v3711, 0.0
        %v3728 = vadd.f32 %v3726, %v3727
        %v3729 = vsel %vm856, %v3712, 0.0
        %v3730 = vadd.f32 %v3728, %v3729
        %v3731 = vsel %vm856, %v3713, 0.0
        %v3732 = vadd.f32 %v3730, %v3731
        %v3733 = vsel %vm856, %v3714, 0.0
        %v3734 = vadd.f32 %v3732, %v3733
        %v3735 = vsel %vm856, %v3715, 0.0
        %v3736 = vadd.f32 %v3734, %v3735
        %v3737 = vsel %vm856, %v3716, 0.0
        %v3738 = vadd.f32 %v3736, %v3737
        %v3739 = vsel %vm856, %v3717, 0.0
        %v3740 = vadd.f32 %v3738, %v3739
        %v3741 = vsel %vm856, %v3718, 0.0
        %v3742 = vadd.f32 %v3740, %v3741
        %v3743 = vsel %vm856, %v3719, 0.0
        %v3744 = vadd.f32 %v3742, %v3743
        %v3745 = vsel %vm856, %v3720, 0.0
        %v3746 = vadd.f32 %v3744, %v3745
        %v3747 = vsel %vm856, %v3721, 0.0
        %v3748 = vadd.f32 %v3746, %v3747
        %v3749 = vsel %vm856, %v3722, 0.0
        %v3750 = vadd.f32 %v3748, %v3749
        %v3751 = vsel %vm856, %v3723, 0.0
        %v3752 = vadd.f32 %v3750, %v3751
        %v3753 = vsel %vm856, %v3724, 0.0
        %v3754 = vadd.f32 %v3752, %v3753
        %v3755 = vsel %vm856, %v3725, 0.0
        %v3756 = vadd.f32 %v3754, %v3755
        %v3757 = vrot.slane %v3756, 4
        %v3758 = vadd.f32 %v3756, %v3757
        %v3759 = vrot.slane %v3758, 2
        %v3760 = vadd.f32 %v3758, %v3759
        %v3761 = vrot.slane %v3760, 1
        %v3762 = vadd.f32 %v3760, %v3761
        %3763 = vst.msk [vmem:[%s603 + $0x1] sm:$0x1] %vm3616, %v3762
        %v3764 = vpack.c.bf16 %v3443, %v3442
        %v3765 = vpack.c.bf16 %v3445, %v3444
        %v3766 = vpack.c.bf16 %v3447, %v3446
        %v3767 = vpack.c.bf16 %v3449, %v3448
        %v3768 = vpack.c.bf16 %v3451, %v3450
        %v3769 = vpack.c.bf16 %v3453, %v3452
        %v3770 = vpack.c.bf16 %v3455, %v3454
        %v3771 = vpack.c.bf16 %v3457, %v3456
        %v3780 = vunpack.c.l.b16 %v3764
        %v3781 = vunpack.c.h.b16 %v3764
        %v3782 = vunpack.c.l.b16 %v3765
        %v3783 = vunpack.c.h.b16 %v3765
        %v3784 = vunpack.c.l.b16 %v3766
        %v3785 = vunpack.c.h.b16 %v3766
        %v3786 = vunpack.c.l.b16 %v3767
        %v3787 = vunpack.c.h.b16 %v3767
        %v3788 = vunpack.c.l.b16 %v3768
        %v3789 = vunpack.c.h.b16 %v3768
        %v3790 = vunpack.c.l.b16 %v3769
        %v3791 = vunpack.c.h.b16 %v3769
        %v3792 = vunpack.c.l.b16 %v3770
        %v3793 = vunpack.c.h.b16 %v3770
        %v3794 = vunpack.c.l.b16 %v3771
        %v3795 = vunpack.c.h.b16 %v3771
        %v3796 = vpack.c.b16 %v3780, %v3780
        %v3797 = vpack.c.b16 %v3781, %v3781
        %v3798 = vpack.c.b16 %v3782, %v3782
        %v3799 = vpack.c.b16 %v3783, %v3783
        %v3800 = vpack.c.b16 %v3784, %v3784
        %v3801 = vpack.c.b16 %v3785, %v3785
        %v3802 = vpack.c.b16 %v3786, %v3786
        %v3803 = vpack.c.b16 %v3787, %v3787
        %v3804 = vpack.c.b16 %v3788, %v3788
        %v3805 = vpack.c.b16 %v3789, %v3789
        %v3806 = vpack.c.b16 %v3790, %v3790
        %v3807 = vpack.c.b16 %v3791, %v3791
        %v3808 = vpack.c.b16 %v3792, %v3792
        %v3809 = vpack.c.b16 %v3793, %v3793
        %v3810 = vpack.c.b16 %v3794, %v3794
        %v3811 = vpack.c.b16 %v3795, %v3795
        %vm3828 = vcmask 11264
        %3829 = vst.msk [vmem:[%s582] sm:$0xf] %vm3828, %v3796
        %3830 = vst.msk [vmem:[%s582 + $0x4] sm:$0xf] %vm3828, %v3797
        %3831 = vst.msk [vmem:[%s582 + $0x8] sm:$0xf] %vm3828, %v3798
        %3832 = vst.msk [vmem:[%s582 + $0xc] sm:$0xf] %vm3828, %v3799
        %3833 = vst.msk [vmem:[%s582 + $0x10] sm:$0xf] %vm3828, %v3800
        %3834 = vst.msk [vmem:[%s582 + $0x14] sm:$0xf] %vm3828, %v3801
        %3835 = vst.msk [vmem:[%s582 + $0x18] sm:$0xf] %vm3828, %v3802
        %3836 = vst.msk [vmem:[%s582 + $0x1c] sm:$0xf] %vm3828, %v3803
        %3837 = vst.msk [vmem:[%s582 + $0x20] sm:$0xf] %vm3828, %v3804
        %3838 = vst.msk [vmem:[%s582 + $0x24] sm:$0xf] %vm3828, %v3805
        %3839 = vst.msk [vmem:[%s582 + $0x28] sm:$0xf] %vm3828, %v3806
        %3840 = vst.msk [vmem:[%s582 + $0x2c] sm:$0xf] %vm3828, %v3807
        %3841 = vst.msk [vmem:[%s582 + $0x30] sm:$0xf] %vm3828, %v3808
        %3842 = vst.msk [vmem:[%s582 + $0x34] sm:$0xf] %vm3828, %v3809
        %3843 = vst.msk [vmem:[%s582 + $0x38] sm:$0xf] %vm3828, %v3810
        %3844 = vst.msk [vmem:[%s582 + $0x3c] sm:$0xf] %vm3828, %v3811
        %v3845 = vpack.c.bf16 %v3564, %v3563
        %v3846 = vpack.c.bf16 %v3566, %v3565
        %v3847 = vpack.c.bf16 %v3568, %v3567
        %v3848 = vpack.c.bf16 %v3570, %v3569
        %v3849 = vpack.c.bf16 %v3572, %v3571
        %v3850 = vpack.c.bf16 %v3574, %v3573
        %v3851 = vpack.c.bf16 %v3576, %v3575
        %v3852 = vpack.c.bf16 %v3578, %v3577
        %v3861 = vunpack.c.l.b16 %v3845
        %v3862 = vunpack.c.h.b16 %v3845
        %v3863 = vunpack.c.l.b16 %v3846
        %v3864 = vunpack.c.h.b16 %v3846
        %v3865 = vunpack.c.l.b16 %v3847
        %v3866 = vunpack.c.h.b16 %v3847
        %v3867 = vunpack.c.l.b16 %v3848
        %v3868 = vunpack.c.h.b16 %v3848
        %v3869 = vunpack.c.l.b16 %v3849
        %v3870 = vunpack.c.h.b16 %v3849
        %v3871 = vunpack.c.l.b16 %v3850
        %v3872 = vunpack.c.h.b16 %v3850
        %v3873 = vunpack.c.l.b16 %v3851
        %v3874 = vunpack.c.h.b16 %v3851
        %v3875 = vunpack.c.l.b16 %v3852
        %v3876 = vunpack.c.h.b16 %v3852
        %v3877 = vpack.c.b16 %v3861, %v3861
        %v3878 = vpack.c.b16 %v3862, %v3862
        %v3879 = vpack.c.b16 %v3863, %v3863
        %v3880 = vpack.c.b16 %v3864, %v3864
        %v3881 = vpack.c.b16 %v3865, %v3865
        %v3882 = vpack.c.b16 %v3866, %v3866
        %v3883 = vpack.c.b16 %v3867, %v3867
        %v3884 = vpack.c.b16 %v3868, %v3868
        %v3885 = vpack.c.b16 %v3869, %v3869
        %v3886 = vpack.c.b16 %v3870, %v3870
        %v3887 = vpack.c.b16 %v3871, %v3871
        %v3888 = vpack.c.b16 %v3872, %v3872
        %v3889 = vpack.c.b16 %v3873, %v3873
        %v3890 = vpack.c.b16 %v3874, %v3874
        %v3891 = vpack.c.b16 %v3875, %v3875
        %v3892 = vpack.c.b16 %v3876, %v3876
        %3909 = vst.msk [vmem:[%s589] sm:$0xf] %vm3828, %v3877
        %3910 = vst.msk [vmem:[%s589 + $0x4] sm:$0xf] %vm3828, %v3878
        %3911 = vst.msk [vmem:[%s589 + $0x8] sm:$0xf] %vm3828, %v3879
        %3912 = vst.msk [vmem:[%s589 + $0xc] sm:$0xf] %vm3828, %v3880
        %3913 = vst.msk [vmem:[%s589 + $0x10] sm:$0xf] %vm3828, %v3881
        %3914 = vst.msk [vmem:[%s589 + $0x14] sm:$0xf] %vm3828, %v3882
        %3915 = vst.msk [vmem:[%s589 + $0x18] sm:$0xf] %vm3828, %v3883
        %3916 = vst.msk [vmem:[%s589 + $0x1c] sm:$0xf] %vm3828, %v3884
        %3917 = vst.msk [vmem:[%s589 + $0x20] sm:$0xf] %vm3828, %v3885
        %3918 = vst.msk [vmem:[%s589 + $0x24] sm:$0xf] %vm3828, %v3886
        %3919 = vst.msk [vmem:[%s589 + $0x28] sm:$0xf] %vm3828, %v3887
        %3920 = vst.msk [vmem:[%s589 + $0x2c] sm:$0xf] %vm3828, %v3888
        %3921 = vst.msk [vmem:[%s589 + $0x30] sm:$0xf] %vm3828, %v3889
        %3922 = vst.msk [vmem:[%s589 + $0x34] sm:$0xf] %vm3828, %v3890
        %3923 = vst.msk [vmem:[%s589 + $0x38] sm:$0xf] %vm3828, %v3891
        %3924 = vst.msk [vmem:[%s589 + $0x3c] sm:$0xf] %vm3828, %v3892
        %s3925 = sand.u32 %s240, 1
        %s3926 = scalar_lea.sflag [#allocation4], %s3925
        %s3927 = sand.u32 %s240, 1
        %s3928 = smul.addr %s3927, 64
        %s3929 = scalar_lea.vmem [#allocation14], %s3928
        %s3930 = sand.u32 %s41, 1
        %s3931 = scalar_lea.sflag [#allocation16], %s3930
        %s3932 = sand.u32 %s270, 1
        %s3933 = smul.addr %s3932, 64
        %s3934 = scalar_lea.vmem [#allocation15], %s3933
        %s3935 = sand.u32 %s41, 1
        %s3936 = scalar_lea.sflag [#allocation16], %s3935
        %s3937 = sand.u32 %s300, 1
        %s3938 = smul.addr %s3937, 2
        %s3939 = scalar_lea.vmem [#allocation17], %s3938
        %s3940 = sand.u32 %s330, 1
        %s3941 = scalar_lea.sflag [#allocation19], %s3940
        %s3942 = sand.u32 %s330, 1
        %s3943 = smul.addr %s3942, 2
        %s3944 = scalar_lea.vmem [#allocation18], %s3943
        // Predicated region
        $region77: #{ffc_resnet_block.18} parent=47 // pred_check
          %p3945 = pneg %p250
        $region78: #{ffc_resnet_block.18} parent=47 // pred_check_branch
          %3947 = sbr.rel (%p3945) target = $region80
        $region79: #{ffc_resnet_block.18} parent=47 // pred_region
          %s3948 = smul.u32 %s45, 2
          %s3949 = sadd.s32 %s3948, %s46
          %s3950 = smul.u32 16, %s3949
          %s3952 = ssub.s32 1024, 1024
          %3953 = vsyncadd %s3926, %s3952
          %s3954 = smul.addr %s3950, 64
          %s3955 = scalar_lea.hbm %s7, %s3954
          %s3956 = sshll.u32 %s3929, 4
          %s3957 = int_to_ptr.vmem [resolvable:$true] %s3956
          %3962 = dma.vmem_to_hbm [thread:$0]  %s3957, 1024, %s3955, %s3926, 64, 64, 4
        $region80: #{ffc_resnet_block.18} parent=47 // pred_fallthru
          _
        // Predicated region
        $region81: #{ffc_resnet_block.18} parent=47 // pred_check
          %p3963 = pneg %p280
        $region82: #{ffc_resnet_block.18} parent=47 // pred_check_branch
          %3965 = sbr.rel (%p3963) target = $region84
        $region83: #{ffc_resnet_block.18} parent=47 // pred_region
          %s3966 = smul.u32 %s45, 2
          %s3967 = sadd.s32 %s3966, %s46
          %s3968 = smul.u32 16, %s3967
          %s3970 = ssub.s32 1024, 1024
          %3971 = vsyncadd %s3931, %s3970
          %s3972 = smul.addr %s3968, 64
          %s3973 = scalar_lea.hbm %s8, %s3972
          %s3974 = sshll.u32 %s3934, 4
          %s3975 = int_to_ptr.vmem [resolvable:$true] %s3974
          %3980 = dma.vmem_to_hbm [thread:$0]  %s3975, 1024, %s3973, %s3931, 64, 64, 4
        $region84: #{ffc_resnet_block.18} parent=47 // pred_fallthru
          _
        // Predicated region
        $region85: #{ffc_resnet_block.18} parent=47 // pred_check
          %p3981 = pneg %p310
        $region86: #{ffc_resnet_block.18} parent=47 // pred_check_branch
          %3983 = sbr.rel (%p3981) target = $region88
        $region87: #{ffc_resnet_block.18} parent=47 // pred_region
          %s3984 = smul.u32 %s45, 2
          %s3985 = sadd.s32 %s3984, %s46
          %s3987 = ssub.s32 32, 32
          %3988 = vsyncadd %s3936, %s3987
          %s3989 = smul.addr %s3985, 32
          %s3990 = scalar_lea.hbm %s9, %s3989
          %s3992 = sshll.u32 %s3939, 4
          %s3993 = int_to_ptr.vmem [resolvable:$true] %s3992
          %3995 = dma.vmem_to_hbm [thread:$0]  %s3993, 32, %s3990, %s3936
        $region88: #{ffc_resnet_block.18} parent=47 // pred_fallthru
          _
        // Predicated region
        $region89: #{ffc_resnet_block.18} parent=47 // pred_check
          %p3996 = pneg %p340
        $region90: #{ffc_resnet_block.18} parent=47 // pred_check_branch
          %3998 = sbr.rel (%p3996) target = $region92
        $region91: #{ffc_resnet_block.18} parent=47 // pred_region
          %s3999 = smul.u32 %s45, 2
          %s4000 = sadd.s32 %s3999, %s46
          %s4002 = ssub.s32 32, 32
          %4003 = vsyncadd %s3941, %s4002
          %s4004 = smul.addr %s4000, 32
          %s4005 = scalar_lea.hbm %s10, %s4004
          %s4007 = sshll.u32 %s3944, 4
          %s4008 = int_to_ptr.vmem [resolvable:$true] %s4007
          %4010 = dma.vmem_to_hbm [thread:$0]  %s4008, 32, %s4005, %s3941
        $region92: #{ffc_resnet_block.18} parent=47 // pred_fallthru
          _
      $region48: #{ffc_resnet_block.18} parent=5 // pred_fallthru
        _
      %p4011 = scmp.le.s32.totalorder 2, %s36
      // Predicated region
      $region93: #{ffc_resnet_block.18} parent=5 // pred_check
        %p4012 = pneg %p4011
      $region94: #{ffc_resnet_block.18} parent=5 // pred_check_branch
        %4014 = sbr.rel (%p4012) target = $region96
      $region95: #{ffc_resnet_block.18} parent=5 // pred_region
        %s4015 = ssub.s32 %s36, 2
        // Predicated region
        $region97: #{ffc_resnet_block.18} parent=95 // pred_check
          %p4016 = pneg %p256
        $region98: #{ffc_resnet_block.18} parent=95 // pred_check_branch
          %4018 = sbr.rel (%p4016) target = $region100
        $region99: #{ffc_resnet_block.18} parent=95 // pred_region
          %s4019 = sand.u32 %s241, 1
          %s4020 = scalar_lea.sflag [#allocation4], %s4019
          %s4021 = sand.u32 %s241, 1
          %s4022 = smul.addr %s4021, 64
          %s4023 = scalar_lea.vmem [#allocation14], %s4022
          %4024 = dma.done %s4020, 1024
        $region100: #{ffc_resnet_block.18} parent=95 // pred_fallthru
          _
        // Predicated region
        $region101: #{ffc_resnet_block.18} parent=95 // pred_check
          %p4025 = pneg %p286
        $region102: #{ffc_resnet_block.18} parent=95 // pred_check_branch
          %4027 = sbr.rel (%p4025) target = $region104
        $region103: #{ffc_resnet_block.18} parent=95 // pred_region
          %s4028 = sand.u32 %s42, 1
          %s4029 = scalar_lea.sflag [#allocation16], %s4028
          %s4030 = sand.u32 %s271, 1
          %s4031 = smul.addr %s4030, 64
          %s4032 = scalar_lea.vmem [#allocation15], %s4031
          %4033 = dma.done %s4029, 1024
        $region104: #{ffc_resnet_block.18} parent=95 // pred_fallthru
          _
        // Predicated region
        $region105: #{ffc_resnet_block.18} parent=95 // pred_check
          %p4034 = pneg %p316
        $region106: #{ffc_resnet_block.18} parent=95 // pred_check_branch
          %4036 = sbr.rel (%p4034) target = $region108
        $region107: #{ffc_resnet_block.18} parent=95 // pred_region
          %s4037 = sand.u32 %s42, 1
          %s4038 = scalar_lea.sflag [#allocation16], %s4037
          %s4039 = sand.u32 %s301, 1
          %s4040 = smul.addr %s4039, 2
          %s4041 = scalar_lea.vmem [#allocation17], %s4040
          %4042 = dma.done %s4038, 32
        $region108: #{ffc_resnet_block.18} parent=95 // pred_fallthru
          _
        // Predicated region
        $region109: #{ffc_resnet_block.18} parent=95 // pred_check
          %p4043 = pneg %p346
        $region110: #{ffc_resnet_block.18} parent=95 // pred_check_branch
          %4045 = sbr.rel (%p4043) target = $region112
        $region111: #{ffc_resnet_block.18} parent=95 // pred_region
          %s4046 = sand.u32 %s331, 1
          %s4047 = scalar_lea.sflag [#allocation19], %s4046
          %s4048 = sand.u32 %s331, 1
          %s4049 = smul.addr %s4048, 2
          %s4050 = scalar_lea.vmem [#allocation18], %s4049
          %4051 = dma.done %s4047, 32
        $region112: #{ffc_resnet_block.18} parent=95 // pred_fallthru
          _
      $region96: #{ffc_resnet_block.18} parent=5 // pred_fallthru
        _
    $region6: #{ffc_resnet_block.18} parent=1 // loop_footer
      %s40 = sadd.s32 1, %s36
    $region7: #{ffc_resnet_block.18} parent=1 // loop_footer_branch
      %35 = sbr.rel target = $region3
    $region8: #{ffc_resnet_block.18} parent=1 // loop_exit
      _
    %4052 = vsyncpa [#allocation3], 1
    %s4053 = scalar_lea.sflag [#allocation3], 1
    %4054 = vsyncpa %s4053, 1
    %4055 = vsyncpa [#allocation6], 1
    %s4056 = scalar_lea.sflag [#allocation6], 1
    %4057 = vsyncpa %s4056, 1
    %4058 = vsyncpa [#allocation9], 1
    %s4059 = scalar_lea.sflag [#allocation9], 1
    %4060 = vsyncpa %s4059, 1
    %4061 = vsyncpa [#allocation12], 1
    %4062 = vsyncpa [#allocation4], 1
    %s4063 = scalar_lea.sflag [#allocation4], 1
    %4064 = vsyncpa %s4063, 1
    %4065 = vsyncpa [#allocation16], 1
    %s4066 = scalar_lea.sflag [#allocation16], 1
    %4067 = vsyncpa %s4066, 1
    %4068 = vsyncpa [#allocation19], 1
    %s4069 = scalar_lea.sflag [#allocation19], 1
    %4070 = vsyncpa %s4069, 1

</llo_original>
